<compile_context>
chip_gen: v7x
topology: tpu7x:2x2x1
jax: 0.10.0
libtpu: 0.0.40
codegen_flags: <defaults>
</compile_context>

<pallas_src>
import jax
import jax.numpy as jnp
from jax.experimental import pallas as pl
from jax.experimental.pallas import tpu as pltpu

H = 7
W = 7


def coord_attn_kernel(x_ref,              # (H, W, C, B)        batch on lanes
                      dww_ref,            # (2, 7, C, 1)        depthwise taps (BN folded)
                      dwb_ref,            # (2, C, 1)           depthwise BN shifts
                      w1_ref, b1_ref,     # (M, C), (M, 1)      conv1 (+ bn1 folded)
                      w23_ref, b23_ref,   # (2*OUT, 2*M), (2*OUT, 1)  block-diag conv2/conv3
                      o_ref,              # (H, W, OUT, B)
                      xhw_sc,             # (C, 14*B)  VMEM scratch: [x_h | x_w]
                      a_sc):              # (2, OUT, 7*B) VMEM scratch: a_h / a_w
    bb = x_ref.shape[-1]
    out_c = o_ref.shape[2]
    f32 = jnp.float32

    # ---- Linear_h: depthwise (1,7) valid conv + BN ---------------------------
    # xhw_sc[c, h*B + n] = sum_w x[h, w, c, n] * wh[c, w] + whb[c]
    # Two accumulators shorten the dependent VALU add chain; per-tap weight
    # loads ((C,1), lane-broadcast on use) keep the live vreg set small.
    for h in range(H):
        a0 = x_ref[h, 0].astype(f32) * dww_ref[0, 0]
        a1 = x_ref[h, 1].astype(f32) * dww_ref[0, 1]
        for t in range(2, W):
            term = x_ref[h, t].astype(f32) * dww_ref[0, t]
            if t % 2 == 0:
                a0 = a0 + term
            else:
                a1 = a1 + term
        xhw_sc[:, h * bb:(h + 1) * bb] = a0 + a1 + dwb_ref[0]

    # ---- Linear_w: depthwise (7,1) valid conv + BN ---------------------------
    for w in range(W):
        a0 = x_ref[0, w].astype(f32) * dww_ref[1, 0]
        a1 = x_ref[1, w].astype(f32) * dww_ref[1, 1]
        for t in range(2, H):
            term = x_ref[t, w].astype(f32) * dww_ref[1, t]
            if t % 2 == 0:
                a0 = a0 + term
            else:
                a1 = a1 + term
        xhw_sc[:, (H + w) * bb:(H + w + 1) * bb] = a0 + a1 + dwb_ref[1]

    # ---- conv1 (1x1) + bn1 (folded) + h_swish --------------------------------
    # The 1x1 conv + inference BN are position-independent, so one matmul over
    # the concatenated (C, 14B) slab is exactly cat -> conv1 -> bn1.
    y = jnp.dot(w1_ref[...], xhw_sc[...], preferred_element_type=f32) + b1_ref[...]
    y = y * (jnp.clip(y + 3.0, 0.0, 6.0) * (1.0 / 6.0))          # h_swish, (M, 14B)

    # ---- conv2 / conv3 (1x1) + sigmoid, fused block-diagonally ---------------
    # w23 = [[W2, 0], [0, W3]] so one (2OUT,2M)x(2M,B) matmul per spatial
    # position gives [a_h(:,p); a_w(:,p)].  Chunking per position keeps the
    # live result at (2*OUT, B) instead of (2*OUT, 7B).
    for p in range(H):
        zp = jnp.concatenate(
            [y[:, p * bb:(p + 1) * bb],
             y[:, (H + p) * bb:(H + p + 1) * bb]], axis=0)        # (2M, B)
        rp = jax.nn.sigmoid(
            jnp.dot(w23_ref[...], zp, preferred_element_type=f32) + b23_ref[...])
        a_sc[0, :, p * bb:(p + 1) * bb] = rp[:out_c]              # a_h[:, p]
        a_sc[1, :, p * bb:(p + 1) * bb] = rp[out_c:]              # a_w[:, p]

    # ---- out[h, w, o, n] = a_h[o, h, n] * a_w[o, w, n] ------------------------
    # Re-load (OUT, B) slices from VMEM per (h, w) — load slots have slack and
    # this bounds the live set to ~3 tiles (no regalloc spills at any OUT/bb).
    for h in range(H):
        ah_h = a_sc[0, :, h * bb:(h + 1) * bb]
        for w in range(W):
            o_ref[h, w] = (ah_h * a_sc[1, :, w * bb:(w + 1) * bb]).astype(o_ref.dtype)


def coordinate_attention(x, params, *, block_n=256):
    """x: (N, C, 7, 7) NCHW (f32 or bf16). Returns (N, OUT, 7, 7) in x.dtype."""
    N, C, h, w = x.shape
    assert h == H and w == W, "CoordinateAttention forward requires H == W == 7"
    assert block_n % 128 == 0 and block_n >= 128
    OUT = params["b23"].shape[0] // 2
    M = params["w1"].shape[0]
    assert params["w23"].shape == (2 * OUT, 2 * M)

    # Batch is the lane axis.  Pad N only up to a multiple of 128 (no pad pass
    # at all for typical batch sizes); cap the block at n_pad//2 so v7x keeps
    # >= 2 parallel grid steps, and force bb to divide n_pad exactly.
    n_pad = 128 * pl.cdiv(N, 128)
    half = max(128, ((n_pad // 2) // 128) * 128)
    bb = min(block_n, half)
    while n_pad % bb:
        bb -= 128
    grid = (n_pad // bb,)

    # One relayout pass (N,C,7,7) -> (7,7,C,N).
    # TODO(synk): accept a batch-last producer layout to drop this transpose
    # and the output transpose — the remaining extra HBM passes.
    x_t = jnp.transpose(x, (2, 3, 1, 0))
    if n_pad != N:
        x_t = jnp.pad(x_t, ((0, 0), (0, 0), (0, 0), (0, n_pad - N)))

    param_order = ["dw_w", "dw_b", "w1", "b1", "w23", "b23"]

    def const_spec(a):
        nd = a.ndim
        return pl.BlockSpec(a.shape, lambda i, _nd=nd: (0,) * _nd)

    in_specs = [pl.BlockSpec((H, W, C, bb), lambda i: (0, 0, 0, i))]
    in_specs += [const_spec(params[k]) for k in param_order]
    out_spec = pl.BlockSpec((H, W, OUT, bb), lambda i: (0, 0, 0, i))

    # VMEM budget: double-buffered in/out blocks + f32 scratch + ~2 MiB slack
    # for lane-padded params.  Only raise the scoped-VMEM limit when we exceed
    # v5e's 16 MiB default; cap at v7x's 64 MiB physical VMEM.
    isz = jnp.dtype(x.dtype).itemsize
    need = (2 * H * W * bb * (C + OUT) * isz            # in + out, double-buffered
            + (2 * H * C + 2 * H * OUT) * bb * 4        # xhw_sc + a_sc
            + (2 << 20))
    cp = dict(dimension_semantics=("parallel",))
    if need > (14 << 20):
        cp["vmem_limit_bytes"] = int(min(need + (4 << 20), 64 << 20))

    out_t = pl.pallas_call(
        coord_attn_kernel,
        out_shape=jax.ShapeDtypeStruct((H, W, OUT, n_pad), x.dtype),
        grid=grid,
        in_specs=in_specs,
        out_specs=out_spec,
        scratch_shapes=[pltpu.VMEM((C, 2 * H * bb), jnp.float32),
                        pltpu.VMEM((2, OUT, H * bb), jnp.float32)],
        compiler_params=pltpu.CompilerParams(**cp),
    )(x_t, *[params[k] for k in param_order])

    return jnp.transpose(out_t[:, :, :, :N], (3, 2, 0, 1))       # (N, OUT, H, W)


# ----------------------------- parameter setup ------------------------------

def bn_fold(gamma, beta, mean, var, eps=1e-5):
    scale = gamma / jnp.sqrt(var + eps)
    shift = beta - mean * scale
    return scale, shift


def make_params(key, inp, out, groups=32):
    midp = max(8, inp // groups)
    ks = jax.random.split(key, 20)
    nrm = lambda k, s, sc=0.2: sc * jax.random.normal(k, s, dtype=jnp.float32)
    uni = lambda k, s: jax.random.uniform(k, s, jnp.float32, 0.5, 1.5)

    # Linear_h: depthwise (1,7) conv (no bias) + BatchNorm2d(inp)
    wh_w = nrm(ks[0], (inp, W))                              # weight[c, 0, 0, w]
    wh_s, wh_b = bn_fold(uni(ks[1], (inp,)), nrm(ks[2], (inp,)),
                         nrm(ks[3], (inp,)), uni(ks[4], (inp,)))
    # Linear_w: depthwise (7,1) conv (no bias) + BatchNorm2d(inp)
    ww_w = nrm(ks[5], (inp, H))                              # weight[c, 0, h, 0]
    ww_s, ww_b = bn_fold(uni(ks[6], (inp,)), nrm(ks[7], (inp,)),
                         nrm(ks[8], (inp,)), uni(ks[9], (inp,)))
    # conv1 (1x1, inp->midp, bias=True) + BatchNorm2d(midp) folded
    w1 = nrm(ks[10], (midp, inp))
    b1 = nrm(ks[11], (midp,))
    s1, sh1 = bn_fold(uni(ks[12], (midp,)), nrm(ks[13], (midp,)),
                      nrm(ks[14], (midp,)), uni(ks[15], (midp,)))
    w1f = s1[:, None] * w1
    b1f = s1 * b1 + sh1
    # conv2 / conv3 (1x1, midp->out, bias=True)
    w2 = nrm(ks[16], (out, midp))
    b2 = nrm(ks[17], (out,))
    w3 = nrm(ks[18], (out, midp))
    b3 = nrm(ks[19], (out,))

    # Fold BN scales into the depthwise taps; pack conv2/conv3 block-diagonally.
    whp = (wh_w * wh_s[:, None]).T[:, :, None]               # (W, C, 1)
    wwp = (ww_w * ww_s[:, None]).T[:, :, None]               # (H, C, 1)
    w23bd = jnp.zeros((2 * out, 2 * midp), jnp.float32)
    w23bd = w23bd.at[:out, :midp].set(w2)
    w23bd = w23bd.at[out:, midp:].set(w3)
    return {
        "dw_w": jnp.stack([whp, wwp]),                       # (2, 7, C, 1)
        "dw_b": jnp.stack([wh_b[:, None], ww_b[:, None]]),   # (2, C, 1)
        "w1": w1f, "b1": b1f[:, None],                       # (M, C), (M, 1)
        "w23": w23bd,                                        # (2*OUT, 2*M) block-diag
        "b23": jnp.concatenate([b2, b3])[:, None],           # (2*OUT, 1)
    }


# --------------- pure-JAX reference (PyTorch cat/split order kept) ----------

def reference_forward(x, p):
    hp = dict(precision="highest")
    M = p["w1"].shape[0]
    OUT = p["b23"].shape[0] // 2
    whp = p["dw_w"][0, :, :, 0].T                            # (C, W)
    wwp = p["dw_w"][1, :, :, 0].T                            # (C, H)
    whb = p["dw_b"][0, :, 0]
    wwb = p["dw_b"][1, :, 0]
    xh = jnp.einsum("nchw,cw->nch", x, whp, **hp) + whb[None, :, None]
    xw = jnp.einsum("nchw,ch->ncw", x, wwp, **hp) + wwb[None, :, None]
    y = jnp.concatenate([xh, xw], axis=2)                    # (N, C, 14)
    y = jnp.einsum("mc,ncp->nmp", p["w1"], y, **hp) + p["b1"][:, 0][None, :, None]
    y = y * jnp.clip(y + 3.0, 0.0, 6.0) / 6.0                # h_swish
    yh, yw = y[:, :, :H], y[:, :, H:]
    w2 = p["w23"][:OUT, :M]
    w3 = p["w23"][OUT:, M:]
    b2 = p["b23"][:OUT, 0]
    b3 = p["b23"][OUT:, 0]
    ah = jax.nn.sigmoid(jnp.einsum("om,nmh->noh", w2, yh, **hp) + b2[None, :, None])
    aw = jax.nn.sigmoid(jnp.einsum("om,nmw->now", w3, yw, **hp) + b3[None, :, None])
    return ah[:, :, :, None] * aw[:, :, None, :]             # (N, OUT, 7, 7)


if __name__ == "__main__":
    N, INP, OUT_C, GROUPS = 2, 32, 32, 32          # midP = max(8, 32 // 32) = 8
    key = jax.random.PRNGKey(0)
    kx, kp = jax.random.split(key)
    x = jax.random.normal(kx, (N, INP, H, W), dtype=jnp.float32)
    params = make_params(kp, INP, OUT_C, GROUPS)

    out = jax.jit(coordinate_attention)(x, params)
    out = jax.block_until_ready(out)

    ref = jax.block_until_ready(reference_forward(x, params))
    assert out.shape == (N, OUT_C, H, W)
    # Tolerance allows for MXU f32 matmul rounding behavior across TPU gens.
    assert jnp.allclose(out, ref, rtol=5e-3, atol=5e-3), "mismatch vs reference"
    print("KERNEL_OK")
</pallas_src>

<mosaic_0001>
module attributes {stable_mosaic.version = 11 : i64} {
  func.func @coord_attn_kernel(%arg0: i32, %arg1: memref<7x7x32x128xf32, #tpu.memory_space<vmem>>, %arg2: memref<2x7x32x1xf32, #tpu.memory_space<vmem>>, %arg3: memref<2x32x1xf32, #tpu.memory_space<vmem>>, %arg4: memref<8x32xf32, #tpu.memory_space<vmem>>, %arg5: memref<8x1xf32, #tpu.memory_space<vmem>>, %arg6: memref<64x16xf32, #tpu.memory_space<vmem>>, %arg7: memref<64x1xf32, #tpu.memory_space<vmem>>, %arg8: memref<7x7x32x128xf32, #tpu.memory_space<vmem>>, %arg9: memref<32x1792xf32, #tpu.memory_space<vmem>>, %arg10: memref<2x32x896xf32, #tpu.memory_space<vmem>>) attributes {dimension_semantics = [#tpu.dimension_semantics<parallel>], iteration_bounds = array<i64: 1>, scalar_prefetch = 0 : i64, scratch_operands = 2 : i64, tpu.core_type = #tpu.core_type<tc>, window_params = [{transform_indices = @transform_0, window_bounds = array<i64: 7, 7, 32, 128>}, {pipeline_mode = #tpu.pipeline_mode<synchronous>, transform_indices = @transform_1, window_bounds = array<i64: 2, 7, 32, 1>}, {pipeline_mode = #tpu.pipeline_mode<synchronous>, transform_indices = @transform_2, window_bounds = array<i64: 2, 32, 1>}, {pipeline_mode = #tpu.pipeline_mode<synchronous>, transform_indices = @transform_3, window_bounds = array<i64: 8, 32>}, {pipeline_mode = #tpu.pipeline_mode<synchronous>, transform_indices = @transform_4, window_bounds = array<i64: 8, 1>}, {pipeline_mode = #tpu.pipeline_mode<synchronous>, transform_indices = @transform_5, window_bounds = array<i64: 64, 16>}, {pipeline_mode = #tpu.pipeline_mode<synchronous>, transform_indices = @transform_6, window_bounds = array<i64: 64, 1>}, {transform_indices = @transform_7, window_bounds = array<i64: 7, 7, 32, 128>}]} {
    %c0 = arith.constant 0 : index
    %c0_0 = arith.constant 0 : index
    %c0_1 = arith.constant 0 : index
    %c0_2 = arith.constant 0 : index
    %0 = vector.load %arg1[%c0, %c0_0, %c0_1, %c0_2] : memref<7x7x32x128xf32, #tpu.memory_space<vmem>>, vector<1x1x32x128xf32>
    %1 = vector.shape_cast %0 : vector<1x1x32x128xf32> to vector<32x128xf32>
    %c0_3 = arith.constant 0 : index
    %c0_4 = arith.constant 0 : index
    %c0_5 = arith.constant 0 : index
    %c0_6 = arith.constant 0 : index
    %2 = vector.load %arg2[%c0_3, %c0_4, %c0_5, %c0_6] : memref<2x7x32x1xf32, #tpu.memory_space<vmem>>, vector<1x1x32x1xf32>
    %3 = vector.shape_cast %2 : vector<1x1x32x1xf32> to vector<32x1xf32>
    %4 = vector.broadcast %3 : vector<32x1xf32> to vector<32x128xf32>
    %5 = arith.mulf %1, %4 : vector<32x128xf32>
    %c0_7 = arith.constant 0 : index
    %c1 = arith.constant 1 : index
    %c0_8 = arith.constant 0 : index
    %c0_9 = arith.constant 0 : index
    %6 = vector.load %arg1[%c0_7, %c1, %c0_8, %c0_9] : memref<7x7x32x128xf32, #tpu.memory_space<vmem>>, vector<1x1x32x128xf32>
    %7 = vector.shape_cast %6 : vector<1x1x32x128xf32> to vector<32x128xf32>
    %c0_10 = arith.constant 0 : index
    %c1_11 = arith.constant 1 : index
    %c0_12 = arith.constant 0 : index
    %c0_13 = arith.constant 0 : index
    %8 = vector.load %arg2[%c0_10, %c1_11, %c0_12, %c0_13] : memref<2x7x32x1xf32, #tpu.memory_space<vmem>>, vector<1x1x32x1xf32>
    %9 = vector.shape_cast %8 : vector<1x1x32x1xf32> to vector<32x1xf32>
    %10 = vector.broadcast %9 : vector<32x1xf32> to vector<32x128xf32>
    %11 = arith.mulf %7, %10 : vector<32x128xf32>
    %c0_14 = arith.constant 0 : index
    %c2 = arith.constant 2 : index
    %c0_15 = arith.constant 0 : index
    %c0_16 = arith.constant 0 : index
    %12 = vector.load %arg1[%c0_14, %c2, %c0_15, %c0_16] : memref<7x7x32x128xf32, #tpu.memory_space<vmem>>, vector<1x1x32x128xf32>
    %13 = vector.shape_cast %12 : vector<1x1x32x128xf32> to vector<32x128xf32>
    %c0_17 = arith.constant 0 : index
    %c2_18 = arith.constant 2 : index
    %c0_19 = arith.constant 0 : index
    %c0_20 = arith.constant 0 : index
    %14 = vector.load %arg2[%c0_17, %c2_18, %c0_19, %c0_20] : memref<2x7x32x1xf32, #tpu.memory_space<vmem>>, vector<1x1x32x1xf32>
    %15 = vector.shape_cast %14 : vector<1x1x32x1xf32> to vector<32x1xf32>
    %16 = vector.broadcast %15 : vector<32x1xf32> to vector<32x128xf32>
    %17 = arith.mulf %13, %16 : vector<32x128xf32>
    %18 = arith.addf %5, %17 : vector<32x128xf32>
    %c0_21 = arith.constant 0 : index
    %c3 = arith.constant 3 : index
    %c0_22 = arith.constant 0 : index
    %c0_23 = arith.constant 0 : index
    %19 = vector.load %arg1[%c0_21, %c3, %c0_22, %c0_23] : memref<7x7x32x128xf32, #tpu.memory_space<vmem>>, vector<1x1x32x128xf32>
    %20 = vector.shape_cast %19 : vector<1x1x32x128xf32> to vector<32x128xf32>
    %c0_24 = arith.constant 0 : index
    %c3_25 = arith.constant 3 : index
    %c0_26 = arith.constant 0 : index
    %c0_27 = arith.constant 0 : index
    %21 = vector.load %arg2[%c0_24, %c3_25, %c0_26, %c0_27] : memref<2x7x32x1xf32, #tpu.memory_space<vmem>>, vector<1x1x32x1xf32>
    %22 = vector.shape_cast %21 : vector<1x1x32x1xf32> to vector<32x1xf32>
    %23 = vector.broadcast %22 : vector<32x1xf32> to vector<32x128xf32>
    %24 = arith.mulf %20, %23 : vector<32x128xf32>
    %25 = arith.addf %11, %24 : vector<32x128xf32>
    %c0_28 = arith.constant 0 : index
    %c4 = arith.constant 4 : index
    %c0_29 = arith.constant 0 : index
    %c0_30 = arith.constant 0 : index
    %26 = vector.load %arg1[%c0_28, %c4, %c0_29, %c0_30] : memref<7x7x32x128xf32, #tpu.memory_space<vmem>>, vector<1x1x32x128xf32>
    %27 = vector.shape_cast %26 : vector<1x1x32x128xf32> to vector<32x128xf32>
    %c0_31 = arith.constant 0 : index
    %c4_32 = arith.constant 4 : index
    %c0_33 = arith.constant 0 : index
    %c0_34 = arith.constant 0 : index
    %28 = vector.load %arg2[%c0_31, %c4_32, %c0_33, %c0_34] : memref<2x7x32x1xf32, #tpu.memory_space<vmem>>, vector<1x1x32x1xf32>
    %29 = vector.shape_cast %28 : vector<1x1x32x1xf32> to vector<32x1xf32>
    %30 = vector.broadcast %29 : vector<32x1xf32> to vector<32x128xf32>
    %31 = arith.mulf %27, %30 : vector<32x128xf32>
    %32 = arith.addf %18, %31 : vector<32x128xf32>
    %c0_35 = arith.constant 0 : index
    %c5 = arith.constant 5 : index
    %c0_36 = arith.constant 0 : index
    %c0_37 = arith.constant 0 : index
    %33 = vector.load %arg1[%c0_35, %c5, %c0_36, %c0_37] : memref<7x7x32x128xf32, #tpu.memory_space<vmem>>, vector<1x1x32x128xf32>
    %34 = vector.shape_cast %33 : vector<1x1x32x128xf32> to vector<32x128xf32>
    %c0_38 = arith.constant 0 : index
    %c5_39 = arith.constant 5 : index
    %c0_40 = arith.constant 0 : index
    %c0_41 = arith.constant 0 : index
    %35 = vector.load %arg2[%c0_38, %c5_39, %c0_40, %c0_41] : memref<2x7x32x1xf32, #tpu.memory_space<vmem>>, vector<1x1x32x1xf32>
    %36 = vector.shape_cast %35 : vector<1x1x32x1xf32> to vector<32x1xf32>
    %37 = vector.broadcast %36 : vector<32x1xf32> to vector<32x128xf32>
    %38 = arith.mulf %34, %37 : vector<32x128xf32>
    %39 = arith.addf %25, %38 : vector<32x128xf32>
    %c0_42 = arith.constant 0 : index
    %c6 = arith.constant 6 : index
    %c0_43 = arith.constant 0 : index
    %c0_44 = arith.constant 0 : index
    %40 = vector.load %arg1[%c0_42, %c6, %c0_43, %c0_44] : memref<7x7x32x128xf32, #tpu.memory_space<vmem>>, vector<1x1x32x128xf32>
    %41 = vector.shape_cast %40 : vector<1x1x32x128xf32> to vector<32x128xf32>
    %c0_45 = arith.constant 0 : index
    %c6_46 = arith.constant 6 : index
    %c0_47 = arith.constant 0 : index
    %c0_48 = arith.constant 0 : index
    %42 = vector.load %arg2[%c0_45, %c6_46, %c0_47, %c0_48] : memref<2x7x32x1xf32, #tpu.memory_space<vmem>>, vector<1x1x32x1xf32>
    %43 = vector.shape_cast %42 : vector<1x1x32x1xf32> to vector<32x1xf32>
    %44 = vector.broadcast %43 : vector<32x1xf32> to vector<32x128xf32>
    %45 = arith.mulf %41, %44 : vector<32x128xf32>
    %46 = arith.addf %32, %45 : vector<32x128xf32>
    %47 = arith.addf %46, %39 : vector<32x128xf32>
    %c0_49 = arith.constant 0 : index
    %c0_50 = arith.constant 0 : index
    %c0_51 = arith.constant 0 : index
    %48 = vector.load %arg3[%c0_49, %c0_50, %c0_51] : memref<2x32x1xf32, #tpu.memory_space<vmem>>, vector<1x32x1xf32>
    %49 = vector.shape_cast %48 : vector<1x32x1xf32> to vector<32x1xf32>
    %50 = vector.broadcast %49 : vector<32x1xf32> to vector<32x128xf32>
    %51 = arith.addf %47, %50 : vector<32x128xf32>
    %c0_52 = arith.constant 0 : index
    %c0_53 = arith.constant 0 : index
    %52 = vector.load %arg9[%c0_52, %c0_53] : memref<32x1792xf32, #tpu.memory_space<vmem>>, vector<32x128xf32>
    tpu.vector_store %arg9[%c0_52, %c0_53], %51 {strides = array<i32>} : memref<32x1792xf32, #tpu.memory_space<vmem>>, vector<32x128xf32>,
    %c1_54 = arith.constant 1 : index
    %c0_55 = arith.constant 0 : index
    %c0_56 = arith.constant 0 : index
    %c0_57 = arith.constant 0 : index
    %53 = vector.load %arg1[%c1_54, %c0_55, %c0_56, %c0_57] : memref<7x7x32x128xf32, #tpu.memory_space<vmem>>, vector<1x1x32x128xf32>
    %54 = vector.shape_cast %53 : vector<1x1x32x128xf32> to vector<32x128xf32>
    %c0_58 = arith.constant 0 : index
    %c0_59 = arith.constant 0 : index
    %c0_60 = arith.constant 0 : index
    %c0_61 = arith.constant 0 : index
    %55 = vector.load %arg2[%c0_58, %c0_59, %c0_60, %c0_61] : memref<2x7x32x1xf32, #tpu.memory_space<vmem>>, vector<1x1x32x1xf32>
    %56 = vector.shape_cast %55 : vector<1x1x32x1xf32> to vector<32x1xf32>
    %57 = vector.broadcast %56 : vector<32x1xf32> to vector<32x128xf32>
    %58 = arith.mulf %54, %57 : vector<32x128xf32>
    %c1_62 = arith.constant 1 : index
    %c1_63 = arith.constant 1 : index
    %c0_64 = arith.constant 0 : index
    %c0_65 = arith.constant 0 : index
    %59 = vector.load %arg1[%c1_62, %c1_63, %c0_64, %c0_65] : memref<7x7x32x128xf32, #tpu.memory_space<vmem>>, vector<1x1x32x128xf32>
    %60 = vector.shape_cast %59 : vector<1x1x32x128xf32> to vector<32x128xf32>
    %c0_66 = arith.constant 0 : index
    %c1_67 = arith.constant 1 : index
    %c0_68 = arith.constant 0 : index
    %c0_69 = arith.constant 0 : index
    %61 = vector.load %arg2[%c0_66, %c1_67, %c0_68, %c0_69] : memref<2x7x32x1xf32, #tpu.memory_space<vmem>>, vector<1x1x32x1xf32>
    %62 = vector.shape_cast %61 : vector<1x1x32x1xf32> to vector<32x1xf32>
    %63 = vector.broadcast %62 : vector<32x1xf32> to vector<32x128xf32>
    %64 = arith.mulf %60, %63 : vector<32x128xf32>
    %c1_70 = arith.constant 1 : index
    %c2_71 = arith.constant 2 : index
    %c0_72 = arith.constant 0 : index
    %c0_73 = arith.constant 0 : index
    %65 = vector.load %arg1[%c1_70, %c2_71, %c0_72, %c0_73] : memref<7x7x32x128xf32, #tpu.memory_space<vmem>>, vector<1x1x32x128xf32>
    %66 = vector.shape_cast %65 : vector<1x1x32x128xf32> to vector<32x128xf32>
    %c0_74 = arith.constant 0 : index
    %c2_75 = arith.constant 2 : index
    %c0_76 = arith.constant 0 : index
    %c0_77 = arith.constant 0 : index
    %67 = vector.load %arg2[%c0_74, %c2_75, %c0_76, %c0_77] : memref<2x7x32x1xf32, #tpu.memory_space<vmem>>, vector<1x1x32x1xf32>
    %68 = vector.shape_cast %67 : vector<1x1x32x1xf32> to vector<32x1xf32>
    %69 = vector.broadcast %68 : vector<32x1xf32> to vector<32x128xf32>
    %70 = arith.mulf %66, %69 : vector<32x128xf32>
    %71 = arith.addf %58, %70 : vector<32x128xf32>
    %c1_78 = arith.constant 1 : index
    %c3_79 = arith.constant 3 : index
    %c0_80 = arith.constant 0 : index
    %c0_81 = arith.constant 0 : index
    %72 = vector.load %arg1[%c1_78, %c3_79, %c0_80, %c0_81] : memref<7x7x32x128xf32, #tpu.memory_space<vmem>>, vector<1x1x32x128xf32>
    %73 = vector.shape_cast %72 : vector<1x1x32x128xf32> to vector<32x128xf32>
    %c0_82 = arith.constant 0 : index
    %c3_83 = arith.constant 3 : index
    %c0_84 = arith.constant 0 : index
    %c0_85 = arith.constant 0 : index
    %74 = vector.load %arg2[%c0_82, %c3_83, %c0_84, %c0_85] : memref<2x7x32x1xf32, #tpu.memory_space<vmem>>, vector<1x1x32x1xf32>
    %75 = vector.shape_cast %74 : vector<1x1x32x1xf32> to vector<32x1xf32>
    %76 = vector.broadcast %75 : vector<32x1xf32> to vector<32x128xf32>
    %77 = arith.mulf %73, %76 : vector<32x128xf32>
    %78 = arith.addf %64, %77 : vector<32x128xf32>
    %c1_86 = arith.constant 1 : index
    %c4_87 = arith.constant 4 : index
    %c0_88 = arith.constant 0 : index
    %c0_89 = arith.constant 0 : index
    %79 = vector.load %arg1[%c1_86, %c4_87, %c0_88, %c0_89] : memref<7x7x32x128xf32, #tpu.memory_space<vmem>>, vector<1x1x32x128xf32>
    %80 = vector.shape_cast %79 : vector<1x1x32x128xf32> to vector<32x128xf32>
    %c0_90 = arith.constant 0 : index
    %c4_91 = arith.constant 4 : index
    %c0_92 = arith.constant 0 : index
    %c0_93 = arith.constant 0 : index
    %81 = vector.load %arg2[%c0_90, %c4_91, %c0_92, %c0_93] : memref<2x7x32x1xf32, #tpu.memory_space<vmem>>, vector<1x1x32x1xf32>
    %82 = vector.shape_cast %81 : vector<1x1x32x1xf32> to vector<32x1xf32>
    %83 = vector.broadcast %82 : vector<32x1xf32> to vector<32x128xf32>
    %84 = arith.mulf %80, %83 : vector<32x128xf32>
    %85 = arith.addf %71, %84 : vector<32x128xf32>
    %c1_94 = arith.constant 1 : index
    %c5_95 = arith.constant 5 : index
    %c0_96 = arith.constant 0 : index
    %c0_97 = arith.constant 0 : index
    %86 = vector.load %arg1[%c1_94, %c5_95, %c0_96, %c0_97] : memref<7x7x32x128xf32, #tpu.memory_space<vmem>>, vector<1x1x32x128xf32>
    %87 = vector.shape_cast %86 : vector<1x1x32x128xf32> to vector<32x128xf32>
    %c0_98 = arith.constant 0 : index
    %c5_99 = arith.constant 5 : index
    %c0_100 = arith.constant 0 : index
    %c0_101 = arith.constant 0 : index
    %88 = vector.load %arg2[%c0_98, %c5_99, %c0_100, %c0_101] : memref<2x7x32x1xf32, #tpu.memory_space<vmem>>, vector<1x1x32x1xf32>
    %89 = vector.shape_cast %88 : vector<1x1x32x1xf32> to vector<32x1xf32>
    %90 = vector.broadcast %89 : vector<32x1xf32> to vector<32x128xf32>
    %91 = arith.mulf %87, %90 : vector<32x128xf32>
    %92 = arith.addf %78, %91 : vector<32x128xf32>
    %c1_102 = arith.constant 1 : index
    %c6_103 = arith.constant 6 : index
    %c0_104 = arith.constant 0 : index
    %c0_105 = arith.constant 0 : index
    %93 = vector.load %arg1[%c1_102, %c6_103, %c0_104, %c0_105] : memref<7x7x32x128xf32, #tpu.memory_space<vmem>>, vector<1x1x32x128xf32>
    %94 = vector.shape_cast %93 : vector<1x1x32x128xf32> to vector<32x128xf32>
    %c0_106 = arith.constant 0 : index
    %c6_107 = arith.constant 6 : index
    %c0_108 = arith.constant 0 : index
    %c0_109 = arith.constant 0 : index
    %95 = vector.load %arg2[%c0_106, %c6_107, %c0_108, %c0_109] : memref<2x7x32x1xf32, #tpu.memory_space<vmem>>, vector<1x1x32x1xf32>
    %96 = vector.shape_cast %95 : vector<1x1x32x1xf32> to vector<32x1xf32>
    %97 = vector.broadcast %96 : vector<32x1xf32> to vector<32x128xf32>
    %98 = arith.mulf %94, %97 : vector<32x128xf32>
    %99 = arith.addf %85, %98 : vector<32x128xf32>
    %100 = arith.addf %99, %92 : vector<32x128xf32>
    %c0_110 = arith.constant 0 : index
    %c0_111 = arith.constant 0 : index
    %c0_112 = arith.constant 0 : index
    %101 = vector.load %arg3[%c0_110, %c0_111, %c0_112] : memref<2x32x1xf32, #tpu.memory_space<vmem>>, vector<1x32x1xf32>
    %102 = vector.shape_cast %101 : vector<1x32x1xf32> to vector<32x1xf32>
    %103 = vector.broadcast %102 : vector<32x1xf32> to vector<32x128xf32>
    %104 = arith.addf %100, %103 : vector<32x128xf32>
    %c0_113 = arith.constant 0 : index
    %c128 = arith.constant 128 : index
    %105 = vector.load %arg9[%c0_113, %c128] : memref<32x1792xf32, #tpu.memory_space<vmem>>, vector<32x128xf32>
    tpu.vector_store %arg9[%c0_113, %c128], %104 {strides = array<i32>} : memref<32x1792xf32, #tpu.memory_space<vmem>>, vector<32x128xf32>,
    %c2_114 = arith.constant 2 : index
    %c0_115 = arith.constant 0 : index
    %c0_116 = arith.constant 0 : index
    %c0_117 = arith.constant 0 : index
    %106 = vector.load %arg1[%c2_114, %c0_115, %c0_116, %c0_117] : memref<7x7x32x128xf32, #tpu.memory_space<vmem>>, vector<1x1x32x128xf32>
    %107 = vector.shape_cast %106 : vector<1x1x32x128xf32> to vector<32x128xf32>
    %c0_118 = arith.constant 0 : index
    %c0_119 = arith.constant 0 : index
    %c0_120 = arith.constant 0 : index
    %c0_121 = arith.constant 0 : index
    %108 = vector.load %arg2[%c0_118, %c0_119, %c0_120, %c0_121] : memref<2x7x32x1xf32, #tpu.memory_space<vmem>>, vector<1x1x32x1xf32>
    %109 = vector.shape_cast %108 : vector<1x1x32x1xf32> to vector<32x1xf32>
    %110 = vector.broadcast %109 : vector<32x1xf32> to vector<32x128xf32>
    %111 = arith.mulf %107, %110 : vector<32x128xf32>
    %c2_122 = arith.constant 2 : index
    %c1_123 = arith.constant 1 : index
    %c0_124 = arith.constant 0 : index
    %c0_125 = arith.constant 0 : index
    %112 = vector.load %arg1[%c2_122, %c1_123, %c0_124, %c0_125] : memref<7x7x32x128xf32, #tpu.memory_space<vmem>>, vector<1x1x32x128xf32>
    %113 = vector.shape_cast %112 : vector<1x1x32x128xf32> to vector<32x128xf32>
    %c0_126 = arith.constant 0 : index
    %c1_127 = arith.constant 1 : index
    %c0_128 = arith.constant 0 : index
    %c0_129 = arith.constant 0 : index
    %114 = vector.load %arg2[%c0_126, %c1_127, %c0_128, %c0_129] : memref<2x7x32x1xf32, #tpu.memory_space<vmem>>, vector<1x1x32x1xf32>
    %115 = vector.shape_cast %114 : vector<1x1x32x1xf32> to vector<32x1xf32>
    %116 = vector.broadcast %115 : vector<32x1xf32> to vector<32x128xf32>
    %117 = arith.mulf %113, %116 : vector<32x128xf32>
    %c2_130 = arith.constant 2 : index
    %c2_131 = arith.constant 2 : index
    %c0_132 = arith.constant 0 : index
    %c0_133 = arith.constant 0 : index
    %118 = vector.load %arg1[%c2_130, %c2_131, %c0_132, %c0_133] : memref<7x7x32x128xf32, #tpu.memory_space<vmem>>, vector<1x1x32x128xf32>
    %119 = vector.shape_cast %118 : vector<1x1x32x128xf32> to vector<32x128xf32>
    %c0_134 = arith.constant 0 : index
    %c2_135 = arith.constant 2 : index
    %c0_136 = arith.constant 0 : index
    %c0_137 = arith.constant 0 : index
    %120 = vector.load %arg2[%c0_134, %c2_135, %c0_136, %c0_137] : memref<2x7x32x1xf32, #tpu.memory_space<vmem>>, vector<1x1x32x1xf32>
    %121 = vector.shape_cast %120 : vector<1x1x32x1xf32> to vector<32x1xf32>
    %122 = vector.broadcast %121 : vector<32x1xf32> to vector<32x128xf32>
    %123 = arith.mulf %119, %122 : vector<32x128xf32>
    %124 = arith.addf %111, %123 : vector<32x128xf32>
    %c2_138 = arith.constant 2 : index
    %c3_139 = arith.constant 3 : index
    %c0_140 = arith.constant 0 : index
    %c0_141 = arith.constant 0 : index
    %125 = vector.load %arg1[%c2_138, %c3_139, %c0_140, %c0_141] : memref<7x7x32x128xf32, #tpu.memory_space<vmem>>, vector<1x1x32x128xf32>
    %126 = vector.shape_cast %125 : vector<1x1x32x128xf32> to vector<32x128xf32>
    %c0_142 = arith.constant 0 : index
    %c3_143 = arith.constant 3 : index
    %c0_144 = arith.constant 0 : index
    %c0_145 = arith.constant 0 : index
    %127 = vector.load %arg2[%c0_142, %c3_143, %c0_144, %c0_145] : memref<2x7x32x1xf32, #tpu.memory_space<vmem>>, vector<1x1x32x1xf32>
    %128 = vector.shape_cast %127 : vector<1x1x32x1xf32> to vector<32x1xf32>
    %129 = vector.broadcast %128 : vector<32x1xf32> to vector<32x128xf32>
    %130 = arith.mulf %126, %129 : vector<32x128xf32>
    %131 = arith.addf %117, %130 : vector<32x128xf32>
    %c2_146 = arith.constant 2 : index
    %c4_147 = arith.constant 4 : index
    %c0_148 = arith.constant 0 : index
    %c0_149 = arith.constant 0 : index
    %132 = vector.load %arg1[%c2_146, %c4_147, %c0_148, %c0_149] : memref<7x7x32x128xf32, #tpu.memory_space<vmem>>, vector<1x1x32x128xf32>
    %133 = vector.shape_cast %132 : vector<1x1x32x128xf32> to vector<32x128xf32>
    %c0_150 = arith.constant 0 : index
    %c4_151 = arith.constant 4 : index
    %c0_152 = arith.constant 0 : index
    %c0_153 = arith.constant 0 : index
    %134 = vector.load %arg2[%c0_150, %c4_151, %c0_152, %c0_153] : memref<2x7x32x1xf32, #tpu.memory_space<vmem>>, vector<1x1x32x1xf32>
    %135 = vector.shape_cast %134 : vector<1x1x32x1xf32> to vector<32x1xf32>
    %136 = vector.broadcast %135 : vector<32x1xf32> to vector<32x128xf32>
    %137 = arith.mulf %133, %136 : vector<32x128xf32>
    %138 = arith.addf %124, %137 : vector<32x128xf32>
    %c2_154 = arith.constant 2 : index
    %c5_155 = arith.constant 5 : index
    %c0_156 = arith.constant 0 : index
    %c0_157 = arith.constant 0 : index
    %139 = vector.load %arg1[%c2_154, %c5_155, %c0_156, %c0_157] : memref<7x7x32x128xf32, #tpu.memory_space<vmem>>, vector<1x1x32x128xf32>
    %140 = vector.shape_cast %139 : vector<1x1x32x128xf32> to vector<32x128xf32>
    %c0_158 = arith.constant 0 : index
    %c5_159 = arith.constant 5 : index
    %c0_160 = arith.constant 0 : index
    %c0_161 = arith.constant 0 : index
    %141 = vector.load %arg2[%c0_158, %c5_159, %c0_160, %c0_161] : memref<2x7x32x1xf32, #tpu.memory_space<vmem>>, vector<1x1x32x1xf32>
    %142 = vector.shape_cast %141 : vector<1x1x32x1xf32> to vector<32x1xf32>
    %143 = vector.broadcast %142 : vector<32x1xf32> to vector<32x128xf32>
    %144 = arith.mulf %140, %143 : vector<32x128xf32>
    %145 = arith.addf %131, %144 : vector<32x128xf32>
    %c2_162 = arith.constant 2 : index
    %c6_163 = arith.constant 6 : index
    %c0_164 = arith.constant 0 : index
    %c0_165 = arith.constant 0 : index
    %146 = vector.load %arg1[%c2_162, %c6_163, %c0_164, %c0_165] : memref<7x7x32x128xf32, #tpu.memory_space<vmem>>, vector<1x1x32x128xf32>
    %147 = vector.shape_cast %146 : vector<1x1x32x128xf32> to vector<32x128xf32>
    %c0_166 = arith.constant 0 : index
    %c6_167 = arith.constant 6 : index
    %c0_168 = arith.constant 0 : index
    %c0_169 = arith.constant 0 : index
    %148 = vector.load %arg2[%c0_166, %c6_167, %c0_168, %c0_169] : memref<2x7x32x1xf32, #tpu.memory_space<vmem>>, vector<1x1x32x1xf32>
    %149 = vector.shape_cast %148 : vector<1x1x32x1xf32> to vector<32x1xf32>
    %150 = vector.broadcast %149 : vector<32x1xf32> to vector<32x128xf32>
    %151 = arith.mulf %147, %150 : vector<32x128xf32>
    %152 = arith.addf %138, %151 : vector<32x128xf32>
    %153 = arith.addf %152, %145 : vector<32x128xf32>
    %c0_170 = arith.constant 0 : index
    %c0_171 = arith.constant 0 : index
    %c0_172 = arith.constant 0 : index
    %154 = vector.load %arg3[%c0_170, %c0_171, %c0_172] : memref<2x32x1xf32, #tpu.memory_space<vmem>>, vector<1x32x1xf32>
    %155 = vector.shape_cast %154 : vector<1x32x1xf32> to vector<32x1xf32>
    %156 = vector.broadcast %155 : vector<32x1xf32> to vector<32x128xf32>
    %157 = arith.addf %153, %156 : vector<32x128xf32>
    %c0_173 = arith.constant 0 : index
    %c256 = arith.constant 256 : index
    %158 = vector.load %arg9[%c0_173, %c256] : memref<32x1792xf32, #tpu.memory_space<vmem>>, vector<32x128xf32>
    tpu.vector_store %arg9[%c0_173, %c256], %157 {strides = array<i32>} : memref<32x1792xf32, #tpu.memory_space<vmem>>, vector<32x128xf32>,
    %c3_174 = arith.constant 3 : index
    %c0_175 = arith.constant 0 : index
    %c0_176 = arith.constant 0 : index
    %c0_177 = arith.constant 0 : index
    %159 = vector.load %arg1[%c3_174, %c0_175, %c0_176, %c0_177] : memref<7x7x32x128xf32, #tpu.memory_space<vmem>>, vector<1x1x32x128xf32>
    %160 = vector.shape_cast %159 : vector<1x1x32x128xf32> to vector<32x128xf32>
    %c0_178 = arith.constant 0 : index
    %c0_179 = arith.constant 0 : index
    %c0_180 = arith.constant 0 : index
    %c0_181 = arith.constant 0 : index
    %161 = vector.load %arg2[%c0_178, %c0_179, %c0_180, %c0_181] : memref<2x7x32x1xf32, #tpu.memory_space<vmem>>, vector<1x1x32x1xf32>
    %162 = vector.shape_cast %161 : vector<1x1x32x1xf32> to vector<32x1xf32>
    %163 = vector.broadcast %162 : vector<32x1xf32> to vector<32x128xf32>
    %164 = arith.mulf %160, %163 : vector<32x128xf32>
    %c3_182 = arith.constant 3 : index
    %c1_183 = arith.constant 1 : index
    %c0_184 = arith.constant 0 : index
    %c0_185 = arith.constant 0 : index
    %165 = vector.load %arg1[%c3_182, %c1_183, %c0_184, %c0_185] : memref<7x7x32x128xf32, #tpu.memory_space<vmem>>, vector<1x1x32x128xf32>
    %166 = vector.shape_cast %165 : vector<1x1x32x128xf32> to vector<32x128xf32>
    %c0_186 = arith.constant 0 : index
    %c1_187 = arith.constant 1 : index
    %c0_188 = arith.constant 0 : index
    %c0_189 = arith.constant 0 : index
    %167 = vector.load %arg2[%c0_186, %c1_187, %c0_188, %c0_189] : memref<2x7x32x1xf32, #tpu.memory_space<vmem>>, vector<1x1x32x1xf32>
    %168 = vector.shape_cast %167 : vector<1x1x32x1xf32> to vector<32x1xf32>
    %169 = vector.broadcast %168 : vector<32x1xf32> to vector<32x128xf32>
    %170 = arith.mulf %166, %169 : vector<32x128xf32>
    %c3_190 = arith.constant 3 : index
    %c2_191 = arith.constant 2 : index
    %c0_192 = arith.constant 0 : index
    %c0_193 = arith.constant 0 : index
    %171 = vector.load %arg1[%c3_190, %c2_191, %c0_192, %c0_193] : memref<7x7x32x128xf32, #tpu.memory_space<vmem>>, vector<1x1x32x128xf32>
    %172 = vector.shape_cast %171 : vector<1x1x32x128xf32> to vector<32x128xf32>
    %c0_194 = arith.constant 0 : index
    %c2_195 = arith.constant 2 : index
    %c0_196 = arith.constant 0 : index
    %c0_197 = arith.constant 0 : index
    %173 = vector.load %arg2[%c0_194, %c2_195, %c0_196, %c0_197] : memref<2x7x32x1xf32, #tpu.memory_space<vmem>>, vector<1x1x32x1xf32>
    %174 = vector.shape_cast %173 : vector<1x1x32x1xf32> to vector<32x1xf32>
    %175 = vector.broadcast %174 : vector<32x1xf32> to vector<32x128xf32>
    %176 = arith.mulf %172, %175 : vector<32x128xf32>
    %177 = arith.addf %164, %176 : vector<32x128xf32>
    %c3_198 = arith.constant 3 : index
    %c3_199 = arith.constant 3 : index
    %c0_200 = arith.constant 0 : index
    %c0_201 = arith.constant 0 : index
    %178 = vector.load %arg1[%c3_198, %c3_199, %c0_200, %c0_201] : memref<7x7x32x128xf32, #tpu.memory_space<vmem>>, vector<1x1x32x128xf32>
    %179 = vector.shape_cast %178 : vector<1x1x32x128xf32> to vector<32x128xf32>
    %c0_202 = arith.constant 0 : index
    %c3_203 = arith.constant 3 : index
    %c0_204 = arith.constant 0 : index
    %c0_205 = arith.constant 0 : index
    %180 = vector.load %arg2[%c0_202, %c3_203, %c0_204, %c0_205] : memref<2x7x32x1xf32, #tpu.memory_space<vmem>>, vector<1x1x32x1xf32>
    %181 = vector.shape_cast %180 : vector<1x1x32x1xf32> to vector<32x1xf32>
    %182 = vector.broadcast %181 : vector<32x1xf32> to vector<32x128xf32>
    %183 = arith.mulf %179, %182 : vector<32x128xf32>
    %184 = arith.addf %170, %183 : vector<32x128xf32>
    %c3_206 = arith.constant 3 : index
    %c4_207 = arith.constant 4 : index
    %c0_208 = arith.constant 0 : index
    %c0_209 = arith.constant 0 : index
    %185 = vector.load %arg1[%c3_206, %c4_207, %c0_208, %c0_209] : memref<7x7x32x128xf32, #tpu.memory_space<vmem>>, vector<1x1x32x128xf32>
    %186 = vector.shape_cast %185 : vector<1x1x32x128xf32> to vector<32x128xf32>
    %c0_210 = arith.constant 0 : index
    %c4_211 = arith.constant 4 : index
    %c0_212 = arith.constant 0 : index
    %c0_213 = arith.constant 0 : index
    %187 = vector.load %arg2[%c0_210, %c4_211, %c0_212, %c0_213] : memref<2x7x32x1xf32, #tpu.memory_space<vmem>>, vector<1x1x32x1xf32>
    %188 = vector.shape_cast %187 : vector<1x1x32x1xf32> to vector<32x1xf32>
    %189 = vector.broadcast %188 : vector<32x1xf32> to vector<32x128xf32>
    %190 = arith.mulf %186, %189 : vector<32x128xf32>
    %191 = arith.addf %177, %190 : vector<32x128xf32>
    %c3_214 = arith.constant 3 : index
    %c5_215 = arith.constant 5 : index
    %c0_216 = arith.constant 0 : index
    %c0_217 = arith.constant 0 : index
    %192 = vector.load %arg1[%c3_214, %c5_215, %c0_216, %c0_217] : memref<7x7x32x128xf32, #tpu.memory_space<vmem>>, vector<1x1x32x128xf32>
    %193 = vector.shape_cast %192 : vector<1x1x32x128xf32> to vector<32x128xf32>
    %c0_218 = arith.constant 0 : index
    %c5_219 = arith.constant 5 : index
    %c0_220 = arith.constant 0 : index
    %c0_221 = arith.constant 0 : index
    %194 = vector.load %arg2[%c0_218, %c5_219, %c0_220, %c0_221] : memref<2x7x32x1xf32, #tpu.memory_space<vmem>>, vector<1x1x32x1xf32>
    %195 = vector.shape_cast %194 : vector<1x1x32x1xf32> to vector<32x1xf32>
    %196 = vector.broadcast %195 : vector<32x1xf32> to vector<32x128xf32>
    %197 = arith.mulf %193, %196 : vector<32x128xf32>
    %198 = arith.addf %184, %197 : vector<32x128xf32>
    %c3_222 = arith.constant 3 : index
    %c6_223 = arith.constant 6 : index
    %c0_224 = arith.constant 0 : index
    %c0_225 = arith.constant 0 : index
    %199 = vector.load %arg1[%c3_222, %c6_223, %c0_224, %c0_225] : memref<7x7x32x128xf32, #tpu.memory_space<vmem>>, vector<1x1x32x128xf32>
    %200 = vector.shape_cast %199 : vector<1x1x32x128xf32> to vector<32x128xf32>
    %c0_226 = arith.constant 0 : index
    %c6_227 = arith.constant 6 : index
    %c0_228 = arith.constant 0 : index
    %c0_229 = arith.constant 0 : index
    %201 = vector.load %arg2[%c0_226, %c6_227, %c0_228, %c0_229] : memref<2x7x32x1xf32, #tpu.memory_space<vmem>>, vector<1x1x32x1xf32>
    %202 = vector.shape_cast %201 : vector<1x1x32x1xf32> to vector<32x1xf32>
    %203 = vector.broadcast %202 : vector<32x1xf32> to vector<32x128xf32>
    %204 = arith.mulf %200, %203 : vector<32x128xf32>
    %205 = arith.addf %191, %204 : vector<32x128xf32>
    %206 = arith.addf %205, %198 : vector<32x128xf32>
    %c0_230 = arith.constant 0 : index
    %c0_231 = arith.constant 0 : index
    %c0_232 = arith.constant 0 : index
    %207 = vector.load %arg3[%c0_230, %c0_231, %c0_232] : memref<2x32x1xf32, #tpu.memory_space<vmem>>, vector<1x32x1xf32>
    %208 = vector.shape_cast %207 : vector<1x32x1xf32> to vector<32x1xf32>
    %209 = vector.broadcast %208 : vector<32x1xf32> to vector<32x128xf32>
    %210 = arith.addf %206, %209 : vector<32x128xf32>
    %c0_233 = arith.constant 0 : index
    %c384 = arith.constant 384 : index
    %211 = vector.load %arg9[%c0_233, %c384] : memref<32x1792xf32, #tpu.memory_space<vmem>>, vector<32x128xf32>
    tpu.vector_store %arg9[%c0_233, %c384], %210 {strides = array<i32>} : memref<32x1792xf32, #tpu.memory_space<vmem>>, vector<32x128xf32>,
    %c4_234 = arith.constant 4 : index
    %c0_235 = arith.constant 0 : index
    %c0_236 = arith.constant 0 : index
    %c0_237 = arith.constant 0 : index
    %212 = vector.load %arg1[%c4_234, %c0_235, %c0_236, %c0_237] : memref<7x7x32x128xf32, #tpu.memory_space<vmem>>, vector<1x1x32x128xf32>
    %213 = vector.shape_cast %212 : vector<1x1x32x128xf32> to vector<32x128xf32>
    %c0_238 = arith.constant 0 : index
    %c0_239 = arith.constant 0 : index
    %c0_240 = arith.constant 0 : index
    %c0_241 = arith.constant 0 : index
    %214 = vector.load %arg2[%c0_238, %c0_239, %c0_240, %c0_241] : memref<2x7x32x1xf32, #tpu.memory_space<vmem>>, vector<1x1x32x1xf32>
    %215 = vector.shape_cast %214 : vector<1x1x32x1xf32> to vector<32x1xf32>
    %216 = vector.broadcast %215 : vector<32x1xf32> to vector<32x128xf32>
    %217 = arith.mulf %213, %216 : vector<32x128xf32>
    %c4_242 = arith.constant 4 : index
    %c1_243 = arith.constant 1 : index
    %c0_244 = arith.constant 0 : index
    %c0_245 = arith.constant 0 : index
    %218 = vector.load %arg1[%c4_242, %c1_243, %c0_244, %c0_245] : memref<7x7x32x128xf32, #tpu.memory_space<vmem>>, vector<1x1x32x128xf32>
    %219 = vector.shape_cast %218 : vector<1x1x32x128xf32> to vector<32x128xf32>
    %c0_246 = arith.constant 0 : index
    %c1_247 = arith.constant 1 : index
    %c0_248 = arith.constant 0 : index
    %c0_249 = arith.constant 0 : index
    %220 = vector.load %arg2[%c0_246, %c1_247, %c0_248, %c0_249] : memref<2x7x32x1xf32, #tpu.memory_space<vmem>>, vector<1x1x32x1xf32>
    %221 = vector.shape_cast %220 : vector<1x1x32x1xf32> to vector<32x1xf32>
    %222 = vector.broadcast %221 : vector<32x1xf32> to vector<32x128xf32>
    %223 = arith.mulf %219, %222 : vector<32x128xf32>
    %c4_250 = arith.constant 4 : index
    %c2_251 = arith.constant 2 : index
    %c0_252 = arith.constant 0 : index
    %c0_253 = arith.constant 0 : index
    %224 = vector.load %arg1[%c4_250, %c2_251, %c0_252, %c0_253] : memref<7x7x32x128xf32, #tpu.memory_space<vmem>>, vector<1x1x32x128xf32>
    %225 = vector.shape_cast %224 : vector<1x1x32x128xf32> to vector<32x128xf32>
    %c0_254 = arith.constant 0 : index
    %c2_255 = arith.constant 2 : index
    %c0_256 = arith.constant 0 : index
    %c0_257 = arith.constant 0 : index
    %226 = vector.load %arg2[%c0_254, %c2_255, %c0_256, %c0_257] : memref<2x7x32x1xf32, #tpu.memory_space<vmem>>, vector<1x1x32x1xf32>
    %227 = vector.shape_cast %226 : vector<1x1x32x1xf32> to vector<32x1xf32>
    %228 = vector.broadcast %227 : vector<32x1xf32> to vector<32x128xf32>
    %229 = arith.mulf %225, %228 : vector<32x128xf32>
    %230 = arith.addf %217, %229 : vector<32x128xf32>
    %c4_258 = arith.constant 4 : index
    %c3_259 = arith.constant 3 : index
    %c0_260 = arith.constant 0 : index
    %c0_261 = arith.constant 0 : index
    %231 = vector.load %arg1[%c4_258, %c3_259, %c0_260, %c0_261] : memref<7x7x32x128xf32, #tpu.memory_space<vmem>>, vector<1x1x32x128xf32>
    %232 = vector.shape_cast %231 : vector<1x1x32x128xf32> to vector<32x128xf32>
    %c0_262 = arith.constant 0 : index
    %c3_263 = arith.constant 3 : index
    %c0_264 = arith.constant 0 : index
    %c0_265 = arith.constant 0 : index
    %233 = vector.load %arg2[%c0_262, %c3_263, %c0_264, %c0_265] : memref<2x7x32x1xf32, #tpu.memory_space<vmem>>, vector<1x1x32x1xf32>
    %234 = vector.shape_cast %233 : vector<1x1x32x1xf32> to vector<32x1xf32>
    %235 = vector.broadcast %234 : vector<32x1xf32> to vector<32x128xf32>
    %236 = arith.mulf %232, %235 : vector<32x128xf32>
    %237 = arith.addf %223, %236 : vector<32x128xf32>
    %c4_266 = arith.constant 4 : index
    %c4_267 = arith.constant 4 : index
    %c0_268 = arith.constant 0 : index
    %c0_269 = arith.constant 0 : index
    %238 = vector.load %arg1[%c4_266, %c4_267, %c0_268, %c0_269] : memref<7x7x32x128xf32, #tpu.memory_space<vmem>>, vector<1x1x32x128xf32>
    %239 = vector.shape_cast %238 : vector<1x1x32x128xf32> to vector<32x128xf32>
    %c0_270 = arith.constant 0 : index
    %c4_271 = arith.constant 4 : index
    %c0_272 = arith.constant 0 : index
    %c0_273 = arith.constant 0 : index
    %240 = vector.load %arg2[%c0_270, %c4_271, %c0_272, %c0_273] : memref<2x7x32x1xf32, #tpu.memory_space<vmem>>, vector<1x1x32x1xf32>
    %241 = vector.shape_cast %240 : vector<1x1x32x1xf32> to vector<32x1xf32>
    %242 = vector.broadcast %241 : vector<32x1xf32> to vector<32x128xf32>
    %243 = arith.mulf %239, %242 : vector<32x128xf32>
    %244 = arith.addf %230, %243 : vector<32x128xf32>
    %c4_274 = arith.constant 4 : index
    %c5_275 = arith.constant 5 : index
    %c0_276 = arith.constant 0 : index
    %c0_277 = arith.constant 0 : index
    %245 = vector.load %arg1[%c4_274, %c5_275, %c0_276, %c0_277] : memref<7x7x32x128xf32, #tpu.memory_space<vmem>>, vector<1x1x32x128xf32>
    %246 = vector.shape_cast %245 : vector<1x1x32x128xf32> to vector<32x128xf32>
    %c0_278 = arith.constant 0 : index
    %c5_279 = arith.constant 5 : index
    %c0_280 = arith.constant 0 : index
    %c0_281 = arith.constant 0 : index
    %247 = vector.load %arg2[%c0_278, %c5_279, %c0_280, %c0_281] : memref<2x7x32x1xf32, #tpu.memory_space<vmem>>, vector<1x1x32x1xf32>
    %248 = vector.shape_cast %247 : vector<1x1x32x1xf32> to vector<32x1xf32>
    %249 = vector.broadcast %248 : vector<32x1xf32> to vector<32x128xf32>
    %250 = arith.mulf %246, %249 : vector<32x128xf32>
    %251 = arith.addf %237, %250 : vector<32x128xf32>
    %c4_282 = arith.constant 4 : index
    %c6_283 = arith.constant 6 : index
    %c0_284 = arith.constant 0 : index
    %c0_285 = arith.constant 0 : index
    %252 = vector.load %arg1[%c4_282, %c6_283, %c0_284, %c0_285] : memref<7x7x32x128xf32, #tpu.memory_space<vmem>>, vector<1x1x32x128xf32>
    %253 = vector.shape_cast %252 : vector<1x1x32x128xf32> to vector<32x128xf32>
    %c0_286 = arith.constant 0 : index
    %c6_287 = arith.constant 6 : index
    %c0_288 = arith.constant 0 : index
    %c0_289 = arith.constant 0 : index
    %254 = vector.load %arg2[%c0_286, %c6_287, %c0_288, %c0_289] : memref<2x7x32x1xf32, #tpu.memory_space<vmem>>, vector<1x1x32x1xf32>
    %255 = vector.shape_cast %254 : vector<1x1x32x1xf32> to vector<32x1xf32>
    %256 = vector.broadcast %255 : vector<32x1xf32> to vector<32x128xf32>
    %257 = arith.mulf %253, %256 : vector<32x128xf32>
    %258 = arith.addf %244, %257 : vector<32x128xf32>
    %259 = arith.addf %258, %251 : vector<32x128xf32>
    %c0_290 = arith.constant 0 : index
    %c0_291 = arith.constant 0 : index
    %c0_292 = arith.constant 0 : index
    %260 = vector.load %arg3[%c0_290, %c0_291, %c0_292] : memref<2x32x1xf32, #tpu.memory_space<vmem>>, vector<1x32x1xf32>
    %261 = vector.shape_cast %260 : vector<1x32x1xf32> to vector<32x1xf32>
    %262 = vector.broadcast %261 : vector<32x1xf32> to vector<32x128xf32>
    %263 = arith.addf %259, %262 : vector<32x128xf32>
    %c0_293 = arith.constant 0 : index
    %c512 = arith.constant 512 : index
    %264 = vector.load %arg9[%c0_293, %c512] : memref<32x1792xf32, #tpu.memory_space<vmem>>, vector<32x128xf32>
    tpu.vector_store %arg9[%c0_293, %c512], %263 {strides = array<i32>} : memref<32x1792xf32, #tpu.memory_space<vmem>>, vector<32x128xf32>,
    %c5_294 = arith.constant 5 : index
    %c0_295 = arith.constant 0 : index
    %c0_296 = arith.constant 0 : index
    %c0_297 = arith.constant 0 : index
    %265 = vector.load %arg1[%c5_294, %c0_295, %c0_296, %c0_297] : memref<7x7x32x128xf32, #tpu.memory_space<vmem>>, vector<1x1x32x128xf32>
    %266 = vector.shape_cast %265 : vector<1x1x32x128xf32> to vector<32x128xf32>
    %c0_298 = arith.constant 0 : index
    %c0_299 = arith.constant 0 : index
    %c0_300 = arith.constant 0 : index
    %c0_301 = arith.constant 0 : index
    %267 = vector.load %arg2[%c0_298, %c0_299, %c0_300, %c0_301] : memref<2x7x32x1xf32, #tpu.memory_space<vmem>>, vector<1x1x32x1xf32>
    %268 = vector.shape_cast %267 : vector<1x1x32x1xf32> to vector<32x1xf32>
    %269 = vector.broadcast %268 : vector<32x1xf32> to vector<32x128xf32>
    %270 = arith.mulf %266, %269 : vector<32x128xf32>
    %c5_302 = arith.constant 5 : index
    %c1_303 = arith.constant 1 : index
    %c0_304 = arith.constant 0 : index
    %c0_305 = arith.constant 0 : index
    %271 = vector.load %arg1[%c5_302, %c1_303, %c0_304, %c0_305] : memref<7x7x32x128xf32, #tpu.memory_space<vmem>>, vector<1x1x32x128xf32>
    %272 = vector.shape_cast %271 : vector<1x1x32x128xf32> to vector<32x128xf32>
    %c0_306 = arith.constant 0 : index
    %c1_307 = arith.constant 1 : index
    %c0_308 = arith.constant 0 : index
    %c0_309 = arith.constant 0 : index
    %273 = vector.load %arg2[%c0_306, %c1_307, %c0_308, %c0_309] : memref<2x7x32x1xf32, #tpu.memory_space<vmem>>, vector<1x1x32x1xf32>
    %274 = vector.shape_cast %273 : vector<1x1x32x1xf32> to vector<32x1xf32>
    %275 = vector.broadcast %274 : vector<32x1xf32> to vector<32x128xf32>
    %276 = arith.mulf %272, %275 : vector<32x128xf32>
    %c5_310 = arith.constant 5 : index
    %c2_311 = arith.constant 2 : index
    %c0_312 = arith.constant 0 : index
    %c0_313 = arith.constant 0 : index
    %277 = vector.load %arg1[%c5_310, %c2_311, %c0_312, %c0_313] : memref<7x7x32x128xf32, #tpu.memory_space<vmem>>, vector<1x1x32x128xf32>
    %278 = vector.shape_cast %277 : vector<1x1x32x128xf32> to vector<32x128xf32>
    %c0_314 = arith.constant 0 : index
    %c2_315 = arith.constant 2 : index
    %c0_316 = arith.constant 0 : index
    %c0_317 = arith.constant 0 : index
    %279 = vector.load %arg2[%c0_314, %c2_315, %c0_316, %c0_317] : memref<2x7x32x1xf32, #tpu.memory_space<vmem>>, vector<1x1x32x1xf32>
    %280 = vector.shape_cast %279 : vector<1x1x32x1xf32> to vector<32x1xf32>
    %281 = vector.broadcast %280 : vector<32x1xf32> to vector<32x128xf32>
    %282 = arith.mulf %278, %281 : vector<32x128xf32>
    %283 = arith.addf %270, %282 : vector<32x128xf32>
    %c5_318 = arith.constant 5 : index
    %c3_319 = arith.constant 3 : index
    %c0_320 = arith.constant 0 : index
    %c0_321 = arith.constant 0 : index
    %284 = vector.load %arg1[%c5_318, %c3_319, %c0_320, %c0_321] : memref<7x7x32x128xf32, #tpu.memory_space<vmem>>, vector<1x1x32x128xf32>
    %285 = vector.shape_cast %284 : vector<1x1x32x128xf32> to vector<32x128xf32>
    %c0_322 = arith.constant 0 : index
    %c3_323 = arith.constant 3 : index
    %c0_324 = arith.constant 0 : index
    %c0_325 = arith.constant 0 : index
    %286 = vector.load %arg2[%c0_322, %c3_323, %c0_324, %c0_325] : memref<2x7x32x1xf32, #tpu.memory_space<vmem>>, vector<1x1x32x1xf32>
    %287 = vector.shape_cast %286 : vector<1x1x32x1xf32> to vector<32x1xf32>
    %288 = vector.broadcast %287 : vector<32x1xf32> to vector<32x128xf32>
    %289 = arith.mulf %285, %288 : vector<32x128xf32>
    %290 = arith.addf %276, %289 : vector<32x128xf32>
    %c5_326 = arith.constant 5 : index
    %c4_327 = arith.constant 4 : index
    %c0_328 = arith.constant 0 : index
    %c0_329 = arith.constant 0 : index
    %291 = vector.load %arg1[%c5_326, %c4_327, %c0_328, %c0_329] : memref<7x7x32x128xf32, #tpu.memory_space<vmem>>, vector<1x1x32x128xf32>
    %292 = vector.shape_cast %291 : vector<1x1x32x128xf32> to vector<32x128xf32>
    %c0_330 = arith.constant 0 : index
    %c4_331 = arith.constant 4 : index
    %c0_332 = arith.constant 0 : index
    %c0_333 = arith.constant 0 : index
    %293 = vector.load %arg2[%c0_330, %c4_331, %c0_332, %c0_333] : memref<2x7x32x1xf32, #tpu.memory_space<vmem>>, vector<1x1x32x1xf32>
    %294 = vector.shape_cast %293 : vector<1x1x32x1xf32> to vector<32x1xf32>
    %295 = vector.broadcast %294 : vector<32x1xf32> to vector<32x128xf32>
    %296 = arith.mulf %292, %295 : vector<32x128xf32>
    %297 = arith.addf %283, %296 : vector<32x128xf32>
    %c5_334 = arith.constant 5 : index
    %c5_335 = arith.constant 5 : index
    %c0_336 = arith.constant 0 : index
    %c0_337 = arith.constant 0 : index
    %298 = vector.load %arg1[%c5_334, %c5_335, %c0_336, %c0_337] : memref<7x7x32x128xf32, #tpu.memory_space<vmem>>, vector<1x1x32x128xf32>
    %299 = vector.shape_cast %298 : vector<1x1x32x128xf32> to vector<32x128xf32>
    %c0_338 = arith.constant 0 : index
    %c5_339 = arith.constant 5 : index
    %c0_340 = arith.constant 0 : index
    %c0_341 = arith.constant 0 : index
    %300 = vector.load %arg2[%c0_338, %c5_339, %c0_340, %c0_341] : memref<2x7x32x1xf32, #tpu.memory_space<vmem>>, vector<1x1x32x1xf32>
    %301 = vector.shape_cast %300 : vector<1x1x32x1xf32> to vector<32x1xf32>
    %302 = vector.broadcast %301 : vector<32x1xf32> to vector<32x128xf32>
    %303 = arith.mulf %299, %302 : vector<32x128xf32>
    %304 = arith.addf %290, %303 : vector<32x128xf32>
    %c5_342 = arith.constant 5 : index
    %c6_343 = arith.constant 6 : index
    %c0_344 = arith.constant 0 : index
    %c0_345 = arith.constant 0 : index
    %305 = vector.load %arg1[%c5_342, %c6_343, %c0_344, %c0_345] : memref<7x7x32x128xf32, #tpu.memory_space<vmem>>, vector<1x1x32x128xf32>
    %306 = vector.shape_cast %305 : vector<1x1x32x128xf32> to vector<32x128xf32>
    %c0_346 = arith.constant 0 : index
    %c6_347 = arith.constant 6 : index
    %c0_348 = arith.constant 0 : index
    %c0_349 = arith.constant 0 : index
    %307 = vector.load %arg2[%c0_346, %c6_347, %c0_348, %c0_349] : memref<2x7x32x1xf32, #tpu.memory_space<vmem>>, vector<1x1x32x1xf32>
    %308 = vector.shape_cast %307 : vector<1x1x32x1xf32> to vector<32x1xf32>
    %309 = vector.broadcast %308 : vector<32x1xf32> to vector<32x128xf32>
    %310 = arith.mulf %306, %309 : vector<32x128xf32>
    %311 = arith.addf %297, %310 : vector<32x128xf32>
    %312 = arith.addf %311, %304 : vector<32x128xf32>
    %c0_350 = arith.constant 0 : index
    %c0_351 = arith.constant 0 : index
    %c0_352 = arith.constant 0 : index
    %313 = vector.load %arg3[%c0_350, %c0_351, %c0_352] : memref<2x32x1xf32, #tpu.memory_space<vmem>>, vector<1x32x1xf32>
    %314 = vector.shape_cast %313 : vector<1x32x1xf32> to vector<32x1xf32>
    %315 = vector.broadcast %314 : vector<32x1xf32> to vector<32x128xf32>
    %316 = arith.addf %312, %315 : vector<32x128xf32>
    %c0_353 = arith.constant 0 : index
    %c640 = arith.constant 640 : index
    %317 = vector.load %arg9[%c0_353, %c640] : memref<32x1792xf32, #tpu.memory_space<vmem>>, vector<32x128xf32>
    tpu.vector_store %arg9[%c0_353, %c640], %316 {strides = array<i32>} : memref<32x1792xf32, #tpu.memory_space<vmem>>, vector<32x128xf32>,
    %c6_354 = arith.constant 6 : index
    %c0_355 = arith.constant 0 : index
    %c0_356 = arith.constant 0 : index
    %c0_357 = arith.constant 0 : index
    %318 = vector.load %arg1[%c6_354, %c0_355, %c0_356, %c0_357] : memref<7x7x32x128xf32, #tpu.memory_space<vmem>>, vector<1x1x32x128xf32>
    %319 = vector.shape_cast %318 : vector<1x1x32x128xf32> to vector<32x128xf32>
    %c0_358 = arith.constant 0 : index
    %c0_359 = arith.constant 0 : index
    %c0_360 = arith.constant 0 : index
    %c0_361 = arith.constant 0 : index
    %320 = vector.load %arg2[%c0_358, %c0_359, %c0_360, %c0_361] : memref<2x7x32x1xf32, #tpu.memory_space<vmem>>, vector<1x1x32x1xf32>
    %321 = vector.shape_cast %320 : vector<1x1x32x1xf32> to vector<32x1xf32>
    %322 = vector.broadcast %321 : vector<32x1xf32> to vector<32x128xf32>
    %323 = arith.mulf %319, %322 : vector<32x128xf32>
    %c6_362 = arith.constant 6 : index
    %c1_363 = arith.constant 1 : index
    %c0_364 = arith.constant 0 : index
    %c0_365 = arith.constant 0 : index
    %324 = vector.load %arg1[%c6_362, %c1_363, %c0_364, %c0_365] : memref<7x7x32x128xf32, #tpu.memory_space<vmem>>, vector<1x1x32x128xf32>
    %325 = vector.shape_cast %324 : vector<1x1x32x128xf32> to vector<32x128xf32>
    %c0_366 = arith.constant 0 : index
    %c1_367 = arith.constant 1 : index
    %c0_368 = arith.constant 0 : index
    %c0_369 = arith.constant 0 : index
    %326 = vector.load %arg2[%c0_366, %c1_367, %c0_368, %c0_369] : memref<2x7x32x1xf32, #tpu.memory_space<vmem>>, vector<1x1x32x1xf32>
    %327 = vector.shape_cast %326 : vector<1x1x32x1xf32> to vector<32x1xf32>
    %328 = vector.broadcast %327 : vector<32x1xf32> to vector<32x128xf32>
    %329 = arith.mulf %325, %328 : vector<32x128xf32>
    %c6_370 = arith.constant 6 : index
    %c2_371 = arith.constant 2 : index
    %c0_372 = arith.constant 0 : index
    %c0_373 = arith.constant 0 : index
    %330 = vector.load %arg1[%c6_370, %c2_371, %c0_372, %c0_373] : memref<7x7x32x128xf32, #tpu.memory_space<vmem>>, vector<1x1x32x128xf32>
    %331 = vector.shape_cast %330 : vector<1x1x32x128xf32> to vector<32x128xf32>
    %c0_374 = arith.constant 0 : index
    %c2_375 = arith.constant 2 : index
    %c0_376 = arith.constant 0 : index
    %c0_377 = arith.constant 0 : index
    %332 = vector.load %arg2[%c0_374, %c2_375, %c0_376, %c0_377] : memref<2x7x32x1xf32, #tpu.memory_space<vmem>>, vector<1x1x32x1xf32>
    %333 = vector.shape_cast %332 : vector<1x1x32x1xf32> to vector<32x1xf32>
    %334 = vector.broadcast %333 : vector<32x1xf32> to vector<32x128xf32>
    %335 = arith.mulf %331, %334 : vector<32x128xf32>
    %336 = arith.addf %323, %335 : vector<32x128xf32>
    %c6_378 = arith.constant 6 : index
    %c3_379 = arith.constant 3 : index
    %c0_380 = arith.constant 0 : index
    %c0_381 = arith.constant 0 : index
    %337 = vector.load %arg1[%c6_378, %c3_379, %c0_380, %c0_381] : memref<7x7x32x128xf32, #tpu.memory_space<vmem>>, vector<1x1x32x128xf32>
    %338 = vector.shape_cast %337 : vector<1x1x32x128xf32> to vector<32x128xf32>
    %c0_382 = arith.constant 0 : index
    %c3_383 = arith.constant 3 : index
    %c0_384 = arith.constant 0 : index
    %c0_385 = arith.constant 0 : index
    %339 = vector.load %arg2[%c0_382, %c3_383, %c0_384, %c0_385] : memref<2x7x32x1xf32, #tpu.memory_space<vmem>>, vector<1x1x32x1xf32>
    %340 = vector.shape_cast %339 : vector<1x1x32x1xf32> to vector<32x1xf32>
    %341 = vector.broadcast %340 : vector<32x1xf32> to vector<32x128xf32>
    %342 = arith.mulf %338, %341 : vector<32x128xf32>
    %343 = arith.addf %329, %342 : vector<32x128xf32>
    %c6_386 = arith.constant 6 : index
    %c4_387 = arith.constant 4 : index
    %c0_388 = arith.constant 0 : index
    %c0_389 = arith.constant 0 : index
    %344 = vector.load %arg1[%c6_386, %c4_387, %c0_388, %c0_389] : memref<7x7x32x128xf32, #tpu.memory_space<vmem>>, vector<1x1x32x128xf32>
    %345 = vector.shape_cast %344 : vector<1x1x32x128xf32> to vector<32x128xf32>
    %c0_390 = arith.constant 0 : index
    %c4_391 = arith.constant 4 : index
    %c0_392 = arith.constant 0 : index
    %c0_393 = arith.constant 0 : index
    %346 = vector.load %arg2[%c0_390, %c4_391, %c0_392, %c0_393] : memref<2x7x32x1xf32, #tpu.memory_space<vmem>>, vector<1x1x32x1xf32>
    %347 = vector.shape_cast %346 : vector<1x1x32x1xf32> to vector<32x1xf32>
    %348 = vector.broadcast %347 : vector<32x1xf32> to vector<32x128xf32>
    %349 = arith.mulf %345, %348 : vector<32x128xf32>
    %350 = arith.addf %336, %349 : vector<32x128xf32>
    %c6_394 = arith.constant 6 : index
    %c5_395 = arith.constant 5 : index
    %c0_396 = arith.constant 0 : index
    %c0_397 = arith.constant 0 : index
    %351 = vector.load %arg1[%c6_394, %c5_395, %c0_396, %c0_397] : memref<7x7x32x128xf32, #tpu.memory_space<vmem>>, vector<1x1x32x128xf32>
    %352 = vector.shape_cast %351 : vector<1x1x32x128xf32> to vector<32x128xf32>
    %c0_398 = arith.constant 0 : index
    %c5_399 = arith.constant 5 : index
    %c0_400 = arith.constant 0 : index
    %c0_401 = arith.constant 0 : index
    %353 = vector.load %arg2[%c0_398, %c5_399, %c0_400, %c0_401] : memref<2x7x32x1xf32, #tpu.memory_space<vmem>>, vector<1x1x32x1xf32>
    %354 = vector.shape_cast %353 : vector<1x1x32x1xf32> to vector<32x1xf32>
    %355 = vector.broadcast %354 : vector<32x1xf32> to vector<32x128xf32>
    %356 = arith.mulf %352, %355 : vector<32x128xf32>
    %357 = arith.addf %343, %356 : vector<32x128xf32>
    %c6_402 = arith.constant 6 : index
    %c6_403 = arith.constant 6 : index
    %c0_404 = arith.constant 0 : index
    %c0_405 = arith.constant 0 : index
    %358 = vector.load %arg1[%c6_402, %c6_403, %c0_404, %c0_405] : memref<7x7x32x128xf32, #tpu.memory_space<vmem>>, vector<1x1x32x128xf32>
    %359 = vector.shape_cast %358 : vector<1x1x32x128xf32> to vector<32x128xf32>
    %c0_406 = arith.constant 0 : index
    %c6_407 = arith.constant 6 : index
    %c0_408 = arith.constant 0 : index
    %c0_409 = arith.constant 0 : index
    %360 = vector.load %arg2[%c0_406, %c6_407, %c0_408, %c0_409] : memref<2x7x32x1xf32, #tpu.memory_space<vmem>>, vector<1x1x32x1xf32>
    %361 = vector.shape_cast %360 : vector<1x1x32x1xf32> to vector<32x1xf32>
    %362 = vector.broadcast %361 : vector<32x1xf32> to vector<32x128xf32>
    %363 = arith.mulf %359, %362 : vector<32x128xf32>
    %364 = arith.addf %350, %363 : vector<32x128xf32>
    %365 = arith.addf %364, %357 : vector<32x128xf32>
    %c0_410 = arith.constant 0 : index
    %c0_411 = arith.constant 0 : index
    %c0_412 = arith.constant 0 : index
    %366 = vector.load %arg3[%c0_410, %c0_411, %c0_412] : memref<2x32x1xf32, #tpu.memory_space<vmem>>, vector<1x32x1xf32>
    %367 = vector.shape_cast %366 : vector<1x32x1xf32> to vector<32x1xf32>
    %368 = vector.broadcast %367 : vector<32x1xf32> to vector<32x128xf32>
    %369 = arith.addf %365, %368 : vector<32x128xf32>
    %c0_413 = arith.constant 0 : index
    %c768 = arith.constant 768 : index
    %370 = vector.load %arg9[%c0_413, %c768] : memref<32x1792xf32, #tpu.memory_space<vmem>>, vector<32x128xf32>
    tpu.vector_store %arg9[%c0_413, %c768], %369 {strides = array<i32>} : memref<32x1792xf32, #tpu.memory_space<vmem>>, vector<32x128xf32>,
    %c0_414 = arith.constant 0 : index
    %c0_415 = arith.constant 0 : index
    %c0_416 = arith.constant 0 : index
    %c0_417 = arith.constant 0 : index
    %371 = vector.load %arg1[%c0_414, %c0_415, %c0_416, %c0_417] : memref<7x7x32x128xf32, #tpu.memory_space<vmem>>, vector<1x1x32x128xf32>
    %372 = vector.shape_cast %371 : vector<1x1x32x128xf32> to vector<32x128xf32>
    %c1_418 = arith.constant 1 : index
    %c0_419 = arith.constant 0 : index
    %c0_420 = arith.constant 0 : index
    %c0_421 = arith.constant 0 : index
    %373 = vector.load %arg2[%c1_418, %c0_419, %c0_420, %c0_421] : memref<2x7x32x1xf32, #tpu.memory_space<vmem>>, vector<1x1x32x1xf32>
    %374 = vector.shape_cast %373 : vector<1x1x32x1xf32> to vector<32x1xf32>
    %375 = vector.broadcast %374 : vector<32x1xf32> to vector<32x128xf32>
    %376 = arith.mulf %372, %375 : vector<32x128xf32>
    %c1_422 = arith.constant 1 : index
    %c0_423 = arith.constant 0 : index
    %c0_424 = arith.constant 0 : index
    %c0_425 = arith.constant 0 : index
    %377 = vector.load %arg1[%c1_422, %c0_423, %c0_424, %c0_425] : memref<7x7x32x128xf32, #tpu.memory_space<vmem>>, vector<1x1x32x128xf32>
    %378 = vector.shape_cast %377 : vector<1x1x32x128xf32> to vector<32x128xf32>
    %c1_426 = arith.constant 1 : index
    %c1_427 = arith.constant 1 : index
    %c0_428 = arith.constant 0 : index
    %c0_429 = arith.constant 0 : index
    %379 = vector.load %arg2[%c1_426, %c1_427, %c0_428, %c0_429] : memref<2x7x32x1xf32, #tpu.memory_space<vmem>>, vector<1x1x32x1xf32>
    %380 = vector.shape_cast %379 : vector<1x1x32x1xf32> to vector<32x1xf32>
    %381 = vector.broadcast %380 : vector<32x1xf32> to vector<32x128xf32>
    %382 = arith.mulf %378, %381 : vector<32x128xf32>
    %c2_430 = arith.constant 2 : index
    %c0_431 = arith.constant 0 : index
    %c0_432 = arith.constant 0 : index
    %c0_433 = arith.constant 0 : index
    %383 = vector.load %arg1[%c2_430, %c0_431, %c0_432, %c0_433] : memref<7x7x32x128xf32, #tpu.memory_space<vmem>>, vector<1x1x32x128xf32>
    %384 = vector.shape_cast %383 : vector<1x1x32x128xf32> to vector<32x128xf32>
    %c1_434 = arith.constant 1 : index
    %c2_435 = arith.constant 2 : index
    %c0_436 = arith.constant 0 : index
    %c0_437 = arith.constant 0 : index
    %385 = vector.load %arg2[%c1_434, %c2_435, %c0_436, %c0_437] : memref<2x7x32x1xf32, #tpu.memory_space<vmem>>, vector<1x1x32x1xf32>
    %386 = vector.shape_cast %385 : vector<1x1x32x1xf32> to vector<32x1xf32>
    %387 = vector.broadcast %386 : vector<32x1xf32> to vector<32x128xf32>
    %388 = arith.mulf %384, %387 : vector<32x128xf32>
    %389 = arith.addf %376, %388 : vector<32x128xf32>
    %c3_438 = arith.constant 3 : index
    %c0_439 = arith.constant 0 : index
    %c0_440 = arith.constant 0 : index
    %c0_441 = arith.constant 0 : index
    %390 = vector.load %arg1[%c3_438, %c0_439, %c0_440, %c0_441] : memref<7x7x32x128xf32, #tpu.memory_space<vmem>>, vector<1x1x32x128xf32>
    %391 = vector.shape_cast %390 : vector<1x1x32x128xf32> to vector<32x128xf32>
    %c1_442 = arith.constant 1 : index
    %c3_443 = arith.constant 3 : index
    %c0_444 = arith.constant 0 : index
    %c0_445 = arith.constant 0 : index
    %392 = vector.load %arg2[%c1_442, %c3_443, %c0_444, %c0_445] : memref<2x7x32x1xf32, #tpu.memory_space<vmem>>, vector<1x1x32x1xf32>
    %393 = vector.shape_cast %392 : vector<1x1x32x1xf32> to vector<32x1xf32>
    %394 = vector.broadcast %393 : vector<32x1xf32> to vector<32x128xf32>
    %395 = arith.mulf %391, %394 : vector<32x128xf32>
    %396 = arith.addf %382, %395 : vector<32x128xf32>
    %c4_446 = arith.constant 4 : index
    %c0_447 = arith.constant 0 : index
    %c0_448 = arith.constant 0 : index
    %c0_449 = arith.constant 0 : index
    %397 = vector.load %arg1[%c4_446, %c0_447, %c0_448, %c0_449] : memref<7x7x32x128xf32, #tpu.memory_space<vmem>>, vector<1x1x32x128xf32>
    %398 = vector.shape_cast %397 : vector<1x1x32x128xf32> to vector<32x128xf32>
    %c1_450 = arith.constant 1 : index
    %c4_451 = arith.constant 4 : index
    %c0_452 = arith.constant 0 : index
    %c0_453 = arith.constant 0 : index
    %399 = vector.load %arg2[%c1_450, %c4_451, %c0_452, %c0_453] : memref<2x7x32x1xf32, #tpu.memory_space<vmem>>, vector<1x1x32x1xf32>
    %400 = vector.shape_cast %399 : vector<1x1x32x1xf32> to vector<32x1xf32>
    %401 = vector.broadcast %400 : vector<32x1xf32> to vector<32x128xf32>
    %402 = arith.mulf %398, %401 : vector<32x128xf32>
    %403 = arith.addf %389, %402 : vector<32x128xf32>
    %c5_454 = arith.constant 5 : index
    %c0_455 = arith.constant 0 : index
    %c0_456 = arith.constant 0 : index
    %c0_457 = arith.constant 0 : index
    %404 = vector.load %arg1[%c5_454, %c0_455, %c0_456, %c0_457] : memref<7x7x32x128xf32, #tpu.memory_space<vmem>>, vector<1x1x32x128xf32>
    %405 = vector.shape_cast %404 : vector<1x1x32x128xf32> to vector<32x128xf32>
    %c1_458 = arith.constant 1 : index
    %c5_459 = arith.constant 5 : index
    %c0_460 = arith.constant 0 : index
    %c0_461 = arith.constant 0 : index
    %406 = vector.load %arg2[%c1_458, %c5_459, %c0_460, %c0_461] : memref<2x7x32x1xf32, #tpu.memory_space<vmem>>, vector<1x1x32x1xf32>
    %407 = vector.shape_cast %406 : vector<1x1x32x1xf32> to vector<32x1xf32>
    %408 = vector.broadcast %407 : vector<32x1xf32> to vector<32x128xf32>
    %409 = arith.mulf %405, %408 : vector<32x128xf32>
    %410 = arith.addf %396, %409 : vector<32x128xf32>
    %c6_462 = arith.constant 6 : index
    %c0_463 = arith.constant 0 : index
    %c0_464 = arith.constant 0 : index
    %c0_465 = arith.constant 0 : index
    %411 = vector.load %arg1[%c6_462, %c0_463, %c0_464, %c0_465] : memref<7x7x32x128xf32, #tpu.memory_space<vmem>>, vector<1x1x32x128xf32>
    %412 = vector.shape_cast %411 : vector<1x1x32x128xf32> to vector<32x128xf32>
    %c1_466 = arith.constant 1 : index
    %c6_467 = arith.constant 6 : index
    %c0_468 = arith.constant 0 : index
    %c0_469 = arith.constant 0 : index
    %413 = vector.load %arg2[%c1_466, %c6_467, %c0_468, %c0_469] : memref<2x7x32x1xf32, #tpu.memory_space<vmem>>, vector<1x1x32x1xf32>
    %414 = vector.shape_cast %413 : vector<1x1x32x1xf32> to vector<32x1xf32>
    %415 = vector.broadcast %414 : vector<32x1xf32> to vector<32x128xf32>
    %416 = arith.mulf %412, %415 : vector<32x128xf32>
    %417 = arith.addf %403, %416 : vector<32x128xf32>
    %418 = arith.addf %417, %410 : vector<32x128xf32>
    %c1_470 = arith.constant 1 : index
    %c0_471 = arith.constant 0 : index
    %c0_472 = arith.constant 0 : index
    %419 = vector.load %arg3[%c1_470, %c0_471, %c0_472] : memref<2x32x1xf32, #tpu.memory_space<vmem>>, vector<1x32x1xf32>
    %420 = vector.shape_cast %419 : vector<1x32x1xf32> to vector<32x1xf32>
    %421 = vector.broadcast %420 : vector<32x1xf32> to vector<32x128xf32>
    %422 = arith.addf %418, %421 : vector<32x128xf32>
    %c0_473 = arith.constant 0 : index
    %c896 = arith.constant 896 : index
    %423 = vector.load %arg9[%c0_473, %c896] : memref<32x1792xf32, #tpu.memory_space<vmem>>, vector<32x128xf32>
    tpu.vector_store %arg9[%c0_473, %c896], %422 {strides = array<i32>} : memref<32x1792xf32, #tpu.memory_space<vmem>>, vector<32x128xf32>,
    %c0_474 = arith.constant 0 : index
    %c1_475 = arith.constant 1 : index
    %c0_476 = arith.constant 0 : index
    %c0_477 = arith.constant 0 : index
    %424 = vector.load %arg1[%c0_474, %c1_475, %c0_476, %c0_477] : memref<7x7x32x128xf32, #tpu.memory_space<vmem>>, vector<1x1x32x128xf32>
    %425 = vector.shape_cast %424 : vector<1x1x32x128xf32> to vector<32x128xf32>
    %c1_478 = arith.constant 1 : index
    %c0_479 = arith.constant 0 : index
    %c0_480 = arith.constant 0 : index
    %c0_481 = arith.constant 0 : index
    %426 = vector.load %arg2[%c1_478, %c0_479, %c0_480, %c0_481] : memref<2x7x32x1xf32, #tpu.memory_space<vmem>>, vector<1x1x32x1xf32>
    %427 = vector.shape_cast %426 : vector<1x1x32x1xf32> to vector<32x1xf32>
    %428 = vector.broadcast %427 : vector<32x1xf32> to vector<32x128xf32>
    %429 = arith.mulf %425, %428 : vector<32x128xf32>
    %c1_482 = arith.constant 1 : index
    %c1_483 = arith.constant 1 : index
    %c0_484 = arith.constant 0 : index
    %c0_485 = arith.constant 0 : index
    %430 = vector.load %arg1[%c1_482, %c1_483, %c0_484, %c0_485] : memref<7x7x32x128xf32, #tpu.memory_space<vmem>>, vector<1x1x32x128xf32>
    %431 = vector.shape_cast %430 : vector<1x1x32x128xf32> to vector<32x128xf32>
    %c1_486 = arith.constant 1 : index
    %c1_487 = arith.constant 1 : index
    %c0_488 = arith.constant 0 : index
    %c0_489 = arith.constant 0 : index
    %432 = vector.load %arg2[%c1_486, %c1_487, %c0_488, %c0_489] : memref<2x7x32x1xf32, #tpu.memory_space<vmem>>, vector<1x1x32x1xf32>
    %433 = vector.shape_cast %432 : vector<1x1x32x1xf32> to vector<32x1xf32>
    %434 = vector.broadcast %433 : vector<32x1xf32> to vector<32x128xf32>
    %435 = arith.mulf %431, %434 : vector<32x128xf32>
    %c2_490 = arith.constant 2 : index
    %c1_491 = arith.constant 1 : index
    %c0_492 = arith.constant 0 : index
    %c0_493 = arith.constant 0 : index
    %436 = vector.load %arg1[%c2_490, %c1_491, %c0_492, %c0_493] : memref<7x7x32x128xf32, #tpu.memory_space<vmem>>, vector<1x1x32x128xf32>
    %437 = vector.shape_cast %436 : vector<1x1x32x128xf32> to vector<32x128xf32>
    %c1_494 = arith.constant 1 : index
    %c2_495 = arith.constant 2 : index
    %c0_496 = arith.constant 0 : index
    %c0_497 = arith.constant 0 : index
    %438 = vector.load %arg2[%c1_494, %c2_495, %c0_496, %c0_497] : memref<2x7x32x1xf32, #tpu.memory_space<vmem>>, vector<1x1x32x1xf32>
    %439 = vector.shape_cast %438 : vector<1x1x32x1xf32> to vector<32x1xf32>
    %440 = vector.broadcast %439 : vector<32x1xf32> to vector<32x128xf32>
    %441 = arith.mulf %437, %440 : vector<32x128xf32>
    %442 = arith.addf %429, %441 : vector<32x128xf32>
    %c3_498 = arith.constant 3 : index
    %c1_499 = arith.constant 1 : index
    %c0_500 = arith.constant 0 : index
    %c0_501 = arith.constant 0 : index
    %443 = vector.load %arg1[%c3_498, %c1_499, %c0_500, %c0_501] : memref<7x7x32x128xf32, #tpu.memory_space<vmem>>, vector<1x1x32x128xf32>
    %444 = vector.shape_cast %443 : vector<1x1x32x128xf32> to vector<32x128xf32>
    %c1_502 = arith.constant 1 : index
    %c3_503 = arith.constant 3 : index
    %c0_504 = arith.constant 0 : index
    %c0_505 = arith.constant 0 : index
    %445 = vector.load %arg2[%c1_502, %c3_503, %c0_504, %c0_505] : memref<2x7x32x1xf32, #tpu.memory_space<vmem>>, vector<1x1x32x1xf32>
    %446 = vector.shape_cast %445 : vector<1x1x32x1xf32> to vector<32x1xf32>
    %447 = vector.broadcast %446 : vector<32x1xf32> to vector<32x128xf32>
    %448 = arith.mulf %444, %447 : vector<32x128xf32>
    %449 = arith.addf %435, %448 : vector<32x128xf32>
    %c4_506 = arith.constant 4 : index
    %c1_507 = arith.constant 1 : index
    %c0_508 = arith.constant 0 : index
    %c0_509 = arith.constant 0 : index
    %450 = vector.load %arg1[%c4_506, %c1_507, %c0_508, %c0_509] : memref<7x7x32x128xf32, #tpu.memory_space<vmem>>, vector<1x1x32x128xf32>
    %451 = vector.shape_cast %450 : vector<1x1x32x128xf32> to vector<32x128xf32>
    %c1_510 = arith.constant 1 : index
    %c4_511 = arith.constant 4 : index
    %c0_512 = arith.constant 0 : index
    %c0_513 = arith.constant 0 : index
    %452 = vector.load %arg2[%c1_510, %c4_511, %c0_512, %c0_513] : memref<2x7x32x1xf32, #tpu.memory_space<vmem>>, vector<1x1x32x1xf32>
    %453 = vector.shape_cast %452 : vector<1x1x32x1xf32> to vector<32x1xf32>
    %454 = vector.broadcast %453 : vector<32x1xf32> to vector<32x128xf32>
    %455 = arith.mulf %451, %454 : vector<32x128xf32>
    %456 = arith.addf %442, %455 : vector<32x128xf32>
    %c5_514 = arith.constant 5 : index
    %c1_515 = arith.constant 1 : index
    %c0_516 = arith.constant 0 : index
    %c0_517 = arith.constant 0 : index
    %457 = vector.load %arg1[%c5_514, %c1_515, %c0_516, %c0_517] : memref<7x7x32x128xf32, #tpu.memory_space<vmem>>, vector<1x1x32x128xf32>
    %458 = vector.shape_cast %457 : vector<1x1x32x128xf32> to vector<32x128xf32>
    %c1_518 = arith.constant 1 : index
    %c5_519 = arith.constant 5 : index
    %c0_520 = arith.constant 0 : index
    %c0_521 = arith.constant 0 : index
    %459 = vector.load %arg2[%c1_518, %c5_519, %c0_520, %c0_521] : memref<2x7x32x1xf32, #tpu.memory_space<vmem>>, vector<1x1x32x1xf32>
    %460 = vector.shape_cast %459 : vector<1x1x32x1xf32> to vector<32x1xf32>
    %461 = vector.broadcast %460 : vector<32x1xf32> to vector<32x128xf32>
    %462 = arith.mulf %458, %461 : vector<32x128xf32>
    %463 = arith.addf %449, %462 : vector<32x128xf32>
    %c6_522 = arith.constant 6 : index
    %c1_523 = arith.constant 1 : index
    %c0_524 = arith.constant 0 : index
    %c0_525 = arith.constant 0 : index
    %464 = vector.load %arg1[%c6_522, %c1_523, %c0_524, %c0_525] : memref<7x7x32x128xf32, #tpu.memory_space<vmem>>, vector<1x1x32x128xf32>
    %465 = vector.shape_cast %464 : vector<1x1x32x128xf32> to vector<32x128xf32>
    %c1_526 = arith.constant 1 : index
    %c6_527 = arith.constant 6 : index
    %c0_528 = arith.constant 0 : index
    %c0_529 = arith.constant 0 : index
    %466 = vector.load %arg2[%c1_526, %c6_527, %c0_528, %c0_529] : memref<2x7x32x1xf32, #tpu.memory_space<vmem>>, vector<1x1x32x1xf32>
    %467 = vector.shape_cast %466 : vector<1x1x32x1xf32> to vector<32x1xf32>
    %468 = vector.broadcast %467 : vector<32x1xf32> to vector<32x128xf32>
    %469 = arith.mulf %465, %468 : vector<32x128xf32>
    %470 = arith.addf %456, %469 : vector<32x128xf32>
    %471 = arith.addf %470, %463 : vector<32x128xf32>
    %c1_530 = arith.constant 1 : index
    %c0_531 = arith.constant 0 : index
    %c0_532 = arith.constant 0 : index
    %472 = vector.load %arg3[%c1_530, %c0_531, %c0_532] : memref<2x32x1xf32, #tpu.memory_space<vmem>>, vector<1x32x1xf32>
    %473 = vector.shape_cast %472 : vector<1x32x1xf32> to vector<32x1xf32>
    %474 = vector.broadcast %473 : vector<32x1xf32> to vector<32x128xf32>
    %475 = arith.addf %471, %474 : vector<32x128xf32>
    %c0_533 = arith.constant 0 : index
    %c1024 = arith.constant 1024 : index
    %476 = vector.load %arg9[%c0_533, %c1024] : memref<32x1792xf32, #tpu.memory_space<vmem>>, vector<32x128xf32>
    tpu.vector_store %arg9[%c0_533, %c1024], %475 {strides = array<i32>} : memref<32x1792xf32, #tpu.memory_space<vmem>>, vector<32x128xf32>,
    %c0_534 = arith.constant 0 : index
    %c2_535 = arith.constant 2 : index
    %c0_536 = arith.constant 0 : index
    %c0_537 = arith.constant 0 : index
    %477 = vector.load %arg1[%c0_534, %c2_535, %c0_536, %c0_537] : memref<7x7x32x128xf32, #tpu.memory_space<vmem>>, vector<1x1x32x128xf32>
    %478 = vector.shape_cast %477 : vector<1x1x32x128xf32> to vector<32x128xf32>
    %c1_538 = arith.constant 1 : index
    %c0_539 = arith.constant 0 : index
    %c0_540 = arith.constant 0 : index
    %c0_541 = arith.constant 0 : index
    %479 = vector.load %arg2[%c1_538, %c0_539, %c0_540, %c0_541] : memref<2x7x32x1xf32, #tpu.memory_space<vmem>>, vector<1x1x32x1xf32>
    %480 = vector.shape_cast %479 : vector<1x1x32x1xf32> to vector<32x1xf32>
    %481 = vector.broadcast %480 : vector<32x1xf32> to vector<32x128xf32>
    %482 = arith.mulf %478, %481 : vector<32x128xf32>
    %c1_542 = arith.constant 1 : index
    %c2_543 = arith.constant 2 : index
    %c0_544 = arith.constant 0 : index
    %c0_545 = arith.constant 0 : index
    %483 = vector.load %arg1[%c1_542, %c2_543, %c0_544, %c0_545] : memref<7x7x32x128xf32, #tpu.memory_space<vmem>>, vector<1x1x32x128xf32>
    %484 = vector.shape_cast %483 : vector<1x1x32x128xf32> to vector<32x128xf32>
    %c1_546 = arith.constant 1 : index
    %c1_547 = arith.constant 1 : index
    %c0_548 = arith.constant 0 : index
    %c0_549 = arith.constant 0 : index
    %485 = vector.load %arg2[%c1_546, %c1_547, %c0_548, %c0_549] : memref<2x7x32x1xf32, #tpu.memory_space<vmem>>, vector<1x1x32x1xf32>
    %486 = vector.shape_cast %485 : vector<1x1x32x1xf32> to vector<32x1xf32>
    %487 = vector.broadcast %486 : vector<32x1xf32> to vector<32x128xf32>
    %488 = arith.mulf %484, %487 : vector<32x128xf32>
    %c2_550 = arith.constant 2 : index
    %c2_551 = arith.constant 2 : index
    %c0_552 = arith.constant 0 : index
    %c0_553 = arith.constant 0 : index
    %489 = vector.load %arg1[%c2_550, %c2_551, %c0_552, %c0_553] : memref<7x7x32x128xf32, #tpu.memory_space<vmem>>, vector<1x1x32x128xf32>
    %490 = vector.shape_cast %489 : vector<1x1x32x128xf32> to vector<32x128xf32>
    %c1_554 = arith.constant 1 : index
    %c2_555 = arith.constant 2 : index
    %c0_556 = arith.constant 0 : index
    %c0_557 = arith.constant 0 : index
    %491 = vector.load %arg2[%c1_554, %c2_555, %c0_556, %c0_557] : memref<2x7x32x1xf32, #tpu.memory_space<vmem>>, vector<1x1x32x1xf32>
    %492 = vector.shape_cast %491 : vector<1x1x32x1xf32> to vector<32x1xf32>
    %493 = vector.broadcast %492 : vector<32x1xf32> to vector<32x128xf32>
    %494 = arith.mulf %490, %493 : vector<32x128xf32>
    %495 = arith.addf %482, %494 : vector<32x128xf32>
    %c3_558 = arith.constant 3 : index
    %c2_559 = arith.constant 2 : index
    %c0_560 = arith.constant 0 : index
    %c0_561 = arith.constant 0 : index
    %496 = vector.load %arg1[%c3_558, %c2_559, %c0_560, %c0_561] : memref<7x7x32x128xf32, #tpu.memory_space<vmem>>, vector<1x1x32x128xf32>
    %497 = vector.shape_cast %496 : vector<1x1x32x128xf32> to vector<32x128xf32>
    %c1_562 = arith.constant 1 : index
    %c3_563 = arith.constant 3 : index
    %c0_564 = arith.constant 0 : index
    %c0_565 = arith.constant 0 : index
    %498 = vector.load %arg2[%c1_562, %c3_563, %c0_564, %c0_565] : memref<2x7x32x1xf32, #tpu.memory_space<vmem>>, vector<1x1x32x1xf32>
    %499 = vector.shape_cast %498 : vector<1x1x32x1xf32> to vector<32x1xf32>
    %500 = vector.broadcast %499 : vector<32x1xf32> to vector<32x128xf32>
    %501 = arith.mulf %497, %500 : vector<32x128xf32>
    %502 = arith.addf %488, %501 : vector<32x128xf32>
    %c4_566 = arith.constant 4 : index
    %c2_567 = arith.constant 2 : index
    %c0_568 = arith.constant 0 : index
    %c0_569 = arith.constant 0 : index
    %503 = vector.load %arg1[%c4_566, %c2_567, %c0_568, %c0_569] : memref<7x7x32x128xf32, #tpu.memory_space<vmem>>, vector<1x1x32x128xf32>
    %504 = vector.shape_cast %503 : vector<1x1x32x128xf32> to vector<32x128xf32>
    %c1_570 = arith.constant 1 : index
    %c4_571 = arith.constant 4 : index
    %c0_572 = arith.constant 0 : index
    %c0_573 = arith.constant 0 : index
    %505 = vector.load %arg2[%c1_570, %c4_571, %c0_572, %c0_573] : memref<2x7x32x1xf32, #tpu.memory_space<vmem>>, vector<1x1x32x1xf32>
    %506 = vector.shape_cast %505 : vector<1x1x32x1xf32> to vector<32x1xf32>
    %507 = vector.broadcast %506 : vector<32x1xf32> to vector<32x128xf32>
    %508 = arith.mulf %504, %507 : vector<32x128xf32>
    %509 = arith.addf %495, %508 : vector<32x128xf32>
    %c5_574 = arith.constant 5 : index
    %c2_575 = arith.constant 2 : index
    %c0_576 = arith.constant 0 : index
    %c0_577 = arith.constant 0 : index
    %510 = vector.load %arg1[%c5_574, %c2_575, %c0_576, %c0_577] : memref<7x7x32x128xf32, #tpu.memory_space<vmem>>, vector<1x1x32x128xf32>
    %511 = vector.shape_cast %510 : vector<1x1x32x128xf32> to vector<32x128xf32>
    %c1_578 = arith.constant 1 : index
    %c5_579 = arith.constant 5 : index
    %c0_580 = arith.constant 0 : index
    %c0_581 = arith.constant 0 : index
    %512 = vector.load %arg2[%c1_578, %c5_579, %c0_580, %c0_581] : memref<2x7x32x1xf32, #tpu.memory_space<vmem>>, vector<1x1x32x1xf32>
    %513 = vector.shape_cast %512 : vector<1x1x32x1xf32> to vector<32x1xf32>
    %514 = vector.broadcast %513 : vector<32x1xf32> to vector<32x128xf32>
    %515 = arith.mulf %511, %514 : vector<32x128xf32>
    %516 = arith.addf %502, %515 : vector<32x128xf32>
    %c6_582 = arith.constant 6 : index
    %c2_583 = arith.constant 2 : index
    %c0_584 = arith.constant 0 : index
    %c0_585 = arith.constant 0 : index
    %517 = vector.load %arg1[%c6_582, %c2_583, %c0_584, %c0_585] : memref<7x7x32x128xf32, #tpu.memory_space<vmem>>, vector<1x1x32x128xf32>
    %518 = vector.shape_cast %517 : vector<1x1x32x128xf32> to vector<32x128xf32>
    %c1_586 = arith.constant 1 : index
    %c6_587 = arith.constant 6 : index
    %c0_588 = arith.constant 0 : index
    %c0_589 = arith.constant 0 : index
    %519 = vector.load %arg2[%c1_586, %c6_587, %c0_588, %c0_589] : memref<2x7x32x1xf32, #tpu.memory_space<vmem>>, vector<1x1x32x1xf32>
    %520 = vector.shape_cast %519 : vector<1x1x32x1xf32> to vector<32x1xf32>
    %521 = vector.broadcast %520 : vector<32x1xf32> to vector<32x128xf32>
    %522 = arith.mulf %518, %521 : vector<32x128xf32>
    %523 = arith.addf %509, %522 : vector<32x128xf32>
    %524 = arith.addf %523, %516 : vector<32x128xf32>
    %c1_590 = arith.constant 1 : index
    %c0_591 = arith.constant 0 : index
    %c0_592 = arith.constant 0 : index
    %525 = vector.load %arg3[%c1_590, %c0_591, %c0_592] : memref<2x32x1xf32, #tpu.memory_space<vmem>>, vector<1x32x1xf32>
    %526 = vector.shape_cast %525 : vector<1x32x1xf32> to vector<32x1xf32>
    %527 = vector.broadcast %526 : vector<32x1xf32> to vector<32x128xf32>
    %528 = arith.addf %524, %527 : vector<32x128xf32>
    %c0_593 = arith.constant 0 : index
    %c1152 = arith.constant 1152 : index
    %529 = vector.load %arg9[%c0_593, %c1152] : memref<32x1792xf32, #tpu.memory_space<vmem>>, vector<32x128xf32>
    tpu.vector_store %arg9[%c0_593, %c1152], %528 {strides = array<i32>} : memref<32x1792xf32, #tpu.memory_space<vmem>>, vector<32x128xf32>,
    %c0_594 = arith.constant 0 : index
    %c3_595 = arith.constant 3 : index
    %c0_596 = arith.constant 0 : index
    %c0_597 = arith.constant 0 : index
    %530 = vector.load %arg1[%c0_594, %c3_595, %c0_596, %c0_597] : memref<7x7x32x128xf32, #tpu.memory_space<vmem>>, vector<1x1x32x128xf32>
    %531 = vector.shape_cast %530 : vector<1x1x32x128xf32> to vector<32x128xf32>
    %c1_598 = arith.constant 1 : index
    %c0_599 = arith.constant 0 : index
    %c0_600 = arith.constant 0 : index
    %c0_601 = arith.constant 0 : index
    %532 = vector.load %arg2[%c1_598, %c0_599, %c0_600, %c0_601] : memref<2x7x32x1xf32, #tpu.memory_space<vmem>>, vector<1x1x32x1xf32>
    %533 = vector.shape_cast %532 : vector<1x1x32x1xf32> to vector<32x1xf32>
    %534 = vector.broadcast %533 : vector<32x1xf32> to vector<32x128xf32>
    %535 = arith.mulf %531, %534 : vector<32x128xf32>
    %c1_602 = arith.constant 1 : index
    %c3_603 = arith.constant 3 : index
    %c0_604 = arith.constant 0 : index
    %c0_605 = arith.constant 0 : index
    %536 = vector.load %arg1[%c1_602, %c3_603, %c0_604, %c0_605] : memref<7x7x32x128xf32, #tpu.memory_space<vmem>>, vector<1x1x32x128xf32>
    %537 = vector.shape_cast %536 : vector<1x1x32x128xf32> to vector<32x128xf32>
    %c1_606 = arith.constant 1 : index
    %c1_607 = arith.constant 1 : index
    %c0_608 = arith.constant 0 : index
    %c0_609 = arith.constant 0 : index
    %538 = vector.load %arg2[%c1_606, %c1_607, %c0_608, %c0_609] : memref<2x7x32x1xf32, #tpu.memory_space<vmem>>, vector<1x1x32x1xf32>
    %539 = vector.shape_cast %538 : vector<1x1x32x1xf32> to vector<32x1xf32>
    %540 = vector.broadcast %539 : vector<32x1xf32> to vector<32x128xf32>
    %541 = arith.mulf %537, %540 : vector<32x128xf32>
    %c2_610 = arith.constant 2 : index
    %c3_611 = arith.constant 3 : index
    %c0_612 = arith.constant 0 : index
    %c0_613 = arith.constant 0 : index
    %542 = vector.load %arg1[%c2_610, %c3_611, %c0_612, %c0_613] : memref<7x7x32x128xf32, #tpu.memory_space<vmem>>, vector<1x1x32x128xf32>
    %543 = vector.shape_cast %542 : vector<1x1x32x128xf32> to vector<32x128xf32>
    %c1_614 = arith.constant 1 : index
    %c2_615 = arith.constant 2 : index
    %c0_616 = arith.constant 0 : index
    %c0_617 = arith.constant 0 : index
    %544 = vector.load %arg2[%c1_614, %c2_615, %c0_616, %c0_617] : memref<2x7x32x1xf32, #tpu.memory_space<vmem>>, vector<1x1x32x1xf32>
    %545 = vector.shape_cast %544 : vector<1x1x32x1xf32> to vector<32x1xf32>
    %546 = vector.broadcast %545 : vector<32x1xf32> to vector<32x128xf32>
    %547 = arith.mulf %543, %546 : vector<32x128xf32>
    %548 = arith.addf %535, %547 : vector<32x128xf32>
    %c3_618 = arith.constant 3 : index
    %c3_619 = arith.constant 3 : index
    %c0_620 = arith.constant 0 : index
    %c0_621 = arith.constant 0 : index
    %549 = vector.load %arg1[%c3_618, %c3_619, %c0_620, %c0_621] : memref<7x7x32x128xf32, #tpu.memory_space<vmem>>, vector<1x1x32x128xf32>
    %550 = vector.shape_cast %549 : vector<1x1x32x128xf32> to vector<32x128xf32>
    %c1_622 = arith.constant 1 : index
    %c3_623 = arith.constant 3 : index
    %c0_624 = arith.constant 0 : index
    %c0_625 = arith.constant 0 : index
    %551 = vector.load %arg2[%c1_622, %c3_623, %c0_624, %c0_625] : memref<2x7x32x1xf32, #tpu.memory_space<vmem>>, vector<1x1x32x1xf32>
    %552 = vector.shape_cast %551 : vector<1x1x32x1xf32> to vector<32x1xf32>
    %553 = vector.broadcast %552 : vector<32x1xf32> to vector<32x128xf32>
    %554 = arith.mulf %550, %553 : vector<32x128xf32>
    %555 = arith.addf %541, %554 : vector<32x128xf32>
    %c4_626 = arith.constant 4 : index
    %c3_627 = arith.constant 3 : index
    %c0_628 = arith.constant 0 : index
    %c0_629 = arith.constant 0 : index
    %556 = vector.load %arg1[%c4_626, %c3_627, %c0_628, %c0_629] : memref<7x7x32x128xf32, #tpu.memory_space<vmem>>, vector<1x1x32x128xf32>
    %557 = vector.shape_cast %556 : vector<1x1x32x128xf32> to vector<32x128xf32>
    %c1_630 = arith.constant 1 : index
    %c4_631 = arith.constant 4 : index
    %c0_632 = arith.constant 0 : index
    %c0_633 = arith.constant 0 : index
    %558 = vector.load %arg2[%c1_630, %c4_631, %c0_632, %c0_633] : memref<2x7x32x1xf32, #tpu.memory_space<vmem>>, vector<1x1x32x1xf32>
    %559 = vector.shape_cast %558 : vector<1x1x32x1xf32> to vector<32x1xf32>
    %560 = vector.broadcast %559 : vector<32x1xf32> to vector<32x128xf32>
    %561 = arith.mulf %557, %560 : vector<32x128xf32>
    %562 = arith.addf %548, %561 : vector<32x128xf32>
    %c5_634 = arith.constant 5 : index
    %c3_635 = arith.constant 3 : index
    %c0_636 = arith.constant 0 : index
    %c0_637 = arith.constant 0 : index
    %563 = vector.load %arg1[%c5_634, %c3_635, %c0_636, %c0_637] : memref<7x7x32x128xf32, #tpu.memory_space<vmem>>, vector<1x1x32x128xf32>
    %564 = vector.shape_cast %563 : vector<1x1x32x128xf32> to vector<32x128xf32>
    %c1_638 = arith.constant 1 : index
    %c5_639 = arith.constant 5 : index
    %c0_640 = arith.constant 0 : index
    %c0_641 = arith.constant 0 : index
    %565 = vector.load %arg2[%c1_638, %c5_639, %c0_640, %c0_641] : memref<2x7x32x1xf32, #tpu.memory_space<vmem>>, vector<1x1x32x1xf32>
    %566 = vector.shape_cast %565 : vector<1x1x32x1xf32> to vector<32x1xf32>
    %567 = vector.broadcast %566 : vector<32x1xf32> to vector<32x128xf32>
    %568 = arith.mulf %564, %567 : vector<32x128xf32>
    %569 = arith.addf %555, %568 : vector<32x128xf32>
    %c6_642 = arith.constant 6 : index
    %c3_643 = arith.constant 3 : index
    %c0_644 = arith.constant 0 : index
    %c0_645 = arith.constant 0 : index
    %570 = vector.load %arg1[%c6_642, %c3_643, %c0_644, %c0_645] : memref<7x7x32x128xf32, #tpu.memory_space<vmem>>, vector<1x1x32x128xf32>
    %571 = vector.shape_cast %570 : vector<1x1x32x128xf32> to vector<32x128xf32>
    %c1_646 = arith.constant 1 : index
    %c6_647 = arith.constant 6 : index
    %c0_648 = arith.constant 0 : index
    %c0_649 = arith.constant 0 : index
    %572 = vector.load %arg2[%c1_646, %c6_647, %c0_648, %c0_649] : memref<2x7x32x1xf32, #tpu.memory_space<vmem>>, vector<1x1x32x1xf32>
    %573 = vector.shape_cast %572 : vector<1x1x32x1xf32> to vector<32x1xf32>
    %574 = vector.broadcast %573 : vector<32x1xf32> to vector<32x128xf32>
    %575 = arith.mulf %571, %574 : vector<32x128xf32>
    %576 = arith.addf %562, %575 : vector<32x128xf32>
    %577 = arith.addf %576, %569 : vector<32x128xf32>
    %c1_650 = arith.constant 1 : index
    %c0_651 = arith.constant 0 : index
    %c0_652 = arith.constant 0 : index
    %578 = vector.load %arg3[%c1_650, %c0_651, %c0_652] : memref<2x32x1xf32, #tpu.memory_space<vmem>>, vector<1x32x1xf32>
    %579 = vector.shape_cast %578 : vector<1x32x1xf32> to vector<32x1xf32>
    %580 = vector.broadcast %579 : vector<32x1xf32> to vector<32x128xf32>
    %581 = arith.addf %577, %580 : vector<32x128xf32>
    %c0_653 = arith.constant 0 : index
    %c1280 = arith.constant 1280 : index
    %582 = vector.load %arg9[%c0_653, %c1280] : memref<32x1792xf32, #tpu.memory_space<vmem>>, vector<32x128xf32>
    tpu.vector_store %arg9[%c0_653, %c1280], %581 {strides = array<i32>} : memref<32x1792xf32, #tpu.memory_space<vmem>>, vector<32x128xf32>,
    %c0_654 = arith.constant 0 : index
    %c4_655 = arith.constant 4 : index
    %c0_656 = arith.constant 0 : index
    %c0_657 = arith.constant 0 : index
    %583 = vector.load %arg1[%c0_654, %c4_655, %c0_656, %c0_657] : memref<7x7x32x128xf32, #tpu.memory_space<vmem>>, vector<1x1x32x128xf32>
    %584 = vector.shape_cast %583 : vector<1x1x32x128xf32> to vector<32x128xf32>
    %c1_658 = arith.constant 1 : index
    %c0_659 = arith.constant 0 : index
    %c0_660 = arith.constant 0 : index
    %c0_661 = arith.constant 0 : index
    %585 = vector.load %arg2[%c1_658, %c0_659, %c0_660, %c0_661] : memref<2x7x32x1xf32, #tpu.memory_space<vmem>>, vector<1x1x32x1xf32>
    %586 = vector.shape_cast %585 : vector<1x1x32x1xf32> to vector<32x1xf32>
    %587 = vector.broadcast %586 : vector<32x1xf32> to vector<32x128xf32>
    %588 = arith.mulf %584, %587 : vector<32x128xf32>
    %c1_662 = arith.constant 1 : index
    %c4_663 = arith.constant 4 : index
    %c0_664 = arith.constant 0 : index
    %c0_665 = arith.constant 0 : index
    %589 = vector.load %arg1[%c1_662, %c4_663, %c0_664, %c0_665] : memref<7x7x32x128xf32, #tpu.memory_space<vmem>>, vector<1x1x32x128xf32>
    %590 = vector.shape_cast %589 : vector<1x1x32x128xf32> to vector<32x128xf32>
    %c1_666 = arith.constant 1 : index
    %c1_667 = arith.constant 1 : index
    %c0_668 = arith.constant 0 : index
    %c0_669 = arith.constant 0 : index
    %591 = vector.load %arg2[%c1_666, %c1_667, %c0_668, %c0_669] : memref<2x7x32x1xf32, #tpu.memory_space<vmem>>, vector<1x1x32x1xf32>
    %592 = vector.shape_cast %591 : vector<1x1x32x1xf32> to vector<32x1xf32>
    %593 = vector.broadcast %592 : vector<32x1xf32> to vector<32x128xf32>
    %594 = arith.mulf %590, %593 : vector<32x128xf32>
    %c2_670 = arith.constant 2 : index
    %c4_671 = arith.constant 4 : index
    %c0_672 = arith.constant 0 : index
    %c0_673 = arith.constant 0 : index
    %595 = vector.load %arg1[%c2_670, %c4_671, %c0_672, %c0_673] : memref<7x7x32x128xf32, #tpu.memory_space<vmem>>, vector<1x1x32x128xf32>
    %596 = vector.shape_cast %595 : vector<1x1x32x128xf32> to vector<32x128xf32>
    %c1_674 = arith.constant 1 : index
    %c2_675 = arith.constant 2 : index
    %c0_676 = arith.constant 0 : index
    %c0_677 = arith.constant 0 : index
    %597 = vector.load %arg2[%c1_674, %c2_675, %c0_676, %c0_677] : memref<2x7x32x1xf32, #tpu.memory_space<vmem>>, vector<1x1x32x1xf32>
    %598 = vector.shape_cast %597 : vector<1x1x32x1xf32> to vector<32x1xf32>
    %599 = vector.broadcast %598 : vector<32x1xf32> to vector<32x128xf32>
    %600 = arith.mulf %596, %599 : vector<32x128xf32>
    %601 = arith.addf %588, %600 : vector<32x128xf32>
    %c3_678 = arith.constant 3 : index
    %c4_679 = arith.constant 4 : index
    %c0_680 = arith.constant 0 : index
    %c0_681 = arith.constant 0 : index
    %602 = vector.load %arg1[%c3_678, %c4_679, %c0_680, %c0_681] : memref<7x7x32x128xf32, #tpu.memory_space<vmem>>, vector<1x1x32x128xf32>
    %603 = vector.shape_cast %602 : vector<1x1x32x128xf32> to vector<32x128xf32>
    %c1_682 = arith.constant 1 : index
    %c3_683 = arith.constant 3 : index
    %c0_684 = arith.constant 0 : index
    %c0_685 = arith.constant 0 : index
    %604 = vector.load %arg2[%c1_682, %c3_683, %c0_684, %c0_685] : memref<2x7x32x1xf32, #tpu.memory_space<vmem>>, vector<1x1x32x1xf32>
    %605 = vector.shape_cast %604 : vector<1x1x32x1xf32> to vector<32x1xf32>
    %606 = vector.broadcast %605 : vector<32x1xf32> to vector<32x128xf32>
    %607 = arith.mulf %603, %606 : vector<32x128xf32>
    %608 = arith.addf %594, %607 : vector<32x128xf32>
    %c4_686 = arith.constant 4 : index
    %c4_687 = arith.constant 4 : index
    %c0_688 = arith.constant 0 : index
    %c0_689 = arith.constant 0 : index
    %609 = vector.load %arg1[%c4_686, %c4_687, %c0_688, %c0_689] : memref<7x7x32x128xf32, #tpu.memory_space<vmem>>, vector<1x1x32x128xf32>
    %610 = vector.shape_cast %609 : vector<1x1x32x128xf32> to vector<32x128xf32>
    %c1_690 = arith.constant 1 : index
    %c4_691 = arith.constant 4 : index
    %c0_692 = arith.constant 0 : index
    %c0_693 = arith.constant 0 : index
    %611 = vector.load %arg2[%c1_690, %c4_691, %c0_692, %c0_693] : memref<2x7x32x1xf32, #tpu.memory_space<vmem>>, vector<1x1x32x1xf32>
    %612 = vector.shape_cast %611 : vector<1x1x32x1xf32> to vector<32x1xf32>
    %613 = vector.broadcast %612 : vector<32x1xf32> to vector<32x128xf32>
    %614 = arith.mulf %610, %613 : vector<32x128xf32>
    %615 = arith.addf %601, %614 : vector<32x128xf32>
    %c5_694 = arith.constant 5 : index
    %c4_695 = arith.constant 4 : index
    %c0_696 = arith.constant 0 : index
    %c0_697 = arith.constant 0 : index
    %616 = vector.load %arg1[%c5_694, %c4_695, %c0_696, %c0_697] : memref<7x7x32x128xf32, #tpu.memory_space<vmem>>, vector<1x1x32x128xf32>
    %617 = vector.shape_cast %616 : vector<1x1x32x128xf32> to vector<32x128xf32>
    %c1_698 = arith.constant 1 : index
    %c5_699 = arith.constant 5 : index
    %c0_700 = arith.constant 0 : index
    %c0_701 = arith.constant 0 : index
    %618 = vector.load %arg2[%c1_698, %c5_699, %c0_700, %c0_701] : memref<2x7x32x1xf32, #tpu.memory_space<vmem>>, vector<1x1x32x1xf32>
    %619 = vector.shape_cast %618 : vector<1x1x32x1xf32> to vector<32x1xf32>
    %620 = vector.broadcast %619 : vector<32x1xf32> to vector<32x128xf32>
    %621 = arith.mulf %617, %620 : vector<32x128xf32>
    %622 = arith.addf %608, %621 : vector<32x128xf32>
    %c6_702 = arith.constant 6 : index
    %c4_703 = arith.constant 4 : index
    %c0_704 = arith.constant 0 : index
    %c0_705 = arith.constant 0 : index
    %623 = vector.load %arg1[%c6_702, %c4_703, %c0_704, %c0_705] : memref<7x7x32x128xf32, #tpu.memory_space<vmem>>, vector<1x1x32x128xf32>
    %624 = vector.shape_cast %623 : vector<1x1x32x128xf32> to vector<32x128xf32>
    %c1_706 = arith.constant 1 : index
    %c6_707 = arith.constant 6 : index
    %c0_708 = arith.constant 0 : index
    %c0_709 = arith.constant 0 : index
    %625 = vector.load %arg2[%c1_706, %c6_707, %c0_708, %c0_709] : memref<2x7x32x1xf32, #tpu.memory_space<vmem>>, vector<1x1x32x1xf32>
    %626 = vector.shape_cast %625 : vector<1x1x32x1xf32> to vector<32x1xf32>
    %627 = vector.broadcast %626 : vector<32x1xf32> to vector<32x128xf32>
    %628 = arith.mulf %624, %627 : vector<32x128xf32>
    %629 = arith.addf %615, %628 : vector<32x128xf32>
    %630 = arith.addf %629, %622 : vector<32x128xf32>
    %c1_710 = arith.constant 1 : index
    %c0_711 = arith.constant 0 : index
    %c0_712 = arith.constant 0 : index
    %631 = vector.load %arg3[%c1_710, %c0_711, %c0_712] : memref<2x32x1xf32, #tpu.memory_space<vmem>>, vector<1x32x1xf32>
    %632 = vector.shape_cast %631 : vector<1x32x1xf32> to vector<32x1xf32>
    %633 = vector.broadcast %632 : vector<32x1xf32> to vector<32x128xf32>
    %634 = arith.addf %630, %633 : vector<32x128xf32>
    %c0_713 = arith.constant 0 : index
    %c1408 = arith.constant 1408 : index
    %635 = vector.load %arg9[%c0_713, %c1408] : memref<32x1792xf32, #tpu.memory_space<vmem>>, vector<32x128xf32>
    tpu.vector_store %arg9[%c0_713, %c1408], %634 {strides = array<i32>} : memref<32x1792xf32, #tpu.memory_space<vmem>>, vector<32x128xf32>,
    %c0_714 = arith.constant 0 : index
    %c5_715 = arith.constant 5 : index
    %c0_716 = arith.constant 0 : index
    %c0_717 = arith.constant 0 : index
    %636 = vector.load %arg1[%c0_714, %c5_715, %c0_716, %c0_717] : memref<7x7x32x128xf32, #tpu.memory_space<vmem>>, vector<1x1x32x128xf32>
    %637 = vector.shape_cast %636 : vector<1x1x32x128xf32> to vector<32x128xf32>
    %c1_718 = arith.constant 1 : index
    %c0_719 = arith.constant 0 : index
    %c0_720 = arith.constant 0 : index
    %c0_721 = arith.constant 0 : index
    %638 = vector.load %arg2[%c1_718, %c0_719, %c0_720, %c0_721] : memref<2x7x32x1xf32, #tpu.memory_space<vmem>>, vector<1x1x32x1xf32>
    %639 = vector.shape_cast %638 : vector<1x1x32x1xf32> to vector<32x1xf32>
    %640 = vector.broadcast %639 : vector<32x1xf32> to vector<32x128xf32>
    %641 = arith.mulf %637, %640 : vector<32x128xf32>
    %c1_722 = arith.constant 1 : index
    %c5_723 = arith.constant 5 : index
    %c0_724 = arith.constant 0 : index
    %c0_725 = arith.constant 0 : index
    %642 = vector.load %arg1[%c1_722, %c5_723, %c0_724, %c0_725] : memref<7x7x32x128xf32, #tpu.memory_space<vmem>>, vector<1x1x32x128xf32>
    %643 = vector.shape_cast %642 : vector<1x1x32x128xf32> to vector<32x128xf32>
    %c1_726 = arith.constant 1 : index
    %c1_727 = arith.constant 1 : index
    %c0_728 = arith.constant 0 : index
    %c0_729 = arith.constant 0 : index
    %644 = vector.load %arg2[%c1_726, %c1_727, %c0_728, %c0_729] : memref<2x7x32x1xf32, #tpu.memory_space<vmem>>, vector<1x1x32x1xf32>
    %645 = vector.shape_cast %644 : vector<1x1x32x1xf32> to vector<32x1xf32>
    %646 = vector.broadcast %645 : vector<32x1xf32> to vector<32x128xf32>
    %647 = arith.mulf %643, %646 : vector<32x128xf32>
    %c2_730 = arith.constant 2 : index
    %c5_731 = arith.constant 5 : index
    %c0_732 = arith.constant 0 : index
    %c0_733 = arith.constant 0 : index
    %648 = vector.load %arg1[%c2_730, %c5_731, %c0_732, %c0_733] : memref<7x7x32x128xf32, #tpu.memory_space<vmem>>, vector<1x1x32x128xf32>
    %649 = vector.shape_cast %648 : vector<1x1x32x128xf32> to vector<32x128xf32>
    %c1_734 = arith.constant 1 : index
    %c2_735 = arith.constant 2 : index
    %c0_736 = arith.constant 0 : index
    %c0_737 = arith.constant 0 : index
    %650 = vector.load %arg2[%c1_734, %c2_735, %c0_736, %c0_737] : memref<2x7x32x1xf32, #tpu.memory_space<vmem>>, vector<1x1x32x1xf32>
    %651 = vector.shape_cast %650 : vector<1x1x32x1xf32> to vector<32x1xf32>
    %652 = vector.broadcast %651 : vector<32x1xf32> to vector<32x128xf32>
    %653 = arith.mulf %649, %652 : vector<32x128xf32>
    %654 = arith.addf %641, %653 : vector<32x128xf32>
    %c3_738 = arith.constant 3 : index
    %c5_739 = arith.constant 5 : index
    %c0_740 = arith.constant 0 : index
    %c0_741 = arith.constant 0 : index
    %655 = vector.load %arg1[%c3_738, %c5_739, %c0_740, %c0_741] : memref<7x7x32x128xf32, #tpu.memory_space<vmem>>, vector<1x1x32x128xf32>
    %656 = vector.shape_cast %655 : vector<1x1x32x128xf32> to vector<32x128xf32>
    %c1_742 = arith.constant 1 : index
    %c3_743 = arith.constant 3 : index
    %c0_744 = arith.constant 0 : index
    %c0_745 = arith.constant 0 : index
    %657 = vector.load %arg2[%c1_742, %c3_743, %c0_744, %c0_745] : memref<2x7x32x1xf32, #tpu.memory_space<vmem>>, vector<1x1x32x1xf32>
    %658 = vector.shape_cast %657 : vector<1x1x32x1xf32> to vector<32x1xf32>
    %659 = vector.broadcast %658 : vector<32x1xf32> to vector<32x128xf32>
    %660 = arith.mulf %656, %659 : vector<32x128xf32>
    %661 = arith.addf %647, %660 : vector<32x128xf32>
    %c4_746 = arith.constant 4 : index
    %c5_747 = arith.constant 5 : index
    %c0_748 = arith.constant 0 : index
    %c0_749 = arith.constant 0 : index
    %662 = vector.load %arg1[%c4_746, %c5_747, %c0_748, %c0_749] : memref<7x7x32x128xf32, #tpu.memory_space<vmem>>, vector<1x1x32x128xf32>
    %663 = vector.shape_cast %662 : vector<1x1x32x128xf32> to vector<32x128xf32>
    %c1_750 = arith.constant 1 : index
    %c4_751 = arith.constant 4 : index
    %c0_752 = arith.constant 0 : index
    %c0_753 = arith.constant 0 : index
    %664 = vector.load %arg2[%c1_750, %c4_751, %c0_752, %c0_753] : memref<2x7x32x1xf32, #tpu.memory_space<vmem>>, vector<1x1x32x1xf32>
    %665 = vector.shape_cast %664 : vector<1x1x32x1xf32> to vector<32x1xf32>
    %666 = vector.broadcast %665 : vector<32x1xf32> to vector<32x128xf32>
    %667 = arith.mulf %663, %666 : vector<32x128xf32>
    %668 = arith.addf %654, %667 : vector<32x128xf32>
    %c5_754 = arith.constant 5 : index
    %c5_755 = arith.constant 5 : index
    %c0_756 = arith.constant 0 : index
    %c0_757 = arith.constant 0 : index
    %669 = vector.load %arg1[%c5_754, %c5_755, %c0_756, %c0_757] : memref<7x7x32x128xf32, #tpu.memory_space<vmem>>, vector<1x1x32x128xf32>
    %670 = vector.shape_cast %669 : vector<1x1x32x128xf32> to vector<32x128xf32>
    %c1_758 = arith.constant 1 : index
    %c5_759 = arith.constant 5 : index
    %c0_760 = arith.constant 0 : index
    %c0_761 = arith.constant 0 : index
    %671 = vector.load %arg2[%c1_758, %c5_759, %c0_760, %c0_761] : memref<2x7x32x1xf32, #tpu.memory_space<vmem>>, vector<1x1x32x1xf32>
    %672 = vector.shape_cast %671 : vector<1x1x32x1xf32> to vector<32x1xf32>
    %673 = vector.broadcast %672 : vector<32x1xf32> to vector<32x128xf32>
    %674 = arith.mulf %670, %673 : vector<32x128xf32>
    %675 = arith.addf %661, %674 : vector<32x128xf32>
    %c6_762 = arith.constant 6 : index
    %c5_763 = arith.constant 5 : index
    %c0_764 = arith.constant 0 : index
    %c0_765 = arith.constant 0 : index
    %676 = vector.load %arg1[%c6_762, %c5_763, %c0_764, %c0_765] : memref<7x7x32x128xf32, #tpu.memory_space<vmem>>, vector<1x1x32x128xf32>
    %677 = vector.shape_cast %676 : vector<1x1x32x128xf32> to vector<32x128xf32>
    %c1_766 = arith.constant 1 : index
    %c6_767 = arith.constant 6 : index
    %c0_768 = arith.constant 0 : index
    %c0_769 = arith.constant 0 : index
    %678 = vector.load %arg2[%c1_766, %c6_767, %c0_768, %c0_769] : memref<2x7x32x1xf32, #tpu.memory_space<vmem>>, vector<1x1x32x1xf32>
    %679 = vector.shape_cast %678 : vector<1x1x32x1xf32> to vector<32x1xf32>
    %680 = vector.broadcast %679 : vector<32x1xf32> to vector<32x128xf32>
    %681 = arith.mulf %677, %680 : vector<32x128xf32>
    %682 = arith.addf %668, %681 : vector<32x128xf32>
    %683 = arith.addf %682, %675 : vector<32x128xf32>
    %c1_770 = arith.constant 1 : index
    %c0_771 = arith.constant 0 : index
    %c0_772 = arith.constant 0 : index
    %684 = vector.load %arg3[%c1_770, %c0_771, %c0_772] : memref<2x32x1xf32, #tpu.memory_space<vmem>>, vector<1x32x1xf32>
    %685 = vector.shape_cast %684 : vector<1x32x1xf32> to vector<32x1xf32>
    %686 = vector.broadcast %685 : vector<32x1xf32> to vector<32x128xf32>
    %687 = arith.addf %683, %686 : vector<32x128xf32>
    %c0_773 = arith.constant 0 : index
    %c1536 = arith.constant 1536 : index
    %688 = vector.load %arg9[%c0_773, %c1536] : memref<32x1792xf32, #tpu.memory_space<vmem>>, vector<32x128xf32>
    tpu.vector_store %arg9[%c0_773, %c1536], %687 {strides = array<i32>} : memref<32x1792xf32, #tpu.memory_space<vmem>>, vector<32x128xf32>,
    %c0_774 = arith.constant 0 : index
    %c6_775 = arith.constant 6 : index
    %c0_776 = arith.constant 0 : index
    %c0_777 = arith.constant 0 : index
    %689 = vector.load %arg1[%c0_774, %c6_775, %c0_776, %c0_777] : memref<7x7x32x128xf32, #tpu.memory_space<vmem>>, vector<1x1x32x128xf32>
    %690 = vector.shape_cast %689 : vector<1x1x32x128xf32> to vector<32x128xf32>
    %c1_778 = arith.constant 1 : index
    %c0_779 = arith.constant 0 : index
    %c0_780 = arith.constant 0 : index
    %c0_781 = arith.constant 0 : index
    %691 = vector.load %arg2[%c1_778, %c0_779, %c0_780, %c0_781] : memref<2x7x32x1xf32, #tpu.memory_space<vmem>>, vector<1x1x32x1xf32>
    %692 = vector.shape_cast %691 : vector<1x1x32x1xf32> to vector<32x1xf32>
    %693 = vector.broadcast %692 : vector<32x1xf32> to vector<32x128xf32>
    %694 = arith.mulf %690, %693 : vector<32x128xf32>
    %c1_782 = arith.constant 1 : index
    %c6_783 = arith.constant 6 : index
    %c0_784 = arith.constant 0 : index
    %c0_785 = arith.constant 0 : index
    %695 = vector.load %arg1[%c1_782, %c6_783, %c0_784, %c0_785] : memref<7x7x32x128xf32, #tpu.memory_space<vmem>>, vector<1x1x32x128xf32>
    %696 = vector.shape_cast %695 : vector<1x1x32x128xf32> to vector<32x128xf32>
    %c1_786 = arith.constant 1 : index
    %c1_787 = arith.constant 1 : index
    %c0_788 = arith.constant 0 : index
    %c0_789 = arith.constant 0 : index
    %697 = vector.load %arg2[%c1_786, %c1_787, %c0_788, %c0_789] : memref<2x7x32x1xf32, #tpu.memory_space<vmem>>, vector<1x1x32x1xf32>
    %698 = vector.shape_cast %697 : vector<1x1x32x1xf32> to vector<32x1xf32>
    %699 = vector.broadcast %698 : vector<32x1xf32> to vector<32x128xf32>
    %700 = arith.mulf %696, %699 : vector<32x128xf32>
    %c2_790 = arith.constant 2 : index
    %c6_791 = arith.constant 6 : index
    %c0_792 = arith.constant 0 : index
    %c0_793 = arith.constant 0 : index
    %701 = vector.load %arg1[%c2_790, %c6_791, %c0_792, %c0_793] : memref<7x7x32x128xf32, #tpu.memory_space<vmem>>, vector<1x1x32x128xf32>
    %702 = vector.shape_cast %701 : vector<1x1x32x128xf32> to vector<32x128xf32>
    %c1_794 = arith.constant 1 : index
    %c2_795 = arith.constant 2 : index
    %c0_796 = arith.constant 0 : index
    %c0_797 = arith.constant 0 : index
    %703 = vector.load %arg2[%c1_794, %c2_795, %c0_796, %c0_797] : memref<2x7x32x1xf32, #tpu.memory_space<vmem>>, vector<1x1x32x1xf32>
    %704 = vector.shape_cast %703 : vector<1x1x32x1xf32> to vector<32x1xf32>
    %705 = vector.broadcast %704 : vector<32x1xf32> to vector<32x128xf32>
    %706 = arith.mulf %702, %705 : vector<32x128xf32>
    %707 = arith.addf %694, %706 : vector<32x128xf32>
    %c3_798 = arith.constant 3 : index
    %c6_799 = arith.constant 6 : index
    %c0_800 = arith.constant 0 : index
    %c0_801 = arith.constant 0 : index
    %708 = vector.load %arg1[%c3_798, %c6_799, %c0_800, %c0_801] : memref<7x7x32x128xf32, #tpu.memory_space<vmem>>, vector<1x1x32x128xf32>
    %709 = vector.shape_cast %708 : vector<1x1x32x128xf32> to vector<32x128xf32>
    %c1_802 = arith.constant 1 : index
    %c3_803 = arith.constant 3 : index
    %c0_804 = arith.constant 0 : index
    %c0_805 = arith.constant 0 : index
    %710 = vector.load %arg2[%c1_802, %c3_803, %c0_804, %c0_805] : memref<2x7x32x1xf32, #tpu.memory_space<vmem>>, vector<1x1x32x1xf32>
    %711 = vector.shape_cast %710 : vector<1x1x32x1xf32> to vector<32x1xf32>
    %712 = vector.broadcast %711 : vector<32x1xf32> to vector<32x128xf32>
    %713 = arith.mulf %709, %712 : vector<32x128xf32>
    %714 = arith.addf %700, %713 : vector<32x128xf32>
    %c4_806 = arith.constant 4 : index
    %c6_807 = arith.constant 6 : index
    %c0_808 = arith.constant 0 : index
    %c0_809 = arith.constant 0 : index
    %715 = vector.load %arg1[%c4_806, %c6_807, %c0_808, %c0_809] : memref<7x7x32x128xf32, #tpu.memory_space<vmem>>, vector<1x1x32x128xf32>
    %716 = vector.shape_cast %715 : vector<1x1x32x128xf32> to vector<32x128xf32>
    %c1_810 = arith.constant 1 : index
    %c4_811 = arith.constant 4 : index
    %c0_812 = arith.constant 0 : index
    %c0_813 = arith.constant 0 : index
    %717 = vector.load %arg2[%c1_810, %c4_811, %c0_812, %c0_813] : memref<2x7x32x1xf32, #tpu.memory_space<vmem>>, vector<1x1x32x1xf32>
    %718 = vector.shape_cast %717 : vector<1x1x32x1xf32> to vector<32x1xf32>
    %719 = vector.broadcast %718 : vector<32x1xf32> to vector<32x128xf32>
    %720 = arith.mulf %716, %719 : vector<32x128xf32>
    %721 = arith.addf %707, %720 : vector<32x128xf32>
    %c5_814 = arith.constant 5 : index
    %c6_815 = arith.constant 6 : index
    %c0_816 = arith.constant 0 : index
    %c0_817 = arith.constant 0 : index
    %722 = vector.load %arg1[%c5_814, %c6_815, %c0_816, %c0_817] : memref<7x7x32x128xf32, #tpu.memory_space<vmem>>, vector<1x1x32x128xf32>
    %723 = vector.shape_cast %722 : vector<1x1x32x128xf32> to vector<32x128xf32>
    %c1_818 = arith.constant 1 : index
    %c5_819 = arith.constant 5 : index
    %c0_820 = arith.constant 0 : index
    %c0_821 = arith.constant 0 : index
    %724 = vector.load %arg2[%c1_818, %c5_819, %c0_820, %c0_821] : memref<2x7x32x1xf32, #tpu.memory_space<vmem>>, vector<1x1x32x1xf32>
    %725 = vector.shape_cast %724 : vector<1x1x32x1xf32> to vector<32x1xf32>
    %726 = vector.broadcast %725 : vector<32x1xf32> to vector<32x128xf32>
    %727 = arith.mulf %723, %726 : vector<32x128xf32>
    %728 = arith.addf %714, %727 : vector<32x128xf32>
    %c6_822 = arith.constant 6 : index
    %c6_823 = arith.constant 6 : index
    %c0_824 = arith.constant 0 : index
    %c0_825 = arith.constant 0 : index
    %729 = vector.load %arg1[%c6_822, %c6_823, %c0_824, %c0_825] : memref<7x7x32x128xf32, #tpu.memory_space<vmem>>, vector<1x1x32x128xf32>
    %730 = vector.shape_cast %729 : vector<1x1x32x128xf32> to vector<32x128xf32>
    %c1_826 = arith.constant 1 : index
    %c6_827 = arith.constant 6 : index
    %c0_828 = arith.constant 0 : index
    %c0_829 = arith.constant 0 : index
    %731 = vector.load %arg2[%c1_826, %c6_827, %c0_828, %c0_829] : memref<2x7x32x1xf32, #tpu.memory_space<vmem>>, vector<1x1x32x1xf32>
    %732 = vector.shape_cast %731 : vector<1x1x32x1xf32> to vector<32x1xf32>
    %733 = vector.broadcast %732 : vector<32x1xf32> to vector<32x128xf32>
    %734 = arith.mulf %730, %733 : vector<32x128xf32>
    %735 = arith.addf %721, %734 : vector<32x128xf32>
    %736 = arith.addf %735, %728 : vector<32x128xf32>
    %c1_830 = arith.constant 1 : index
    %c0_831 = arith.constant 0 : index
    %c0_832 = arith.constant 0 : index
    %737 = vector.load %arg3[%c1_830, %c0_831, %c0_832] : memref<2x32x1xf32, #tpu.memory_space<vmem>>, vector<1x32x1xf32>
    %738 = vector.shape_cast %737 : vector<1x32x1xf32> to vector<32x1xf32>
    %739 = vector.broadcast %738 : vector<32x1xf32> to vector<32x128xf32>
    %740 = arith.addf %736, %739 : vector<32x128xf32>
    %c0_833 = arith.constant 0 : index
    %c1664 = arith.constant 1664 : index
    %741 = vector.load %arg9[%c0_833, %c1664] : memref<32x1792xf32, #tpu.memory_space<vmem>>, vector<32x128xf32>
    tpu.vector_store %arg9[%c0_833, %c1664], %740 {strides = array<i32>} : memref<32x1792xf32, #tpu.memory_space<vmem>>, vector<32x128xf32>,
    %c0_834 = arith.constant 0 : index
    %c0_835 = arith.constant 0 : index
    %742 = vector.load %arg4[%c0_834, %c0_835] : memref<8x32xf32, #tpu.memory_space<vmem>>, vector<8x32xf32>
    %c0_836 = arith.constant 0 : index
    %c0_837 = arith.constant 0 : index
    %743 = vector.load %arg9[%c0_836, %c0_837] : memref<32x1792xf32, #tpu.memory_space<vmem>>, vector<32x1792xf32>
    %cst = arith.constant dense<0.000000e+00> : vector<8x1792xf32>
    %744 = tpu.matmul %742, %743, %cst {dimension_numbers = #tpu.dot_dimension_numbers<[1], [0], [0], [1], [0, 0, 1, 1], [], []>} : vector<8x32xf32>, vector<32x1792xf32>, vector<8x1792xf32> -> vector<8x1792xf32>
    %c0_838 = arith.constant 0 : index
    %c0_839 = arith.constant 0 : index
    %745 = vector.load %arg5[%c0_838, %c0_839] : memref<8x1xf32, #tpu.memory_space<vmem>>, vector<8x1xf32>
    %746 = vector.broadcast %745 : vector<8x1xf32> to vector<8x1792xf32>
    %747 = arith.addf %744, %746 : vector<8x1792xf32>
    %cst_840 = arith.constant 3.000000e+00 : f32
    %748 = vector.broadcast %cst_840 : f32 to vector<8x1792xf32>
    %749 = arith.addf %747, %748 : vector<8x1792xf32>
    %cst_841 = arith.constant 0.000000e+00 : f32
    %cst_842 = arith.constant 6.000000e+00 : f32
    %750 = vector.broadcast %cst_841 : f32 to vector<8x1792xf32>
    %751 = arith.maximumf %750, %749 : vector<8x1792xf32>
    %752 = vector.broadcast %cst_842 : f32 to vector<8x1792xf32>
    %753 = arith.minimumf %752, %751 : vector<8x1792xf32>
    %cst_843 = arith.constant 0.166666672 : f32
    %754 = vector.broadcast %cst_843 : f32 to vector<8x1792xf32>
    %755 = arith.mulf %753, %754 : vector<8x1792xf32>
    %756 = arith.mulf %747, %755 : vector<8x1792xf32>
    %757 = vector.extract_strided_slice %756 {offsets = [0, 0], sizes = [8, 128], strides = [1, 1]} : vector<8x1792xf32> to vector<8x128xf32>
    %758 = vector.extract_strided_slice %756 {offsets = [0, 896], sizes = [8, 128], strides = [1, 1]} : vector<8x1792xf32> to vector<8x128xf32>
    %759 = tpu.concatenate %757, %758 in 0 : vector<8x128xf32>, vector<8x128xf32> -> vector<16x128xf32>
    %c0_844 = arith.constant 0 : index
    %c0_845 = arith.constant 0 : index
    %760 = vector.load %arg6[%c0_844, %c0_845] : memref<64x16xf32, #tpu.memory_space<vmem>>, vector<64x16xf32>
    %cst_846 = arith.constant dense<0.000000e+00> : vector<64x128xf32>
    %761 = tpu.matmul %760, %759, %cst_846 {dimension_numbers = #tpu.dot_dimension_numbers<[1], [0], [0], [1], [0, 0, 1, 1], [], []>} : vector<64x16xf32>, vector<16x128xf32>, vector<64x128xf32> -> vector<64x128xf32>
    %c0_847 = arith.constant 0 : index
    %c0_848 = arith.constant 0 : index
    %762 = vector.load %arg7[%c0_847, %c0_848] : memref<64x1xf32, #tpu.memory_space<vmem>>, vector<64x1xf32>
    %763 = vector.broadcast %762 : vector<64x1xf32> to vector<64x128xf32>
    %764 = arith.addf %761, %763 : vector<64x128xf32>
    %765 = arith.negf %764 : vector<64x128xf32>
    %766 = math.exp %765 : vector<64x128xf32>
    %cst_849 = arith.constant 1.000000e+00 : f32
    %767 = vector.broadcast %cst_849 : f32 to vector<64x128xf32>
    %768 = arith.addf %767, %766 : vector<64x128xf32>
    %769 = arith.divf %767, %768 : vector<64x128xf32>
    %770 = vector.extract_strided_slice %769 {offsets = [0, 0], sizes = [32, 128], strides = [1, 1]} : vector<64x128xf32> to vector<32x128xf32>
    %c0_850 = arith.constant 0 : index
    %c0_851 = arith.constant 0 : index
    %c0_852 = arith.constant 0 : index
    %771 = vector.load %arg10[%c0_850, %c0_851, %c0_852] : memref<2x32x896xf32, #tpu.memory_space<vmem>>, vector<1x32x128xf32>
    %772 = vector.shape_cast %771 : vector<1x32x128xf32> to vector<32x128xf32>
    %773 = vector.shape_cast %770 : vector<32x128xf32> to vector<1x32x128xf32>
    tpu.vector_store %arg10[%c0_850, %c0_851, %c0_852], %773 {strides = array<i32>} : memref<2x32x896xf32, #tpu.memory_space<vmem>>, vector<1x32x128xf32>,
    %774 = vector.extract_strided_slice %769 {offsets = [32, 0], sizes = [32, 128], strides = [1, 1]} : vector<64x128xf32> to vector<32x128xf32>
    %c1_853 = arith.constant 1 : index
    %c0_854 = arith.constant 0 : index
    %c0_855 = arith.constant 0 : index
    %775 = vector.load %arg10[%c1_853, %c0_854, %c0_855] : memref<2x32x896xf32, #tpu.memory_space<vmem>>, vector<1x32x128xf32>
    %776 = vector.shape_cast %775 : vector<1x32x128xf32> to vector<32x128xf32>
    %777 = vector.shape_cast %774 : vector<32x128xf32> to vector<1x32x128xf32>
    tpu.vector_store %arg10[%c1_853, %c0_854, %c0_855], %777 {strides = array<i32>} : memref<2x32x896xf32, #tpu.memory_space<vmem>>, vector<1x32x128xf32>,
    %778 = vector.extract_strided_slice %756 {offsets = [0, 128], sizes = [8, 128], strides = [1, 1]} : vector<8x1792xf32> to vector<8x128xf32>
    %779 = vector.extract_strided_slice %756 {offsets = [0, 1024], sizes = [8, 128], strides = [1, 1]} : vector<8x1792xf32> to vector<8x128xf32>
    %780 = tpu.concatenate %778, %779 in 0 : vector<8x128xf32>, vector<8x128xf32> -> vector<16x128xf32>
    %c0_856 = arith.constant 0 : index
    %c0_857 = arith.constant 0 : index
    %781 = vector.load %arg6[%c0_856, %c0_857] : memref<64x16xf32, #tpu.memory_space<vmem>>, vector<64x16xf32>
    %cst_858 = arith.constant dense<0.000000e+00> : vector<64x128xf32>
    %782 = tpu.matmul %781, %780, %cst_858 {dimension_numbers = #tpu.dot_dimension_numbers<[1], [0], [0], [1], [0, 0, 1, 1], [], []>} : vector<64x16xf32>, vector<16x128xf32>, vector<64x128xf32> -> vector<64x128xf32>
    %c0_859 = arith.constant 0 : index
    %c0_860 = arith.constant 0 : index
    %783 = vector.load %arg7[%c0_859, %c0_860] : memref<64x1xf32, #tpu.memory_space<vmem>>, vector<64x1xf32>
    %784 = vector.broadcast %783 : vector<64x1xf32> to vector<64x128xf32>
    %785 = arith.addf %782, %784 : vector<64x128xf32>
    %786 = arith.negf %785 : vector<64x128xf32>
    %787 = math.exp %786 : vector<64x128xf32>
    %cst_861 = arith.constant 1.000000e+00 : f32
    %788 = vector.broadcast %cst_861 : f32 to vector<64x128xf32>
    %789 = arith.addf %788, %787 : vector<64x128xf32>
    %790 = arith.divf %788, %789 : vector<64x128xf32>
    %791 = vector.extract_strided_slice %790 {offsets = [0, 0], sizes = [32, 128], strides = [1, 1]} : vector<64x128xf32> to vector<32x128xf32>
    %c0_862 = arith.constant 0 : index
    %c0_863 = arith.constant 0 : index
    %c128_864 = arith.constant 128 : index
    %792 = vector.load %arg10[%c0_862, %c0_863, %c128_864] : memref<2x32x896xf32, #tpu.memory_space<vmem>>, vector<1x32x128xf32>
    %793 = vector.shape_cast %792 : vector<1x32x128xf32> to vector<32x128xf32>
    %794 = vector.shape_cast %791 : vector<32x128xf32> to vector<1x32x128xf32>
    tpu.vector_store %arg10[%c0_862, %c0_863, %c128_864], %794 {strides = array<i32>} : memref<2x32x896xf32, #tpu.memory_space<vmem>>, vector<1x32x128xf32>,
    %795 = vector.extract_strided_slice %790 {offsets = [32, 0], sizes = [32, 128], strides = [1, 1]} : vector<64x128xf32> to vector<32x128xf32>
    %c1_865 = arith.constant 1 : index
    %c0_866 = arith.constant 0 : index
    %c128_867 = arith.constant 128 : index
    %796 = vector.load %arg10[%c1_865, %c0_866, %c128_867] : memref<2x32x896xf32, #tpu.memory_space<vmem>>, vector<1x32x128xf32>
    %797 = vector.shape_cast %796 : vector<1x32x128xf32> to vector<32x128xf32>
    %798 = vector.shape_cast %795 : vector<32x128xf32> to vector<1x32x128xf32>
    tpu.vector_store %arg10[%c1_865, %c0_866, %c128_867], %798 {strides = array<i32>} : memref<2x32x896xf32, #tpu.memory_space<vmem>>, vector<1x32x128xf32>,
    %799 = vector.extract_strided_slice %756 {offsets = [0, 256], sizes = [8, 128], strides = [1, 1]} : vector<8x1792xf32> to vector<8x128xf32>
    %800 = vector.extract_strided_slice %756 {offsets = [0, 1152], sizes = [8, 128], strides = [1, 1]} : vector<8x1792xf32> to vector<8x128xf32>
    %801 = tpu.concatenate %799, %800 in 0 : vector<8x128xf32>, vector<8x128xf32> -> vector<16x128xf32>
    %c0_868 = arith.constant 0 : index
    %c0_869 = arith.constant 0 : index
    %802 = vector.load %arg6[%c0_868, %c0_869] : memref<64x16xf32, #tpu.memory_space<vmem>>, vector<64x16xf32>
    %cst_870 = arith.constant dense<0.000000e+00> : vector<64x128xf32>
    %803 = tpu.matmul %802, %801, %cst_870 {dimension_numbers = #tpu.dot_dimension_numbers<[1], [0], [0], [1], [0, 0, 1, 1], [], []>} : vector<64x16xf32>, vector<16x128xf32>, vector<64x128xf32> -> vector<64x128xf32>
    %c0_871 = arith.constant 0 : index
    %c0_872 = arith.constant 0 : index
    %804 = vector.load %arg7[%c0_871, %c0_872] : memref<64x1xf32, #tpu.memory_space<vmem>>, vector<64x1xf32>
    %805 = vector.broadcast %804 : vector<64x1xf32> to vector<64x128xf32>
    %806 = arith.addf %803, %805 : vector<64x128xf32>
    %807 = arith.negf %806 : vector<64x128xf32>
    %808 = math.exp %807 : vector<64x128xf32>
    %cst_873 = arith.constant 1.000000e+00 : f32
    %809 = vector.broadcast %cst_873 : f32 to vector<64x128xf32>
    %810 = arith.addf %809, %808 : vector<64x128xf32>
    %811 = arith.divf %809, %810 : vector<64x128xf32>
    %812 = vector.extract_strided_slice %811 {offsets = [0, 0], sizes = [32, 128], strides = [1, 1]} : vector<64x128xf32> to vector<32x128xf32>
    %c0_874 = arith.constant 0 : index
    %c0_875 = arith.constant 0 : index
    %c256_876 = arith.constant 256 : index
    %813 = vector.load %arg10[%c0_874, %c0_875, %c256_876] : memref<2x32x896xf32, #tpu.memory_space<vmem>>, vector<1x32x128xf32>
    %814 = vector.shape_cast %813 : vector<1x32x128xf32> to vector<32x128xf32>
    %815 = vector.shape_cast %812 : vector<32x128xf32> to vector<1x32x128xf32>
    tpu.vector_store %arg10[%c0_874, %c0_875, %c256_876], %815 {strides = array<i32>} : memref<2x32x896xf32, #tpu.memory_space<vmem>>, vector<1x32x128xf32>,
    %816 = vector.extract_strided_slice %811 {offsets = [32, 0], sizes = [32, 128], strides = [1, 1]} : vector<64x128xf32> to vector<32x128xf32>
    %c1_877 = arith.constant 1 : index
    %c0_878 = arith.constant 0 : index
    %c256_879 = arith.constant 256 : index
    %817 = vector.load %arg10[%c1_877, %c0_878, %c256_879] : memref<2x32x896xf32, #tpu.memory_space<vmem>>, vector<1x32x128xf32>
    %818 = vector.shape_cast %817 : vector<1x32x128xf32> to vector<32x128xf32>
    %819 = vector.shape_cast %816 : vector<32x128xf32> to vector<1x32x128xf32>
    tpu.vector_store %arg10[%c1_877, %c0_878, %c256_879], %819 {strides = array<i32>} : memref<2x32x896xf32, #tpu.memory_space<vmem>>, vector<1x32x128xf32>,
    %820 = vector.extract_strided_slice %756 {offsets = [0, 384], sizes = [8, 128], strides = [1, 1]} : vector<8x1792xf32> to vector<8x128xf32>
    %821 = vector.extract_strided_slice %756 {offsets = [0, 1280], sizes = [8, 128], strides = [1, 1]} : vector<8x1792xf32> to vector<8x128xf32>
    %822 = tpu.concatenate %820, %821 in 0 : vector<8x128xf32>, vector<8x128xf32> -> vector<16x128xf32>
    %c0_880 = arith.constant 0 : index
    %c0_881 = arith.constant 0 : index
    %823 = vector.load %arg6[%c0_880, %c0_881] : memref<64x16xf32, #tpu.memory_space<vmem>>, vector<64x16xf32>
    %cst_882 = arith.constant dense<0.000000e+00> : vector<64x128xf32>
    %824 = tpu.matmul %823, %822, %cst_882 {dimension_numbers = #tpu.dot_dimension_numbers<[1], [0], [0], [1], [0, 0, 1, 1], [], []>} : vector<64x16xf32>, vector<16x128xf32>, vector<64x128xf32> -> vector<64x128xf32>
    %c0_883 = arith.constant 0 : index
    %c0_884 = arith.constant 0 : index
    %825 = vector.load %arg7[%c0_883, %c0_884] : memref<64x1xf32, #tpu.memory_space<vmem>>, vector<64x1xf32>
    %826 = vector.broadcast %825 : vector<64x1xf32> to vector<64x128xf32>
    %827 = arith.addf %824, %826 : vector<64x128xf32>
    %828 = arith.negf %827 : vector<64x128xf32>
    %829 = math.exp %828 : vector<64x128xf32>
    %cst_885 = arith.constant 1.000000e+00 : f32
    %830 = vector.broadcast %cst_885 : f32 to vector<64x128xf32>
    %831 = arith.addf %830, %829 : vector<64x128xf32>
    %832 = arith.divf %830, %831 : vector<64x128xf32>
    %833 = vector.extract_strided_slice %832 {offsets = [0, 0], sizes = [32, 128], strides = [1, 1]} : vector<64x128xf32> to vector<32x128xf32>
    %c0_886 = arith.constant 0 : index
    %c0_887 = arith.constant 0 : index
    %c384_888 = arith.constant 384 : index
    %834 = vector.load %arg10[%c0_886, %c0_887, %c384_888] : memref<2x32x896xf32, #tpu.memory_space<vmem>>, vector<1x32x128xf32>
    %835 = vector.shape_cast %834 : vector<1x32x128xf32> to vector<32x128xf32>
    %836 = vector.shape_cast %833 : vector<32x128xf32> to vector<1x32x128xf32>
    tpu.vector_store %arg10[%c0_886, %c0_887, %c384_888], %836 {strides = array<i32>} : memref<2x32x896xf32, #tpu.memory_space<vmem>>, vector<1x32x128xf32>,
    %837 = vector.extract_strided_slice %832 {offsets = [32, 0], sizes = [32, 128], strides = [1, 1]} : vector<64x128xf32> to vector<32x128xf32>
    %c1_889 = arith.constant 1 : index
    %c0_890 = arith.constant 0 : index
    %c384_891 = arith.constant 384 : index
    %838 = vector.load %arg10[%c1_889, %c0_890, %c384_891] : memref<2x32x896xf32, #tpu.memory_space<vmem>>, vector<1x32x128xf32>
    %839 = vector.shape_cast %838 : vector<1x32x128xf32> to vector<32x128xf32>
    %840 = vector.shape_cast %837 : vector<32x128xf32> to vector<1x32x128xf32>
    tpu.vector_store %arg10[%c1_889, %c0_890, %c384_891], %840 {strides = array<i32>} : memref<2x32x896xf32, #tpu.memory_space<vmem>>, vector<1x32x128xf32>,
    %841 = vector.extract_strided_slice %756 {offsets = [0, 512], sizes = [8, 128], strides = [1, 1]} : vector<8x1792xf32> to vector<8x128xf32>
    %842 = vector.extract_strided_slice %756 {offsets = [0, 1408], sizes = [8, 128], strides = [1, 1]} : vector<8x1792xf32> to vector<8x128xf32>
    %843 = tpu.concatenate %841, %842 in 0 : vector<8x128xf32>, vector<8x128xf32> -> vector<16x128xf32>
    %c0_892 = arith.constant 0 : index
    %c0_893 = arith.constant 0 : index
    %844 = vector.load %arg6[%c0_892, %c0_893] : memref<64x16xf32, #tpu.memory_space<vmem>>, vector<64x16xf32>
    %cst_894 = arith.constant dense<0.000000e+00> : vector<64x128xf32>
    %845 = tpu.matmul %844, %843, %cst_894 {dimension_numbers = #tpu.dot_dimension_numbers<[1], [0], [0], [1], [0, 0, 1, 1], [], []>} : vector<64x16xf32>, vector<16x128xf32>, vector<64x128xf32> -> vector<64x128xf32>
    %c0_895 = arith.constant 0 : index
    %c0_896 = arith.constant 0 : index
    %846 = vector.load %arg7[%c0_895, %c0_896] : memref<64x1xf32, #tpu.memory_space<vmem>>, vector<64x1xf32>
    %847 = vector.broadcast %846 : vector<64x1xf32> to vector<64x128xf32>
    %848 = arith.addf %845, %847 : vector<64x128xf32>
    %849 = arith.negf %848 : vector<64x128xf32>
    %850 = math.exp %849 : vector<64x128xf32>
    %cst_897 = arith.constant 1.000000e+00 : f32
    %851 = vector.broadcast %cst_897 : f32 to vector<64x128xf32>
    %852 = arith.addf %851, %850 : vector<64x128xf32>
    %853 = arith.divf %851, %852 : vector<64x128xf32>
    %854 = vector.extract_strided_slice %853 {offsets = [0, 0], sizes = [32, 128], strides = [1, 1]} : vector<64x128xf32> to vector<32x128xf32>
    %c0_898 = arith.constant 0 : index
    %c0_899 = arith.constant 0 : index
    %c512_900 = arith.constant 512 : index
    %855 = vector.load %arg10[%c0_898, %c0_899, %c512_900] : memref<2x32x896xf32, #tpu.memory_space<vmem>>, vector<1x32x128xf32>
    %856 = vector.shape_cast %855 : vector<1x32x128xf32> to vector<32x128xf32>
    %857 = vector.shape_cast %854 : vector<32x128xf32> to vector<1x32x128xf32>
    tpu.vector_store %arg10[%c0_898, %c0_899, %c512_900], %857 {strides = array<i32>} : memref<2x32x896xf32, #tpu.memory_space<vmem>>, vector<1x32x128xf32>,
    %858 = vector.extract_strided_slice %853 {offsets = [32, 0], sizes = [32, 128], strides = [1, 1]} : vector<64x128xf32> to vector<32x128xf32>
    %c1_901 = arith.constant 1 : index
    %c0_902 = arith.constant 0 : index
    %c512_903 = arith.constant 512 : index
    %859 = vector.load %arg10[%c1_901, %c0_902, %c512_903] : memref<2x32x896xf32, #tpu.memory_space<vmem>>, vector<1x32x128xf32>
    %860 = vector.shape_cast %859 : vector<1x32x128xf32> to vector<32x128xf32>
    %861 = vector.shape_cast %858 : vector<32x128xf32> to vector<1x32x128xf32>
    tpu.vector_store %arg10[%c1_901, %c0_902, %c512_903], %861 {strides = array<i32>} : memref<2x32x896xf32, #tpu.memory_space<vmem>>, vector<1x32x128xf32>,
    %862 = vector.extract_strided_slice %756 {offsets = [0, 640], sizes = [8, 128], strides = [1, 1]} : vector<8x1792xf32> to vector<8x128xf32>
    %863 = vector.extract_strided_slice %756 {offsets = [0, 1536], sizes = [8, 128], strides = [1, 1]} : vector<8x1792xf32> to vector<8x128xf32>
    %864 = tpu.concatenate %862, %863 in 0 : vector<8x128xf32>, vector<8x128xf32> -> vector<16x128xf32>
    %c0_904 = arith.constant 0 : index
    %c0_905 = arith.constant 0 : index
    %865 = vector.load %arg6[%c0_904, %c0_905] : memref<64x16xf32, #tpu.memory_space<vmem>>, vector<64x16xf32>
    %cst_906 = arith.constant dense<0.000000e+00> : vector<64x128xf32>
    %866 = tpu.matmul %865, %864, %cst_906 {dimension_numbers = #tpu.dot_dimension_numbers<[1], [0], [0], [1], [0, 0, 1, 1], [], []>} : vector<64x16xf32>, vector<16x128xf32>, vector<64x128xf32> -> vector<64x128xf32>
    %c0_907 = arith.constant 0 : index
    %c0_908 = arith.constant 0 : index
    %867 = vector.load %arg7[%c0_907, %c0_908] : memref<64x1xf32, #tpu.memory_space<vmem>>, vector<64x1xf32>
    %868 = vector.broadcast %867 : vector<64x1xf32> to vector<64x128xf32>
    %869 = arith.addf %866, %868 : vector<64x128xf32>
    %870 = arith.negf %869 : vector<64x128xf32>
    %871 = math.exp %870 : vector<64x128xf32>
    %cst_909 = arith.constant 1.000000e+00 : f32
    %872 = vector.broadcast %cst_909 : f32 to vector<64x128xf32>
    %873 = arith.addf %872, %871 : vector<64x128xf32>
    %874 = arith.divf %872, %873 : vector<64x128xf32>
    %875 = vector.extract_strided_slice %874 {offsets = [0, 0], sizes = [32, 128], strides = [1, 1]} : vector<64x128xf32> to vector<32x128xf32>
    %c0_910 = arith.constant 0 : index
    %c0_911 = arith.constant 0 : index
    %c640_912 = arith.constant 640 : index
    %876 = vector.load %arg10[%c0_910, %c0_911, %c640_912] : memref<2x32x896xf32, #tpu.memory_space<vmem>>, vector<1x32x128xf32>
    %877 = vector.shape_cast %876 : vector<1x32x128xf32> to vector<32x128xf32>
    %878 = vector.shape_cast %875 : vector<32x128xf32> to vector<1x32x128xf32>
    tpu.vector_store %arg10[%c0_910, %c0_911, %c640_912], %878 {strides = array<i32>} : memref<2x32x896xf32, #tpu.memory_space<vmem>>, vector<1x32x128xf32>,
    %879 = vector.extract_strided_slice %874 {offsets = [32, 0], sizes = [32, 128], strides = [1, 1]} : vector<64x128xf32> to vector<32x128xf32>
    %c1_913 = arith.constant 1 : index
    %c0_914 = arith.constant 0 : index
    %c640_915 = arith.constant 640 : index
    %880 = vector.load %arg10[%c1_913, %c0_914, %c640_915] : memref<2x32x896xf32, #tpu.memory_space<vmem>>, vector<1x32x128xf32>
    %881 = vector.shape_cast %880 : vector<1x32x128xf32> to vector<32x128xf32>
    %882 = vector.shape_cast %879 : vector<32x128xf32> to vector<1x32x128xf32>
    tpu.vector_store %arg10[%c1_913, %c0_914, %c640_915], %882 {strides = array<i32>} : memref<2x32x896xf32, #tpu.memory_space<vmem>>, vector<1x32x128xf32>,
    %883 = vector.extract_strided_slice %756 {offsets = [0, 768], sizes = [8, 128], strides = [1, 1]} : vector<8x1792xf32> to vector<8x128xf32>
    %884 = vector.extract_strided_slice %756 {offsets = [0, 1664], sizes = [8, 128], strides = [1, 1]} : vector<8x1792xf32> to vector<8x128xf32>
    %885 = tpu.concatenate %883, %884 in 0 : vector<8x128xf32>, vector<8x128xf32> -> vector<16x128xf32>
    %c0_916 = arith.constant 0 : index
    %c0_917 = arith.constant 0 : index
    %886 = vector.load %arg6[%c0_916, %c0_917] : memref<64x16xf32, #tpu.memory_space<vmem>>, vector<64x16xf32>
    %cst_918 = arith.constant dense<0.000000e+00> : vector<64x128xf32>
    %887 = tpu.matmul %886, %885, %cst_918 {dimension_numbers = #tpu.dot_dimension_numbers<[1], [0], [0], [1], [0, 0, 1, 1], [], []>} : vector<64x16xf32>, vector<16x128xf32>, vector<64x128xf32> -> vector<64x128xf32>
    %c0_919 = arith.constant 0 : index
    %c0_920 = arith.constant 0 : index
    %888 = vector.load %arg7[%c0_919, %c0_920] : memref<64x1xf32, #tpu.memory_space<vmem>>, vector<64x1xf32>
    %889 = vector.broadcast %888 : vector<64x1xf32> to vector<64x128xf32>
    %890 = arith.addf %887, %889 : vector<64x128xf32>
    %891 = arith.negf %890 : vector<64x128xf32>
    %892 = math.exp %891 : vector<64x128xf32>
    %cst_921 = arith.constant 1.000000e+00 : f32
    %893 = vector.broadcast %cst_921 : f32 to vector<64x128xf32>
    %894 = arith.addf %893, %892 : vector<64x128xf32>
    %895 = arith.divf %893, %894 : vector<64x128xf32>
    %896 = vector.extract_strided_slice %895 {offsets = [0, 0], sizes = [32, 128], strides = [1, 1]} : vector<64x128xf32> to vector<32x128xf32>
    %c0_922 = arith.constant 0 : index
    %c0_923 = arith.constant 0 : index
    %c768_924 = arith.constant 768 : index
    %897 = vector.load %arg10[%c0_922, %c0_923, %c768_924] : memref<2x32x896xf32, #tpu.memory_space<vmem>>, vector<1x32x128xf32>
    %898 = vector.shape_cast %897 : vector<1x32x128xf32> to vector<32x128xf32>
    %899 = vector.shape_cast %896 : vector<32x128xf32> to vector<1x32x128xf32>
    tpu.vector_store %arg10[%c0_922, %c0_923, %c768_924], %899 {strides = array<i32>} : memref<2x32x896xf32, #tpu.memory_space<vmem>>, vector<1x32x128xf32>,
    %900 = vector.extract_strided_slice %895 {offsets = [32, 0], sizes = [32, 128], strides = [1, 1]} : vector<64x128xf32> to vector<32x128xf32>
    %c1_925 = arith.constant 1 : index
    %c0_926 = arith.constant 0 : index
    %c768_927 = arith.constant 768 : index
    %901 = vector.load %arg10[%c1_925, %c0_926, %c768_927] : memref<2x32x896xf32, #tpu.memory_space<vmem>>, vector<1x32x128xf32>
    %902 = vector.shape_cast %901 : vector<1x32x128xf32> to vector<32x128xf32>
    %903 = vector.shape_cast %900 : vector<32x128xf32> to vector<1x32x128xf32>
    tpu.vector_store %arg10[%c1_925, %c0_926, %c768_927], %903 {strides = array<i32>} : memref<2x32x896xf32, #tpu.memory_space<vmem>>, vector<1x32x128xf32>,
    %c0_928 = arith.constant 0 : index
    %c0_929 = arith.constant 0 : index
    %c0_930 = arith.constant 0 : index
    %904 = vector.load %arg10[%c0_928, %c0_929, %c0_930] : memref<2x32x896xf32, #tpu.memory_space<vmem>>, vector<1x32x128xf32>
    %905 = vector.shape_cast %904 : vector<1x32x128xf32> to vector<32x128xf32>
    %c1_931 = arith.constant 1 : index
    %c0_932 = arith.constant 0 : index
    %c0_933 = arith.constant 0 : index
    %906 = vector.load %arg10[%c1_931, %c0_932, %c0_933] : memref<2x32x896xf32, #tpu.memory_space<vmem>>, vector<1x32x128xf32>
    %907 = vector.shape_cast %906 : vector<1x32x128xf32> to vector<32x128xf32>
    %908 = arith.mulf %905, %907 : vector<32x128xf32>
    %c0_934 = arith.constant 0 : index
    %c0_935 = arith.constant 0 : index
    %c0_936 = arith.constant 0 : index
    %c0_937 = arith.constant 0 : index
    %909 = vector.load %arg8[%c0_934, %c0_935, %c0_936, %c0_937] : memref<7x7x32x128xf32, #tpu.memory_space<vmem>>, vector<1x1x32x128xf32>
    %910 = vector.shape_cast %909 : vector<1x1x32x128xf32> to vector<32x128xf32>
    %911 = vector.shape_cast %908 : vector<32x128xf32> to vector<1x1x32x128xf32>
    tpu.vector_store %arg8[%c0_934, %c0_935, %c0_936, %c0_937], %911 {strides = array<i32>} : memref<7x7x32x128xf32, #tpu.memory_space<vmem>>, vector<1x1x32x128xf32>,
    %c1_938 = arith.constant 1 : index
    %c0_939 = arith.constant 0 : index
    %c128_940 = arith.constant 128 : index
    %912 = vector.load %arg10[%c1_938, %c0_939, %c128_940] : memref<2x32x896xf32, #tpu.memory_space<vmem>>, vector<1x32x128xf32>
    %913 = vector.shape_cast %912 : vector<1x32x128xf32> to vector<32x128xf32>
    %914 = arith.mulf %905, %913 : vector<32x128xf32>
    %c0_941 = arith.constant 0 : index
    %c1_942 = arith.constant 1 : index
    %c0_943 = arith.constant 0 : index
    %c0_944 = arith.constant 0 : index
    %915 = vector.load %arg8[%c0_941, %c1_942, %c0_943, %c0_944] : memref<7x7x32x128xf32, #tpu.memory_space<vmem>>, vector<1x1x32x128xf32>
    %916 = vector.shape_cast %915 : vector<1x1x32x128xf32> to vector<32x128xf32>
    %917 = vector.shape_cast %914 : vector<32x128xf32> to vector<1x1x32x128xf32>
    tpu.vector_store %arg8[%c0_941, %c1_942, %c0_943, %c0_944], %917 {strides = array<i32>} : memref<7x7x32x128xf32, #tpu.memory_space<vmem>>, vector<1x1x32x128xf32>,
    %c1_945 = arith.constant 1 : index
    %c0_946 = arith.constant 0 : index
    %c256_947 = arith.constant 256 : index
    %918 = vector.load %arg10[%c1_945, %c0_946, %c256_947] : memref<2x32x896xf32, #tpu.memory_space<vmem>>, vector<1x32x128xf32>
    %919 = vector.shape_cast %918 : vector<1x32x128xf32> to vector<32x128xf32>
    %920 = arith.mulf %905, %919 : vector<32x128xf32>
    %c0_948 = arith.constant 0 : index
    %c2_949 = arith.constant 2 : index
    %c0_950 = arith.constant 0 : index
    %c0_951 = arith.constant 0 : index
    %921 = vector.load %arg8[%c0_948, %c2_949, %c0_950, %c0_951] : memref<7x7x32x128xf32, #tpu.memory_space<vmem>>, vector<1x1x32x128xf32>
    %922 = vector.shape_cast %921 : vector<1x1x32x128xf32> to vector<32x128xf32>
    %923 = vector.shape_cast %920 : vector<32x128xf32> to vector<1x1x32x128xf32>
    tpu.vector_store %arg8[%c0_948, %c2_949, %c0_950, %c0_951], %923 {strides = array<i32>} : memref<7x7x32x128xf32, #tpu.memory_space<vmem>>, vector<1x1x32x128xf32>,
    %c1_952 = arith.constant 1 : index
    %c0_953 = arith.constant 0 : index
    %c384_954 = arith.constant 384 : index
    %924 = vector.load %arg10[%c1_952, %c0_953, %c384_954] : memref<2x32x896xf32, #tpu.memory_space<vmem>>, vector<1x32x128xf32>
    %925 = vector.shape_cast %924 : vector<1x32x128xf32> to vector<32x128xf32>
    %926 = arith.mulf %905, %925 : vector<32x128xf32>
    %c0_955 = arith.constant 0 : index
    %c3_956 = arith.constant 3 : index
    %c0_957 = arith.constant 0 : index
    %c0_958 = arith.constant 0 : index
    %927 = vector.load %arg8[%c0_955, %c3_956, %c0_957, %c0_958] : memref<7x7x32x128xf32, #tpu.memory_space<vmem>>, vector<1x1x32x128xf32>
    %928 = vector.shape_cast %927 : vector<1x1x32x128xf32> to vector<32x128xf32>
    %929 = vector.shape_cast %926 : vector<32x128xf32> to vector<1x1x32x128xf32>
    tpu.vector_store %arg8[%c0_955, %c3_956, %c0_957, %c0_958], %929 {strides = array<i32>} : memref<7x7x32x128xf32, #tpu.memory_space<vmem>>, vector<1x1x32x128xf32>,
    %c1_959 = arith.constant 1 : index
    %c0_960 = arith.constant 0 : index
    %c512_961 = arith.constant 512 : index
    %930 = vector.load %arg10[%c1_959, %c0_960, %c512_961] : memref<2x32x896xf32, #tpu.memory_space<vmem>>, vector<1x32x128xf32>
    %931 = vector.shape_cast %930 : vector<1x32x128xf32> to vector<32x128xf32>
    %932 = arith.mulf %905, %931 : vector<32x128xf32>
    %c0_962 = arith.constant 0 : index
    %c4_963 = arith.constant 4 : index
    %c0_964 = arith.constant 0 : index
    %c0_965 = arith.constant 0 : index
    %933 = vector.load %arg8[%c0_962, %c4_963, %c0_964, %c0_965] : memref<7x7x32x128xf32, #tpu.memory_space<vmem>>, vector<1x1x32x128xf32>
    %934 = vector.shape_cast %933 : vector<1x1x32x128xf32> to vector<32x128xf32>
    %935 = vector.shape_cast %932 : vector<32x128xf32> to vector<1x1x32x128xf32>
    tpu.vector_store %arg8[%c0_962, %c4_963, %c0_964, %c0_965], %935 {strides = array<i32>} : memref<7x7x32x128xf32, #tpu.memory_space<vmem>>, vector<1x1x32x128xf32>,
    %c1_966 = arith.constant 1 : index
    %c0_967 = arith.constant 0 : index
    %c640_968 = arith.constant 640 : index
    %936 = vector.load %arg10[%c1_966, %c0_967, %c640_968] : memref<2x32x896xf32, #tpu.memory_space<vmem>>, vector<1x32x128xf32>
    %937 = vector.shape_cast %936 : vector<1x32x128xf32> to vector<32x128xf32>
    %938 = arith.mulf %905, %937 : vector<32x128xf32>
    %c0_969 = arith.constant 0 : index
    %c5_970 = arith.constant 5 : index
    %c0_971 = arith.constant 0 : index
    %c0_972 = arith.constant 0 : index
    %939 = vector.load %arg8[%c0_969, %c5_970, %c0_971, %c0_972] : memref<7x7x32x128xf32, #tpu.memory_space<vmem>>, vector<1x1x32x128xf32>
    %940 = vector.shape_cast %939 : vector<1x1x32x128xf32> to vector<32x128xf32>
    %941 = vector.shape_cast %938 : vector<32x128xf32> to vector<1x1x32x128xf32>
    tpu.vector_store %arg8[%c0_969, %c5_970, %c0_971, %c0_972], %941 {strides = array<i32>} : memref<7x7x32x128xf32, #tpu.memory_space<vmem>>, vector<1x1x32x128xf32>,
    %c1_973 = arith.constant 1 : index
    %c0_974 = arith.constant 0 : index
    %c768_975 = arith.constant 768 : index
    %942 = vector.load %arg10[%c1_973, %c0_974, %c768_975] : memref<2x32x896xf32, #tpu.memory_space<vmem>>, vector<1x32x128xf32>
    %943 = vector.shape_cast %942 : vector<1x32x128xf32> to vector<32x128xf32>
    %944 = arith.mulf %905, %943 : vector<32x128xf32>
    %c0_976 = arith.constant 0 : index
    %c6_977 = arith.constant 6 : index
    %c0_978 = arith.constant 0 : index
    %c0_979 = arith.constant 0 : index
    %945 = vector.load %arg8[%c0_976, %c6_977, %c0_978, %c0_979] : memref<7x7x32x128xf32, #tpu.memory_space<vmem>>, vector<1x1x32x128xf32>
    %946 = vector.shape_cast %945 : vector<1x1x32x128xf32> to vector<32x128xf32>
    %947 = vector.shape_cast %944 : vector<32x128xf32> to vector<1x1x32x128xf32>
    tpu.vector_store %arg8[%c0_976, %c6_977, %c0_978, %c0_979], %947 {strides = array<i32>} : memref<7x7x32x128xf32, #tpu.memory_space<vmem>>, vector<1x1x32x128xf32>,
    %c0_980 = arith.constant 0 : index
    %c0_981 = arith.constant 0 : index
    %c128_982 = arith.constant 128 : index
    %948 = vector.load %arg10[%c0_980, %c0_981, %c128_982] : memref<2x32x896xf32, #tpu.memory_space<vmem>>, vector<1x32x128xf32>
    %949 = vector.shape_cast %948 : vector<1x32x128xf32> to vector<32x128xf32>
    %c1_983 = arith.constant 1 : index
    %c0_984 = arith.constant 0 : index
    %c0_985 = arith.constant 0 : index
    %950 = vector.load %arg10[%c1_983, %c0_984, %c0_985] : memref<2x32x896xf32, #tpu.memory_space<vmem>>, vector<1x32x128xf32>
    %951 = vector.shape_cast %950 : vector<1x32x128xf32> to vector<32x128xf32>
    %952 = arith.mulf %949, %951 : vector<32x128xf32>
    %c1_986 = arith.constant 1 : index
    %c0_987 = arith.constant 0 : index
    %c0_988 = arith.constant 0 : index
    %c0_989 = arith.constant 0 : index
    %953 = vector.load %arg8[%c1_986, %c0_987, %c0_988, %c0_989] : memref<7x7x32x128xf32, #tpu.memory_space<vmem>>, vector<1x1x32x128xf32>
    %954 = vector.shape_cast %953 : vector<1x1x32x128xf32> to vector<32x128xf32>
    %955 = vector.shape_cast %952 : vector<32x128xf32> to vector<1x1x32x128xf32>
    tpu.vector_store %arg8[%c1_986, %c0_987, %c0_988, %c0_989], %955 {strides = array<i32>} : memref<7x7x32x128xf32, #tpu.memory_space<vmem>>, vector<1x1x32x128xf32>,
    %c1_990 = arith.constant 1 : index
    %c0_991 = arith.constant 0 : index
    %c128_992 = arith.constant 128 : index
    %956 = vector.load %arg10[%c1_990, %c0_991, %c128_992] : memref<2x32x896xf32, #tpu.memory_space<vmem>>, vector<1x32x128xf32>
    %957 = vector.shape_cast %956 : vector<1x32x128xf32> to vector<32x128xf32>
    %958 = arith.mulf %949, %957 : vector<32x128xf32>
    %c1_993 = arith.constant 1 : index
    %c1_994 = arith.constant 1 : index
    %c0_995 = arith.constant 0 : index
    %c0_996 = arith.constant 0 : index
    %959 = vector.load %arg8[%c1_993, %c1_994, %c0_995, %c0_996] : memref<7x7x32x128xf32, #tpu.memory_space<vmem>>, vector<1x1x32x128xf32>
    %960 = vector.shape_cast %959 : vector<1x1x32x128xf32> to vector<32x128xf32>
    %961 = vector.shape_cast %958 : vector<32x128xf32> to vector<1x1x32x128xf32>
    tpu.vector_store %arg8[%c1_993, %c1_994, %c0_995, %c0_996], %961 {strides = array<i32>} : memref<7x7x32x128xf32, #tpu.memory_space<vmem>>, vector<1x1x32x128xf32>,
    %c1_997 = arith.constant 1 : index
    %c0_998 = arith.constant 0 : index
    %c256_999 = arith.constant 256 : index
    %962 = vector.load %arg10[%c1_997, %c0_998, %c256_999] : memref<2x32x896xf32, #tpu.memory_space<vmem>>, vector<1x32x128xf32>
    %963 = vector.shape_cast %962 : vector<1x32x128xf32> to vector<32x128xf32>
    %964 = arith.mulf %949, %963 : vector<32x128xf32>
    %c1_1000 = arith.constant 1 : index
    %c2_1001 = arith.constant 2 : index
    %c0_1002 = arith.constant 0 : index
    %c0_1003 = arith.constant 0 : index
    %965 = vector.load %arg8[%c1_1000, %c2_1001, %c0_1002, %c0_1003] : memref<7x7x32x128xf32, #tpu.memory_space<vmem>>, vector<1x1x32x128xf32>
    %966 = vector.shape_cast %965 : vector<1x1x32x128xf32> to vector<32x128xf32>
    %967 = vector.shape_cast %964 : vector<32x128xf32> to vector<1x1x32x128xf32>
    tpu.vector_store %arg8[%c1_1000, %c2_1001, %c0_1002, %c0_1003], %967 {strides = array<i32>} : memref<7x7x32x128xf32, #tpu.memory_space<vmem>>, vector<1x1x32x128xf32>,
    %c1_1004 = arith.constant 1 : index
    %c0_1005 = arith.constant 0 : index
    %c384_1006 = arith.constant 384 : index
    %968 = vector.load %arg10[%c1_1004, %c0_1005, %c384_1006] : memref<2x32x896xf32, #tpu.memory_space<vmem>>, vector<1x32x128xf32>
    %969 = vector.shape_cast %968 : vector<1x32x128xf32> to vector<32x128xf32>
    %970 = arith.mulf %949, %969 : vector<32x128xf32>
    %c1_1007 = arith.constant 1 : index
    %c3_1008 = arith.constant 3 : index
    %c0_1009 = arith.constant 0 : index
    %c0_1010 = arith.constant 0 : index
    %971 = vector.load %arg8[%c1_1007, %c3_1008, %c0_1009, %c0_1010] : memref<7x7x32x128xf32, #tpu.memory_space<vmem>>, vector<1x1x32x128xf32>
    %972 = vector.shape_cast %971 : vector<1x1x32x128xf32> to vector<32x128xf32>
    %973 = vector.shape_cast %970 : vector<32x128xf32> to vector<1x1x32x128xf32>
    tpu.vector_store %arg8[%c1_1007, %c3_1008, %c0_1009, %c0_1010], %973 {strides = array<i32>} : memref<7x7x32x128xf32, #tpu.memory_space<vmem>>, vector<1x1x32x128xf32>,
    %c1_1011 = arith.constant 1 : index
    %c0_1012 = arith.constant 0 : index
    %c512_1013 = arith.constant 512 : index
    %974 = vector.load %arg10[%c1_1011, %c0_1012, %c512_1013] : memref<2x32x896xf32, #tpu.memory_space<vmem>>, vector<1x32x128xf32>
    %975 = vector.shape_cast %974 : vector<1x32x128xf32> to vector<32x128xf32>
    %976 = arith.mulf %949, %975 : vector<32x128xf32>
    %c1_1014 = arith.constant 1 : index
    %c4_1015 = arith.constant 4 : index
    %c0_1016 = arith.constant 0 : index
    %c0_1017 = arith.constant 0 : index
    %977 = vector.load %arg8[%c1_1014, %c4_1015, %c0_1016, %c0_1017] : memref<7x7x32x128xf32, #tpu.memory_space<vmem>>, vector<1x1x32x128xf32>
    %978 = vector.shape_cast %977 : vector<1x1x32x128xf32> to vector<32x128xf32>
    %979 = vector.shape_cast %976 : vector<32x128xf32> to vector<1x1x32x128xf32>
    tpu.vector_store %arg8[%c1_1014, %c4_1015, %c0_1016, %c0_1017], %979 {strides = array<i32>} : memref<7x7x32x128xf32, #tpu.memory_space<vmem>>, vector<1x1x32x128xf32>,
    %c1_1018 = arith.constant 1 : index
    %c0_1019 = arith.constant 0 : index
    %c640_1020 = arith.constant 640 : index
    %980 = vector.load %arg10[%c1_1018, %c0_1019, %c640_1020] : memref<2x32x896xf32, #tpu.memory_space<vmem>>, vector<1x32x128xf32>
    %981 = vector.shape_cast %980 : vector<1x32x128xf32> to vector<32x128xf32>
    %982 = arith.mulf %949, %981 : vector<32x128xf32>
    %c1_1021 = arith.constant 1 : index
    %c5_1022 = arith.constant 5 : index
    %c0_1023 = arith.constant 0 : index
    %c0_1024 = arith.constant 0 : index
    %983 = vector.load %arg8[%c1_1021, %c5_1022, %c0_1023, %c0_1024] : memref<7x7x32x128xf32, #tpu.memory_space<vmem>>, vector<1x1x32x128xf32>
    %984 = vector.shape_cast %983 : vector<1x1x32x128xf32> to vector<32x128xf32>
    %985 = vector.shape_cast %982 : vector<32x128xf32> to vector<1x1x32x128xf32>
    tpu.vector_store %arg8[%c1_1021, %c5_1022, %c0_1023, %c0_1024], %985 {strides = array<i32>} : memref<7x7x32x128xf32, #tpu.memory_space<vmem>>, vector<1x1x32x128xf32>,
    %c1_1025 = arith.constant 1 : index
    %c0_1026 = arith.constant 0 : index
    %c768_1027 = arith.constant 768 : index
    %986 = vector.load %arg10[%c1_1025, %c0_1026, %c768_1027] : memref<2x32x896xf32, #tpu.memory_space<vmem>>, vector<1x32x128xf32>
    %987 = vector.shape_cast %986 : vector<1x32x128xf32> to vector<32x128xf32>
    %988 = arith.mulf %949, %987 : vector<32x128xf32>
    %c1_1028 = arith.constant 1 : index
    %c6_1029 = arith.constant 6 : index
    %c0_1030 = arith.constant 0 : index
    %c0_1031 = arith.constant 0 : index
    %989 = vector.load %arg8[%c1_1028, %c6_1029, %c0_1030, %c0_1031] : memref<7x7x32x128xf32, #tpu.memory_space<vmem>>, vector<1x1x32x128xf32>
    %990 = vector.shape_cast %989 : vector<1x1x32x128xf32> to vector<32x128xf32>
    %991 = vector.shape_cast %988 : vector<32x128xf32> to vector<1x1x32x128xf32>
    tpu.vector_store %arg8[%c1_1028, %c6_1029, %c0_1030, %c0_1031], %991 {strides = array<i32>} : memref<7x7x32x128xf32, #tpu.memory_space<vmem>>, vector<1x1x32x128xf32>,
    %c0_1032 = arith.constant 0 : index
    %c0_1033 = arith.constant 0 : index
    %c256_1034 = arith.constant 256 : index
    %992 = vector.load %arg10[%c0_1032, %c0_1033, %c256_1034] : memref<2x32x896xf32, #tpu.memory_space<vmem>>, vector<1x32x128xf32>
    %993 = vector.shape_cast %992 : vector<1x32x128xf32> to vector<32x128xf32>
    %c1_1035 = arith.constant 1 : index
    %c0_1036 = arith.constant 0 : index
    %c0_1037 = arith.constant 0 : index
    %994 = vector.load %arg10[%c1_1035, %c0_1036, %c0_1037] : memref<2x32x896xf32, #tpu.memory_space<vmem>>, vector<1x32x128xf32>
    %995 = vector.shape_cast %994 : vector<1x32x128xf32> to vector<32x128xf32>
    %996 = arith.mulf %993, %995 : vector<32x128xf32>
    %c2_1038 = arith.constant 2 : index
    %c0_1039 = arith.constant 0 : index
    %c0_1040 = arith.constant 0 : index
    %c0_1041 = arith.constant 0 : index
    %997 = vector.load %arg8[%c2_1038, %c0_1039, %c0_1040, %c0_1041] : memref<7x7x32x128xf32, #tpu.memory_space<vmem>>, vector<1x1x32x128xf32>
    %998 = vector.shape_cast %997 : vector<1x1x32x128xf32> to vector<32x128xf32>
    %999 = vector.shape_cast %996 : vector<32x128xf32> to vector<1x1x32x128xf32>
    tpu.vector_store %arg8[%c2_1038, %c0_1039, %c0_1040, %c0_1041], %999 {strides = array<i32>} : memref<7x7x32x128xf32, #tpu.memory_space<vmem>>, vector<1x1x32x128xf32>,
    %c1_1042 = arith.constant 1 : index
    %c0_1043 = arith.constant 0 : index
    %c128_1044 = arith.constant 128 : index
    %1000 = vector.load %arg10[%c1_1042, %c0_1043, %c128_1044] : memref<2x32x896xf32, #tpu.memory_space<vmem>>, vector<1x32x128xf32>
    %1001 = vector.shape_cast %1000 : vector<1x32x128xf32> to vector<32x128xf32>
    %1002 = arith.mulf %993, %1001 : vector<32x128xf32>
    %c2_1045 = arith.constant 2 : index
    %c1_1046 = arith.constant 1 : index
    %c0_1047 = arith.constant 0 : index
    %c0_1048 = arith.constant 0 : index
    %1003 = vector.load %arg8[%c2_1045, %c1_1046, %c0_1047, %c0_1048] : memref<7x7x32x128xf32, #tpu.memory_space<vmem>>, vector<1x1x32x128xf32>
    %1004 = vector.shape_cast %1003 : vector<1x1x32x128xf32> to vector<32x128xf32>
    %1005 = vector.shape_cast %1002 : vector<32x128xf32> to vector<1x1x32x128xf32>
    tpu.vector_store %arg8[%c2_1045, %c1_1046, %c0_1047, %c0_1048], %1005 {strides = array<i32>} : memref<7x7x32x128xf32, #tpu.memory_space<vmem>>, vector<1x1x32x128xf32>,
    %c1_1049 = arith.constant 1 : index
    %c0_1050 = arith.constant 0 : index
    %c256_1051 = arith.constant 256 : index
    %1006 = vector.load %arg10[%c1_1049, %c0_1050, %c256_1051] : memref<2x32x896xf32, #tpu.memory_space<vmem>>, vector<1x32x128xf32>
    %1007 = vector.shape_cast %1006 : vector<1x32x128xf32> to vector<32x128xf32>
    %1008 = arith.mulf %993, %1007 : vector<32x128xf32>
    %c2_1052 = arith.constant 2 : index
    %c2_1053 = arith.constant 2 : index
    %c0_1054 = arith.constant 0 : index
    %c0_1055 = arith.constant 0 : index
    %1009 = vector.load %arg8[%c2_1052, %c2_1053, %c0_1054, %c0_1055] : memref<7x7x32x128xf32, #tpu.memory_space<vmem>>, vector<1x1x32x128xf32>
    %1010 = vector.shape_cast %1009 : vector<1x1x32x128xf32> to vector<32x128xf32>
    %1011 = vector.shape_cast %1008 : vector<32x128xf32> to vector<1x1x32x128xf32>
    tpu.vector_store %arg8[%c2_1052, %c2_1053, %c0_1054, %c0_1055], %1011 {strides = array<i32>} : memref<7x7x32x128xf32, #tpu.memory_space<vmem>>, vector<1x1x32x128xf32>,
    %c1_1056 = arith.constant 1 : index
    %c0_1057 = arith.constant 0 : index
    %c384_1058 = arith.constant 384 : index
    %1012 = vector.load %arg10[%c1_1056, %c0_1057, %c384_1058] : memref<2x32x896xf32, #tpu.memory_space<vmem>>, vector<1x32x128xf32>
    %1013 = vector.shape_cast %1012 : vector<1x32x128xf32> to vector<32x128xf32>
    %1014 = arith.mulf %993, %1013 : vector<32x128xf32>
    %c2_1059 = arith.constant 2 : index
    %c3_1060 = arith.constant 3 : index
    %c0_1061 = arith.constant 0 : index
    %c0_1062 = arith.constant 0 : index
    %1015 = vector.load %arg8[%c2_1059, %c3_1060, %c0_1061, %c0_1062] : memref<7x7x32x128xf32, #tpu.memory_space<vmem>>, vector<1x1x32x128xf32>
    %1016 = vector.shape_cast %1015 : vector<1x1x32x128xf32> to vector<32x128xf32>
    %1017 = vector.shape_cast %1014 : vector<32x128xf32> to vector<1x1x32x128xf32>
    tpu.vector_store %arg8[%c2_1059, %c3_1060, %c0_1061, %c0_1062], %1017 {strides = array<i32>} : memref<7x7x32x128xf32, #tpu.memory_space<vmem>>, vector<1x1x32x128xf32>,
    %c1_1063 = arith.constant 1 : index
    %c0_1064 = arith.constant 0 : index
    %c512_1065 = arith.constant 512 : index
    %1018 = vector.load %arg10[%c1_1063, %c0_1064, %c512_1065] : memref<2x32x896xf32, #tpu.memory_space<vmem>>, vector<1x32x128xf32>
    %1019 = vector.shape_cast %1018 : vector<1x32x128xf32> to vector<32x128xf32>
    %1020 = arith.mulf %993, %1019 : vector<32x128xf32>
    %c2_1066 = arith.constant 2 : index
    %c4_1067 = arith.constant 4 : index
    %c0_1068 = arith.constant 0 : index
    %c0_1069 = arith.constant 0 : index
    %1021 = vector.load %arg8[%c2_1066, %c4_1067, %c0_1068, %c0_1069] : memref<7x7x32x128xf32, #tpu.memory_space<vmem>>, vector<1x1x32x128xf32>
    %1022 = vector.shape_cast %1021 : vector<1x1x32x128xf32> to vector<32x128xf32>
    %1023 = vector.shape_cast %1020 : vector<32x128xf32> to vector<1x1x32x128xf32>
    tpu.vector_store %arg8[%c2_1066, %c4_1067, %c0_1068, %c0_1069], %1023 {strides = array<i32>} : memref<7x7x32x128xf32, #tpu.memory_space<vmem>>, vector<1x1x32x128xf32>,
    %c1_1070 = arith.constant 1 : index
    %c0_1071 = arith.constant 0 : index
    %c640_1072 = arith.constant 640 : index
    %1024 = vector.load %arg10[%c1_1070, %c0_1071, %c640_1072] : memref<2x32x896xf32, #tpu.memory_space<vmem>>, vector<1x32x128xf32>
    %1025 = vector.shape_cast %1024 : vector<1x32x128xf32> to vector<32x128xf32>
    %1026 = arith.mulf %993, %1025 : vector<32x128xf32>
    %c2_1073 = arith.constant 2 : index
    %c5_1074 = arith.constant 5 : index
    %c0_1075 = arith.constant 0 : index
    %c0_1076 = arith.constant 0 : index
    %1027 = vector.load %arg8[%c2_1073, %c5_1074, %c0_1075, %c0_1076] : memref<7x7x32x128xf32, #tpu.memory_space<vmem>>, vector<1x1x32x128xf32>
    %1028 = vector.shape_cast %1027 : vector<1x1x32x128xf32> to vector<32x128xf32>
    %1029 = vector.shape_cast %1026 : vector<32x128xf32> to vector<1x1x32x128xf32>
    tpu.vector_store %arg8[%c2_1073, %c5_1074, %c0_1075, %c0_1076], %1029 {strides = array<i32>} : memref<7x7x32x128xf32, #tpu.memory_space<vmem>>, vector<1x1x32x128xf32>,
    %c1_1077 = arith.constant 1 : index
    %c0_1078 = arith.constant 0 : index
    %c768_1079 = arith.constant 768 : index
    %1030 = vector.load %arg10[%c1_1077, %c0_1078, %c768_1079] : memref<2x32x896xf32, #tpu.memory_space<vmem>>, vector<1x32x128xf32>
    %1031 = vector.shape_cast %1030 : vector<1x32x128xf32> to vector<32x128xf32>
    %1032 = arith.mulf %993, %1031 : vector<32x128xf32>
    %c2_1080 = arith.constant 2 : index
    %c6_1081 = arith.constant 6 : index
    %c0_1082 = arith.constant 0 : index
    %c0_1083 = arith.constant 0 : index
    %1033 = vector.load %arg8[%c2_1080, %c6_1081, %c0_1082, %c0_1083] : memref<7x7x32x128xf32, #tpu.memory_space<vmem>>, vector<1x1x32x128xf32>
    %1034 = vector.shape_cast %1033 : vector<1x1x32x128xf32> to vector<32x128xf32>
    %1035 = vector.shape_cast %1032 : vector<32x128xf32> to vector<1x1x32x128xf32>
    tpu.vector_store %arg8[%c2_1080, %c6_1081, %c0_1082, %c0_1083], %1035 {strides = array<i32>} : memref<7x7x32x128xf32, #tpu.memory_space<vmem>>, vector<1x1x32x128xf32>,
    %c0_1084 = arith.constant 0 : index
    %c0_1085 = arith.constant 0 : index
    %c384_1086 = arith.constant 384 : index
    %1036 = vector.load %arg10[%c0_1084, %c0_1085, %c384_1086] : memref<2x32x896xf32, #tpu.memory_space<vmem>>, vector<1x32x128xf32>
    %1037 = vector.shape_cast %1036 : vector<1x32x128xf32> to vector<32x128xf32>
    %c1_1087 = arith.constant 1 : index
    %c0_1088 = arith.constant 0 : index
    %c0_1089 = arith.constant 0 : index
    %1038 = vector.load %arg10[%c1_1087, %c0_1088, %c0_1089] : memref<2x32x896xf32, #tpu.memory_space<vmem>>, vector<1x32x128xf32>
    %1039 = vector.shape_cast %1038 : vector<1x32x128xf32> to vector<32x128xf32>
    %1040 = arith.mulf %1037, %1039 : vector<32x128xf32>
    %c3_1090 = arith.constant 3 : index
    %c0_1091 = arith.constant 0 : index
    %c0_1092 = arith.constant 0 : index
    %c0_1093 = arith.constant 0 : index
    %1041 = vector.load %arg8[%c3_1090, %c0_1091, %c0_1092, %c0_1093] : memref<7x7x32x128xf32, #tpu.memory_space<vmem>>, vector<1x1x32x128xf32>
    %1042 = vector.shape_cast %1041 : vector<1x1x32x128xf32> to vector<32x128xf32>
    %1043 = vector.shape_cast %1040 : vector<32x128xf32> to vector<1x1x32x128xf32>
    tpu.vector_store %arg8[%c3_1090, %c0_1091, %c0_1092, %c0_1093], %1043 {strides = array<i32>} : memref<7x7x32x128xf32, #tpu.memory_space<vmem>>, vector<1x1x32x128xf32>,
    %c1_1094 = arith.constant 1 : index
    %c0_1095 = arith.constant 0 : index
    %c128_1096 = arith.constant 128 : index
    %1044 = vector.load %arg10[%c1_1094, %c0_1095, %c128_1096] : memref<2x32x896xf32, #tpu.memory_space<vmem>>, vector<1x32x128xf32>
    %1045 = vector.shape_cast %1044 : vector<1x32x128xf32> to vector<32x128xf32>
    %1046 = arith.mulf %1037, %1045 : vector<32x128xf32>
    %c3_1097 = arith.constant 3 : index
    %c1_1098 = arith.constant 1 : index
    %c0_1099 = arith.constant 0 : index
    %c0_1100 = arith.constant 0 : index
    %1047 = vector.load %arg8[%c3_1097, %c1_1098, %c0_1099, %c0_1100] : memref<7x7x32x128xf32, #tpu.memory_space<vmem>>, vector<1x1x32x128xf32>
    %1048 = vector.shape_cast %1047 : vector<1x1x32x128xf32> to vector<32x128xf32>
    %1049 = vector.shape_cast %1046 : vector<32x128xf32> to vector<1x1x32x128xf32>
    tpu.vector_store %arg8[%c3_1097, %c1_1098, %c0_1099, %c0_1100], %1049 {strides = array<i32>} : memref<7x7x32x128xf32, #tpu.memory_space<vmem>>, vector<1x1x32x128xf32>,
    %c1_1101 = arith.constant 1 : index
    %c0_1102 = arith.constant 0 : index
    %c256_1103 = arith.constant 256 : index
    %1050 = vector.load %arg10[%c1_1101, %c0_1102, %c256_1103] : memref<2x32x896xf32, #tpu.memory_space<vmem>>, vector<1x32x128xf32>
    %1051 = vector.shape_cast %1050 : vector<1x32x128xf32> to vector<32x128xf32>
    %1052 = arith.mulf %1037, %1051 : vector<32x128xf32>
    %c3_1104 = arith.constant 3 : index
    %c2_1105 = arith.constant 2 : index
    %c0_1106 = arith.constant 0 : index
    %c0_1107 = arith.constant 0 : index
    %1053 = vector.load %arg8[%c3_1104, %c2_1105, %c0_1106, %c0_1107] : memref<7x7x32x128xf32, #tpu.memory_space<vmem>>, vector<1x1x32x128xf32>
    %1054 = vector.shape_cast %1053 : vector<1x1x32x128xf32> to vector<32x128xf32>
    %1055 = vector.shape_cast %1052 : vector<32x128xf32> to vector<1x1x32x128xf32>
    tpu.vector_store %arg8[%c3_1104, %c2_1105, %c0_1106, %c0_1107], %1055 {strides = array<i32>} : memref<7x7x32x128xf32, #tpu.memory_space<vmem>>, vector<1x1x32x128xf32>,
    %c1_1108 = arith.constant 1 : index
    %c0_1109 = arith.constant 0 : index
    %c384_1110 = arith.constant 384 : index
    %1056 = vector.load %arg10[%c1_1108, %c0_1109, %c384_1110] : memref<2x32x896xf32, #tpu.memory_space<vmem>>, vector<1x32x128xf32>
    %1057 = vector.shape_cast %1056 : vector<1x32x128xf32> to vector<32x128xf32>
    %1058 = arith.mulf %1037, %1057 : vector<32x128xf32>
    %c3_1111 = arith.constant 3 : index
    %c3_1112 = arith.constant 3 : index
    %c0_1113 = arith.constant 0 : index
    %c0_1114 = arith.constant 0 : index
    %1059 = vector.load %arg8[%c3_1111, %c3_1112, %c0_1113, %c0_1114] : memref<7x7x32x128xf32, #tpu.memory_space<vmem>>, vector<1x1x32x128xf32>
    %1060 = vector.shape_cast %1059 : vector<1x1x32x128xf32> to vector<32x128xf32>
    %1061 = vector.shape_cast %1058 : vector<32x128xf32> to vector<1x1x32x128xf32>
    tpu.vector_store %arg8[%c3_1111, %c3_1112, %c0_1113, %c0_1114], %1061 {strides = array<i32>} : memref<7x7x32x128xf32, #tpu.memory_space<vmem>>, vector<1x1x32x128xf32>,
    %c1_1115 = arith.constant 1 : index
    %c0_1116 = arith.constant 0 : index
    %c512_1117 = arith.constant 512 : index
    %1062 = vector.load %arg10[%c1_1115, %c0_1116, %c512_1117] : memref<2x32x896xf32, #tpu.memory_space<vmem>>, vector<1x32x128xf32>
    %1063 = vector.shape_cast %1062 : vector<1x32x128xf32> to vector<32x128xf32>
    %1064 = arith.mulf %1037, %1063 : vector<32x128xf32>
    %c3_1118 = arith.constant 3 : index
    %c4_1119 = arith.constant 4 : index
    %c0_1120 = arith.constant 0 : index
    %c0_1121 = arith.constant 0 : index
    %1065 = vector.load %arg8[%c3_1118, %c4_1119, %c0_1120, %c0_1121] : memref<7x7x32x128xf32, #tpu.memory_space<vmem>>, vector<1x1x32x128xf32>
    %1066 = vector.shape_cast %1065 : vector<1x1x32x128xf32> to vector<32x128xf32>
    %1067 = vector.shape_cast %1064 : vector<32x128xf32> to vector<1x1x32x128xf32>
    tpu.vector_store %arg8[%c3_1118, %c4_1119, %c0_1120, %c0_1121], %1067 {strides = array<i32>} : memref<7x7x32x128xf32, #tpu.memory_space<vmem>>, vector<1x1x32x128xf32>,
    %c1_1122 = arith.constant 1 : index
    %c0_1123 = arith.constant 0 : index
    %c640_1124 = arith.constant 640 : index
    %1068 = vector.load %arg10[%c1_1122, %c0_1123, %c640_1124] : memref<2x32x896xf32, #tpu.memory_space<vmem>>, vector<1x32x128xf32>
    %1069 = vector.shape_cast %1068 : vector<1x32x128xf32> to vector<32x128xf32>
    %1070 = arith.mulf %1037, %1069 : vector<32x128xf32>
    %c3_1125 = arith.constant 3 : index
    %c5_1126 = arith.constant 5 : index
    %c0_1127 = arith.constant 0 : index
    %c0_1128 = arith.constant 0 : index
    %1071 = vector.load %arg8[%c3_1125, %c5_1126, %c0_1127, %c0_1128] : memref<7x7x32x128xf32, #tpu.memory_space<vmem>>, vector<1x1x32x128xf32>
    %1072 = vector.shape_cast %1071 : vector<1x1x32x128xf32> to vector<32x128xf32>
    %1073 = vector.shape_cast %1070 : vector<32x128xf32> to vector<1x1x32x128xf32>
    tpu.vector_store %arg8[%c3_1125, %c5_1126, %c0_1127, %c0_1128], %1073 {strides = array<i32>} : memref<7x7x32x128xf32, #tpu.memory_space<vmem>>, vector<1x1x32x128xf32>,
    %c1_1129 = arith.constant 1 : index
    %c0_1130 = arith.constant 0 : index
    %c768_1131 = arith.constant 768 : index
    %1074 = vector.load %arg10[%c1_1129, %c0_1130, %c768_1131] : memref<2x32x896xf32, #tpu.memory_space<vmem>>, vector<1x32x128xf32>
    %1075 = vector.shape_cast %1074 : vector<1x32x128xf32> to vector<32x128xf32>
    %1076 = arith.mulf %1037, %1075 : vector<32x128xf32>
    %c3_1132 = arith.constant 3 : index
    %c6_1133 = arith.constant 6 : index
    %c0_1134 = arith.constant 0 : index
    %c0_1135 = arith.constant 0 : index
    %1077 = vector.load %arg8[%c3_1132, %c6_1133, %c0_1134, %c0_1135] : memref<7x7x32x128xf32, #tpu.memory_space<vmem>>, vector<1x1x32x128xf32>
    %1078 = vector.shape_cast %1077 : vector<1x1x32x128xf32> to vector<32x128xf32>
    %1079 = vector.shape_cast %1076 : vector<32x128xf32> to vector<1x1x32x128xf32>
    tpu.vector_store %arg8[%c3_1132, %c6_1133, %c0_1134, %c0_1135], %1079 {strides = array<i32>} : memref<7x7x32x128xf32, #tpu.memory_space<vmem>>, vector<1x1x32x128xf32>,
    %c0_1136 = arith.constant 0 : index
    %c0_1137 = arith.constant 0 : index
    %c512_1138 = arith.constant 512 : index
    %1080 = vector.load %arg10[%c0_1136, %c0_1137, %c512_1138] : memref<2x32x896xf32, #tpu.memory_space<vmem>>, vector<1x32x128xf32>
    %1081 = vector.shape_cast %1080 : vector<1x32x128xf32> to vector<32x128xf32>
    %c1_1139 = arith.constant 1 : index
    %c0_1140 = arith.constant 0 : index
    %c0_1141 = arith.constant 0 : index
    %1082 = vector.load %arg10[%c1_1139, %c0_1140, %c0_1141] : memref<2x32x896xf32, #tpu.memory_space<vmem>>, vector<1x32x128xf32>
    %1083 = vector.shape_cast %1082 : vector<1x32x128xf32> to vector<32x128xf32>
    %1084 = arith.mulf %1081, %1083 : vector<32x128xf32>
    %c4_1142 = arith.constant 4 : index
    %c0_1143 = arith.constant 0 : index
    %c0_1144 = arith.constant 0 : index
    %c0_1145 = arith.constant 0 : index
    %1085 = vector.load %arg8[%c4_1142, %c0_1143, %c0_1144, %c0_1145] : memref<7x7x32x128xf32, #tpu.memory_space<vmem>>, vector<1x1x32x128xf32>
    %1086 = vector.shape_cast %1085 : vector<1x1x32x128xf32> to vector<32x128xf32>
    %1087 = vector.shape_cast %1084 : vector<32x128xf32> to vector<1x1x32x128xf32>
    tpu.vector_store %arg8[%c4_1142, %c0_1143, %c0_1144, %c0_1145], %1087 {strides = array<i32>} : memref<7x7x32x128xf32, #tpu.memory_space<vmem>>, vector<1x1x32x128xf32>,
    %c1_1146 = arith.constant 1 : index
    %c0_1147 = arith.constant 0 : index
    %c128_1148 = arith.constant 128 : index
    %1088 = vector.load %arg10[%c1_1146, %c0_1147, %c128_1148] : memref<2x32x896xf32, #tpu.memory_space<vmem>>, vector<1x32x128xf32>
    %1089 = vector.shape_cast %1088 : vector<1x32x128xf32> to vector<32x128xf32>
    %1090 = arith.mulf %1081, %1089 : vector<32x128xf32>
    %c4_1149 = arith.constant 4 : index
    %c1_1150 = arith.constant 1 : index
    %c0_1151 = arith.constant 0 : index
    %c0_1152 = arith.constant 0 : index
    %1091 = vector.load %arg8[%c4_1149, %c1_1150, %c0_1151, %c0_1152] : memref<7x7x32x128xf32, #tpu.memory_space<vmem>>, vector<1x1x32x128xf32>
    %1092 = vector.shape_cast %1091 : vector<1x1x32x128xf32> to vector<32x128xf32>
    %1093 = vector.shape_cast %1090 : vector<32x128xf32> to vector<1x1x32x128xf32>
    tpu.vector_store %arg8[%c4_1149, %c1_1150, %c0_1151, %c0_1152], %1093 {strides = array<i32>} : memref<7x7x32x128xf32, #tpu.memory_space<vmem>>, vector<1x1x32x128xf32>,
    %c1_1153 = arith.constant 1 : index
    %c0_1154 = arith.constant 0 : index
    %c256_1155 = arith.constant 256 : index
    %1094 = vector.load %arg10[%c1_1153, %c0_1154, %c256_1155] : memref<2x32x896xf32, #tpu.memory_space<vmem>>, vector<1x32x128xf32>
    %1095 = vector.shape_cast %1094 : vector<1x32x128xf32> to vector<32x128xf32>
    %1096 = arith.mulf %1081, %1095 : vector<32x128xf32>
    %c4_1156 = arith.constant 4 : index
    %c2_1157 = arith.constant 2 : index
    %c0_1158 = arith.constant 0 : index
    %c0_1159 = arith.constant 0 : index
    %1097 = vector.load %arg8[%c4_1156, %c2_1157, %c0_1158, %c0_1159] : memref<7x7x32x128xf32, #tpu.memory_space<vmem>>, vector<1x1x32x128xf32>
    %1098 = vector.shape_cast %1097 : vector<1x1x32x128xf32> to vector<32x128xf32>
    %1099 = vector.shape_cast %1096 : vector<32x128xf32> to vector<1x1x32x128xf32>
    tpu.vector_store %arg8[%c4_1156, %c2_1157, %c0_1158, %c0_1159], %1099 {strides = array<i32>} : memref<7x7x32x128xf32, #tpu.memory_space<vmem>>, vector<1x1x32x128xf32>,
    %c1_1160 = arith.constant 1 : index
    %c0_1161 = arith.constant 0 : index
    %c384_1162 = arith.constant 384 : index
    %1100 = vector.load %arg10[%c1_1160, %c0_1161, %c384_1162] : memref<2x32x896xf32, #tpu.memory_space<vmem>>, vector<1x32x128xf32>
    %1101 = vector.shape_cast %1100 : vector<1x32x128xf32> to vector<32x128xf32>
    %1102 = arith.mulf %1081, %1101 : vector<32x128xf32>
    %c4_1163 = arith.constant 4 : index
    %c3_1164 = arith.constant 3 : index
    %c0_1165 = arith.constant 0 : index
    %c0_1166 = arith.constant 0 : index
    %1103 = vector.load %arg8[%c4_1163, %c3_1164, %c0_1165, %c0_1166] : memref<7x7x32x128xf32, #tpu.memory_space<vmem>>, vector<1x1x32x128xf32>
    %1104 = vector.shape_cast %1103 : vector<1x1x32x128xf32> to vector<32x128xf32>
    %1105 = vector.shape_cast %1102 : vector<32x128xf32> to vector<1x1x32x128xf32>
    tpu.vector_store %arg8[%c4_1163, %c3_1164, %c0_1165, %c0_1166], %1105 {strides = array<i32>} : memref<7x7x32x128xf32, #tpu.memory_space<vmem>>, vector<1x1x32x128xf32>,
    %c1_1167 = arith.constant 1 : index
    %c0_1168 = arith.constant 0 : index
    %c512_1169 = arith.constant 512 : index
    %1106 = vector.load %arg10[%c1_1167, %c0_1168, %c512_1169] : memref<2x32x896xf32, #tpu.memory_space<vmem>>, vector<1x32x128xf32>
    %1107 = vector.shape_cast %1106 : vector<1x32x128xf32> to vector<32x128xf32>
    %1108 = arith.mulf %1081, %1107 : vector<32x128xf32>
    %c4_1170 = arith.constant 4 : index
    %c4_1171 = arith.constant 4 : index
    %c0_1172 = arith.constant 0 : index
    %c0_1173 = arith.constant 0 : index
    %1109 = vector.load %arg8[%c4_1170, %c4_1171, %c0_1172, %c0_1173] : memref<7x7x32x128xf32, #tpu.memory_space<vmem>>, vector<1x1x32x128xf32>
    %1110 = vector.shape_cast %1109 : vector<1x1x32x128xf32> to vector<32x128xf32>
    %1111 = vector.shape_cast %1108 : vector<32x128xf32> to vector<1x1x32x128xf32>
    tpu.vector_store %arg8[%c4_1170, %c4_1171, %c0_1172, %c0_1173], %1111 {strides = array<i32>} : memref<7x7x32x128xf32, #tpu.memory_space<vmem>>, vector<1x1x32x128xf32>,
    %c1_1174 = arith.constant 1 : index
    %c0_1175 = arith.constant 0 : index
    %c640_1176 = arith.constant 640 : index
    %1112 = vector.load %arg10[%c1_1174, %c0_1175, %c640_1176] : memref<2x32x896xf32, #tpu.memory_space<vmem>>, vector<1x32x128xf32>
    %1113 = vector.shape_cast %1112 : vector<1x32x128xf32> to vector<32x128xf32>
    %1114 = arith.mulf %1081, %1113 : vector<32x128xf32>
    %c4_1177 = arith.constant 4 : index
    %c5_1178 = arith.constant 5 : index
    %c0_1179 = arith.constant 0 : index
    %c0_1180 = arith.constant 0 : index
    %1115 = vector.load %arg8[%c4_1177, %c5_1178, %c0_1179, %c0_1180] : memref<7x7x32x128xf32, #tpu.memory_space<vmem>>, vector<1x1x32x128xf32>
    %1116 = vector.shape_cast %1115 : vector<1x1x32x128xf32> to vector<32x128xf32>
    %1117 = vector.shape_cast %1114 : vector<32x128xf32> to vector<1x1x32x128xf32>
    tpu.vector_store %arg8[%c4_1177, %c5_1178, %c0_1179, %c0_1180], %1117 {strides = array<i32>} : memref<7x7x32x128xf32, #tpu.memory_space<vmem>>, vector<1x1x32x128xf32>,
    %c1_1181 = arith.constant 1 : index
    %c0_1182 = arith.constant 0 : index
    %c768_1183 = arith.constant 768 : index
    %1118 = vector.load %arg10[%c1_1181, %c0_1182, %c768_1183] : memref<2x32x896xf32, #tpu.memory_space<vmem>>, vector<1x32x128xf32>
    %1119 = vector.shape_cast %1118 : vector<1x32x128xf32> to vector<32x128xf32>
    %1120 = arith.mulf %1081, %1119 : vector<32x128xf32>
    %c4_1184 = arith.constant 4 : index
    %c6_1185 = arith.constant 6 : index
    %c0_1186 = arith.constant 0 : index
    %c0_1187 = arith.constant 0 : index
    %1121 = vector.load %arg8[%c4_1184, %c6_1185, %c0_1186, %c0_1187] : memref<7x7x32x128xf32, #tpu.memory_space<vmem>>, vector<1x1x32x128xf32>
    %1122 = vector.shape_cast %1121 : vector<1x1x32x128xf32> to vector<32x128xf32>
    %1123 = vector.shape_cast %1120 : vector<32x128xf32> to vector<1x1x32x128xf32>
    tpu.vector_store %arg8[%c4_1184, %c6_1185, %c0_1186, %c0_1187], %1123 {strides = array<i32>} : memref<7x7x32x128xf32, #tpu.memory_space<vmem>>, vector<1x1x32x128xf32>,
    %c0_1188 = arith.constant 0 : index
    %c0_1189 = arith.constant 0 : index
    %c640_1190 = arith.constant 640 : index
    %1124 = vector.load %arg10[%c0_1188, %c0_1189, %c640_1190] : memref<2x32x896xf32, #tpu.memory_space<vmem>>, vector<1x32x128xf32>
    %1125 = vector.shape_cast %1124 : vector<1x32x128xf32> to vector<32x128xf32>
    %c1_1191 = arith.constant 1 : index
    %c0_1192 = arith.constant 0 : index
    %c0_1193 = arith.constant 0 : index
    %1126 = vector.load %arg10[%c1_1191, %c0_1192, %c0_1193] : memref<2x32x896xf32, #tpu.memory_space<vmem>>, vector<1x32x128xf32>
    %1127 = vector.shape_cast %1126 : vector<1x32x128xf32> to vector<32x128xf32>
    %1128 = arith.mulf %1125, %1127 : vector<32x128xf32>
    %c5_1194 = arith.constant 5 : index
    %c0_1195 = arith.constant 0 : index
    %c0_1196 = arith.constant 0 : index
    %c0_1197 = arith.constant 0 : index
    %1129 = vector.load %arg8[%c5_1194, %c0_1195, %c0_1196, %c0_1197] : memref<7x7x32x128xf32, #tpu.memory_space<vmem>>, vector<1x1x32x128xf32>
    %1130 = vector.shape_cast %1129 : vector<1x1x32x128xf32> to vector<32x128xf32>
    %1131 = vector.shape_cast %1128 : vector<32x128xf32> to vector<1x1x32x128xf32>
    tpu.vector_store %arg8[%c5_1194, %c0_1195, %c0_1196, %c0_1197], %1131 {strides = array<i32>} : memref<7x7x32x128xf32, #tpu.memory_space<vmem>>, vector<1x1x32x128xf32>,
    %c1_1198 = arith.constant 1 : index
    %c0_1199 = arith.constant 0 : index
    %c128_1200 = arith.constant 128 : index
    %1132 = vector.load %arg10[%c1_1198, %c0_1199, %c128_1200] : memref<2x32x896xf32, #tpu.memory_space<vmem>>, vector<1x32x128xf32>
    %1133 = vector.shape_cast %1132 : vector<1x32x128xf32> to vector<32x128xf32>
    %1134 = arith.mulf %1125, %1133 : vector<32x128xf32>
    %c5_1201 = arith.constant 5 : index
    %c1_1202 = arith.constant 1 : index
    %c0_1203 = arith.constant 0 : index
    %c0_1204 = arith.constant 0 : index
    %1135 = vector.load %arg8[%c5_1201, %c1_1202, %c0_1203, %c0_1204] : memref<7x7x32x128xf32, #tpu.memory_space<vmem>>, vector<1x1x32x128xf32>
    %1136 = vector.shape_cast %1135 : vector<1x1x32x128xf32> to vector<32x128xf32>
    %1137 = vector.shape_cast %1134 : vector<32x128xf32> to vector<1x1x32x128xf32>
    tpu.vector_store %arg8[%c5_1201, %c1_1202, %c0_1203, %c0_1204], %1137 {strides = array<i32>} : memref<7x7x32x128xf32, #tpu.memory_space<vmem>>, vector<1x1x32x128xf32>,
    %c1_1205 = arith.constant 1 : index
    %c0_1206 = arith.constant 0 : index
    %c256_1207 = arith.constant 256 : index
    %1138 = vector.load %arg10[%c1_1205, %c0_1206, %c256_1207] : memref<2x32x896xf32, #tpu.memory_space<vmem>>, vector<1x32x128xf32>
    %1139 = vector.shape_cast %1138 : vector<1x32x128xf32> to vector<32x128xf32>
    %1140 = arith.mulf %1125, %1139 : vector<32x128xf32>
    %c5_1208 = arith.constant 5 : index
    %c2_1209 = arith.constant 2 : index
    %c0_1210 = arith.constant 0 : index
    %c0_1211 = arith.constant 0 : index
    %1141 = vector.load %arg8[%c5_1208, %c2_1209, %c0_1210, %c0_1211] : memref<7x7x32x128xf32, #tpu.memory_space<vmem>>, vector<1x1x32x128xf32>
    %1142 = vector.shape_cast %1141 : vector<1x1x32x128xf32> to vector<32x128xf32>
    %1143 = vector.shape_cast %1140 : vector<32x128xf32> to vector<1x1x32x128xf32>
    tpu.vector_store %arg8[%c5_1208, %c2_1209, %c0_1210, %c0_1211], %1143 {strides = array<i32>} : memref<7x7x32x128xf32, #tpu.memory_space<vmem>>, vector<1x1x32x128xf32>,
    %c1_1212 = arith.constant 1 : index
    %c0_1213 = arith.constant 0 : index
    %c384_1214 = arith.constant 384 : index
    %1144 = vector.load %arg10[%c1_1212, %c0_1213, %c384_1214] : memref<2x32x896xf32, #tpu.memory_space<vmem>>, vector<1x32x128xf32>
    %1145 = vector.shape_cast %1144 : vector<1x32x128xf32> to vector<32x128xf32>
    %1146 = arith.mulf %1125, %1145 : vector<32x128xf32>
    %c5_1215 = arith.constant 5 : index
    %c3_1216 = arith.constant 3 : index
    %c0_1217 = arith.constant 0 : index
    %c0_1218 = arith.constant 0 : index
    %1147 = vector.load %arg8[%c5_1215, %c3_1216, %c0_1217, %c0_1218] : memref<7x7x32x128xf32, #tpu.memory_space<vmem>>, vector<1x1x32x128xf32>
    %1148 = vector.shape_cast %1147 : vector<1x1x32x128xf32> to vector<32x128xf32>
    %1149 = vector.shape_cast %1146 : vector<32x128xf32> to vector<1x1x32x128xf32>
    tpu.vector_store %arg8[%c5_1215, %c3_1216, %c0_1217, %c0_1218], %1149 {strides = array<i32>} : memref<7x7x32x128xf32, #tpu.memory_space<vmem>>, vector<1x1x32x128xf32>,
    %c1_1219 = arith.constant 1 : index
    %c0_1220 = arith.constant 0 : index
    %c512_1221 = arith.constant 512 : index
    %1150 = vector.load %arg10[%c1_1219, %c0_1220, %c512_1221] : memref<2x32x896xf32, #tpu.memory_space<vmem>>, vector<1x32x128xf32>
    %1151 = vector.shape_cast %1150 : vector<1x32x128xf32> to vector<32x128xf32>
    %1152 = arith.mulf %1125, %1151 : vector<32x128xf32>
    %c5_1222 = arith.constant 5 : index
    %c4_1223 = arith.constant 4 : index
    %c0_1224 = arith.constant 0 : index
    %c0_1225 = arith.constant 0 : index
    %1153 = vector.load %arg8[%c5_1222, %c4_1223, %c0_1224, %c0_1225] : memref<7x7x32x128xf32, #tpu.memory_space<vmem>>, vector<1x1x32x128xf32>
    %1154 = vector.shape_cast %1153 : vector<1x1x32x128xf32> to vector<32x128xf32>
    %1155 = vector.shape_cast %1152 : vector<32x128xf32> to vector<1x1x32x128xf32>
    tpu.vector_store %arg8[%c5_1222, %c4_1223, %c0_1224, %c0_1225], %1155 {strides = array<i32>} : memref<7x7x32x128xf32, #tpu.memory_space<vmem>>, vector<1x1x32x128xf32>,
    %c1_1226 = arith.constant 1 : index
    %c0_1227 = arith.constant 0 : index
    %c640_1228 = arith.constant 640 : index
    %1156 = vector.load %arg10[%c1_1226, %c0_1227, %c640_1228] : memref<2x32x896xf32, #tpu.memory_space<vmem>>, vector<1x32x128xf32>
    %1157 = vector.shape_cast %1156 : vector<1x32x128xf32> to vector<32x128xf32>
    %1158 = arith.mulf %1125, %1157 : vector<32x128xf32>
    %c5_1229 = arith.constant 5 : index
    %c5_1230 = arith.constant 5 : index
    %c0_1231 = arith.constant 0 : index
    %c0_1232 = arith.constant 0 : index
    %1159 = vector.load %arg8[%c5_1229, %c5_1230, %c0_1231, %c0_1232] : memref<7x7x32x128xf32, #tpu.memory_space<vmem>>, vector<1x1x32x128xf32>
    %1160 = vector.shape_cast %1159 : vector<1x1x32x128xf32> to vector<32x128xf32>
    %1161 = vector.shape_cast %1158 : vector<32x128xf32> to vector<1x1x32x128xf32>
    tpu.vector_store %arg8[%c5_1229, %c5_1230, %c0_1231, %c0_1232], %1161 {strides = array<i32>} : memref<7x7x32x128xf32, #tpu.memory_space<vmem>>, vector<1x1x32x128xf32>,
    %c1_1233 = arith.constant 1 : index
    %c0_1234 = arith.constant 0 : index
    %c768_1235 = arith.constant 768 : index
    %1162 = vector.load %arg10[%c1_1233, %c0_1234, %c768_1235] : memref<2x32x896xf32, #tpu.memory_space<vmem>>, vector<1x32x128xf32>
    %1163 = vector.shape_cast %1162 : vector<1x32x128xf32> to vector<32x128xf32>
    %1164 = arith.mulf %1125, %1163 : vector<32x128xf32>
    %c5_1236 = arith.constant 5 : index
    %c6_1237 = arith.constant 6 : index
    %c0_1238 = arith.constant 0 : index
    %c0_1239 = arith.constant 0 : index
    %1165 = vector.load %arg8[%c5_1236, %c6_1237, %c0_1238, %c0_1239] : memref<7x7x32x128xf32, #tpu.memory_space<vmem>>, vector<1x1x32x128xf32>
    %1166 = vector.shape_cast %1165 : vector<1x1x32x128xf32> to vector<32x128xf32>
    %1167 = vector.shape_cast %1164 : vector<32x128xf32> to vector<1x1x32x128xf32>
    tpu.vector_store %arg8[%c5_1236, %c6_1237, %c0_1238, %c0_1239], %1167 {strides = array<i32>} : memref<7x7x32x128xf32, #tpu.memory_space<vmem>>, vector<1x1x32x128xf32>,
    %c0_1240 = arith.constant 0 : index
    %c0_1241 = arith.constant 0 : index
    %c768_1242 = arith.constant 768 : index
    %1168 = vector.load %arg10[%c0_1240, %c0_1241, %c768_1242] : memref<2x32x896xf32, #tpu.memory_space<vmem>>, vector<1x32x128xf32>
    %1169 = vector.shape_cast %1168 : vector<1x32x128xf32> to vector<32x128xf32>
    %c1_1243 = arith.constant 1 : index
    %c0_1244 = arith.constant 0 : index
    %c0_1245 = arith.constant 0 : index
    %1170 = vector.load %arg10[%c1_1243, %c0_1244, %c0_1245] : memref<2x32x896xf32, #tpu.memory_space<vmem>>, vector<1x32x128xf32>
    %1171 = vector.shape_cast %1170 : vector<1x32x128xf32> to vector<32x128xf32>
    %1172 = arith.mulf %1169, %1171 : vector<32x128xf32>
    %c6_1246 = arith.constant 6 : index
    %c0_1247 = arith.constant 0 : index
    %c0_1248 = arith.constant 0 : index
    %c0_1249 = arith.constant 0 : index
    %1173 = vector.load %arg8[%c6_1246, %c0_1247, %c0_1248, %c0_1249] : memref<7x7x32x128xf32, #tpu.memory_space<vmem>>, vector<1x1x32x128xf32>
    %1174 = vector.shape_cast %1173 : vector<1x1x32x128xf32> to vector<32x128xf32>
    %1175 = vector.shape_cast %1172 : vector<32x128xf32> to vector<1x1x32x128xf32>
    tpu.vector_store %arg8[%c6_1246, %c0_1247, %c0_1248, %c0_1249], %1175 {strides = array<i32>} : memref<7x7x32x128xf32, #tpu.memory_space<vmem>>, vector<1x1x32x128xf32>,
    %c1_1250 = arith.constant 1 : index
    %c0_1251 = arith.constant 0 : index
    %c128_1252 = arith.constant 128 : index
    %1176 = vector.load %arg10[%c1_1250, %c0_1251, %c128_1252] : memref<2x32x896xf32, #tpu.memory_space<vmem>>, vector<1x32x128xf32>
    %1177 = vector.shape_cast %1176 : vector<1x32x128xf32> to vector<32x128xf32>
    %1178 = arith.mulf %1169, %1177 : vector<32x128xf32>
    %c6_1253 = arith.constant 6 : index
    %c1_1254 = arith.constant 1 : index
    %c0_1255 = arith.constant 0 : index
    %c0_1256 = arith.constant 0 : index
    %1179 = vector.load %arg8[%c6_1253, %c1_1254, %c0_1255, %c0_1256] : memref<7x7x32x128xf32, #tpu.memory_space<vmem>>, vector<1x1x32x128xf32>
    %1180 = vector.shape_cast %1179 : vector<1x1x32x128xf32> to vector<32x128xf32>
    %1181 = vector.shape_cast %1178 : vector<32x128xf32> to vector<1x1x32x128xf32>
    tpu.vector_store %arg8[%c6_1253, %c1_1254, %c0_1255, %c0_1256], %1181 {strides = array<i32>} : memref<7x7x32x128xf32, #tpu.memory_space<vmem>>, vector<1x1x32x128xf32>,
    %c1_1257 = arith.constant 1 : index
    %c0_1258 = arith.constant 0 : index
    %c256_1259 = arith.constant 256 : index
    %1182 = vector.load %arg10[%c1_1257, %c0_1258, %c256_1259] : memref<2x32x896xf32, #tpu.memory_space<vmem>>, vector<1x32x128xf32>
    %1183 = vector.shape_cast %1182 : vector<1x32x128xf32> to vector<32x128xf32>
    %1184 = arith.mulf %1169, %1183 : vector<32x128xf32>
    %c6_1260 = arith.constant 6 : index
    %c2_1261 = arith.constant 2 : index
    %c0_1262 = arith.constant 0 : index
    %c0_1263 = arith.constant 0 : index
    %1185 = vector.load %arg8[%c6_1260, %c2_1261, %c0_1262, %c0_1263] : memref<7x7x32x128xf32, #tpu.memory_space<vmem>>, vector<1x1x32x128xf32>
    %1186 = vector.shape_cast %1185 : vector<1x1x32x128xf32> to vector<32x128xf32>
    %1187 = vector.shape_cast %1184 : vector<32x128xf32> to vector<1x1x32x128xf32>
    tpu.vector_store %arg8[%c6_1260, %c2_1261, %c0_1262, %c0_1263], %1187 {strides = array<i32>} : memref<7x7x32x128xf32, #tpu.memory_space<vmem>>, vector<1x1x32x128xf32>,
    %c1_1264 = arith.constant 1 : index
    %c0_1265 = arith.constant 0 : index
    %c384_1266 = arith.constant 384 : index
    %1188 = vector.load %arg10[%c1_1264, %c0_1265, %c384_1266] : memref<2x32x896xf32, #tpu.memory_space<vmem>>, vector<1x32x128xf32>
    %1189 = vector.shape_cast %1188 : vector<1x32x128xf32> to vector<32x128xf32>
    %1190 = arith.mulf %1169, %1189 : vector<32x128xf32>
    %c6_1267 = arith.constant 6 : index
    %c3_1268 = arith.constant 3 : index
    %c0_1269 = arith.constant 0 : index
    %c0_1270 = arith.constant 0 : index
    %1191 = vector.load %arg8[%c6_1267, %c3_1268, %c0_1269, %c0_1270] : memref<7x7x32x128xf32, #tpu.memory_space<vmem>>, vector<1x1x32x128xf32>
    %1192 = vector.shape_cast %1191 : vector<1x1x32x128xf32> to vector<32x128xf32>
    %1193 = vector.shape_cast %1190 : vector<32x128xf32> to vector<1x1x32x128xf32>
    tpu.vector_store %arg8[%c6_1267, %c3_1268, %c0_1269, %c0_1270], %1193 {strides = array<i32>} : memref<7x7x32x128xf32, #tpu.memory_space<vmem>>, vector<1x1x32x128xf32>,
    %c1_1271 = arith.constant 1 : index
    %c0_1272 = arith.constant 0 : index
    %c512_1273 = arith.constant 512 : index
    %1194 = vector.load %arg10[%c1_1271, %c0_1272, %c512_1273] : memref<2x32x896xf32, #tpu.memory_space<vmem>>, vector<1x32x128xf32>
    %1195 = vector.shape_cast %1194 : vector<1x32x128xf32> to vector<32x128xf32>
    %1196 = arith.mulf %1169, %1195 : vector<32x128xf32>
    %c6_1274 = arith.constant 6 : index
    %c4_1275 = arith.constant 4 : index
    %c0_1276 = arith.constant 0 : index
    %c0_1277 = arith.constant 0 : index
    %1197 = vector.load %arg8[%c6_1274, %c4_1275, %c0_1276, %c0_1277] : memref<7x7x32x128xf32, #tpu.memory_space<vmem>>, vector<1x1x32x128xf32>
    %1198 = vector.shape_cast %1197 : vector<1x1x32x128xf32> to vector<32x128xf32>
    %1199 = vector.shape_cast %1196 : vector<32x128xf32> to vector<1x1x32x128xf32>
    tpu.vector_store %arg8[%c6_1274, %c4_1275, %c0_1276, %c0_1277], %1199 {strides = array<i32>} : memref<7x7x32x128xf32, #tpu.memory_space<vmem>>, vector<1x1x32x128xf32>,
    %c1_1278 = arith.constant 1 : index
    %c0_1279 = arith.constant 0 : index
    %c640_1280 = arith.constant 640 : index
    %1200 = vector.load %arg10[%c1_1278, %c0_1279, %c640_1280] : memref<2x32x896xf32, #tpu.memory_space<vmem>>, vector<1x32x128xf32>
    %1201 = vector.shape_cast %1200 : vector<1x32x128xf32> to vector<32x128xf32>
    %1202 = arith.mulf %1169, %1201 : vector<32x128xf32>
    %c6_1281 = arith.constant 6 : index
    %c5_1282 = arith.constant 5 : index
    %c0_1283 = arith.constant 0 : index
    %c0_1284 = arith.constant 0 : index
    %1203 = vector.load %arg8[%c6_1281, %c5_1282, %c0_1283, %c0_1284] : memref<7x7x32x128xf32, #tpu.memory_space<vmem>>, vector<1x1x32x128xf32>
    %1204 = vector.shape_cast %1203 : vector<1x1x32x128xf32> to vector<32x128xf32>
    %1205 = vector.shape_cast %1202 : vector<32x128xf32> to vector<1x1x32x128xf32>
    tpu.vector_store %arg8[%c6_1281, %c5_1282, %c0_1283, %c0_1284], %1205 {strides = array<i32>} : memref<7x7x32x128xf32, #tpu.memory_space<vmem>>, vector<1x1x32x128xf32>,
    %c1_1285 = arith.constant 1 : index
    %c0_1286 = arith.constant 0 : index
    %c768_1287 = arith.constant 768 : index
    %1206 = vector.load %arg10[%c1_1285, %c0_1286, %c768_1287] : memref<2x32x896xf32, #tpu.memory_space<vmem>>, vector<1x32x128xf32>
    %1207 = vector.shape_cast %1206 : vector<1x32x128xf32> to vector<32x128xf32>
    %1208 = arith.mulf %1169, %1207 : vector<32x128xf32>
    %c6_1288 = arith.constant 6 : index
    %c6_1289 = arith.constant 6 : index
    %c0_1290 = arith.constant 0 : index
    %c0_1291 = arith.constant 0 : index
    %1209 = vector.load %arg8[%c6_1288, %c6_1289, %c0_1290, %c0_1291] : memref<7x7x32x128xf32, #tpu.memory_space<vmem>>, vector<1x1x32x128xf32>
    %1210 = vector.shape_cast %1209 : vector<1x1x32x128xf32> to vector<32x128xf32>
    %1211 = vector.shape_cast %1208 : vector<32x128xf32> to vector<1x1x32x128xf32>
    tpu.vector_store %arg8[%c6_1288, %c6_1289, %c0_1290, %c0_1291], %1211 {strides = array<i32>} : memref<7x7x32x128xf32, #tpu.memory_space<vmem>>, vector<1x1x32x128xf32>,
    return
  }
  func.func @transform_0(%arg0: i32) -> (i32, i32, i32, i32) {
    %c0_i32 = arith.constant 0 : i32
    %c0_i32_0 = arith.constant 0 : i32
    %c0_i32_1 = arith.constant 0 : i32
    %c0_i32_2 = arith.constant 0 : i32
    return %c0_i32, %c0_i32_0, %c0_i32_1, %arg0 : i32, i32, i32, i32
  }
  func.func @transform_1(%arg0: i32) -> (i32, i32, i32, i32) {
    %c0_i32 = arith.constant 0 : i32
    %c0_i32_0 = arith.constant 0 : i32
    %c0_i32_1 = arith.constant 0 : i32
    %c0_i32_2 = arith.constant 0 : i32
    %c0_i32_3 = arith.constant 0 : i32
    return %c0_i32, %c0_i32_0, %c0_i32_1, %c0_i32_2 : i32, i32, i32, i32
  }
  func.func @transform_2(%arg0: i32) -> (i32, i32, i32) {
    %c0_i32 = arith.constant 0 : i32
    %c0_i32_0 = arith.constant 0 : i32
    %c0_i32_1 = arith.constant 0 : i32
    %c0_i32_2 = arith.constant 0 : i32
    return %c0_i32, %c0_i32_0, %c0_i32_1 : i32, i32, i32
  }
  func.func @transform_3(%arg0: i32) -> (i32, i32) {
    %c0_i32 = arith.constant 0 : i32
    %c0_i32_0 = arith.constant 0 : i32
    %c0_i32_1 = arith.constant 0 : i32
    return %c0_i32, %c0_i32_0 : i32, i32
  }
  func.func @transform_4(%arg0: i32) -> (i32, i32) {
    %c0_i32 = arith.constant 0 : i32
    %c0_i32_0 = arith.constant 0 : i32
    %c0_i32_1 = arith.constant 0 : i32
    return %c0_i32, %c0_i32_0 : i32, i32
  }
  func.func @transform_5(%arg0: i32) -> (i32, i32) {
    %c0_i32 = arith.constant 0 : i32
    %c0_i32_0 = arith.constant 0 : i32
    %c0_i32_1 = arith.constant 0 : i32
    return %c0_i32, %c0_i32_0 : i32, i32
  }
  func.func @transform_6(%arg0: i32) -> (i32, i32) {
    %c0_i32 = arith.constant 0 : i32
    %c0_i32_0 = arith.constant 0 : i32
    %c0_i32_1 = arith.constant 0 : i32
    return %c0_i32, %c0_i32_0 : i32, i32
  }
  func.func @transform_7(%arg0: i32) -> (i32, i32, i32, i32) {
    %c0_i32 = arith.constant 0 : i32
    %c0_i32_0 = arith.constant 0 : i32
    %c0_i32_1 = arith.constant 0 : i32
    %c0_i32_2 = arith.constant 0 : i32
    return %c0_i32, %c0_i32_0, %c0_i32_1, %arg0 : i32, i32, i32, i32
  }
}

</mosaic_0001>

<llo_original>
// kernel: coordinate_attention.1
$region0: #{coordinate_attention.1}
  #allocation0 [shape = 'u32[]', space=smem, size = 0x4, offset = 0x4, fixed_abs, tag = 'smem constant byte address 0x4 - core index']
  #allocation1 [shape = 'u32[144,128]{1,0:T(1,128)}', space=vmem, size = 0x12000, scoped, tag = 'internal scratch']
  #allocation2 [shape = 'f32[32,1792]{1,0:T(8,128)}', space=vmem, size = 0x38000, scoped, tag = 'scratch operand']
  #allocation3 [shape = 'f32[2,32,896]{2,1,0:T(8,128)}', space=vmem, size = 0x38000, scoped, tag = 'scratch operand']
  %s0 = inlined_call_operand.vmem [shape: f32[7,7,32,128], index: 0, kind: input, shape index: {}]
  %s1 = inlined_call_operand.vmem [shape: f32[2,7,32,1], index: 1, kind: input, shape index: {}]
  %s2 = inlined_call_operand.vmem [shape: f32[2,32,1], index: 2, kind: input, shape index: {}]
  %s3 = inlined_call_operand.vmem [shape: f32[8,32], index: 3, kind: input, shape index: {}]
  %s4 = inlined_call_operand.vmem [shape: f32[8,1], index: 4, kind: input, shape index: {}]
  %s5 = inlined_call_operand.vmem [shape: f32[64,16], index: 5, kind: input, shape index: {}]
  %s6 = inlined_call_operand.vmem [shape: f32[64,1], index: 6, kind: input, shape index: {}]
  %s7 = inlined_call_operand.vmem [shape: f32[7,7,32,128], index: 7, kind: output, shape index: {}]
  %s8 = sld [smem:[#allocation0]]
  $region38: #{coordinate_attention.1} parent=0
    _
  %s10 = ssub.s32 1, %s8
  %s11 = scalar_select 0, %s10, %s8
  // Predicated region
  $region2: #{coordinate_attention.1} parent=0 // pred_check
    _
  $region3: #{coordinate_attention.1} parent=0 // pred_check_branch
    %13 = sbr.rel (0) target = $region5
  $region4: #{coordinate_attention.1} parent=0 // pred_region
    _
  $region5: #{coordinate_attention.1} parent=0 // pred_fallthru
    _
  // Predicated region
  $region6: #{coordinate_attention.1} parent=0 // pred_check
    _
  $region7: #{coordinate_attention.1} parent=0 // pred_check_branch
    %15 = sbr.rel (0) target = $region9
  $region8: #{coordinate_attention.1} parent=0 // pred_region
    _
  $region9: #{coordinate_attention.1} parent=0 // pred_fallthru
    _
  // Predicated region
  $region10: #{coordinate_attention.1} parent=0 // pred_check
    _
  $region11: #{coordinate_attention.1} parent=0 // pred_check_branch
    %17 = sbr.rel (0) target = $region13
  $region12: #{coordinate_attention.1} parent=0 // pred_region
    _
  $region13: #{coordinate_attention.1} parent=0 // pred_fallthru
    _
  // Predicated region
  $region14: #{coordinate_attention.1} parent=0 // pred_check
    _
  $region15: #{coordinate_attention.1} parent=0 // pred_check_branch
    %19 = sbr.rel (0) target = $region17
  $region16: #{coordinate_attention.1} parent=0 // pred_region
    _
  $region17: #{coordinate_attention.1} parent=0 // pred_fallthru
    _
  // Predicated region
  $region18: #{coordinate_attention.1} parent=0 // pred_check
    _
  $region19: #{coordinate_attention.1} parent=0 // pred_check_branch
    %21 = sbr.rel (0) target = $region21
  $region20: #{coordinate_attention.1} parent=0 // pred_region
    _
  $region21: #{coordinate_attention.1} parent=0 // pred_fallthru
    _
  // Predicated region
  $region22: #{coordinate_attention.1} parent=0 // pred_check
    _
  $region23: #{coordinate_attention.1} parent=0 // pred_check_branch
    %23 = sbr.rel (0) target = $region25
  $region24: #{coordinate_attention.1} parent=0 // pred_region
    _
  $region25: #{coordinate_attention.1} parent=0 // pred_fallthru
    _
  // Predicated region
  $region26: #{coordinate_attention.1} parent=0 // pred_check
    _
  $region27: #{coordinate_attention.1} parent=0 // pred_check_branch
    %25 = sbr.rel (0) target = $region29
  $region28: #{coordinate_attention.1} parent=0 // pred_region
    _
  $region29: #{coordinate_attention.1} parent=0 // pred_fallthru
    _
  %v26 = vld [vmem:[%s0] sm:$0xff]
  %v27 = vld [vmem:[%s0 + $0x8] sm:$0xff]
  %v28 = vld [vmem:[%s0 + $0x10] sm:$0xff]
  %v29 = vld [vmem:[%s0 + $0x18] sm:$0xff]
  %v30 = vld [vmem:[%s1] sm:$0xff]
  %v31 = vld [vmem:[%s1 + $0x8] sm:$0xff]
  %v32 = vld [vmem:[%s1 + $0x10] sm:$0xff]
  %v33 = vld [vmem:[%s1 + $0x18] sm:$0xff]
  %35 = vset.pattern.permute.xlu0 0
  %36 = vperm.xlu0 %35, %v30
  %v37 = vpop.permute.xlu0 %36
  %40 = vset.pattern.permute.xlu0 0
  %41 = vperm.xlu0 %40, %v31
  %v42 = vpop.permute.xlu0 %41
  %45 = vset.pattern.permute.xlu0 0
  %46 = vperm.xlu0 %45, %v32
  %v47 = vpop.permute.xlu0 %46
  %50 = vset.pattern.permute.xlu0 0
  %51 = vperm.xlu0 %50, %v33
  %v52 = vpop.permute.xlu0 %51
  %v54 = vmul.f32 %v26, %v37
  %v55 = vmul.f32 %v27, %v42
  %v56 = vmul.f32 %v28, %v47
  %v57 = vmul.f32 %v29, %v52
  %s58 = scalar_lea.vmem %s0, 32
  %v59 = vld [vmem:[%s58] sm:$0xff]
  %v60 = vld [vmem:[%s58 + $0x8] sm:$0xff]
  %v61 = vld [vmem:[%s58 + $0x10] sm:$0xff]
  %v62 = vld [vmem:[%s58 + $0x18] sm:$0xff]
  %s63 = scalar_lea.vmem %s1, 32
  %v64 = vld [vmem:[%s63] sm:$0xff]
  %v65 = vld [vmem:[%s63 + $0x8] sm:$0xff]
  %v66 = vld [vmem:[%s63 + $0x10] sm:$0xff]
  %v67 = vld [vmem:[%s63 + $0x18] sm:$0xff]
  %69 = vset.pattern.permute.xlu0 0
  %70 = vperm.xlu0 %69, %v64
  %v71 = vpop.permute.xlu0 %70
  %74 = vset.pattern.permute.xlu0 0
  %75 = vperm.xlu0 %74, %v65
  %v76 = vpop.permute.xlu0 %75
  %79 = vset.pattern.permute.xlu0 0
  %80 = vperm.xlu0 %79, %v66
  %v81 = vpop.permute.xlu0 %80
  %84 = vset.pattern.permute.xlu0 0
  %85 = vperm.xlu0 %84, %v67
  %v86 = vpop.permute.xlu0 %85
  %v88 = vmul.f32 %v59, %v71
  %v89 = vmul.f32 %v60, %v76
  %v90 = vmul.f32 %v61, %v81
  %v91 = vmul.f32 %v62, %v86
  %s92 = scalar_lea.vmem %s0, 64
  %v93 = vld [vmem:[%s92] sm:$0xff]
  %v94 = vld [vmem:[%s92 + $0x8] sm:$0xff]
  %v95 = vld [vmem:[%s92 + $0x10] sm:$0xff]
  %v96 = vld [vmem:[%s92 + $0x18] sm:$0xff]
  %s97 = scalar_lea.vmem %s1, 64
  %v98 = vld [vmem:[%s97] sm:$0xff]
  %v99 = vld [vmem:[%s97 + $0x8] sm:$0xff]
  %v100 = vld [vmem:[%s97 + $0x10] sm:$0xff]
  %v101 = vld [vmem:[%s97 + $0x18] sm:$0xff]
  %103 = vset.pattern.permute.xlu0 0
  %104 = vperm.xlu0 %103, %v98
  %v105 = vpop.permute.xlu0 %104
  %108 = vset.pattern.permute.xlu0 0
  %109 = vperm.xlu0 %108, %v99
  %v110 = vpop.permute.xlu0 %109
  %113 = vset.pattern.permute.xlu0 0
  %114 = vperm.xlu0 %113, %v100
  %v115 = vpop.permute.xlu0 %114
  %118 = vset.pattern.permute.xlu0 0
  %119 = vperm.xlu0 %118, %v101
  %v120 = vpop.permute.xlu0 %119
  %v122 = vmul.f32 %v93, %v105
  %v123 = vmul.f32 %v94, %v110
  %v124 = vmul.f32 %v95, %v115
  %v125 = vmul.f32 %v96, %v120
  %v126 = vadd.f32 %v54, %v122
  %v127 = vadd.f32 %v55, %v123
  %v128 = vadd.f32 %v56, %v124
  %v129 = vadd.f32 %v57, %v125
  %s130 = scalar_lea.vmem %s0, 96
  %v131 = vld [vmem:[%s130] sm:$0xff]
  %v132 = vld [vmem:[%s130 + $0x8] sm:$0xff]
  %v133 = vld [vmem:[%s130 + $0x10] sm:$0xff]
  %v134 = vld [vmem:[%s130 + $0x18] sm:$0xff]
  %s135 = scalar_lea.vmem %s1, 96
  %v136 = vld [vmem:[%s135] sm:$0xff]
  %v137 = vld [vmem:[%s135 + $0x8] sm:$0xff]
  %v138 = vld [vmem:[%s135 + $0x10] sm:$0xff]
  %v139 = vld [vmem:[%s135 + $0x18] sm:$0xff]
  %141 = vset.pattern.permute.xlu0 0
  %142 = vperm.xlu0 %141, %v136
  %v143 = vpop.permute.xlu0 %142
  %146 = vset.pattern.permute.xlu0 0
  %147 = vperm.xlu0 %146, %v137
  %v148 = vpop.permute.xlu0 %147
  %151 = vset.pattern.permute.xlu0 0
  %152 = vperm.xlu0 %151, %v138
  %v153 = vpop.permute.xlu0 %152
  %156 = vset.pattern.permute.xlu0 0
  %157 = vperm.xlu0 %156, %v139
  %v158 = vpop.permute.xlu0 %157
  %v160 = vmul.f32 %v131, %v143
  %v161 = vmul.f32 %v132, %v148
  %v162 = vmul.f32 %v133, %v153
  %v163 = vmul.f32 %v134, %v158
  %v164 = vadd.f32 %v88, %v160
  %v165 = vadd.f32 %v89, %v161
  %v166 = vadd.f32 %v90, %v162
  %v167 = vadd.f32 %v91, %v163
  %s168 = scalar_lea.vmem %s0, 128
  %v169 = vld [vmem:[%s168] sm:$0xff]
  %v170 = vld [vmem:[%s168 + $0x8] sm:$0xff]
  %v171 = vld [vmem:[%s168 + $0x10] sm:$0xff]
  %v172 = vld [vmem:[%s168 + $0x18] sm:$0xff]
  %s173 = scalar_lea.vmem %s1, 128
  %v174 = vld [vmem:[%s173] sm:$0xff]
  %v175 = vld [vmem:[%s173 + $0x8] sm:$0xff]
  %v176 = vld [vmem:[%s173 + $0x10] sm:$0xff]
  %v177 = vld [vmem:[%s173 + $0x18] sm:$0xff]
  %179 = vset.pattern.permute.xlu0 0
  %180 = vperm.xlu0 %179, %v174
  %v181 = vpop.permute.xlu0 %180
  %184 = vset.pattern.permute.xlu0 0
  %185 = vperm.xlu0 %184, %v175
  %v186 = vpop.permute.xlu0 %185
  %189 = vset.pattern.permute.xlu0 0
  %190 = vperm.xlu0 %189, %v176
  %v191 = vpop.permute.xlu0 %190
  %194 = vset.pattern.permute.xlu0 0
  %195 = vperm.xlu0 %194, %v177
  %v196 = vpop.permute.xlu0 %195
  %v198 = vmul.f32 %v169, %v181
  %v199 = vmul.f32 %v170, %v186
  %v200 = vmul.f32 %v171, %v191
  %v201 = vmul.f32 %v172, %v196
  %v202 = vadd.f32 %v126, %v198
  %v203 = vadd.f32 %v127, %v199
  %v204 = vadd.f32 %v128, %v200
  %v205 = vadd.f32 %v129, %v201
  %s206 = scalar_lea.vmem %s0, 160
  %v207 = vld [vmem:[%s206] sm:$0xff]
  %v208 = vld [vmem:[%s206 + $0x8] sm:$0xff]
  %v209 = vld [vmem:[%s206 + $0x10] sm:$0xff]
  %v210 = vld [vmem:[%s206 + $0x18] sm:$0xff]
  %s211 = scalar_lea.vmem %s1, 160
  %v212 = vld [vmem:[%s211] sm:$0xff]
  %v213 = vld [vmem:[%s211 + $0x8] sm:$0xff]
  %v214 = vld [vmem:[%s211 + $0x10] sm:$0xff]
  %v215 = vld [vmem:[%s211 + $0x18] sm:$0xff]
  %217 = vset.pattern.permute.xlu0 0
  %218 = vperm.xlu0 %217, %v212
  %v219 = vpop.permute.xlu0 %218
  %222 = vset.pattern.permute.xlu0 0
  %223 = vperm.xlu0 %222, %v213
  %v224 = vpop.permute.xlu0 %223
  %227 = vset.pattern.permute.xlu0 0
  %228 = vperm.xlu0 %227, %v214
  %v229 = vpop.permute.xlu0 %228
  %232 = vset.pattern.permute.xlu0 0
  %233 = vperm.xlu0 %232, %v215
  %v234 = vpop.permute.xlu0 %233
  %v236 = vmul.f32 %v207, %v219
  %v237 = vmul.f32 %v208, %v224
  %v238 = vmul.f32 %v209, %v229
  %v239 = vmul.f32 %v210, %v234
  %v240 = vadd.f32 %v164, %v236
  %v241 = vadd.f32 %v165, %v237
  %v242 = vadd.f32 %v166, %v238
  %v243 = vadd.f32 %v167, %v239
  %s244 = scalar_lea.vmem %s0, 192
  %v245 = vld [vmem:[%s244] sm:$0xff]
  %v246 = vld [vmem:[%s244 + $0x8] sm:$0xff]
  %v247 = vld [vmem:[%s244 + $0x10] sm:$0xff]
  %v248 = vld [vmem:[%s244 + $0x18] sm:$0xff]
  %s249 = scalar_lea.vmem %s1, 192
  %v250 = vld [vmem:[%s249] sm:$0xff]
  %v251 = vld [vmem:[%s249 + $0x8] sm:$0xff]
  %v252 = vld [vmem:[%s249 + $0x10] sm:$0xff]
  %v253 = vld [vmem:[%s249 + $0x18] sm:$0xff]
  %255 = vset.pattern.permute.xlu0 0
  %256 = vperm.xlu0 %255, %v250
  %v257 = vpop.permute.xlu0 %256
  %260 = vset.pattern.permute.xlu0 0
  %261 = vperm.xlu0 %260, %v251
  %v262 = vpop.permute.xlu0 %261
  %265 = vset.pattern.permute.xlu0 0
  %266 = vperm.xlu0 %265, %v252
  %v267 = vpop.permute.xlu0 %266
  %270 = vset.pattern.permute.xlu0 0
  %271 = vperm.xlu0 %270, %v253
  %v272 = vpop.permute.xlu0 %271
  %v274 = vmul.f32 %v245, %v257
  %v275 = vmul.f32 %v246, %v262
  %v276 = vmul.f32 %v247, %v267
  %v277 = vmul.f32 %v248, %v272
  %v278 = vadd.f32 %v202, %v274
  %v279 = vadd.f32 %v203, %v275
  %v280 = vadd.f32 %v204, %v276
  %v281 = vadd.f32 %v205, %v277
  %v282 = vadd.f32 %v278, %v240
  %v283 = vadd.f32 %v279, %v241
  %v284 = vadd.f32 %v280, %v242
  %v285 = vadd.f32 %v281, %v243
  %v286 = vld [vmem:[%s2] sm:$0xff]
  %v287 = vld [vmem:[%s2 + $0x8] sm:$0xff]
  %v288 = vld [vmem:[%s2 + $0x10] sm:$0xff]
  %v289 = vld [vmem:[%s2 + $0x18] sm:$0xff]
  %291 = vset.pattern.permute.xlu0 0
  %292 = vperm.xlu0 %291, %v286
  %v293 = vpop.permute.xlu0 %292
  %296 = vset.pattern.permute.xlu0 0
  %297 = vperm.xlu0 %296, %v287
  %v298 = vpop.permute.xlu0 %297
  %301 = vset.pattern.permute.xlu0 0
  %302 = vperm.xlu0 %301, %v288
  %v303 = vpop.permute.xlu0 %302
  %306 = vset.pattern.permute.xlu0 0
  %307 = vperm.xlu0 %306, %v289
  %v308 = vpop.permute.xlu0 %307
  %v310 = vadd.f32 %v282, %v293
  %v311 = vadd.f32 %v283, %v298
  %v312 = vadd.f32 %v284, %v303
  %v313 = vadd.f32 %v285, %v308
  %314 = vst [vmem:[#allocation2] sm:$0xff] %v310
  %315 = vst [vmem:[#allocation2 + $0x70] sm:$0xff] %v311
  %316 = vst [vmem:[#allocation2 + $0xe0] sm:$0xff] %v312
  %317 = vst [vmem:[#allocation2 + $0x150] sm:$0xff] %v313
  %s318 = scalar_lea.vmem %s0, 224
  %v319 = vld [vmem:[%s318] sm:$0xff]
  %v320 = vld [vmem:[%s318 + $0x8] sm:$0xff]
  %v321 = vld [vmem:[%s318 + $0x10] sm:$0xff]
  %v322 = vld [vmem:[%s318 + $0x18] sm:$0xff]
  %v323 = vld [vmem:[%s1] sm:$0xff]
  %v324 = vld [vmem:[%s1 + $0x8] sm:$0xff]
  %v325 = vld [vmem:[%s1 + $0x10] sm:$0xff]
  %v326 = vld [vmem:[%s1 + $0x18] sm:$0xff]
  %328 = vset.pattern.permute.xlu0 0
  %329 = vperm.xlu0 %328, %v323
  %v330 = vpop.permute.xlu0 %329
  %333 = vset.pattern.permute.xlu0 0
  %334 = vperm.xlu0 %333, %v324
  %v335 = vpop.permute.xlu0 %334
  %338 = vset.pattern.permute.xlu0 0
  %339 = vperm.xlu0 %338, %v325
  %v340 = vpop.permute.xlu0 %339
  %343 = vset.pattern.permute.xlu0 0
  %344 = vperm.xlu0 %343, %v326
  %v345 = vpop.permute.xlu0 %344
  %v347 = vmul.f32 %v319, %v330
  %v348 = vmul.f32 %v320, %v335
  %v349 = vmul.f32 %v321, %v340
  %v350 = vmul.f32 %v322, %v345
  %s351 = scalar_lea.vmem %s0, 256
  %v352 = vld [vmem:[%s351] sm:$0xff]
  %v353 = vld [vmem:[%s351 + $0x8] sm:$0xff]
  %v354 = vld [vmem:[%s351 + $0x10] sm:$0xff]
  %v355 = vld [vmem:[%s351 + $0x18] sm:$0xff]
  %v356 = vld [vmem:[%s63] sm:$0xff]
  %v357 = vld [vmem:[%s63 + $0x8] sm:$0xff]
  %v358 = vld [vmem:[%s63 + $0x10] sm:$0xff]
  %v359 = vld [vmem:[%s63 + $0x18] sm:$0xff]
  %361 = vset.pattern.permute.xlu0 0
  %362 = vperm.xlu0 %361, %v356
  %v363 = vpop.permute.xlu0 %362
  %366 = vset.pattern.permute.xlu0 0
  %367 = vperm.xlu0 %366, %v357
  %v368 = vpop.permute.xlu0 %367
  %371 = vset.pattern.permute.xlu0 0
  %372 = vperm.xlu0 %371, %v358
  %v373 = vpop.permute.xlu0 %372
  %376 = vset.pattern.permute.xlu0 0
  %377 = vperm.xlu0 %376, %v359
  %v378 = vpop.permute.xlu0 %377
  %v380 = vmul.f32 %v352, %v363
  %v381 = vmul.f32 %v353, %v368
  %v382 = vmul.f32 %v354, %v373
  %v383 = vmul.f32 %v355, %v378
  %s384 = scalar_lea.vmem %s0, 288
  %v385 = vld [vmem:[%s384] sm:$0xff]
  %v386 = vld [vmem:[%s384 + $0x8] sm:$0xff]
  %v387 = vld [vmem:[%s384 + $0x10] sm:$0xff]
  %v388 = vld [vmem:[%s384 + $0x18] sm:$0xff]
  %v389 = vld [vmem:[%s97] sm:$0xff]
  %v390 = vld [vmem:[%s97 + $0x8] sm:$0xff]
  %v391 = vld [vmem:[%s97 + $0x10] sm:$0xff]
  %v392 = vld [vmem:[%s97 + $0x18] sm:$0xff]
  %394 = vset.pattern.permute.xlu0 0
  %395 = vperm.xlu0 %394, %v389
  %v396 = vpop.permute.xlu0 %395
  %399 = vset.pattern.permute.xlu0 0
  %400 = vperm.xlu0 %399, %v390
  %v401 = vpop.permute.xlu0 %400
  %404 = vset.pattern.permute.xlu0 0
  %405 = vperm.xlu0 %404, %v391
  %v406 = vpop.permute.xlu0 %405
  %409 = vset.pattern.permute.xlu0 0
  %410 = vperm.xlu0 %409, %v392
  %v411 = vpop.permute.xlu0 %410
  %v413 = vmul.f32 %v385, %v396
  %v414 = vmul.f32 %v386, %v401
  %v415 = vmul.f32 %v387, %v406
  %v416 = vmul.f32 %v388, %v411
  %v417 = vadd.f32 %v347, %v413
  %v418 = vadd.f32 %v348, %v414
  %v419 = vadd.f32 %v349, %v415
  %v420 = vadd.f32 %v350, %v416
  %s421 = scalar_lea.vmem %s0, 320
  %v422 = vld [vmem:[%s421] sm:$0xff]
  %v423 = vld [vmem:[%s421 + $0x8] sm:$0xff]
  %v424 = vld [vmem:[%s421 + $0x10] sm:$0xff]
  %v425 = vld [vmem:[%s421 + $0x18] sm:$0xff]
  %v426 = vld [vmem:[%s135] sm:$0xff]
  %v427 = vld [vmem:[%s135 + $0x8] sm:$0xff]
  %v428 = vld [vmem:[%s135 + $0x10] sm:$0xff]
  %v429 = vld [vmem:[%s135 + $0x18] sm:$0xff]
  %431 = vset.pattern.permute.xlu0 0
  %432 = vperm.xlu0 %431, %v426
  %v433 = vpop.permute.xlu0 %432
  %436 = vset.pattern.permute.xlu0 0
  %437 = vperm.xlu0 %436, %v427
  %v438 = vpop.permute.xlu0 %437
  %441 = vset.pattern.permute.xlu0 0
  %442 = vperm.xlu0 %441, %v428
  %v443 = vpop.permute.xlu0 %442
  %446 = vset.pattern.permute.xlu0 0
  %447 = vperm.xlu0 %446, %v429
  %v448 = vpop.permute.xlu0 %447
  %v450 = vmul.f32 %v422, %v433
  %v451 = vmul.f32 %v423, %v438
  %v452 = vmul.f32 %v424, %v443
  %v453 = vmul.f32 %v425, %v448
  %v454 = vadd.f32 %v380, %v450
  %v455 = vadd.f32 %v381, %v451
  %v456 = vadd.f32 %v382, %v452
  %v457 = vadd.f32 %v383, %v453
  %s458 = scalar_lea.vmem %s0, 352
  %v459 = vld [vmem:[%s458] sm:$0xff]
  %v460 = vld [vmem:[%s458 + $0x8] sm:$0xff]
  %v461 = vld [vmem:[%s458 + $0x10] sm:$0xff]
  %v462 = vld [vmem:[%s458 + $0x18] sm:$0xff]
  %v463 = vld [vmem:[%s173] sm:$0xff]
  %v464 = vld [vmem:[%s173 + $0x8] sm:$0xff]
  %v465 = vld [vmem:[%s173 + $0x10] sm:$0xff]
  %v466 = vld [vmem:[%s173 + $0x18] sm:$0xff]
  %468 = vset.pattern.permute.xlu0 0
  %469 = vperm.xlu0 %468, %v463
  %v470 = vpop.permute.xlu0 %469
  %473 = vset.pattern.permute.xlu0 0
  %474 = vperm.xlu0 %473, %v464
  %v475 = vpop.permute.xlu0 %474
  %478 = vset.pattern.permute.xlu0 0
  %479 = vperm.xlu0 %478, %v465
  %v480 = vpop.permute.xlu0 %479
  %483 = vset.pattern.permute.xlu0 0
  %484 = vperm.xlu0 %483, %v466
  %v485 = vpop.permute.xlu0 %484
  %v487 = vmul.f32 %v459, %v470
  %v488 = vmul.f32 %v460, %v475
  %v489 = vmul.f32 %v461, %v480
  %v490 = vmul.f32 %v462, %v485
  %v491 = vadd.f32 %v417, %v487
  %v492 = vadd.f32 %v418, %v488
  %v493 = vadd.f32 %v419, %v489
  %v494 = vadd.f32 %v420, %v490
  %s495 = scalar_lea.vmem %s0, 384
  %v496 = vld [vmem:[%s495] sm:$0xff]
  %v497 = vld [vmem:[%s495 + $0x8] sm:$0xff]
  %v498 = vld [vmem:[%s495 + $0x10] sm:$0xff]
  %v499 = vld [vmem:[%s495 + $0x18] sm:$0xff]
  %v500 = vld [vmem:[%s211] sm:$0xff]
  %v501 = vld [vmem:[%s211 + $0x8] sm:$0xff]
  %v502 = vld [vmem:[%s211 + $0x10] sm:$0xff]
  %v503 = vld [vmem:[%s211 + $0x18] sm:$0xff]
  %505 = vset.pattern.permute.xlu0 0
  %506 = vperm.xlu0 %505, %v500
  %v507 = vpop.permute.xlu0 %506
  %510 = vset.pattern.permute.xlu0 0
  %511 = vperm.xlu0 %510, %v501
  %v512 = vpop.permute.xlu0 %511
  %515 = vset.pattern.permute.xlu0 0
  %516 = vperm.xlu0 %515, %v502
  %v517 = vpop.permute.xlu0 %516
  %520 = vset.pattern.permute.xlu0 0
  %521 = vperm.xlu0 %520, %v503
  %v522 = vpop.permute.xlu0 %521
  %v524 = vmul.f32 %v496, %v507
  %v525 = vmul.f32 %v497, %v512
  %v526 = vmul.f32 %v498, %v517
  %v527 = vmul.f32 %v499, %v522
  %v528 = vadd.f32 %v454, %v524
  %v529 = vadd.f32 %v455, %v525
  %v530 = vadd.f32 %v456, %v526
  %v531 = vadd.f32 %v457, %v527
  %s532 = scalar_lea.vmem %s0, 416
  %v533 = vld [vmem:[%s532] sm:$0xff]
  %v534 = vld [vmem:[%s532 + $0x8] sm:$0xff]
  %v535 = vld [vmem:[%s532 + $0x10] sm:$0xff]
  %v536 = vld [vmem:[%s532 + $0x18] sm:$0xff]
  %v537 = vld [vmem:[%s249] sm:$0xff]
  %v538 = vld [vmem:[%s249 + $0x8] sm:$0xff]
  %v539 = vld [vmem:[%s249 + $0x10] sm:$0xff]
  %v540 = vld [vmem:[%s249 + $0x18] sm:$0xff]
  %542 = vset.pattern.permute.xlu0 0
  %543 = vperm.xlu0 %542, %v537
  %v544 = vpop.permute.xlu0 %543
  %547 = vset.pattern.permute.xlu0 0
  %548 = vperm.xlu0 %547, %v538
  %v549 = vpop.permute.xlu0 %548
  %552 = vset.pattern.permute.xlu0 0
  %553 = vperm.xlu0 %552, %v539
  %v554 = vpop.permute.xlu0 %553
  %557 = vset.pattern.permute.xlu0 0
  %558 = vperm.xlu0 %557, %v540
  %v559 = vpop.permute.xlu0 %558
  %v561 = vmul.f32 %v533, %v544
  %v562 = vmul.f32 %v534, %v549
  %v563 = vmul.f32 %v535, %v554
  %v564 = vmul.f32 %v536, %v559
  %v565 = vadd.f32 %v491, %v561
  %v566 = vadd.f32 %v492, %v562
  %v567 = vadd.f32 %v493, %v563
  %v568 = vadd.f32 %v494, %v564
  %v569 = vadd.f32 %v565, %v528
  %v570 = vadd.f32 %v566, %v529
  %v571 = vadd.f32 %v567, %v530
  %v572 = vadd.f32 %v568, %v531
  %v573 = vld [vmem:[%s2] sm:$0xff]
  %v574 = vld [vmem:[%s2 + $0x8] sm:$0xff]
  %v575 = vld [vmem:[%s2 + $0x10] sm:$0xff]
  %v576 = vld [vmem:[%s2 + $0x18] sm:$0xff]
  %578 = vset.pattern.permute.xlu0 0
  %579 = vperm.xlu0 %578, %v573
  %v580 = vpop.permute.xlu0 %579
  %583 = vset.pattern.permute.xlu0 0
  %584 = vperm.xlu0 %583, %v574
  %v585 = vpop.permute.xlu0 %584
  %588 = vset.pattern.permute.xlu0 0
  %589 = vperm.xlu0 %588, %v575
  %v590 = vpop.permute.xlu0 %589
  %593 = vset.pattern.permute.xlu0 0
  %594 = vperm.xlu0 %593, %v576
  %v595 = vpop.permute.xlu0 %594
  %v597 = vadd.f32 %v569, %v580
  %v598 = vadd.f32 %v570, %v585
  %v599 = vadd.f32 %v571, %v590
  %v600 = vadd.f32 %v572, %v595
  %601 = vst [vmem:[#allocation2 + $0x8] sm:$0xff] %v597
  %602 = vst [vmem:[#allocation2 + $0x78] sm:$0xff] %v598
  %603 = vst [vmem:[#allocation2 + $0xe8] sm:$0xff] %v599
  %604 = vst [vmem:[#allocation2 + $0x158] sm:$0xff] %v600
  %s605 = scalar_lea.vmem %s0, 448
  %v606 = vld [vmem:[%s605] sm:$0xff]
  %v607 = vld [vmem:[%s605 + $0x8] sm:$0xff]
  %v608 = vld [vmem:[%s605 + $0x10] sm:$0xff]
  %v609 = vld [vmem:[%s605 + $0x18] sm:$0xff]
  %v610 = vld [vmem:[%s1] sm:$0xff]
  %v611 = vld [vmem:[%s1 + $0x8] sm:$0xff]
  %v612 = vld [vmem:[%s1 + $0x10] sm:$0xff]
  %v613 = vld [vmem:[%s1 + $0x18] sm:$0xff]
  %615 = vset.pattern.permute.xlu0 0
  %616 = vperm.xlu0 %615, %v610
  %v617 = vpop.permute.xlu0 %616
  %620 = vset.pattern.permute.xlu0 0
  %621 = vperm.xlu0 %620, %v611
  %v622 = vpop.permute.xlu0 %621
  %625 = vset.pattern.permute.xlu0 0
  %626 = vperm.xlu0 %625, %v612
  %v627 = vpop.permute.xlu0 %626
  %630 = vset.pattern.permute.xlu0 0
  %631 = vperm.xlu0 %630, %v613
  %v632 = vpop.permute.xlu0 %631
  %v634 = vmul.f32 %v606, %v617
  %v635 = vmul.f32 %v607, %v622
  %v636 = vmul.f32 %v608, %v627
  %v637 = vmul.f32 %v609, %v632
  %s638 = scalar_lea.vmem %s0, 480
  %v639 = vld [vmem:[%s638] sm:$0xff]
  %v640 = vld [vmem:[%s638 + $0x8] sm:$0xff]
  %v641 = vld [vmem:[%s638 + $0x10] sm:$0xff]
  %v642 = vld [vmem:[%s638 + $0x18] sm:$0xff]
  %v643 = vld [vmem:[%s63] sm:$0xff]
  %v644 = vld [vmem:[%s63 + $0x8] sm:$0xff]
  %v645 = vld [vmem:[%s63 + $0x10] sm:$0xff]
  %v646 = vld [vmem:[%s63 + $0x18] sm:$0xff]
  %648 = vset.pattern.permute.xlu0 0
  %649 = vperm.xlu0 %648, %v643
  %v650 = vpop.permute.xlu0 %649
  %653 = vset.pattern.permute.xlu0 0
  %654 = vperm.xlu0 %653, %v644
  %v655 = vpop.permute.xlu0 %654
  %658 = vset.pattern.permute.xlu0 0
  %659 = vperm.xlu0 %658, %v645
  %v660 = vpop.permute.xlu0 %659
  %663 = vset.pattern.permute.xlu0 0
  %664 = vperm.xlu0 %663, %v646
  %v665 = vpop.permute.xlu0 %664
  %v667 = vmul.f32 %v639, %v650
  %v668 = vmul.f32 %v640, %v655
  %v669 = vmul.f32 %v641, %v660
  %v670 = vmul.f32 %v642, %v665
  %s671 = scalar_lea.vmem %s0, 512
  %v672 = vld [vmem:[%s671] sm:$0xff]
  %v673 = vld [vmem:[%s671 + $0x8] sm:$0xff]
  %v674 = vld [vmem:[%s671 + $0x10] sm:$0xff]
  %v675 = vld [vmem:[%s671 + $0x18] sm:$0xff]
  %v676 = vld [vmem:[%s97] sm:$0xff]
  %v677 = vld [vmem:[%s97 + $0x8] sm:$0xff]
  %v678 = vld [vmem:[%s97 + $0x10] sm:$0xff]
  %v679 = vld [vmem:[%s97 + $0x18] sm:$0xff]
  %681 = vset.pattern.permute.xlu0 0
  %682 = vperm.xlu0 %681, %v676
  %v683 = vpop.permute.xlu0 %682
  %686 = vset.pattern.permute.xlu0 0
  %687 = vperm.xlu0 %686, %v677
  %v688 = vpop.permute.xlu0 %687
  %691 = vset.pattern.permute.xlu0 0
  %692 = vperm.xlu0 %691, %v678
  %v693 = vpop.permute.xlu0 %692
  %696 = vset.pattern.permute.xlu0 0
  %697 = vperm.xlu0 %696, %v679
  %v698 = vpop.permute.xlu0 %697
  %v700 = vmul.f32 %v672, %v683
  %v701 = vmul.f32 %v673, %v688
  %v702 = vmul.f32 %v674, %v693
  %v703 = vmul.f32 %v675, %v698
  %v704 = vadd.f32 %v634, %v700
  %v705 = vadd.f32 %v635, %v701
  %v706 = vadd.f32 %v636, %v702
  %v707 = vadd.f32 %v637, %v703
  %s708 = scalar_lea.vmem %s0, 544
  %v709 = vld [vmem:[%s708] sm:$0xff]
  %v710 = vld [vmem:[%s708 + $0x8] sm:$0xff]
  %v711 = vld [vmem:[%s708 + $0x10] sm:$0xff]
  %v712 = vld [vmem:[%s708 + $0x18] sm:$0xff]
  %v713 = vld [vmem:[%s135] sm:$0xff]
  %v714 = vld [vmem:[%s135 + $0x8] sm:$0xff]
  %v715 = vld [vmem:[%s135 + $0x10] sm:$0xff]
  %v716 = vld [vmem:[%s135 + $0x18] sm:$0xff]
  %718 = vset.pattern.permute.xlu0 0
  %719 = vperm.xlu0 %718, %v713
  %v720 = vpop.permute.xlu0 %719
  %723 = vset.pattern.permute.xlu0 0
  %724 = vperm.xlu0 %723, %v714
  %v725 = vpop.permute.xlu0 %724
  %728 = vset.pattern.permute.xlu0 0
  %729 = vperm.xlu0 %728, %v715
  %v730 = vpop.permute.xlu0 %729
  %733 = vset.pattern.permute.xlu0 0
  %734 = vperm.xlu0 %733, %v716
  %v735 = vpop.permute.xlu0 %734
  %v737 = vmul.f32 %v709, %v720
  %v738 = vmul.f32 %v710, %v725
  %v739 = vmul.f32 %v711, %v730
  %v740 = vmul.f32 %v712, %v735
  %v741 = vadd.f32 %v667, %v737
  %v742 = vadd.f32 %v668, %v738
  %v743 = vadd.f32 %v669, %v739
  %v744 = vadd.f32 %v670, %v740
  %s745 = scalar_lea.vmem %s0, 576
  %v746 = vld [vmem:[%s745] sm:$0xff]
  %v747 = vld [vmem:[%s745 + $0x8] sm:$0xff]
  %v748 = vld [vmem:[%s745 + $0x10] sm:$0xff]
  %v749 = vld [vmem:[%s745 + $0x18] sm:$0xff]
  %v750 = vld [vmem:[%s173] sm:$0xff]
  %v751 = vld [vmem:[%s173 + $0x8] sm:$0xff]
  %v752 = vld [vmem:[%s173 + $0x10] sm:$0xff]
  %v753 = vld [vmem:[%s173 + $0x18] sm:$0xff]
  %755 = vset.pattern.permute.xlu0 0
  %756 = vperm.xlu0 %755, %v750
  %v757 = vpop.permute.xlu0 %756
  %760 = vset.pattern.permute.xlu0 0
  %761 = vperm.xlu0 %760, %v751
  %v762 = vpop.permute.xlu0 %761
  %765 = vset.pattern.permute.xlu0 0
  %766 = vperm.xlu0 %765, %v752
  %v767 = vpop.permute.xlu0 %766
  %770 = vset.pattern.permute.xlu0 0
  %771 = vperm.xlu0 %770, %v753
  %v772 = vpop.permute.xlu0 %771
  %v774 = vmul.f32 %v746, %v757
  %v775 = vmul.f32 %v747, %v762
  %v776 = vmul.f32 %v748, %v767
  %v777 = vmul.f32 %v749, %v772
  %v778 = vadd.f32 %v704, %v774
  %v779 = vadd.f32 %v705, %v775
  %v780 = vadd.f32 %v706, %v776
  %v781 = vadd.f32 %v707, %v777
  %s782 = scalar_lea.vmem %s0, 608
  %v783 = vld [vmem:[%s782] sm:$0xff]
  %v784 = vld [vmem:[%s782 + $0x8] sm:$0xff]
  %v785 = vld [vmem:[%s782 + $0x10] sm:$0xff]
  %v786 = vld [vmem:[%s782 + $0x18] sm:$0xff]
  %v787 = vld [vmem:[%s211] sm:$0xff]
  %v788 = vld [vmem:[%s211 + $0x8] sm:$0xff]
  %v789 = vld [vmem:[%s211 + $0x10] sm:$0xff]
  %v790 = vld [vmem:[%s211 + $0x18] sm:$0xff]
  %792 = vset.pattern.permute.xlu0 0
  %793 = vperm.xlu0 %792, %v787
  %v794 = vpop.permute.xlu0 %793
  %797 = vset.pattern.permute.xlu0 0
  %798 = vperm.xlu0 %797, %v788
  %v799 = vpop.permute.xlu0 %798
  %802 = vset.pattern.permute.xlu0 0
  %803 = vperm.xlu0 %802, %v789
  %v804 = vpop.permute.xlu0 %803
  %807 = vset.pattern.permute.xlu0 0
  %808 = vperm.xlu0 %807, %v790
  %v809 = vpop.permute.xlu0 %808
  %v811 = vmul.f32 %v783, %v794
  %v812 = vmul.f32 %v784, %v799
  %v813 = vmul.f32 %v785, %v804
  %v814 = vmul.f32 %v786, %v809
  %v815 = vadd.f32 %v741, %v811
  %v816 = vadd.f32 %v742, %v812
  %v817 = vadd.f32 %v743, %v813
  %v818 = vadd.f32 %v744, %v814
  %s819 = scalar_lea.vmem %s0, 640
  %v820 = vld [vmem:[%s819] sm:$0xff]
  %v821 = vld [vmem:[%s819 + $0x8] sm:$0xff]
  %v822 = vld [vmem:[%s819 + $0x10] sm:$0xff]
  %v823 = vld [vmem:[%s819 + $0x18] sm:$0xff]
  %v824 = vld [vmem:[%s249] sm:$0xff]
  %v825 = vld [vmem:[%s249 + $0x8] sm:$0xff]
  %v826 = vld [vmem:[%s249 + $0x10] sm:$0xff]
  %v827 = vld [vmem:[%s249 + $0x18] sm:$0xff]
  %829 = vset.pattern.permute.xlu0 0
  %830 = vperm.xlu0 %829, %v824
  %v831 = vpop.permute.xlu0 %830
  %834 = vset.pattern.permute.xlu0 0
  %835 = vperm.xlu0 %834, %v825
  %v836 = vpop.permute.xlu0 %835
  %839 = vset.pattern.permute.xlu0 0
  %840 = vperm.xlu0 %839, %v826
  %v841 = vpop.permute.xlu0 %840
  %844 = vset.pattern.permute.xlu0 0
  %845 = vperm.xlu0 %844, %v827
  %v846 = vpop.permute.xlu0 %845
  %v848 = vmul.f32 %v820, %v831
  %v849 = vmul.f32 %v821, %v836
  %v850 = vmul.f32 %v822, %v841
  %v851 = vmul.f32 %v823, %v846
  %v852 = vadd.f32 %v778, %v848
  %v853 = vadd.f32 %v779, %v849
  %v854 = vadd.f32 %v780, %v850
  %v855 = vadd.f32 %v781, %v851
  %v856 = vadd.f32 %v852, %v815
  %v857 = vadd.f32 %v853, %v816
  %v858 = vadd.f32 %v854, %v817
  %v859 = vadd.f32 %v855, %v818
  %v860 = vld [vmem:[%s2] sm:$0xff]
  %v861 = vld [vmem:[%s2 + $0x8] sm:$0xff]
  %v862 = vld [vmem:[%s2 + $0x10] sm:$0xff]
  %v863 = vld [vmem:[%s2 + $0x18] sm:$0xff]
  %865 = vset.pattern.permute.xlu0 0
  %866 = vperm.xlu0 %865, %v860
  %v867 = vpop.permute.xlu0 %866
  %870 = vset.pattern.permute.xlu0 0
  %871 = vperm.xlu0 %870, %v861
  %v872 = vpop.permute.xlu0 %871
  %875 = vset.pattern.permute.xlu0 0
  %876 = vperm.xlu0 %875, %v862
  %v877 = vpop.permute.xlu0 %876
  %880 = vset.pattern.permute.xlu0 0
  %881 = vperm.xlu0 %880, %v863
  %v882 = vpop.permute.xlu0 %881
  %v884 = vadd.f32 %v856, %v867
  %v885 = vadd.f32 %v857, %v872
  %v886 = vadd.f32 %v858, %v877
  %v887 = vadd.f32 %v859, %v882
  %888 = vst [vmem:[#allocation2 + $0x10] sm:$0xff] %v884
  %889 = vst [vmem:[#allocation2 + $0x80] sm:$0xff] %v885
  %890 = vst [vmem:[#allocation2 + $0xf0] sm:$0xff] %v886
  %891 = vst [vmem:[#allocation2 + $0x160] sm:$0xff] %v887
  %s892 = scalar_lea.vmem %s0, 672
  %v893 = vld [vmem:[%s892] sm:$0xff]
  %v894 = vld [vmem:[%s892 + $0x8] sm:$0xff]
  %v895 = vld [vmem:[%s892 + $0x10] sm:$0xff]
  %v896 = vld [vmem:[%s892 + $0x18] sm:$0xff]
  %v897 = vld [vmem:[%s1] sm:$0xff]
  %v898 = vld [vmem:[%s1 + $0x8] sm:$0xff]
  %v899 = vld [vmem:[%s1 + $0x10] sm:$0xff]
  %v900 = vld [vmem:[%s1 + $0x18] sm:$0xff]
  %902 = vset.pattern.permute.xlu0 0
  %903 = vperm.xlu0 %902, %v897
  %v904 = vpop.permute.xlu0 %903
  %907 = vset.pattern.permute.xlu0 0
  %908 = vperm.xlu0 %907, %v898
  %v909 = vpop.permute.xlu0 %908
  %912 = vset.pattern.permute.xlu0 0
  %913 = vperm.xlu0 %912, %v899
  %v914 = vpop.permute.xlu0 %913
  %917 = vset.pattern.permute.xlu0 0
  %918 = vperm.xlu0 %917, %v900
  %v919 = vpop.permute.xlu0 %918
  %v921 = vmul.f32 %v893, %v904
  %v922 = vmul.f32 %v894, %v909
  %v923 = vmul.f32 %v895, %v914
  %v924 = vmul.f32 %v896, %v919
  %s925 = scalar_lea.vmem %s0, 704
  %v926 = vld [vmem:[%s925] sm:$0xff]
  %v927 = vld [vmem:[%s925 + $0x8] sm:$0xff]
  %v928 = vld [vmem:[%s925 + $0x10] sm:$0xff]
  %v929 = vld [vmem:[%s925 + $0x18] sm:$0xff]
  %v930 = vld [vmem:[%s63] sm:$0xff]
  %v931 = vld [vmem:[%s63 + $0x8] sm:$0xff]
  %v932 = vld [vmem:[%s63 + $0x10] sm:$0xff]
  %v933 = vld [vmem:[%s63 + $0x18] sm:$0xff]
  %935 = vset.pattern.permute.xlu0 0
  %936 = vperm.xlu0 %935, %v930
  %v937 = vpop.permute.xlu0 %936
  %940 = vset.pattern.permute.xlu0 0
  %941 = vperm.xlu0 %940, %v931
  %v942 = vpop.permute.xlu0 %941
  %945 = vset.pattern.permute.xlu0 0
  %946 = vperm.xlu0 %945, %v932
  %v947 = vpop.permute.xlu0 %946
  %950 = vset.pattern.permute.xlu0 0
  %951 = vperm.xlu0 %950, %v933
  %v952 = vpop.permute.xlu0 %951
  %v954 = vmul.f32 %v926, %v937
  %v955 = vmul.f32 %v927, %v942
  %v956 = vmul.f32 %v928, %v947
  %v957 = vmul.f32 %v929, %v952
  %s958 = scalar_lea.vmem %s0, 736
  %v959 = vld [vmem:[%s958] sm:$0xff]
  %v960 = vld [vmem:[%s958 + $0x8] sm:$0xff]
  %v961 = vld [vmem:[%s958 + $0x10] sm:$0xff]
  %v962 = vld [vmem:[%s958 + $0x18] sm:$0xff]
  %v963 = vld [vmem:[%s97] sm:$0xff]
  %v964 = vld [vmem:[%s97 + $0x8] sm:$0xff]
  %v965 = vld [vmem:[%s97 + $0x10] sm:$0xff]
  %v966 = vld [vmem:[%s97 + $0x18] sm:$0xff]
  %968 = vset.pattern.permute.xlu0 0
  %969 = vperm.xlu0 %968, %v963
  %v970 = vpop.permute.xlu0 %969
  %973 = vset.pattern.permute.xlu0 0
  %974 = vperm.xlu0 %973, %v964
  %v975 = vpop.permute.xlu0 %974
  %978 = vset.pattern.permute.xlu0 0
  %979 = vperm.xlu0 %978, %v965
  %v980 = vpop.permute.xlu0 %979
  %983 = vset.pattern.permute.xlu0 0
  %984 = vperm.xlu0 %983, %v966
  %v985 = vpop.permute.xlu0 %984
  %v987 = vmul.f32 %v959, %v970
  %v988 = vmul.f32 %v960, %v975
  %v989 = vmul.f32 %v961, %v980
  %v990 = vmul.f32 %v962, %v985
  %v991 = vadd.f32 %v921, %v987
  %v992 = vadd.f32 %v922, %v988
  %v993 = vadd.f32 %v923, %v989
  %v994 = vadd.f32 %v924, %v990
  %s995 = scalar_lea.vmem %s0, 768
  %v996 = vld [vmem:[%s995] sm:$0xff]
  %v997 = vld [vmem:[%s995 + $0x8] sm:$0xff]
  %v998 = vld [vmem:[%s995 + $0x10] sm:$0xff]
  %v999 = vld [vmem:[%s995 + $0x18] sm:$0xff]
  %v1000 = vld [vmem:[%s135] sm:$0xff]
  %v1001 = vld [vmem:[%s135 + $0x8] sm:$0xff]
  %v1002 = vld [vmem:[%s135 + $0x10] sm:$0xff]
  %v1003 = vld [vmem:[%s135 + $0x18] sm:$0xff]
  %1005 = vset.pattern.permute.xlu0 0
  %1006 = vperm.xlu0 %1005, %v1000
  %v1007 = vpop.permute.xlu0 %1006
  %1010 = vset.pattern.permute.xlu0 0
  %1011 = vperm.xlu0 %1010, %v1001
  %v1012 = vpop.permute.xlu0 %1011
  %1015 = vset.pattern.permute.xlu0 0
  %1016 = vperm.xlu0 %1015, %v1002
  %v1017 = vpop.permute.xlu0 %1016
  %1020 = vset.pattern.permute.xlu0 0
  %1021 = vperm.xlu0 %1020, %v1003
  %v1022 = vpop.permute.xlu0 %1021
  %v1024 = vmul.f32 %v996, %v1007
  %v1025 = vmul.f32 %v997, %v1012
  %v1026 = vmul.f32 %v998, %v1017
  %v1027 = vmul.f32 %v999, %v1022
  %v1028 = vadd.f32 %v954, %v1024
  %v1029 = vadd.f32 %v955, %v1025
  %v1030 = vadd.f32 %v956, %v1026
  %v1031 = vadd.f32 %v957, %v1027
  %s1032 = scalar_lea.vmem %s0, 800
  %v1033 = vld [vmem:[%s1032] sm:$0xff]
  %v1034 = vld [vmem:[%s1032 + $0x8] sm:$0xff]
  %v1035 = vld [vmem:[%s1032 + $0x10] sm:$0xff]
  %v1036 = vld [vmem:[%s1032 + $0x18] sm:$0xff]
  %v1037 = vld [vmem:[%s173] sm:$0xff]
  %v1038 = vld [vmem:[%s173 + $0x8] sm:$0xff]
  %v1039 = vld [vmem:[%s173 + $0x10] sm:$0xff]
  %v1040 = vld [vmem:[%s173 + $0x18] sm:$0xff]
  %1042 = vset.pattern.permute.xlu0 0
  %1043 = vperm.xlu0 %1042, %v1037
  %v1044 = vpop.permute.xlu0 %1043
  %1047 = vset.pattern.permute.xlu0 0
  %1048 = vperm.xlu0 %1047, %v1038
  %v1049 = vpop.permute.xlu0 %1048
  %1052 = vset.pattern.permute.xlu0 0
  %1053 = vperm.xlu0 %1052, %v1039
  %v1054 = vpop.permute.xlu0 %1053
  %1057 = vset.pattern.permute.xlu0 0
  %1058 = vperm.xlu0 %1057, %v1040
  %v1059 = vpop.permute.xlu0 %1058
  %v1061 = vmul.f32 %v1033, %v1044
  %v1062 = vmul.f32 %v1034, %v1049
  %v1063 = vmul.f32 %v1035, %v1054
  %v1064 = vmul.f32 %v1036, %v1059
  %v1065 = vadd.f32 %v991, %v1061
  %v1066 = vadd.f32 %v992, %v1062
  %v1067 = vadd.f32 %v993, %v1063
  %v1068 = vadd.f32 %v994, %v1064
  %s1069 = scalar_lea.vmem %s0, 832
  %v1070 = vld [vmem:[%s1069] sm:$0xff]
  %v1071 = vld [vmem:[%s1069 + $0x8] sm:$0xff]
  %v1072 = vld [vmem:[%s1069 + $0x10] sm:$0xff]
  %v1073 = vld [vmem:[%s1069 + $0x18] sm:$0xff]
  %v1074 = vld [vmem:[%s211] sm:$0xff]
  %v1075 = vld [vmem:[%s211 + $0x8] sm:$0xff]
  %v1076 = vld [vmem:[%s211 + $0x10] sm:$0xff]
  %v1077 = vld [vmem:[%s211 + $0x18] sm:$0xff]
  %1079 = vset.pattern.permute.xlu0 0
  %1080 = vperm.xlu0 %1079, %v1074
  %v1081 = vpop.permute.xlu0 %1080
  %1084 = vset.pattern.permute.xlu0 0
  %1085 = vperm.xlu0 %1084, %v1075
  %v1086 = vpop.permute.xlu0 %1085
  %1089 = vset.pattern.permute.xlu0 0
  %1090 = vperm.xlu0 %1089, %v1076
  %v1091 = vpop.permute.xlu0 %1090
  %1094 = vset.pattern.permute.xlu0 0
  %1095 = vperm.xlu0 %1094, %v1077
  %v1096 = vpop.permute.xlu0 %1095
  %v1098 = vmul.f32 %v1070, %v1081
  %v1099 = vmul.f32 %v1071, %v1086
  %v1100 = vmul.f32 %v1072, %v1091
  %v1101 = vmul.f32 %v1073, %v1096
  %v1102 = vadd.f32 %v1028, %v1098
  %v1103 = vadd.f32 %v1029, %v1099
  %v1104 = vadd.f32 %v1030, %v1100
  %v1105 = vadd.f32 %v1031, %v1101
  %s1106 = scalar_lea.vmem %s0, 864
  %v1107 = vld [vmem:[%s1106] sm:$0xff]
  %v1108 = vld [vmem:[%s1106 + $0x8] sm:$0xff]
  %v1109 = vld [vmem:[%s1106 + $0x10] sm:$0xff]
  %v1110 = vld [vmem:[%s1106 + $0x18] sm:$0xff]
  %v1111 = vld [vmem:[%s249] sm:$0xff]
  %v1112 = vld [vmem:[%s249 + $0x8] sm:$0xff]
  %v1113 = vld [vmem:[%s249 + $0x10] sm:$0xff]
  %v1114 = vld [vmem:[%s249 + $0x18] sm:$0xff]
  %1116 = vset.pattern.permute.xlu0 0
  %1117 = vperm.xlu0 %1116, %v1111
  %v1118 = vpop.permute.xlu0 %1117
  %1121 = vset.pattern.permute.xlu0 0
  %1122 = vperm.xlu0 %1121, %v1112
  %v1123 = vpop.permute.xlu0 %1122
  %1126 = vset.pattern.permute.xlu0 0
  %1127 = vperm.xlu0 %1126, %v1113
  %v1128 = vpop.permute.xlu0 %1127
  %1131 = vset.pattern.permute.xlu0 0
  %1132 = vperm.xlu0 %1131, %v1114
  %v1133 = vpop.permute.xlu0 %1132
  %v1135 = vmul.f32 %v1107, %v1118
  %v1136 = vmul.f32 %v1108, %v1123
  %v1137 = vmul.f32 %v1109, %v1128
  %v1138 = vmul.f32 %v1110, %v1133
  %v1139 = vadd.f32 %v1065, %v1135
  %v1140 = vadd.f32 %v1066, %v1136
  %v1141 = vadd.f32 %v1067, %v1137
  %v1142 = vadd.f32 %v1068, %v1138
  %v1143 = vadd.f32 %v1139, %v1102
  %v1144 = vadd.f32 %v1140, %v1103
  %v1145 = vadd.f32 %v1141, %v1104
  %v1146 = vadd.f32 %v1142, %v1105
  %v1147 = vld [vmem:[%s2] sm:$0xff]
  %v1148 = vld [vmem:[%s2 + $0x8] sm:$0xff]
  %v1149 = vld [vmem:[%s2 + $0x10] sm:$0xff]
  %v1150 = vld [vmem:[%s2 + $0x18] sm:$0xff]
  %1152 = vset.pattern.permute.xlu0 0
  %1153 = vperm.xlu0 %1152, %v1147
  %v1154 = vpop.permute.xlu0 %1153
  %1157 = vset.pattern.permute.xlu0 0
  %1158 = vperm.xlu0 %1157, %v1148
  %v1159 = vpop.permute.xlu0 %1158
  %1162 = vset.pattern.permute.xlu0 0
  %1163 = vperm.xlu0 %1162, %v1149
  %v1164 = vpop.permute.xlu0 %1163
  %1167 = vset.pattern.permute.xlu0 0
  %1168 = vperm.xlu0 %1167, %v1150
  %v1169 = vpop.permute.xlu0 %1168
  %v1171 = vadd.f32 %v1143, %v1154
  %v1172 = vadd.f32 %v1144, %v1159
  %v1173 = vadd.f32 %v1145, %v1164
  %v1174 = vadd.f32 %v1146, %v1169
  %1175 = vst [vmem:[#allocation2 + $0x18] sm:$0xff] %v1171
  %1176 = vst [vmem:[#allocation2 + $0x88] sm:$0xff] %v1172
  %1177 = vst [vmem:[#allocation2 + $0xf8] sm:$0xff] %v1173
  %1178 = vst [vmem:[#allocation2 + $0x168] sm:$0xff] %v1174
  %s1179 = scalar_lea.vmem %s0, 896
  %v1180 = vld [vmem:[%s1179] sm:$0xff]
  %v1181 = vld [vmem:[%s1179 + $0x8] sm:$0xff]
  %v1182 = vld [vmem:[%s1179 + $0x10] sm:$0xff]
  %v1183 = vld [vmem:[%s1179 + $0x18] sm:$0xff]
  %v1184 = vld [vmem:[%s1] sm:$0xff]
  %v1185 = vld [vmem:[%s1 + $0x8] sm:$0xff]
  %v1186 = vld [vmem:[%s1 + $0x10] sm:$0xff]
  %v1187 = vld [vmem:[%s1 + $0x18] sm:$0xff]
  %1189 = vset.pattern.permute.xlu0 0
  %1190 = vperm.xlu0 %1189, %v1184
  %v1191 = vpop.permute.xlu0 %1190
  %1194 = vset.pattern.permute.xlu0 0
  %1195 = vperm.xlu0 %1194, %v1185
  %v1196 = vpop.permute.xlu0 %1195
  %1199 = vset.pattern.permute.xlu0 0
  %1200 = vperm.xlu0 %1199, %v1186
  %v1201 = vpop.permute.xlu0 %1200
  %1204 = vset.pattern.permute.xlu0 0
  %1205 = vperm.xlu0 %1204, %v1187
  %v1206 = vpop.permute.xlu0 %1205
  %v1208 = vmul.f32 %v1180, %v1191
  %v1209 = vmul.f32 %v1181, %v1196
  %v1210 = vmul.f32 %v1182, %v1201
  %v1211 = vmul.f32 %v1183, %v1206
  %s1212 = scalar_lea.vmem %s0, 928
  %v1213 = vld [vmem:[%s1212] sm:$0xff]
  %v1214 = vld [vmem:[%s1212 + $0x8] sm:$0xff]
  %v1215 = vld [vmem:[%s1212 + $0x10] sm:$0xff]
  %v1216 = vld [vmem:[%s1212 + $0x18] sm:$0xff]
  %v1217 = vld [vmem:[%s63] sm:$0xff]
  %v1218 = vld [vmem:[%s63 + $0x8] sm:$0xff]
  %v1219 = vld [vmem:[%s63 + $0x10] sm:$0xff]
  %v1220 = vld [vmem:[%s63 + $0x18] sm:$0xff]
  %1222 = vset.pattern.permute.xlu0 0
  %1223 = vperm.xlu0 %1222, %v1217
  %v1224 = vpop.permute.xlu0 %1223
  %1227 = vset.pattern.permute.xlu0 0
  %1228 = vperm.xlu0 %1227, %v1218
  %v1229 = vpop.permute.xlu0 %1228
  %1232 = vset.pattern.permute.xlu0 0
  %1233 = vperm.xlu0 %1232, %v1219
  %v1234 = vpop.permute.xlu0 %1233
  %1237 = vset.pattern.permute.xlu0 0
  %1238 = vperm.xlu0 %1237, %v1220
  %v1239 = vpop.permute.xlu0 %1238
  %v1241 = vmul.f32 %v1213, %v1224
  %v1242 = vmul.f32 %v1214, %v1229
  %v1243 = vmul.f32 %v1215, %v1234
  %v1244 = vmul.f32 %v1216, %v1239
  %s1245 = scalar_lea.vmem %s0, 960
  %v1246 = vld [vmem:[%s1245] sm:$0xff]
  %v1247 = vld [vmem:[%s1245 + $0x8] sm:$0xff]
  %v1248 = vld [vmem:[%s1245 + $0x10] sm:$0xff]
  %v1249 = vld [vmem:[%s1245 + $0x18] sm:$0xff]
  %v1250 = vld [vmem:[%s97] sm:$0xff]
  %v1251 = vld [vmem:[%s97 + $0x8] sm:$0xff]
  %v1252 = vld [vmem:[%s97 + $0x10] sm:$0xff]
  %v1253 = vld [vmem:[%s97 + $0x18] sm:$0xff]
  %1255 = vset.pattern.permute.xlu0 0
  %1256 = vperm.xlu0 %1255, %v1250
  %v1257 = vpop.permute.xlu0 %1256
  %1260 = vset.pattern.permute.xlu0 0
  %1261 = vperm.xlu0 %1260, %v1251
  %v1262 = vpop.permute.xlu0 %1261
  %1265 = vset.pattern.permute.xlu0 0
  %1266 = vperm.xlu0 %1265, %v1252
  %v1267 = vpop.permute.xlu0 %1266
  %1270 = vset.pattern.permute.xlu0 0
  %1271 = vperm.xlu0 %1270, %v1253
  %v1272 = vpop.permute.xlu0 %1271
  %v1274 = vmul.f32 %v1246, %v1257
  %v1275 = vmul.f32 %v1247, %v1262
  %v1276 = vmul.f32 %v1248, %v1267
  %v1277 = vmul.f32 %v1249, %v1272
  %v1278 = vadd.f32 %v1208, %v1274
  %v1279 = vadd.f32 %v1209, %v1275
  %v1280 = vadd.f32 %v1210, %v1276
  %v1281 = vadd.f32 %v1211, %v1277
  %s1282 = scalar_lea.vmem %s0, 992
  %v1283 = vld [vmem:[%s1282] sm:$0xff]
  %v1284 = vld [vmem:[%s1282 + $0x8] sm:$0xff]
  %v1285 = vld [vmem:[%s1282 + $0x10] sm:$0xff]
  %v1286 = vld [vmem:[%s1282 + $0x18] sm:$0xff]
  %v1287 = vld [vmem:[%s135] sm:$0xff]
  %v1288 = vld [vmem:[%s135 + $0x8] sm:$0xff]
  %v1289 = vld [vmem:[%s135 + $0x10] sm:$0xff]
  %v1290 = vld [vmem:[%s135 + $0x18] sm:$0xff]
  %1292 = vset.pattern.permute.xlu0 0
  %1293 = vperm.xlu0 %1292, %v1287
  %v1294 = vpop.permute.xlu0 %1293
  %1297 = vset.pattern.permute.xlu0 0
  %1298 = vperm.xlu0 %1297, %v1288
  %v1299 = vpop.permute.xlu0 %1298
  %1302 = vset.pattern.permute.xlu0 0
  %1303 = vperm.xlu0 %1302, %v1289
  %v1304 = vpop.permute.xlu0 %1303
  %1307 = vset.pattern.permute.xlu0 0
  %1308 = vperm.xlu0 %1307, %v1290
  %v1309 = vpop.permute.xlu0 %1308
  %v1311 = vmul.f32 %v1283, %v1294
  %v1312 = vmul.f32 %v1284, %v1299
  %v1313 = vmul.f32 %v1285, %v1304
  %v1314 = vmul.f32 %v1286, %v1309
  %v1315 = vadd.f32 %v1241, %v1311
  %v1316 = vadd.f32 %v1242, %v1312
  %v1317 = vadd.f32 %v1243, %v1313
  %v1318 = vadd.f32 %v1244, %v1314
  %s1319 = scalar_lea.vmem %s0, 1024
  %v1320 = vld [vmem:[%s1319] sm:$0xff]
  %v1321 = vld [vmem:[%s1319 + $0x8] sm:$0xff]
  %v1322 = vld [vmem:[%s1319 + $0x10] sm:$0xff]
  %v1323 = vld [vmem:[%s1319 + $0x18] sm:$0xff]
  %v1324 = vld [vmem:[%s173] sm:$0xff]
  %v1325 = vld [vmem:[%s173 + $0x8] sm:$0xff]
  %v1326 = vld [vmem:[%s173 + $0x10] sm:$0xff]
  %v1327 = vld [vmem:[%s173 + $0x18] sm:$0xff]
  %1329 = vset.pattern.permute.xlu0 0
  %1330 = vperm.xlu0 %1329, %v1324
  %v1331 = vpop.permute.xlu0 %1330
  %1334 = vset.pattern.permute.xlu0 0
  %1335 = vperm.xlu0 %1334, %v1325
  %v1336 = vpop.permute.xlu0 %1335
  %1339 = vset.pattern.permute.xlu0 0
  %1340 = vperm.xlu0 %1339, %v1326
  %v1341 = vpop.permute.xlu0 %1340
  %1344 = vset.pattern.permute.xlu0 0
  %1345 = vperm.xlu0 %1344, %v1327
  %v1346 = vpop.permute.xlu0 %1345
  %v1348 = vmul.f32 %v1320, %v1331
  %v1349 = vmul.f32 %v1321, %v1336
  %v1350 = vmul.f32 %v1322, %v1341
  %v1351 = vmul.f32 %v1323, %v1346
  %v1352 = vadd.f32 %v1278, %v1348
  %v1353 = vadd.f32 %v1279, %v1349
  %v1354 = vadd.f32 %v1280, %v1350
  %v1355 = vadd.f32 %v1281, %v1351
  %s1356 = scalar_lea.vmem %s0, 1056
  %v1357 = vld [vmem:[%s1356] sm:$0xff]
  %v1358 = vld [vmem:[%s1356 + $0x8] sm:$0xff]
  %v1359 = vld [vmem:[%s1356 + $0x10] sm:$0xff]
  %v1360 = vld [vmem:[%s1356 + $0x18] sm:$0xff]
  %v1361 = vld [vmem:[%s211] sm:$0xff]
  %v1362 = vld [vmem:[%s211 + $0x8] sm:$0xff]
  %v1363 = vld [vmem:[%s211 + $0x10] sm:$0xff]
  %v1364 = vld [vmem:[%s211 + $0x18] sm:$0xff]
  %1366 = vset.pattern.permute.xlu0 0
  %1367 = vperm.xlu0 %1366, %v1361
  %v1368 = vpop.permute.xlu0 %1367
  %1371 = vset.pattern.permute.xlu0 0
  %1372 = vperm.xlu0 %1371, %v1362
  %v1373 = vpop.permute.xlu0 %1372
  %1376 = vset.pattern.permute.xlu0 0
  %1377 = vperm.xlu0 %1376, %v1363
  %v1378 = vpop.permute.xlu0 %1377
  %1381 = vset.pattern.permute.xlu0 0
  %1382 = vperm.xlu0 %1381, %v1364
  %v1383 = vpop.permute.xlu0 %1382
  %v1385 = vmul.f32 %v1357, %v1368
  %v1386 = vmul.f32 %v1358, %v1373
  %v1387 = vmul.f32 %v1359, %v1378
  %v1388 = vmul.f32 %v1360, %v1383
  %v1389 = vadd.f32 %v1315, %v1385
  %v1390 = vadd.f32 %v1316, %v1386
  %v1391 = vadd.f32 %v1317, %v1387
  %v1392 = vadd.f32 %v1318, %v1388
  %s1393 = scalar_lea.vmem %s0, 1088
  %v1394 = vld [vmem:[%s1393] sm:$0xff]
  %v1395 = vld [vmem:[%s1393 + $0x8] sm:$0xff]
  %v1396 = vld [vmem:[%s1393 + $0x10] sm:$0xff]
  %v1397 = vld [vmem:[%s1393 + $0x18] sm:$0xff]
  %v1398 = vld [vmem:[%s249] sm:$0xff]
  %v1399 = vld [vmem:[%s249 + $0x8] sm:$0xff]
  %v1400 = vld [vmem:[%s249 + $0x10] sm:$0xff]
  %v1401 = vld [vmem:[%s249 + $0x18] sm:$0xff]
  %1403 = vset.pattern.permute.xlu0 0
  %1404 = vperm.xlu0 %1403, %v1398
  %v1405 = vpop.permute.xlu0 %1404
  %1408 = vset.pattern.permute.xlu0 0
  %1409 = vperm.xlu0 %1408, %v1399
  %v1410 = vpop.permute.xlu0 %1409
  %1413 = vset.pattern.permute.xlu0 0
  %1414 = vperm.xlu0 %1413, %v1400
  %v1415 = vpop.permute.xlu0 %1414
  %1418 = vset.pattern.permute.xlu0 0
  %1419 = vperm.xlu0 %1418, %v1401
  %v1420 = vpop.permute.xlu0 %1419
  %v1422 = vmul.f32 %v1394, %v1405
  %v1423 = vmul.f32 %v1395, %v1410
  %v1424 = vmul.f32 %v1396, %v1415
  %v1425 = vmul.f32 %v1397, %v1420
  %v1426 = vadd.f32 %v1352, %v1422
  %v1427 = vadd.f32 %v1353, %v1423
  %v1428 = vadd.f32 %v1354, %v1424
  %v1429 = vadd.f32 %v1355, %v1425
  %v1430 = vadd.f32 %v1426, %v1389
  %v1431 = vadd.f32 %v1427, %v1390
  %v1432 = vadd.f32 %v1428, %v1391
  %v1433 = vadd.f32 %v1429, %v1392
  %v1434 = vld [vmem:[%s2] sm:$0xff]
  %v1435 = vld [vmem:[%s2 + $0x8] sm:$0xff]
  %v1436 = vld [vmem:[%s2 + $0x10] sm:$0xff]
  %v1437 = vld [vmem:[%s2 + $0x18] sm:$0xff]
  %1439 = vset.pattern.permute.xlu0 0
  %1440 = vperm.xlu0 %1439, %v1434
  %v1441 = vpop.permute.xlu0 %1440
  %1444 = vset.pattern.permute.xlu0 0
  %1445 = vperm.xlu0 %1444, %v1435
  %v1446 = vpop.permute.xlu0 %1445
  %1449 = vset.pattern.permute.xlu0 0
  %1450 = vperm.xlu0 %1449, %v1436
  %v1451 = vpop.permute.xlu0 %1450
  %1454 = vset.pattern.permute.xlu0 0
  %1455 = vperm.xlu0 %1454, %v1437
  %v1456 = vpop.permute.xlu0 %1455
  %v1458 = vadd.f32 %v1430, %v1441
  %v1459 = vadd.f32 %v1431, %v1446
  %v1460 = vadd.f32 %v1432, %v1451
  %v1461 = vadd.f32 %v1433, %v1456
  %1462 = vst [vmem:[#allocation2 + $0x20] sm:$0xff] %v1458
  %1463 = vst [vmem:[#allocation2 + $0x90] sm:$0xff] %v1459
  %1464 = vst [vmem:[#allocation2 + $0x100] sm:$0xff] %v1460
  %1465 = vst [vmem:[#allocation2 + $0x170] sm:$0xff] %v1461
  %s1466 = scalar_lea.vmem %s0, 1120
  %v1467 = vld [vmem:[%s1466] sm:$0xff]
  %v1468 = vld [vmem:[%s1466 + $0x8] sm:$0xff]
  %v1469 = vld [vmem:[%s1466 + $0x10] sm:$0xff]
  %v1470 = vld [vmem:[%s1466 + $0x18] sm:$0xff]
  %v1471 = vld [vmem:[%s1] sm:$0xff]
  %v1472 = vld [vmem:[%s1 + $0x8] sm:$0xff]
  %v1473 = vld [vmem:[%s1 + $0x10] sm:$0xff]
  %v1474 = vld [vmem:[%s1 + $0x18] sm:$0xff]
  %1476 = vset.pattern.permute.xlu0 0
  %1477 = vperm.xlu0 %1476, %v1471
  %v1478 = vpop.permute.xlu0 %1477
  %1481 = vset.pattern.permute.xlu0 0
  %1482 = vperm.xlu0 %1481, %v1472
  %v1483 = vpop.permute.xlu0 %1482
  %1486 = vset.pattern.permute.xlu0 0
  %1487 = vperm.xlu0 %1486, %v1473
  %v1488 = vpop.permute.xlu0 %1487
  %1491 = vset.pattern.permute.xlu0 0
  %1492 = vperm.xlu0 %1491, %v1474
  %v1493 = vpop.permute.xlu0 %1492
  %v1495 = vmul.f32 %v1467, %v1478
  %v1496 = vmul.f32 %v1468, %v1483
  %v1497 = vmul.f32 %v1469, %v1488
  %v1498 = vmul.f32 %v1470, %v1493
  %s1499 = scalar_lea.vmem %s0, 1152
  %v1500 = vld [vmem:[%s1499] sm:$0xff]
  %v1501 = vld [vmem:[%s1499 + $0x8] sm:$0xff]
  %v1502 = vld [vmem:[%s1499 + $0x10] sm:$0xff]
  %v1503 = vld [vmem:[%s1499 + $0x18] sm:$0xff]
  %v1504 = vld [vmem:[%s63] sm:$0xff]
  %v1505 = vld [vmem:[%s63 + $0x8] sm:$0xff]
  %v1506 = vld [vmem:[%s63 + $0x10] sm:$0xff]
  %v1507 = vld [vmem:[%s63 + $0x18] sm:$0xff]
  %1509 = vset.pattern.permute.xlu0 0
  %1510 = vperm.xlu0 %1509, %v1504
  %v1511 = vpop.permute.xlu0 %1510
  %1514 = vset.pattern.permute.xlu0 0
  %1515 = vperm.xlu0 %1514, %v1505
  %v1516 = vpop.permute.xlu0 %1515
  %1519 = vset.pattern.permute.xlu0 0
  %1520 = vperm.xlu0 %1519, %v1506
  %v1521 = vpop.permute.xlu0 %1520
  %1524 = vset.pattern.permute.xlu0 0
  %1525 = vperm.xlu0 %1524, %v1507
  %v1526 = vpop.permute.xlu0 %1525
  %v1528 = vmul.f32 %v1500, %v1511
  %v1529 = vmul.f32 %v1501, %v1516
  %v1530 = vmul.f32 %v1502, %v1521
  %v1531 = vmul.f32 %v1503, %v1526
  %s1532 = scalar_lea.vmem %s0, 1184
  %v1533 = vld [vmem:[%s1532] sm:$0xff]
  %v1534 = vld [vmem:[%s1532 + $0x8] sm:$0xff]
  %v1535 = vld [vmem:[%s1532 + $0x10] sm:$0xff]
  %v1536 = vld [vmem:[%s1532 + $0x18] sm:$0xff]
  %v1537 = vld [vmem:[%s97] sm:$0xff]
  %v1538 = vld [vmem:[%s97 + $0x8] sm:$0xff]
  %v1539 = vld [vmem:[%s97 + $0x10] sm:$0xff]
  %v1540 = vld [vmem:[%s97 + $0x18] sm:$0xff]
  %1542 = vset.pattern.permute.xlu0 0
  %1543 = vperm.xlu0 %1542, %v1537
  %v1544 = vpop.permute.xlu0 %1543
  %1547 = vset.pattern.permute.xlu0 0
  %1548 = vperm.xlu0 %1547, %v1538
  %v1549 = vpop.permute.xlu0 %1548
  %1552 = vset.pattern.permute.xlu0 0
  %1553 = vperm.xlu0 %1552, %v1539
  %v1554 = vpop.permute.xlu0 %1553
  %1557 = vset.pattern.permute.xlu0 0
  %1558 = vperm.xlu0 %1557, %v1540
  %v1559 = vpop.permute.xlu0 %1558
  %v1561 = vmul.f32 %v1533, %v1544
  %v1562 = vmul.f32 %v1534, %v1549
  %v1563 = vmul.f32 %v1535, %v1554
  %v1564 = vmul.f32 %v1536, %v1559
  %v1565 = vadd.f32 %v1495, %v1561
  %v1566 = vadd.f32 %v1496, %v1562
  %v1567 = vadd.f32 %v1497, %v1563
  %v1568 = vadd.f32 %v1498, %v1564
  %s1569 = scalar_lea.vmem %s0, 1216
  %v1570 = vld [vmem:[%s1569] sm:$0xff]
  %v1571 = vld [vmem:[%s1569 + $0x8] sm:$0xff]
  %v1572 = vld [vmem:[%s1569 + $0x10] sm:$0xff]
  %v1573 = vld [vmem:[%s1569 + $0x18] sm:$0xff]
  %v1574 = vld [vmem:[%s135] sm:$0xff]
  %v1575 = vld [vmem:[%s135 + $0x8] sm:$0xff]
  %v1576 = vld [vmem:[%s135 + $0x10] sm:$0xff]
  %v1577 = vld [vmem:[%s135 + $0x18] sm:$0xff]
  %1579 = vset.pattern.permute.xlu0 0
  %1580 = vperm.xlu0 %1579, %v1574
  %v1581 = vpop.permute.xlu0 %1580
  %1584 = vset.pattern.permute.xlu0 0
  %1585 = vperm.xlu0 %1584, %v1575
  %v1586 = vpop.permute.xlu0 %1585
  %1589 = vset.pattern.permute.xlu0 0
  %1590 = vperm.xlu0 %1589, %v1576
  %v1591 = vpop.permute.xlu0 %1590
  %1594 = vset.pattern.permute.xlu0 0
  %1595 = vperm.xlu0 %1594, %v1577
  %v1596 = vpop.permute.xlu0 %1595
  %v1598 = vmul.f32 %v1570, %v1581
  %v1599 = vmul.f32 %v1571, %v1586
  %v1600 = vmul.f32 %v1572, %v1591
  %v1601 = vmul.f32 %v1573, %v1596
  %v1602 = vadd.f32 %v1528, %v1598
  %v1603 = vadd.f32 %v1529, %v1599
  %v1604 = vadd.f32 %v1530, %v1600
  %v1605 = vadd.f32 %v1531, %v1601
  %s1606 = scalar_lea.vmem %s0, 1248
  %v1607 = vld [vmem:[%s1606] sm:$0xff]
  %v1608 = vld [vmem:[%s1606 + $0x8] sm:$0xff]
  %v1609 = vld [vmem:[%s1606 + $0x10] sm:$0xff]
  %v1610 = vld [vmem:[%s1606 + $0x18] sm:$0xff]
  %v1611 = vld [vmem:[%s173] sm:$0xff]
  %v1612 = vld [vmem:[%s173 + $0x8] sm:$0xff]
  %v1613 = vld [vmem:[%s173 + $0x10] sm:$0xff]
  %v1614 = vld [vmem:[%s173 + $0x18] sm:$0xff]
  %1616 = vset.pattern.permute.xlu0 0
  %1617 = vperm.xlu0 %1616, %v1611
  %v1618 = vpop.permute.xlu0 %1617
  %1621 = vset.pattern.permute.xlu0 0
  %1622 = vperm.xlu0 %1621, %v1612
  %v1623 = vpop.permute.xlu0 %1622
  %1626 = vset.pattern.permute.xlu0 0
  %1627 = vperm.xlu0 %1626, %v1613
  %v1628 = vpop.permute.xlu0 %1627
  %1631 = vset.pattern.permute.xlu0 0
  %1632 = vperm.xlu0 %1631, %v1614
  %v1633 = vpop.permute.xlu0 %1632
  %v1635 = vmul.f32 %v1607, %v1618
  %v1636 = vmul.f32 %v1608, %v1623
  %v1637 = vmul.f32 %v1609, %v1628
  %v1638 = vmul.f32 %v1610, %v1633
  %v1639 = vadd.f32 %v1565, %v1635
  %v1640 = vadd.f32 %v1566, %v1636
  %v1641 = vadd.f32 %v1567, %v1637
  %v1642 = vadd.f32 %v1568, %v1638
  %s1643 = scalar_lea.vmem %s0, 1280
  %v1644 = vld [vmem:[%s1643] sm:$0xff]
  %v1645 = vld [vmem:[%s1643 + $0x8] sm:$0xff]
  %v1646 = vld [vmem:[%s1643 + $0x10] sm:$0xff]
  %v1647 = vld [vmem:[%s1643 + $0x18] sm:$0xff]
  %v1648 = vld [vmem:[%s211] sm:$0xff]
  %v1649 = vld [vmem:[%s211 + $0x8] sm:$0xff]
  %v1650 = vld [vmem:[%s211 + $0x10] sm:$0xff]
  %v1651 = vld [vmem:[%s211 + $0x18] sm:$0xff]
  %1653 = vset.pattern.permute.xlu0 0
  %1654 = vperm.xlu0 %1653, %v1648
  %v1655 = vpop.permute.xlu0 %1654
  %1658 = vset.pattern.permute.xlu0 0
  %1659 = vperm.xlu0 %1658, %v1649
  %v1660 = vpop.permute.xlu0 %1659
  %1663 = vset.pattern.permute.xlu0 0
  %1664 = vperm.xlu0 %1663, %v1650
  %v1665 = vpop.permute.xlu0 %1664
  %1668 = vset.pattern.permute.xlu0 0
  %1669 = vperm.xlu0 %1668, %v1651
  %v1670 = vpop.permute.xlu0 %1669
  %v1672 = vmul.f32 %v1644, %v1655
  %v1673 = vmul.f32 %v1645, %v1660
  %v1674 = vmul.f32 %v1646, %v1665
  %v1675 = vmul.f32 %v1647, %v1670
  %v1676 = vadd.f32 %v1602, %v1672
  %v1677 = vadd.f32 %v1603, %v1673
  %v1678 = vadd.f32 %v1604, %v1674
  %v1679 = vadd.f32 %v1605, %v1675
  %s1680 = scalar_lea.vmem %s0, 1312
  %v1681 = vld [vmem:[%s1680] sm:$0xff]
  %v1682 = vld [vmem:[%s1680 + $0x8] sm:$0xff]
  %v1683 = vld [vmem:[%s1680 + $0x10] sm:$0xff]
  %v1684 = vld [vmem:[%s1680 + $0x18] sm:$0xff]
  %v1685 = vld [vmem:[%s249] sm:$0xff]
  %v1686 = vld [vmem:[%s249 + $0x8] sm:$0xff]
  %v1687 = vld [vmem:[%s249 + $0x10] sm:$0xff]
  %v1688 = vld [vmem:[%s249 + $0x18] sm:$0xff]
  %1690 = vset.pattern.permute.xlu0 0
  %1691 = vperm.xlu0 %1690, %v1685
  %v1692 = vpop.permute.xlu0 %1691
  %1695 = vset.pattern.permute.xlu0 0
  %1696 = vperm.xlu0 %1695, %v1686
  %v1697 = vpop.permute.xlu0 %1696
  %1700 = vset.pattern.permute.xlu0 0
  %1701 = vperm.xlu0 %1700, %v1687
  %v1702 = vpop.permute.xlu0 %1701
  %1705 = vset.pattern.permute.xlu0 0
  %1706 = vperm.xlu0 %1705, %v1688
  %v1707 = vpop.permute.xlu0 %1706
  %v1709 = vmul.f32 %v1681, %v1692
  %v1710 = vmul.f32 %v1682, %v1697
  %v1711 = vmul.f32 %v1683, %v1702
  %v1712 = vmul.f32 %v1684, %v1707
  %v1713 = vadd.f32 %v1639, %v1709
  %v1714 = vadd.f32 %v1640, %v1710
  %v1715 = vadd.f32 %v1641, %v1711
  %v1716 = vadd.f32 %v1642, %v1712
  %v1717 = vadd.f32 %v1713, %v1676
  %v1718 = vadd.f32 %v1714, %v1677
  %v1719 = vadd.f32 %v1715, %v1678
  %v1720 = vadd.f32 %v1716, %v1679
  %v1721 = vld [vmem:[%s2] sm:$0xff]
  %v1722 = vld [vmem:[%s2 + $0x8] sm:$0xff]
  %v1723 = vld [vmem:[%s2 + $0x10] sm:$0xff]
  %v1724 = vld [vmem:[%s2 + $0x18] sm:$0xff]
  %1726 = vset.pattern.permute.xlu0 0
  %1727 = vperm.xlu0 %1726, %v1721
  %v1728 = vpop.permute.xlu0 %1727
  %1731 = vset.pattern.permute.xlu0 0
  %1732 = vperm.xlu0 %1731, %v1722
  %v1733 = vpop.permute.xlu0 %1732
  %1736 = vset.pattern.permute.xlu0 0
  %1737 = vperm.xlu0 %1736, %v1723
  %v1738 = vpop.permute.xlu0 %1737
  %1741 = vset.pattern.permute.xlu0 0
  %1742 = vperm.xlu0 %1741, %v1724
  %v1743 = vpop.permute.xlu0 %1742
  %v1745 = vadd.f32 %v1717, %v1728
  %v1746 = vadd.f32 %v1718, %v1733
  %v1747 = vadd.f32 %v1719, %v1738
  %v1748 = vadd.f32 %v1720, %v1743
  %1749 = vst [vmem:[#allocation2 + $0x28] sm:$0xff] %v1745
  %1750 = vst [vmem:[#allocation2 + $0x98] sm:$0xff] %v1746
  %1751 = vst [vmem:[#allocation2 + $0x108] sm:$0xff] %v1747
  %1752 = vst [vmem:[#allocation2 + $0x178] sm:$0xff] %v1748
  %s1753 = scalar_lea.vmem %s0, 1344
  %v1754 = vld [vmem:[%s1753] sm:$0xff]
  %v1755 = vld [vmem:[%s1753 + $0x8] sm:$0xff]
  %v1756 = vld [vmem:[%s1753 + $0x10] sm:$0xff]
  %v1757 = vld [vmem:[%s1753 + $0x18] sm:$0xff]
  %v1758 = vld [vmem:[%s1] sm:$0xff]
  %v1759 = vld [vmem:[%s1 + $0x8] sm:$0xff]
  %v1760 = vld [vmem:[%s1 + $0x10] sm:$0xff]
  %v1761 = vld [vmem:[%s1 + $0x18] sm:$0xff]
  %1763 = vset.pattern.permute.xlu0 0
  %1764 = vperm.xlu0 %1763, %v1758
  %v1765 = vpop.permute.xlu0 %1764
  %1768 = vset.pattern.permute.xlu0 0
  %1769 = vperm.xlu0 %1768, %v1759
  %v1770 = vpop.permute.xlu0 %1769
  %1773 = vset.pattern.permute.xlu0 0
  %1774 = vperm.xlu0 %1773, %v1760
  %v1775 = vpop.permute.xlu0 %1774
  %1778 = vset.pattern.permute.xlu0 0
  %1779 = vperm.xlu0 %1778, %v1761
  %v1780 = vpop.permute.xlu0 %1779
  %v1782 = vmul.f32 %v1754, %v1765
  %v1783 = vmul.f32 %v1755, %v1770
  %v1784 = vmul.f32 %v1756, %v1775
  %v1785 = vmul.f32 %v1757, %v1780
  %s1786 = scalar_lea.vmem %s0, 1376
  %v1787 = vld [vmem:[%s1786] sm:$0xff]
  %v1788 = vld [vmem:[%s1786 + $0x8] sm:$0xff]
  %v1789 = vld [vmem:[%s1786 + $0x10] sm:$0xff]
  %v1790 = vld [vmem:[%s1786 + $0x18] sm:$0xff]
  %v1791 = vld [vmem:[%s63] sm:$0xff]
  %v1792 = vld [vmem:[%s63 + $0x8] sm:$0xff]
  %v1793 = vld [vmem:[%s63 + $0x10] sm:$0xff]
  %v1794 = vld [vmem:[%s63 + $0x18] sm:$0xff]
  %1796 = vset.pattern.permute.xlu0 0
  %1797 = vperm.xlu0 %1796, %v1791
  %v1798 = vpop.permute.xlu0 %1797
  %1801 = vset.pattern.permute.xlu0 0
  %1802 = vperm.xlu0 %1801, %v1792
  %v1803 = vpop.permute.xlu0 %1802
  %1806 = vset.pattern.permute.xlu0 0
  %1807 = vperm.xlu0 %1806, %v1793
  %v1808 = vpop.permute.xlu0 %1807
  %1811 = vset.pattern.permute.xlu0 0
  %1812 = vperm.xlu0 %1811, %v1794
  %v1813 = vpop.permute.xlu0 %1812
  %v1815 = vmul.f32 %v1787, %v1798
  %v1816 = vmul.f32 %v1788, %v1803
  %v1817 = vmul.f32 %v1789, %v1808
  %v1818 = vmul.f32 %v1790, %v1813
  %s1819 = scalar_lea.vmem %s0, 1408
  %v1820 = vld [vmem:[%s1819] sm:$0xff]
  %v1821 = vld [vmem:[%s1819 + $0x8] sm:$0xff]
  %v1822 = vld [vmem:[%s1819 + $0x10] sm:$0xff]
  %v1823 = vld [vmem:[%s1819 + $0x18] sm:$0xff]
  %v1824 = vld [vmem:[%s97] sm:$0xff]
  %v1825 = vld [vmem:[%s97 + $0x8] sm:$0xff]
  %v1826 = vld [vmem:[%s97 + $0x10] sm:$0xff]
  %v1827 = vld [vmem:[%s97 + $0x18] sm:$0xff]
  %1829 = vset.pattern.permute.xlu0 0
  %1830 = vperm.xlu0 %1829, %v1824
  %v1831 = vpop.permute.xlu0 %1830
  %1834 = vset.pattern.permute.xlu0 0
  %1835 = vperm.xlu0 %1834, %v1825
  %v1836 = vpop.permute.xlu0 %1835
  %1839 = vset.pattern.permute.xlu0 0
  %1840 = vperm.xlu0 %1839, %v1826
  %v1841 = vpop.permute.xlu0 %1840
  %1844 = vset.pattern.permute.xlu0 0
  %1845 = vperm.xlu0 %1844, %v1827
  %v1846 = vpop.permute.xlu0 %1845
  %v1848 = vmul.f32 %v1820, %v1831
  %v1849 = vmul.f32 %v1821, %v1836
  %v1850 = vmul.f32 %v1822, %v1841
  %v1851 = vmul.f32 %v1823, %v1846
  %v1852 = vadd.f32 %v1782, %v1848
  %v1853 = vadd.f32 %v1783, %v1849
  %v1854 = vadd.f32 %v1784, %v1850
  %v1855 = vadd.f32 %v1785, %v1851
  %s1856 = scalar_lea.vmem %s0, 1440
  %v1857 = vld [vmem:[%s1856] sm:$0xff]
  %v1858 = vld [vmem:[%s1856 + $0x8] sm:$0xff]
  %v1859 = vld [vmem:[%s1856 + $0x10] sm:$0xff]
  %v1860 = vld [vmem:[%s1856 + $0x18] sm:$0xff]
  %v1861 = vld [vmem:[%s135] sm:$0xff]
  %v1862 = vld [vmem:[%s135 + $0x8] sm:$0xff]
  %v1863 = vld [vmem:[%s135 + $0x10] sm:$0xff]
  %v1864 = vld [vmem:[%s135 + $0x18] sm:$0xff]
  %1866 = vset.pattern.permute.xlu0 0
  %1867 = vperm.xlu0 %1866, %v1861
  %v1868 = vpop.permute.xlu0 %1867
  %1871 = vset.pattern.permute.xlu0 0
  %1872 = vperm.xlu0 %1871, %v1862
  %v1873 = vpop.permute.xlu0 %1872
  %1876 = vset.pattern.permute.xlu0 0
  %1877 = vperm.xlu0 %1876, %v1863
  %v1878 = vpop.permute.xlu0 %1877
  %1881 = vset.pattern.permute.xlu0 0
  %1882 = vperm.xlu0 %1881, %v1864
  %v1883 = vpop.permute.xlu0 %1882
  %v1885 = vmul.f32 %v1857, %v1868
  %v1886 = vmul.f32 %v1858, %v1873
  %v1887 = vmul.f32 %v1859, %v1878
  %v1888 = vmul.f32 %v1860, %v1883
  %v1889 = vadd.f32 %v1815, %v1885
  %v1890 = vadd.f32 %v1816, %v1886
  %v1891 = vadd.f32 %v1817, %v1887
  %v1892 = vadd.f32 %v1818, %v1888
  %s1893 = scalar_lea.vmem %s0, 1472
  %v1894 = vld [vmem:[%s1893] sm:$0xff]
  %v1895 = vld [vmem:[%s1893 + $0x8] sm:$0xff]
  %v1896 = vld [vmem:[%s1893 + $0x10] sm:$0xff]
  %v1897 = vld [vmem:[%s1893 + $0x18] sm:$0xff]
  %v1898 = vld [vmem:[%s173] sm:$0xff]
  %v1899 = vld [vmem:[%s173 + $0x8] sm:$0xff]
  %v1900 = vld [vmem:[%s173 + $0x10] sm:$0xff]
  %v1901 = vld [vmem:[%s173 + $0x18] sm:$0xff]
  %1903 = vset.pattern.permute.xlu0 0
  %1904 = vperm.xlu0 %1903, %v1898
  %v1905 = vpop.permute.xlu0 %1904
  %1908 = vset.pattern.permute.xlu0 0
  %1909 = vperm.xlu0 %1908, %v1899
  %v1910 = vpop.permute.xlu0 %1909
  %1913 = vset.pattern.permute.xlu0 0
  %1914 = vperm.xlu0 %1913, %v1900
  %v1915 = vpop.permute.xlu0 %1914
  %1918 = vset.pattern.permute.xlu0 0
  %1919 = vperm.xlu0 %1918, %v1901
  %v1920 = vpop.permute.xlu0 %1919
  %v1922 = vmul.f32 %v1894, %v1905
  %v1923 = vmul.f32 %v1895, %v1910
  %v1924 = vmul.f32 %v1896, %v1915
  %v1925 = vmul.f32 %v1897, %v1920
  %v1926 = vadd.f32 %v1852, %v1922
  %v1927 = vadd.f32 %v1853, %v1923
  %v1928 = vadd.f32 %v1854, %v1924
  %v1929 = vadd.f32 %v1855, %v1925
  %s1930 = scalar_lea.vmem %s0, 1504
  %v1931 = vld [vmem:[%s1930] sm:$0xff]
  %v1932 = vld [vmem:[%s1930 + $0x8] sm:$0xff]
  %v1933 = vld [vmem:[%s1930 + $0x10] sm:$0xff]
  %v1934 = vld [vmem:[%s1930 + $0x18] sm:$0xff]
  %v1935 = vld [vmem:[%s211] sm:$0xff]
  %v1936 = vld [vmem:[%s211 + $0x8] sm:$0xff]
  %v1937 = vld [vmem:[%s211 + $0x10] sm:$0xff]
  %v1938 = vld [vmem:[%s211 + $0x18] sm:$0xff]
  %1940 = vset.pattern.permute.xlu0 0
  %1941 = vperm.xlu0 %1940, %v1935
  %v1942 = vpop.permute.xlu0 %1941
  %1945 = vset.pattern.permute.xlu0 0
  %1946 = vperm.xlu0 %1945, %v1936
  %v1947 = vpop.permute.xlu0 %1946
  %1950 = vset.pattern.permute.xlu0 0
  %1951 = vperm.xlu0 %1950, %v1937
  %v1952 = vpop.permute.xlu0 %1951
  %1955 = vset.pattern.permute.xlu0 0
  %1956 = vperm.xlu0 %1955, %v1938
  %v1957 = vpop.permute.xlu0 %1956
  %v1959 = vmul.f32 %v1931, %v1942
  %v1960 = vmul.f32 %v1932, %v1947
  %v1961 = vmul.f32 %v1933, %v1952
  %v1962 = vmul.f32 %v1934, %v1957
  %v1963 = vadd.f32 %v1889, %v1959
  %v1964 = vadd.f32 %v1890, %v1960
  %v1965 = vadd.f32 %v1891, %v1961
  %v1966 = vadd.f32 %v1892, %v1962
  %s1967 = scalar_lea.vmem %s0, 1536
  %v1968 = vld [vmem:[%s1967] sm:$0xff]
  %v1969 = vld [vmem:[%s1967 + $0x8] sm:$0xff]
  %v1970 = vld [vmem:[%s1967 + $0x10] sm:$0xff]
  %v1971 = vld [vmem:[%s1967 + $0x18] sm:$0xff]
  %v1972 = vld [vmem:[%s249] sm:$0xff]
  %v1973 = vld [vmem:[%s249 + $0x8] sm:$0xff]
  %v1974 = vld [vmem:[%s249 + $0x10] sm:$0xff]
  %v1975 = vld [vmem:[%s249 + $0x18] sm:$0xff]
  %1977 = vset.pattern.permute.xlu0 0
  %1978 = vperm.xlu0 %1977, %v1972
  %v1979 = vpop.permute.xlu0 %1978
  %1982 = vset.pattern.permute.xlu0 0
  %1983 = vperm.xlu0 %1982, %v1973
  %v1984 = vpop.permute.xlu0 %1983
  %1987 = vset.pattern.permute.xlu0 0
  %1988 = vperm.xlu0 %1987, %v1974
  %v1989 = vpop.permute.xlu0 %1988
  %1992 = vset.pattern.permute.xlu0 0
  %1993 = vperm.xlu0 %1992, %v1975
  %v1994 = vpop.permute.xlu0 %1993
  %v1996 = vmul.f32 %v1968, %v1979
  %v1997 = vmul.f32 %v1969, %v1984
  %v1998 = vmul.f32 %v1970, %v1989
  %v1999 = vmul.f32 %v1971, %v1994
  %v2000 = vadd.f32 %v1926, %v1996
  %v2001 = vadd.f32 %v1927, %v1997
  %v2002 = vadd.f32 %v1928, %v1998
  %v2003 = vadd.f32 %v1929, %v1999
  %v2004 = vadd.f32 %v2000, %v1963
  %v2005 = vadd.f32 %v2001, %v1964
  %v2006 = vadd.f32 %v2002, %v1965
  %v2007 = vadd.f32 %v2003, %v1966
  %v2008 = vld [vmem:[%s2] sm:$0xff]
  %v2009 = vld [vmem:[%s2 + $0x8] sm:$0xff]
  %v2010 = vld [vmem:[%s2 + $0x10] sm:$0xff]
  %v2011 = vld [vmem:[%s2 + $0x18] sm:$0xff]
  %2013 = vset.pattern.permute.xlu0 0
  %2014 = vperm.xlu0 %2013, %v2008
  %v2015 = vpop.permute.xlu0 %2014
  %2018 = vset.pattern.permute.xlu0 0
  %2019 = vperm.xlu0 %2018, %v2009
  %v2020 = vpop.permute.xlu0 %2019
  %2023 = vset.pattern.permute.xlu0 0
  %2024 = vperm.xlu0 %2023, %v2010
  %v2025 = vpop.permute.xlu0 %2024
  %2028 = vset.pattern.permute.xlu0 0
  %2029 = vperm.xlu0 %2028, %v2011
  %v2030 = vpop.permute.xlu0 %2029
  %v2032 = vadd.f32 %v2004, %v2015
  %v2033 = vadd.f32 %v2005, %v2020
  %v2034 = vadd.f32 %v2006, %v2025
  %v2035 = vadd.f32 %v2007, %v2030
  %2036 = vst [vmem:[#allocation2 + $0x30] sm:$0xff] %v2032
  %2037 = vst [vmem:[#allocation2 + $0xa0] sm:$0xff] %v2033
  %2038 = vst [vmem:[#allocation2 + $0x110] sm:$0xff] %v2034
  %2039 = vst [vmem:[#allocation2 + $0x180] sm:$0xff] %v2035
  %v2040 = vld [vmem:[%s0] sm:$0xff]
  %v2041 = vld [vmem:[%s0 + $0x8] sm:$0xff]
  %v2042 = vld [vmem:[%s0 + $0x10] sm:$0xff]
  %v2043 = vld [vmem:[%s0 + $0x18] sm:$0xff]
  %s2044 = scalar_lea.vmem %s1, 224
  %v2045 = vld [vmem:[%s2044] sm:$0xff]
  %v2046 = vld [vmem:[%s2044 + $0x8] sm:$0xff]
  %v2047 = vld [vmem:[%s2044 + $0x10] sm:$0xff]
  %v2048 = vld [vmem:[%s2044 + $0x18] sm:$0xff]
  %2050 = vset.pattern.permute.xlu0 0
  %2051 = vperm.xlu0 %2050, %v2045
  %v2052 = vpop.permute.xlu0 %2051
  %2055 = vset.pattern.permute.xlu0 0
  %2056 = vperm.xlu0 %2055, %v2046
  %v2057 = vpop.permute.xlu0 %2056
  %2060 = vset.pattern.permute.xlu0 0
  %2061 = vperm.xlu0 %2060, %v2047
  %v2062 = vpop.permute.xlu0 %2061
  %2065 = vset.pattern.permute.xlu0 0
  %2066 = vperm.xlu0 %2065, %v2048
  %v2067 = vpop.permute.xlu0 %2066
  %v2069 = vmul.f32 %v2040, %v2052
  %v2070 = vmul.f32 %v2041, %v2057
  %v2071 = vmul.f32 %v2042, %v2062
  %v2072 = vmul.f32 %v2043, %v2067
  %v2073 = vld [vmem:[%s318] sm:$0xff]
  %v2074 = vld [vmem:[%s318 + $0x8] sm:$0xff]
  %v2075 = vld [vmem:[%s318 + $0x10] sm:$0xff]
  %v2076 = vld [vmem:[%s318 + $0x18] sm:$0xff]
  %s2077 = scalar_lea.vmem %s1, 256
  %v2078 = vld [vmem:[%s2077] sm:$0xff]
  %v2079 = vld [vmem:[%s2077 + $0x8] sm:$0xff]
  %v2080 = vld [vmem:[%s2077 + $0x10] sm:$0xff]
  %v2081 = vld [vmem:[%s2077 + $0x18] sm:$0xff]
  %2083 = vset.pattern.permute.xlu0 0
  %2084 = vperm.xlu0 %2083, %v2078
  %v2085 = vpop.permute.xlu0 %2084
  %2088 = vset.pattern.permute.xlu0 0
  %2089 = vperm.xlu0 %2088, %v2079
  %v2090 = vpop.permute.xlu0 %2089
  %2093 = vset.pattern.permute.xlu0 0
  %2094 = vperm.xlu0 %2093, %v2080
  %v2095 = vpop.permute.xlu0 %2094
  %2098 = vset.pattern.permute.xlu0 0
  %2099 = vperm.xlu0 %2098, %v2081
  %v2100 = vpop.permute.xlu0 %2099
  %v2102 = vmul.f32 %v2073, %v2085
  %v2103 = vmul.f32 %v2074, %v2090
  %v2104 = vmul.f32 %v2075, %v2095
  %v2105 = vmul.f32 %v2076, %v2100
  %v2106 = vld [vmem:[%s605] sm:$0xff]
  %v2107 = vld [vmem:[%s605 + $0x8] sm:$0xff]
  %v2108 = vld [vmem:[%s605 + $0x10] sm:$0xff]
  %v2109 = vld [vmem:[%s605 + $0x18] sm:$0xff]
  %s2110 = scalar_lea.vmem %s1, 288
  %v2111 = vld [vmem:[%s2110] sm:$0xff]
  %v2112 = vld [vmem:[%s2110 + $0x8] sm:$0xff]
  %v2113 = vld [vmem:[%s2110 + $0x10] sm:$0xff]
  %v2114 = vld [vmem:[%s2110 + $0x18] sm:$0xff]
  %2116 = vset.pattern.permute.xlu0 0
  %2117 = vperm.xlu0 %2116, %v2111
  %v2118 = vpop.permute.xlu0 %2117
  %2121 = vset.pattern.permute.xlu0 0
  %2122 = vperm.xlu0 %2121, %v2112
  %v2123 = vpop.permute.xlu0 %2122
  %2126 = vset.pattern.permute.xlu0 0
  %2127 = vperm.xlu0 %2126, %v2113
  %v2128 = vpop.permute.xlu0 %2127
  %2131 = vset.pattern.permute.xlu0 0
  %2132 = vperm.xlu0 %2131, %v2114
  %v2133 = vpop.permute.xlu0 %2132
  %v2135 = vmul.f32 %v2106, %v2118
  %v2136 = vmul.f32 %v2107, %v2123
  %v2137 = vmul.f32 %v2108, %v2128
  %v2138 = vmul.f32 %v2109, %v2133
  %v2139 = vadd.f32 %v2069, %v2135
  %v2140 = vadd.f32 %v2070, %v2136
  %v2141 = vadd.f32 %v2071, %v2137
  %v2142 = vadd.f32 %v2072, %v2138
  %v2143 = vld [vmem:[%s892] sm:$0xff]
  %v2144 = vld [vmem:[%s892 + $0x8] sm:$0xff]
  %v2145 = vld [vmem:[%s892 + $0x10] sm:$0xff]
  %v2146 = vld [vmem:[%s892 + $0x18] sm:$0xff]
  %s2147 = scalar_lea.vmem %s1, 320
  %v2148 = vld [vmem:[%s2147] sm:$0xff]
  %v2149 = vld [vmem:[%s2147 + $0x8] sm:$0xff]
  %v2150 = vld [vmem:[%s2147 + $0x10] sm:$0xff]
  %v2151 = vld [vmem:[%s2147 + $0x18] sm:$0xff]
  %2153 = vset.pattern.permute.xlu0 0
  %2154 = vperm.xlu0 %2153, %v2148
  %v2155 = vpop.permute.xlu0 %2154
  %2158 = vset.pattern.permute.xlu0 0
  %2159 = vperm.xlu0 %2158, %v2149
  %v2160 = vpop.permute.xlu0 %2159
  %2163 = vset.pattern.permute.xlu0 0
  %2164 = vperm.xlu0 %2163, %v2150
  %v2165 = vpop.permute.xlu0 %2164
  %2168 = vset.pattern.permute.xlu0 0
  %2169 = vperm.xlu0 %2168, %v2151
  %v2170 = vpop.permute.xlu0 %2169
  %v2172 = vmul.f32 %v2143, %v2155
  %v2173 = vmul.f32 %v2144, %v2160
  %v2174 = vmul.f32 %v2145, %v2165
  %v2175 = vmul.f32 %v2146, %v2170
  %v2176 = vadd.f32 %v2102, %v2172
  %v2177 = vadd.f32 %v2103, %v2173
  %v2178 = vadd.f32 %v2104, %v2174
  %v2179 = vadd.f32 %v2105, %v2175
  %v2180 = vld [vmem:[%s1179] sm:$0xff]
  %v2181 = vld [vmem:[%s1179 + $0x8] sm:$0xff]
  %v2182 = vld [vmem:[%s1179 + $0x10] sm:$0xff]
  %v2183 = vld [vmem:[%s1179 + $0x18] sm:$0xff]
  %s2184 = scalar_lea.vmem %s1, 352
  %v2185 = vld [vmem:[%s2184] sm:$0xff]
  %v2186 = vld [vmem:[%s2184 + $0x8] sm:$0xff]
  %v2187 = vld [vmem:[%s2184 + $0x10] sm:$0xff]
  %v2188 = vld [vmem:[%s2184 + $0x18] sm:$0xff]
  %2190 = vset.pattern.permute.xlu0 0
  %2191 = vperm.xlu0 %2190, %v2185
  %v2192 = vpop.permute.xlu0 %2191
  %2195 = vset.pattern.permute.xlu0 0
  %2196 = vperm.xlu0 %2195, %v2186
  %v2197 = vpop.permute.xlu0 %2196
  %2200 = vset.pattern.permute.xlu0 0
  %2201 = vperm.xlu0 %2200, %v2187
  %v2202 = vpop.permute.xlu0 %2201
  %2205 = vset.pattern.permute.xlu0 0
  %2206 = vperm.xlu0 %2205, %v2188
  %v2207 = vpop.permute.xlu0 %2206
  %v2209 = vmul.f32 %v2180, %v2192
  %v2210 = vmul.f32 %v2181, %v2197
  %v2211 = vmul.f32 %v2182, %v2202
  %v2212 = vmul.f32 %v2183, %v2207
  %v2213 = vadd.f32 %v2139, %v2209
  %v2214 = vadd.f32 %v2140, %v2210
  %v2215 = vadd.f32 %v2141, %v2211
  %v2216 = vadd.f32 %v2142, %v2212
  %v2217 = vld [vmem:[%s1466] sm:$0xff]
  %v2218 = vld [vmem:[%s1466 + $0x8] sm:$0xff]
  %v2219 = vld [vmem:[%s1466 + $0x10] sm:$0xff]
  %v2220 = vld [vmem:[%s1466 + $0x18] sm:$0xff]
  %s2221 = scalar_lea.vmem %s1, 384
  %v2222 = vld [vmem:[%s2221] sm:$0xff]
  %v2223 = vld [vmem:[%s2221 + $0x8] sm:$0xff]
  %v2224 = vld [vmem:[%s2221 + $0x10] sm:$0xff]
  %v2225 = vld [vmem:[%s2221 + $0x18] sm:$0xff]
  %2227 = vset.pattern.permute.xlu0 0
  %2228 = vperm.xlu0 %2227, %v2222
  %v2229 = vpop.permute.xlu0 %2228
  %2232 = vset.pattern.permute.xlu0 0
  %2233 = vperm.xlu0 %2232, %v2223
  %v2234 = vpop.permute.xlu0 %2233
  %2237 = vset.pattern.permute.xlu0 0
  %2238 = vperm.xlu0 %2237, %v2224
  %v2239 = vpop.permute.xlu0 %2238
  %2242 = vset.pattern.permute.xlu0 0
  %2243 = vperm.xlu0 %2242, %v2225
  %v2244 = vpop.permute.xlu0 %2243
  %v2246 = vmul.f32 %v2217, %v2229
  %v2247 = vmul.f32 %v2218, %v2234
  %v2248 = vmul.f32 %v2219, %v2239
  %v2249 = vmul.f32 %v2220, %v2244
  %v2250 = vadd.f32 %v2176, %v2246
  %v2251 = vadd.f32 %v2177, %v2247
  %v2252 = vadd.f32 %v2178, %v2248
  %v2253 = vadd.f32 %v2179, %v2249
  %v2254 = vld [vmem:[%s1753] sm:$0xff]
  %v2255 = vld [vmem:[%s1753 + $0x8] sm:$0xff]
  %v2256 = vld [vmem:[%s1753 + $0x10] sm:$0xff]
  %v2257 = vld [vmem:[%s1753 + $0x18] sm:$0xff]
  %s2258 = scalar_lea.vmem %s1, 416
  %v2259 = vld [vmem:[%s2258] sm:$0xff]
  %v2260 = vld [vmem:[%s2258 + $0x8] sm:$0xff]
  %v2261 = vld [vmem:[%s2258 + $0x10] sm:$0xff]
  %v2262 = vld [vmem:[%s2258 + $0x18] sm:$0xff]
  %2264 = vset.pattern.permute.xlu0 0
  %2265 = vperm.xlu0 %2264, %v2259
  %v2266 = vpop.permute.xlu0 %2265
  %2269 = vset.pattern.permute.xlu0 0
  %2270 = vperm.xlu0 %2269, %v2260
  %v2271 = vpop.permute.xlu0 %2270
  %2274 = vset.pattern.permute.xlu0 0
  %2275 = vperm.xlu0 %2274, %v2261
  %v2276 = vpop.permute.xlu0 %2275
  %2279 = vset.pattern.permute.xlu0 0
  %2280 = vperm.xlu0 %2279, %v2262
  %v2281 = vpop.permute.xlu0 %2280
  %v2283 = vmul.f32 %v2254, %v2266
  %v2284 = vmul.f32 %v2255, %v2271
  %v2285 = vmul.f32 %v2256, %v2276
  %v2286 = vmul.f32 %v2257, %v2281
  %v2287 = vadd.f32 %v2213, %v2283
  %v2288 = vadd.f32 %v2214, %v2284
  %v2289 = vadd.f32 %v2215, %v2285
  %v2290 = vadd.f32 %v2216, %v2286
  %v2291 = vadd.f32 %v2287, %v2250
  %v2292 = vadd.f32 %v2288, %v2251
  %v2293 = vadd.f32 %v2289, %v2252
  %v2294 = vadd.f32 %v2290, %v2253
  %s2295 = scalar_lea.vmem %s2, 32
  %v2296 = vld [vmem:[%s2295] sm:$0xff]
  %v2297 = vld [vmem:[%s2295 + $0x8] sm:$0xff]
  %v2298 = vld [vmem:[%s2295 + $0x10] sm:$0xff]
  %v2299 = vld [vmem:[%s2295 + $0x18] sm:$0xff]
  %2301 = vset.pattern.permute.xlu0 0
  %2302 = vperm.xlu0 %2301, %v2296
  %v2303 = vpop.permute.xlu0 %2302
  %2306 = vset.pattern.permute.xlu0 0
  %2307 = vperm.xlu0 %2306, %v2297
  %v2308 = vpop.permute.xlu0 %2307
  %2311 = vset.pattern.permute.xlu0 0
  %2312 = vperm.xlu0 %2311, %v2298
  %v2313 = vpop.permute.xlu0 %2312
  %2316 = vset.pattern.permute.xlu0 0
  %2317 = vperm.xlu0 %2316, %v2299
  %v2318 = vpop.permute.xlu0 %2317
  %v2320 = vadd.f32 %v2291, %v2303
  %v2321 = vadd.f32 %v2292, %v2308
  %v2322 = vadd.f32 %v2293, %v2313
  %v2323 = vadd.f32 %v2294, %v2318
  %2324 = vst [vmem:[#allocation2 + $0x38] sm:$0xff] %v2320
  %2325 = vst [vmem:[#allocation2 + $0xa8] sm:$0xff] %v2321
  %2326 = vst [vmem:[#allocation2 + $0x118] sm:$0xff] %v2322
  %2327 = vst [vmem:[#allocation2 + $0x188] sm:$0xff] %v2323
  %v2328 = vld [vmem:[%s58] sm:$0xff]
  %v2329 = vld [vmem:[%s58 + $0x8] sm:$0xff]
  %v2330 = vld [vmem:[%s58 + $0x10] sm:$0xff]
  %v2331 = vld [vmem:[%s58 + $0x18] sm:$0xff]
  %v2332 = vld [vmem:[%s2044] sm:$0xff]
  %v2333 = vld [vmem:[%s2044 + $0x8] sm:$0xff]
  %v2334 = vld [vmem:[%s2044 + $0x10] sm:$0xff]
  %v2335 = vld [vmem:[%s2044 + $0x18] sm:$0xff]
  %2337 = vset.pattern.permute.xlu0 0
  %2338 = vperm.xlu0 %2337, %v2332
  %v2339 = vpop.permute.xlu0 %2338
  %2342 = vset.pattern.permute.xlu0 0
  %2343 = vperm.xlu0 %2342, %v2333
  %v2344 = vpop.permute.xlu0 %2343
  %2347 = vset.pattern.permute.xlu0 0
  %2348 = vperm.xlu0 %2347, %v2334
  %v2349 = vpop.permute.xlu0 %2348
  %2352 = vset.pattern.permute.xlu0 0
  %2353 = vperm.xlu0 %2352, %v2335
  %v2354 = vpop.permute.xlu0 %2353
  %v2356 = vmul.f32 %v2328, %v2339
  %v2357 = vmul.f32 %v2329, %v2344
  %v2358 = vmul.f32 %v2330, %v2349
  %v2359 = vmul.f32 %v2331, %v2354
  %v2360 = vld [vmem:[%s351] sm:$0xff]
  %v2361 = vld [vmem:[%s351 + $0x8] sm:$0xff]
  %v2362 = vld [vmem:[%s351 + $0x10] sm:$0xff]
  %v2363 = vld [vmem:[%s351 + $0x18] sm:$0xff]
  %v2364 = vld [vmem:[%s2077] sm:$0xff]
  %v2365 = vld [vmem:[%s2077 + $0x8] sm:$0xff]
  %v2366 = vld [vmem:[%s2077 + $0x10] sm:$0xff]
  %v2367 = vld [vmem:[%s2077 + $0x18] sm:$0xff]
  %2369 = vset.pattern.permute.xlu0 0
  %2370 = vperm.xlu0 %2369, %v2364
  %v2371 = vpop.permute.xlu0 %2370
  %2374 = vset.pattern.permute.xlu0 0
  %2375 = vperm.xlu0 %2374, %v2365
  %v2376 = vpop.permute.xlu0 %2375
  %2379 = vset.pattern.permute.xlu0 0
  %2380 = vperm.xlu0 %2379, %v2366
  %v2381 = vpop.permute.xlu0 %2380
  %2384 = vset.pattern.permute.xlu0 0
  %2385 = vperm.xlu0 %2384, %v2367
  %v2386 = vpop.permute.xlu0 %2385
  %v2388 = vmul.f32 %v2360, %v2371
  %v2389 = vmul.f32 %v2361, %v2376
  %v2390 = vmul.f32 %v2362, %v2381
  %v2391 = vmul.f32 %v2363, %v2386
  %v2392 = vld [vmem:[%s638] sm:$0xff]
  %v2393 = vld [vmem:[%s638 + $0x8] sm:$0xff]
  %v2394 = vld [vmem:[%s638 + $0x10] sm:$0xff]
  %v2395 = vld [vmem:[%s638 + $0x18] sm:$0xff]
  %v2396 = vld [vmem:[%s2110] sm:$0xff]
  %v2397 = vld [vmem:[%s2110 + $0x8] sm:$0xff]
  %v2398 = vld [vmem:[%s2110 + $0x10] sm:$0xff]
  %v2399 = vld [vmem:[%s2110 + $0x18] sm:$0xff]
  %2401 = vset.pattern.permute.xlu0 0
  %2402 = vperm.xlu0 %2401, %v2396
  %v2403 = vpop.permute.xlu0 %2402
  %2406 = vset.pattern.permute.xlu0 0
  %2407 = vperm.xlu0 %2406, %v2397
  %v2408 = vpop.permute.xlu0 %2407
  %2411 = vset.pattern.permute.xlu0 0
  %2412 = vperm.xlu0 %2411, %v2398
  %v2413 = vpop.permute.xlu0 %2412
  %2416 = vset.pattern.permute.xlu0 0
  %2417 = vperm.xlu0 %2416, %v2399
  %v2418 = vpop.permute.xlu0 %2417
  %v2420 = vmul.f32 %v2392, %v2403
  %v2421 = vmul.f32 %v2393, %v2408
  %v2422 = vmul.f32 %v2394, %v2413
  %v2423 = vmul.f32 %v2395, %v2418
  %v2424 = vadd.f32 %v2356, %v2420
  %v2425 = vadd.f32 %v2357, %v2421
  %v2426 = vadd.f32 %v2358, %v2422
  %v2427 = vadd.f32 %v2359, %v2423
  %v2428 = vld [vmem:[%s925] sm:$0xff]
  %v2429 = vld [vmem:[%s925 + $0x8] sm:$0xff]
  %v2430 = vld [vmem:[%s925 + $0x10] sm:$0xff]
  %v2431 = vld [vmem:[%s925 + $0x18] sm:$0xff]
  %v2432 = vld [vmem:[%s2147] sm:$0xff]
  %v2433 = vld [vmem:[%s2147 + $0x8] sm:$0xff]
  %v2434 = vld [vmem:[%s2147 + $0x10] sm:$0xff]
  %v2435 = vld [vmem:[%s2147 + $0x18] sm:$0xff]
  %2437 = vset.pattern.permute.xlu0 0
  %2438 = vperm.xlu0 %2437, %v2432
  %v2439 = vpop.permute.xlu0 %2438
  %2442 = vset.pattern.permute.xlu0 0
  %2443 = vperm.xlu0 %2442, %v2433
  %v2444 = vpop.permute.xlu0 %2443
  %2447 = vset.pattern.permute.xlu0 0
  %2448 = vperm.xlu0 %2447, %v2434
  %v2449 = vpop.permute.xlu0 %2448
  %2452 = vset.pattern.permute.xlu0 0
  %2453 = vperm.xlu0 %2452, %v2435
  %v2454 = vpop.permute.xlu0 %2453
  %v2456 = vmul.f32 %v2428, %v2439
  %v2457 = vmul.f32 %v2429, %v2444
  %v2458 = vmul.f32 %v2430, %v2449
  %v2459 = vmul.f32 %v2431, %v2454
  %v2460 = vadd.f32 %v2388, %v2456
  %v2461 = vadd.f32 %v2389, %v2457
  %v2462 = vadd.f32 %v2390, %v2458
  %v2463 = vadd.f32 %v2391, %v2459
  %v2464 = vld [vmem:[%s1212] sm:$0xff]
  %v2465 = vld [vmem:[%s1212 + $0x8] sm:$0xff]
  %v2466 = vld [vmem:[%s1212 + $0x10] sm:$0xff]
  %v2467 = vld [vmem:[%s1212 + $0x18] sm:$0xff]
  %v2468 = vld [vmem:[%s2184] sm:$0xff]
  %v2469 = vld [vmem:[%s2184 + $0x8] sm:$0xff]
  %v2470 = vld [vmem:[%s2184 + $0x10] sm:$0xff]
  %v2471 = vld [vmem:[%s2184 + $0x18] sm:$0xff]
  %2473 = vset.pattern.permute.xlu0 0
  %2474 = vperm.xlu0 %2473, %v2468
  %v2475 = vpop.permute.xlu0 %2474
  %2478 = vset.pattern.permute.xlu0 0
  %2479 = vperm.xlu0 %2478, %v2469
  %v2480 = vpop.permute.xlu0 %2479
  %2483 = vset.pattern.permute.xlu0 0
  %2484 = vperm.xlu0 %2483, %v2470
  %v2485 = vpop.permute.xlu0 %2484
  %2488 = vset.pattern.permute.xlu0 0
  %2489 = vperm.xlu0 %2488, %v2471
  %v2490 = vpop.permute.xlu0 %2489
  %v2492 = vmul.f32 %v2464, %v2475
  %v2493 = vmul.f32 %v2465, %v2480
  %v2494 = vmul.f32 %v2466, %v2485
  %v2495 = vmul.f32 %v2467, %v2490
  %v2496 = vadd.f32 %v2424, %v2492
  %v2497 = vadd.f32 %v2425, %v2493
  %v2498 = vadd.f32 %v2426, %v2494
  %v2499 = vadd.f32 %v2427, %v2495
  %v2500 = vld [vmem:[%s1499] sm:$0xff]
  %v2501 = vld [vmem:[%s1499 + $0x8] sm:$0xff]
  %v2502 = vld [vmem:[%s1499 + $0x10] sm:$0xff]
  %v2503 = vld [vmem:[%s1499 + $0x18] sm:$0xff]
  %v2504 = vld [vmem:[%s2221] sm:$0xff]
  %v2505 = vld [vmem:[%s2221 + $0x8] sm:$0xff]
  %v2506 = vld [vmem:[%s2221 + $0x10] sm:$0xff]
  %v2507 = vld [vmem:[%s2221 + $0x18] sm:$0xff]
  %2509 = vset.pattern.permute.xlu0 0
  %2510 = vperm.xlu0 %2509, %v2504
  %v2511 = vpop.permute.xlu0 %2510
  %2514 = vset.pattern.permute.xlu0 0
  %2515 = vperm.xlu0 %2514, %v2505
  %v2516 = vpop.permute.xlu0 %2515
  %2519 = vset.pattern.permute.xlu0 0
  %2520 = vperm.xlu0 %2519, %v2506
  %v2521 = vpop.permute.xlu0 %2520
  %2524 = vset.pattern.permute.xlu0 0
  %2525 = vperm.xlu0 %2524, %v2507
  %v2526 = vpop.permute.xlu0 %2525
  %v2528 = vmul.f32 %v2500, %v2511
  %v2529 = vmul.f32 %v2501, %v2516
  %v2530 = vmul.f32 %v2502, %v2521
  %v2531 = vmul.f32 %v2503, %v2526
  %v2532 = vadd.f32 %v2460, %v2528
  %v2533 = vadd.f32 %v2461, %v2529
  %v2534 = vadd.f32 %v2462, %v2530
  %v2535 = vadd.f32 %v2463, %v2531
  %v2536 = vld [vmem:[%s1786] sm:$0xff]
  %v2537 = vld [vmem:[%s1786 + $0x8] sm:$0xff]
  %v2538 = vld [vmem:[%s1786 + $0x10] sm:$0xff]
  %v2539 = vld [vmem:[%s1786 + $0x18] sm:$0xff]
  %v2540 = vld [vmem:[%s2258] sm:$0xff]
  %v2541 = vld [vmem:[%s2258 + $0x8] sm:$0xff]
  %v2542 = vld [vmem:[%s2258 + $0x10] sm:$0xff]
  %v2543 = vld [vmem:[%s2258 + $0x18] sm:$0xff]
  %2545 = vset.pattern.permute.xlu0 0
  %2546 = vperm.xlu0 %2545, %v2540
  %v2547 = vpop.permute.xlu0 %2546
  %2550 = vset.pattern.permute.xlu0 0
  %2551 = vperm.xlu0 %2550, %v2541
  %v2552 = vpop.permute.xlu0 %2551
  %2555 = vset.pattern.permute.xlu0 0
  %2556 = vperm.xlu0 %2555, %v2542
  %v2557 = vpop.permute.xlu0 %2556
  %2560 = vset.pattern.permute.xlu0 0
  %2561 = vperm.xlu0 %2560, %v2543
  %v2562 = vpop.permute.xlu0 %2561
  %v2564 = vmul.f32 %v2536, %v2547
  %v2565 = vmul.f32 %v2537, %v2552
  %v2566 = vmul.f32 %v2538, %v2557
  %v2567 = vmul.f32 %v2539, %v2562
  %v2568 = vadd.f32 %v2496, %v2564
  %v2569 = vadd.f32 %v2497, %v2565
  %v2570 = vadd.f32 %v2498, %v2566
  %v2571 = vadd.f32 %v2499, %v2567
  %v2572 = vadd.f32 %v2568, %v2532
  %v2573 = vadd.f32 %v2569, %v2533
  %v2574 = vadd.f32 %v2570, %v2534
  %v2575 = vadd.f32 %v2571, %v2535
  %v2576 = vld [vmem:[%s2295] sm:$0xff]
  %v2577 = vld [vmem:[%s2295 + $0x8] sm:$0xff]
  %v2578 = vld [vmem:[%s2295 + $0x10] sm:$0xff]
  %v2579 = vld [vmem:[%s2295 + $0x18] sm:$0xff]
  %2581 = vset.pattern.permute.xlu0 0
  %2582 = vperm.xlu0 %2581, %v2576
  %v2583 = vpop.permute.xlu0 %2582
  %2586 = vset.pattern.permute.xlu0 0
  %2587 = vperm.xlu0 %2586, %v2577
  %v2588 = vpop.permute.xlu0 %2587
  %2591 = vset.pattern.permute.xlu0 0
  %2592 = vperm.xlu0 %2591, %v2578
  %v2593 = vpop.permute.xlu0 %2592
  %2596 = vset.pattern.permute.xlu0 0
  %2597 = vperm.xlu0 %2596, %v2579
  %v2598 = vpop.permute.xlu0 %2597
  %v2600 = vadd.f32 %v2572, %v2583
  %v2601 = vadd.f32 %v2573, %v2588
  %v2602 = vadd.f32 %v2574, %v2593
  %v2603 = vadd.f32 %v2575, %v2598
  %2604 = vst [vmem:[#allocation2 + $0x40] sm:$0xff] %v2600
  %2605 = vst [vmem:[#allocation2 + $0xb0] sm:$0xff] %v2601
  %2606 = vst [vmem:[#allocation2 + $0x120] sm:$0xff] %v2602
  %2607 = vst [vmem:[#allocation2 + $0x190] sm:$0xff] %v2603
  %v2608 = vld [vmem:[%s92] sm:$0xff]
  %v2609 = vld [vmem:[%s92 + $0x8] sm:$0xff]
  %v2610 = vld [vmem:[%s92 + $0x10] sm:$0xff]
  %v2611 = vld [vmem:[%s92 + $0x18] sm:$0xff]
  %v2612 = vld [vmem:[%s2044] sm:$0xff]
  %v2613 = vld [vmem:[%s2044 + $0x8] sm:$0xff]
  %v2614 = vld [vmem:[%s2044 + $0x10] sm:$0xff]
  %v2615 = vld [vmem:[%s2044 + $0x18] sm:$0xff]
  %2617 = vset.pattern.permute.xlu0 0
  %2618 = vperm.xlu0 %2617, %v2612
  %v2619 = vpop.permute.xlu0 %2618
  %2622 = vset.pattern.permute.xlu0 0
  %2623 = vperm.xlu0 %2622, %v2613
  %v2624 = vpop.permute.xlu0 %2623
  %2627 = vset.pattern.permute.xlu0 0
  %2628 = vperm.xlu0 %2627, %v2614
  %v2629 = vpop.permute.xlu0 %2628
  %2632 = vset.pattern.permute.xlu0 0
  %2633 = vperm.xlu0 %2632, %v2615
  %v2634 = vpop.permute.xlu0 %2633
  %v2636 = vmul.f32 %v2608, %v2619
  %v2637 = vmul.f32 %v2609, %v2624
  %v2638 = vmul.f32 %v2610, %v2629
  %v2639 = vmul.f32 %v2611, %v2634
  %v2640 = vld [vmem:[%s384] sm:$0xff]
  %v2641 = vld [vmem:[%s384 + $0x8] sm:$0xff]
  %v2642 = vld [vmem:[%s384 + $0x10] sm:$0xff]
  %v2643 = vld [vmem:[%s384 + $0x18] sm:$0xff]
  %v2644 = vld [vmem:[%s2077] sm:$0xff]
  %v2645 = vld [vmem:[%s2077 + $0x8] sm:$0xff]
  %v2646 = vld [vmem:[%s2077 + $0x10] sm:$0xff]
  %v2647 = vld [vmem:[%s2077 + $0x18] sm:$0xff]
  %2649 = vset.pattern.permute.xlu0 0
  %2650 = vperm.xlu0 %2649, %v2644
  %v2651 = vpop.permute.xlu0 %2650
  %2654 = vset.pattern.permute.xlu0 0
  %2655 = vperm.xlu0 %2654, %v2645
  %v2656 = vpop.permute.xlu0 %2655
  %2659 = vset.pattern.permute.xlu0 0
  %2660 = vperm.xlu0 %2659, %v2646
  %v2661 = vpop.permute.xlu0 %2660
  %2664 = vset.pattern.permute.xlu0 0
  %2665 = vperm.xlu0 %2664, %v2647
  %v2666 = vpop.permute.xlu0 %2665
  %v2668 = vmul.f32 %v2640, %v2651
  %v2669 = vmul.f32 %v2641, %v2656
  %v2670 = vmul.f32 %v2642, %v2661
  %v2671 = vmul.f32 %v2643, %v2666
  %v2672 = vld [vmem:[%s671] sm:$0xff]
  %v2673 = vld [vmem:[%s671 + $0x8] sm:$0xff]
  %v2674 = vld [vmem:[%s671 + $0x10] sm:$0xff]
  %v2675 = vld [vmem:[%s671 + $0x18] sm:$0xff]
  %v2676 = vld [vmem:[%s2110] sm:$0xff]
  %v2677 = vld [vmem:[%s2110 + $0x8] sm:$0xff]
  %v2678 = vld [vmem:[%s2110 + $0x10] sm:$0xff]
  %v2679 = vld [vmem:[%s2110 + $0x18] sm:$0xff]
  %2681 = vset.pattern.permute.xlu0 0
  %2682 = vperm.xlu0 %2681, %v2676
  %v2683 = vpop.permute.xlu0 %2682
  %2686 = vset.pattern.permute.xlu0 0
  %2687 = vperm.xlu0 %2686, %v2677
  %v2688 = vpop.permute.xlu0 %2687
  %2691 = vset.pattern.permute.xlu0 0
  %2692 = vperm.xlu0 %2691, %v2678
  %v2693 = vpop.permute.xlu0 %2692
  %2696 = vset.pattern.permute.xlu0 0
  %2697 = vperm.xlu0 %2696, %v2679
  %v2698 = vpop.permute.xlu0 %2697
  %v2700 = vmul.f32 %v2672, %v2683
  %v2701 = vmul.f32 %v2673, %v2688
  %v2702 = vmul.f32 %v2674, %v2693
  %v2703 = vmul.f32 %v2675, %v2698
  %v2704 = vadd.f32 %v2636, %v2700
  %v2705 = vadd.f32 %v2637, %v2701
  %v2706 = vadd.f32 %v2638, %v2702
  %v2707 = vadd.f32 %v2639, %v2703
  %v2708 = vld [vmem:[%s958] sm:$0xff]
  %v2709 = vld [vmem:[%s958 + $0x8] sm:$0xff]
  %v2710 = vld [vmem:[%s958 + $0x10] sm:$0xff]
  %v2711 = vld [vmem:[%s958 + $0x18] sm:$0xff]
  %v2712 = vld [vmem:[%s2147] sm:$0xff]
  %v2713 = vld [vmem:[%s2147 + $0x8] sm:$0xff]
  %v2714 = vld [vmem:[%s2147 + $0x10] sm:$0xff]
  %v2715 = vld [vmem:[%s2147 + $0x18] sm:$0xff]
  %2717 = vset.pattern.permute.xlu0 0
  %2718 = vperm.xlu0 %2717, %v2712
  %v2719 = vpop.permute.xlu0 %2718
  %2722 = vset.pattern.permute.xlu0 0
  %2723 = vperm.xlu0 %2722, %v2713
  %v2724 = vpop.permute.xlu0 %2723
  %2727 = vset.pattern.permute.xlu0 0
  %2728 = vperm.xlu0 %2727, %v2714
  %v2729 = vpop.permute.xlu0 %2728
  %2732 = vset.pattern.permute.xlu0 0
  %2733 = vperm.xlu0 %2732, %v2715
  %v2734 = vpop.permute.xlu0 %2733
  %v2736 = vmul.f32 %v2708, %v2719
  %v2737 = vmul.f32 %v2709, %v2724
  %v2738 = vmul.f32 %v2710, %v2729
  %v2739 = vmul.f32 %v2711, %v2734
  %v2740 = vadd.f32 %v2668, %v2736
  %v2741 = vadd.f32 %v2669, %v2737
  %v2742 = vadd.f32 %v2670, %v2738
  %v2743 = vadd.f32 %v2671, %v2739
  %v2744 = vld [vmem:[%s1245] sm:$0xff]
  %v2745 = vld [vmem:[%s1245 + $0x8] sm:$0xff]
  %v2746 = vld [vmem:[%s1245 + $0x10] sm:$0xff]
  %v2747 = vld [vmem:[%s1245 + $0x18] sm:$0xff]
  %v2748 = vld [vmem:[%s2184] sm:$0xff]
  %v2749 = vld [vmem:[%s2184 + $0x8] sm:$0xff]
  %v2750 = vld [vmem:[%s2184 + $0x10] sm:$0xff]
  %v2751 = vld [vmem:[%s2184 + $0x18] sm:$0xff]
  %2753 = vset.pattern.permute.xlu0 0
  %2754 = vperm.xlu0 %2753, %v2748
  %v2755 = vpop.permute.xlu0 %2754
  %2758 = vset.pattern.permute.xlu0 0
  %2759 = vperm.xlu0 %2758, %v2749
  %v2760 = vpop.permute.xlu0 %2759
  %2763 = vset.pattern.permute.xlu0 0
  %2764 = vperm.xlu0 %2763, %v2750
  %v2765 = vpop.permute.xlu0 %2764
  %2768 = vset.pattern.permute.xlu0 0
  %2769 = vperm.xlu0 %2768, %v2751
  %v2770 = vpop.permute.xlu0 %2769
  %v2772 = vmul.f32 %v2744, %v2755
  %v2773 = vmul.f32 %v2745, %v2760
  %v2774 = vmul.f32 %v2746, %v2765
  %v2775 = vmul.f32 %v2747, %v2770
  %v2776 = vadd.f32 %v2704, %v2772
  %v2777 = vadd.f32 %v2705, %v2773
  %v2778 = vadd.f32 %v2706, %v2774
  %v2779 = vadd.f32 %v2707, %v2775
  %v2780 = vld [vmem:[%s1532] sm:$0xff]
  %v2781 = vld [vmem:[%s1532 + $0x8] sm:$0xff]
  %v2782 = vld [vmem:[%s1532 + $0x10] sm:$0xff]
  %v2783 = vld [vmem:[%s1532 + $0x18] sm:$0xff]
  %v2784 = vld [vmem:[%s2221] sm:$0xff]
  %v2785 = vld [vmem:[%s2221 + $0x8] sm:$0xff]
  %v2786 = vld [vmem:[%s2221 + $0x10] sm:$0xff]
  %v2787 = vld [vmem:[%s2221 + $0x18] sm:$0xff]
  %2789 = vset.pattern.permute.xlu0 0
  %2790 = vperm.xlu0 %2789, %v2784
  %v2791 = vpop.permute.xlu0 %2790
  %2794 = vset.pattern.permute.xlu0 0
  %2795 = vperm.xlu0 %2794, %v2785
  %v2796 = vpop.permute.xlu0 %2795
  %2799 = vset.pattern.permute.xlu0 0
  %2800 = vperm.xlu0 %2799, %v2786
  %v2801 = vpop.permute.xlu0 %2800
  %2804 = vset.pattern.permute.xlu0 0
  %2805 = vperm.xlu0 %2804, %v2787
  %v2806 = vpop.permute.xlu0 %2805
  %v2808 = vmul.f32 %v2780, %v2791
  %v2809 = vmul.f32 %v2781, %v2796
  %v2810 = vmul.f32 %v2782, %v2801
  %v2811 = vmul.f32 %v2783, %v2806
  %v2812 = vadd.f32 %v2740, %v2808
  %v2813 = vadd.f32 %v2741, %v2809
  %v2814 = vadd.f32 %v2742, %v2810
  %v2815 = vadd.f32 %v2743, %v2811
  %v2816 = vld [vmem:[%s1819] sm:$0xff]
  %v2817 = vld [vmem:[%s1819 + $0x8] sm:$0xff]
  %v2818 = vld [vmem:[%s1819 + $0x10] sm:$0xff]
  %v2819 = vld [vmem:[%s1819 + $0x18] sm:$0xff]
  %v2820 = vld [vmem:[%s2258] sm:$0xff]
  %v2821 = vld [vmem:[%s2258 + $0x8] sm:$0xff]
  %v2822 = vld [vmem:[%s2258 + $0x10] sm:$0xff]
  %v2823 = vld [vmem:[%s2258 + $0x18] sm:$0xff]
  %2825 = vset.pattern.permute.xlu0 0
  %2826 = vperm.xlu0 %2825, %v2820
  %v2827 = vpop.permute.xlu0 %2826
  %2830 = vset.pattern.permute.xlu0 0
  %2831 = vperm.xlu0 %2830, %v2821
  %v2832 = vpop.permute.xlu0 %2831
  %2835 = vset.pattern.permute.xlu0 0
  %2836 = vperm.xlu0 %2835, %v2822
  %v2837 = vpop.permute.xlu0 %2836
  %2840 = vset.pattern.permute.xlu0 0
  %2841 = vperm.xlu0 %2840, %v2823
  %v2842 = vpop.permute.xlu0 %2841
  %v2844 = vmul.f32 %v2816, %v2827
  %v2845 = vmul.f32 %v2817, %v2832
  %v2846 = vmul.f32 %v2818, %v2837
  %v2847 = vmul.f32 %v2819, %v2842
  %v2848 = vadd.f32 %v2776, %v2844
  %v2849 = vadd.f32 %v2777, %v2845
  %v2850 = vadd.f32 %v2778, %v2846
  %v2851 = vadd.f32 %v2779, %v2847
  %v2852 = vadd.f32 %v2848, %v2812
  %v2853 = vadd.f32 %v2849, %v2813
  %v2854 = vadd.f32 %v2850, %v2814
  %v2855 = vadd.f32 %v2851, %v2815
  %v2856 = vld [vmem:[%s2295] sm:$0xff]
  %v2857 = vld [vmem:[%s2295 + $0x8] sm:$0xff]
  %v2858 = vld [vmem:[%s2295 + $0x10] sm:$0xff]
  %v2859 = vld [vmem:[%s2295 + $0x18] sm:$0xff]
  %2861 = vset.pattern.permute.xlu0 0
  %2862 = vperm.xlu0 %2861, %v2856
  %v2863 = vpop.permute.xlu0 %2862
  %2866 = vset.pattern.permute.xlu0 0
  %2867 = vperm.xlu0 %2866, %v2857
  %v2868 = vpop.permute.xlu0 %2867
  %2871 = vset.pattern.permute.xlu0 0
  %2872 = vperm.xlu0 %2871, %v2858
  %v2873 = vpop.permute.xlu0 %2872
  %2876 = vset.pattern.permute.xlu0 0
  %2877 = vperm.xlu0 %2876, %v2859
  %v2878 = vpop.permute.xlu0 %2877
  %v2880 = vadd.f32 %v2852, %v2863
  %v2881 = vadd.f32 %v2853, %v2868
  %v2882 = vadd.f32 %v2854, %v2873
  %v2883 = vadd.f32 %v2855, %v2878
  %2884 = vst [vmem:[#allocation2 + $0x48] sm:$0xff] %v2880
  %2885 = vst [vmem:[#allocation2 + $0xb8] sm:$0xff] %v2881
  %2886 = vst [vmem:[#allocation2 + $0x128] sm:$0xff] %v2882
  %2887 = vst [vmem:[#allocation2 + $0x198] sm:$0xff] %v2883
  %v2888 = vld [vmem:[%s130] sm:$0xff]
  %v2889 = vld [vmem:[%s130 + $0x8] sm:$0xff]
  %v2890 = vld [vmem:[%s130 + $0x10] sm:$0xff]
  %v2891 = vld [vmem:[%s130 + $0x18] sm:$0xff]
  %v2892 = vld [vmem:[%s2044] sm:$0xff]
  %v2893 = vld [vmem:[%s2044 + $0x8] sm:$0xff]
  %v2894 = vld [vmem:[%s2044 + $0x10] sm:$0xff]
  %v2895 = vld [vmem:[%s2044 + $0x18] sm:$0xff]
  %2897 = vset.pattern.permute.xlu0 0
  %2898 = vperm.xlu0 %2897, %v2892
  %v2899 = vpop.permute.xlu0 %2898
  %2902 = vset.pattern.permute.xlu0 0
  %2903 = vperm.xlu0 %2902, %v2893
  %v2904 = vpop.permute.xlu0 %2903
  %2907 = vset.pattern.permute.xlu0 0
  %2908 = vperm.xlu0 %2907, %v2894
  %v2909 = vpop.permute.xlu0 %2908
  %2912 = vset.pattern.permute.xlu0 0
  %2913 = vperm.xlu0 %2912, %v2895
  %v2914 = vpop.permute.xlu0 %2913
  %v2916 = vmul.f32 %v2888, %v2899
  %v2917 = vmul.f32 %v2889, %v2904
  %v2918 = vmul.f32 %v2890, %v2909
  %v2919 = vmul.f32 %v2891, %v2914
  %v2920 = vld [vmem:[%s421] sm:$0xff]
  %v2921 = vld [vmem:[%s421 + $0x8] sm:$0xff]
  %v2922 = vld [vmem:[%s421 + $0x10] sm:$0xff]
  %v2923 = vld [vmem:[%s421 + $0x18] sm:$0xff]
  %v2924 = vld [vmem:[%s2077] sm:$0xff]
  %v2925 = vld [vmem:[%s2077 + $0x8] sm:$0xff]
  %v2926 = vld [vmem:[%s2077 + $0x10] sm:$0xff]
  %v2927 = vld [vmem:[%s2077 + $0x18] sm:$0xff]
  %2929 = vset.pattern.permute.xlu0 0
  %2930 = vperm.xlu0 %2929, %v2924
  %v2931 = vpop.permute.xlu0 %2930
  %2934 = vset.pattern.permute.xlu0 0
  %2935 = vperm.xlu0 %2934, %v2925
  %v2936 = vpop.permute.xlu0 %2935
  %2939 = vset.pattern.permute.xlu0 0
  %2940 = vperm.xlu0 %2939, %v2926
  %v2941 = vpop.permute.xlu0 %2940
  %2944 = vset.pattern.permute.xlu0 0
  %2945 = vperm.xlu0 %2944, %v2927
  %v2946 = vpop.permute.xlu0 %2945
  %v2948 = vmul.f32 %v2920, %v2931
  %v2949 = vmul.f32 %v2921, %v2936
  %v2950 = vmul.f32 %v2922, %v2941
  %v2951 = vmul.f32 %v2923, %v2946
  %v2952 = vld [vmem:[%s708] sm:$0xff]
  %v2953 = vld [vmem:[%s708 + $0x8] sm:$0xff]
  %v2954 = vld [vmem:[%s708 + $0x10] sm:$0xff]
  %v2955 = vld [vmem:[%s708 + $0x18] sm:$0xff]
  %v2956 = vld [vmem:[%s2110] sm:$0xff]
  %v2957 = vld [vmem:[%s2110 + $0x8] sm:$0xff]
  %v2958 = vld [vmem:[%s2110 + $0x10] sm:$0xff]
  %v2959 = vld [vmem:[%s2110 + $0x18] sm:$0xff]
  %2961 = vset.pattern.permute.xlu0 0
  %2962 = vperm.xlu0 %2961, %v2956
  %v2963 = vpop.permute.xlu0 %2962
  %2966 = vset.pattern.permute.xlu0 0
  %2967 = vperm.xlu0 %2966, %v2957
  %v2968 = vpop.permute.xlu0 %2967
  %2971 = vset.pattern.permute.xlu0 0
  %2972 = vperm.xlu0 %2971, %v2958
  %v2973 = vpop.permute.xlu0 %2972
  %2976 = vset.pattern.permute.xlu0 0
  %2977 = vperm.xlu0 %2976, %v2959
  %v2978 = vpop.permute.xlu0 %2977
  %v2980 = vmul.f32 %v2952, %v2963
  %v2981 = vmul.f32 %v2953, %v2968
  %v2982 = vmul.f32 %v2954, %v2973
  %v2983 = vmul.f32 %v2955, %v2978
  %v2984 = vadd.f32 %v2916, %v2980
  %v2985 = vadd.f32 %v2917, %v2981
  %v2986 = vadd.f32 %v2918, %v2982
  %v2987 = vadd.f32 %v2919, %v2983
  %v2988 = vld [vmem:[%s995] sm:$0xff]
  %v2989 = vld [vmem:[%s995 + $0x8] sm:$0xff]
  %v2990 = vld [vmem:[%s995 + $0x10] sm:$0xff]
  %v2991 = vld [vmem:[%s995 + $0x18] sm:$0xff]
  %v2992 = vld [vmem:[%s2147] sm:$0xff]
  %v2993 = vld [vmem:[%s2147 + $0x8] sm:$0xff]
  %v2994 = vld [vmem:[%s2147 + $0x10] sm:$0xff]
  %v2995 = vld [vmem:[%s2147 + $0x18] sm:$0xff]
  %2997 = vset.pattern.permute.xlu0 0
  %2998 = vperm.xlu0 %2997, %v2992
  %v2999 = vpop.permute.xlu0 %2998
  %3002 = vset.pattern.permute.xlu0 0
  %3003 = vperm.xlu0 %3002, %v2993
  %v3004 = vpop.permute.xlu0 %3003
  %3007 = vset.pattern.permute.xlu0 0
  %3008 = vperm.xlu0 %3007, %v2994
  %v3009 = vpop.permute.xlu0 %3008
  %3012 = vset.pattern.permute.xlu0 0
  %3013 = vperm.xlu0 %3012, %v2995
  %v3014 = vpop.permute.xlu0 %3013
  %v3016 = vmul.f32 %v2988, %v2999
  %v3017 = vmul.f32 %v2989, %v3004
  %v3018 = vmul.f32 %v2990, %v3009
  %v3019 = vmul.f32 %v2991, %v3014
  %v3020 = vadd.f32 %v2948, %v3016
  %v3021 = vadd.f32 %v2949, %v3017
  %v3022 = vadd.f32 %v2950, %v3018
  %v3023 = vadd.f32 %v2951, %v3019
  %v3024 = vld [vmem:[%s1282] sm:$0xff]
  %v3025 = vld [vmem:[%s1282 + $0x8] sm:$0xff]
  %v3026 = vld [vmem:[%s1282 + $0x10] sm:$0xff]
  %v3027 = vld [vmem:[%s1282 + $0x18] sm:$0xff]
  %v3028 = vld [vmem:[%s2184] sm:$0xff]
  %v3029 = vld [vmem:[%s2184 + $0x8] sm:$0xff]
  %v3030 = vld [vmem:[%s2184 + $0x10] sm:$0xff]
  %v3031 = vld [vmem:[%s2184 + $0x18] sm:$0xff]
  %3033 = vset.pattern.permute.xlu0 0
  %3034 = vperm.xlu0 %3033, %v3028
  %v3035 = vpop.permute.xlu0 %3034
  %3038 = vset.pattern.permute.xlu0 0
  %3039 = vperm.xlu0 %3038, %v3029
  %v3040 = vpop.permute.xlu0 %3039
  %3043 = vset.pattern.permute.xlu0 0
  %3044 = vperm.xlu0 %3043, %v3030
  %v3045 = vpop.permute.xlu0 %3044
  %3048 = vset.pattern.permute.xlu0 0
  %3049 = vperm.xlu0 %3048, %v3031
  %v3050 = vpop.permute.xlu0 %3049
  %v3052 = vmul.f32 %v3024, %v3035
  %v3053 = vmul.f32 %v3025, %v3040
  %v3054 = vmul.f32 %v3026, %v3045
  %v3055 = vmul.f32 %v3027, %v3050
  %v3056 = vadd.f32 %v2984, %v3052
  %v3057 = vadd.f32 %v2985, %v3053
  %v3058 = vadd.f32 %v2986, %v3054
  %v3059 = vadd.f32 %v2987, %v3055
  %v3060 = vld [vmem:[%s1569] sm:$0xff]
  %v3061 = vld [vmem:[%s1569 + $0x8] sm:$0xff]
  %v3062 = vld [vmem:[%s1569 + $0x10] sm:$0xff]
  %v3063 = vld [vmem:[%s1569 + $0x18] sm:$0xff]
  %v3064 = vld [vmem:[%s2221] sm:$0xff]
  %v3065 = vld [vmem:[%s2221 + $0x8] sm:$0xff]
  %v3066 = vld [vmem:[%s2221 + $0x10] sm:$0xff]
  %v3067 = vld [vmem:[%s2221 + $0x18] sm:$0xff]
  %3069 = vset.pattern.permute.xlu0 0
  %3070 = vperm.xlu0 %3069, %v3064
  %v3071 = vpop.permute.xlu0 %3070
  %3074 = vset.pattern.permute.xlu0 0
  %3075 = vperm.xlu0 %3074, %v3065
  %v3076 = vpop.permute.xlu0 %3075
  %3079 = vset.pattern.permute.xlu0 0
  %3080 = vperm.xlu0 %3079, %v3066
  %v3081 = vpop.permute.xlu0 %3080
  %3084 = vset.pattern.permute.xlu0 0
  %3085 = vperm.xlu0 %3084, %v3067
  %v3086 = vpop.permute.xlu0 %3085
  %v3088 = vmul.f32 %v3060, %v3071
  %v3089 = vmul.f32 %v3061, %v3076
  %v3090 = vmul.f32 %v3062, %v3081
  %v3091 = vmul.f32 %v3063, %v3086
  %v3092 = vadd.f32 %v3020, %v3088
  %v3093 = vadd.f32 %v3021, %v3089
  %v3094 = vadd.f32 %v3022, %v3090
  %v3095 = vadd.f32 %v3023, %v3091
  %v3096 = vld [vmem:[%s1856] sm:$0xff]
  %v3097 = vld [vmem:[%s1856 + $0x8] sm:$0xff]
  %v3098 = vld [vmem:[%s1856 + $0x10] sm:$0xff]
  %v3099 = vld [vmem:[%s1856 + $0x18] sm:$0xff]
  %v3100 = vld [vmem:[%s2258] sm:$0xff]
  %v3101 = vld [vmem:[%s2258 + $0x8] sm:$0xff]
  %v3102 = vld [vmem:[%s2258 + $0x10] sm:$0xff]
  %v3103 = vld [vmem:[%s2258 + $0x18] sm:$0xff]
  %3105 = vset.pattern.permute.xlu0 0
  %3106 = vperm.xlu0 %3105, %v3100
  %v3107 = vpop.permute.xlu0 %3106
  %3110 = vset.pattern.permute.xlu0 0
  %3111 = vperm.xlu0 %3110, %v3101
  %v3112 = vpop.permute.xlu0 %3111
  %3115 = vset.pattern.permute.xlu0 0
  %3116 = vperm.xlu0 %3115, %v3102
  %v3117 = vpop.permute.xlu0 %3116
  %3120 = vset.pattern.permute.xlu0 0
  %3121 = vperm.xlu0 %3120, %v3103
  %v3122 = vpop.permute.xlu0 %3121
  %v3124 = vmul.f32 %v3096, %v3107
  %v3125 = vmul.f32 %v3097, %v3112
  %v3126 = vmul.f32 %v3098, %v3117
  %v3127 = vmul.f32 %v3099, %v3122
  %v3128 = vadd.f32 %v3056, %v3124
  %v3129 = vadd.f32 %v3057, %v3125
  %v3130 = vadd.f32 %v3058, %v3126
  %v3131 = vadd.f32 %v3059, %v3127
  %v3132 = vadd.f32 %v3128, %v3092
  %v3133 = vadd.f32 %v3129, %v3093
  %v3134 = vadd.f32 %v3130, %v3094
  %v3135 = vadd.f32 %v3131, %v3095
  %v3136 = vld [vmem:[%s2295] sm:$0xff]
  %v3137 = vld [vmem:[%s2295 + $0x8] sm:$0xff]
  %v3138 = vld [vmem:[%s2295 + $0x10] sm:$0xff]
  %v3139 = vld [vmem:[%s2295 + $0x18] sm:$0xff]
  %3141 = vset.pattern.permute.xlu0 0
  %3142 = vperm.xlu0 %3141, %v3136
  %v3143 = vpop.permute.xlu0 %3142
  %3146 = vset.pattern.permute.xlu0 0
  %3147 = vperm.xlu0 %3146, %v3137
  %v3148 = vpop.permute.xlu0 %3147
  %3151 = vset.pattern.permute.xlu0 0
  %3152 = vperm.xlu0 %3151, %v3138
  %v3153 = vpop.permute.xlu0 %3152
  %3156 = vset.pattern.permute.xlu0 0
  %3157 = vperm.xlu0 %3156, %v3139
  %v3158 = vpop.permute.xlu0 %3157
  %v3160 = vadd.f32 %v3132, %v3143
  %v3161 = vadd.f32 %v3133, %v3148
  %v3162 = vadd.f32 %v3134, %v3153
  %v3163 = vadd.f32 %v3135, %v3158
  %3164 = vst [vmem:[#allocation2 + $0x50] sm:$0xff] %v3160
  %3165 = vst [vmem:[#allocation2 + $0xc0] sm:$0xff] %v3161
  %3166 = vst [vmem:[#allocation2 + $0x130] sm:$0xff] %v3162
  %3167 = vst [vmem:[#allocation2 + $0x1a0] sm:$0xff] %v3163
  %v3168 = vld [vmem:[%s168] sm:$0xff]
  %v3169 = vld [vmem:[%s168 + $0x8] sm:$0xff]
  %v3170 = vld [vmem:[%s168 + $0x10] sm:$0xff]
  %v3171 = vld [vmem:[%s168 + $0x18] sm:$0xff]
  %v3172 = vld [vmem:[%s2044] sm:$0xff]
  %v3173 = vld [vmem:[%s2044 + $0x8] sm:$0xff]
  %v3174 = vld [vmem:[%s2044 + $0x10] sm:$0xff]
  %v3175 = vld [vmem:[%s2044 + $0x18] sm:$0xff]
  %3177 = vset.pattern.permute.xlu0 0
  %3178 = vperm.xlu0 %3177, %v3172
  %v3179 = vpop.permute.xlu0 %3178
  %3182 = vset.pattern.permute.xlu0 0
  %3183 = vperm.xlu0 %3182, %v3173
  %v3184 = vpop.permute.xlu0 %3183
  %3187 = vset.pattern.permute.xlu0 0
  %3188 = vperm.xlu0 %3187, %v3174
  %v3189 = vpop.permute.xlu0 %3188
  %3192 = vset.pattern.permute.xlu0 0
  %3193 = vperm.xlu0 %3192, %v3175
  %v3194 = vpop.permute.xlu0 %3193
  %v3196 = vmul.f32 %v3168, %v3179
  %v3197 = vmul.f32 %v3169, %v3184
  %v3198 = vmul.f32 %v3170, %v3189
  %v3199 = vmul.f32 %v3171, %v3194
  %v3200 = vld [vmem:[%s458] sm:$0xff]
  %v3201 = vld [vmem:[%s458 + $0x8] sm:$0xff]
  %v3202 = vld [vmem:[%s458 + $0x10] sm:$0xff]
  %v3203 = vld [vmem:[%s458 + $0x18] sm:$0xff]
  %v3204 = vld [vmem:[%s2077] sm:$0xff]
  %v3205 = vld [vmem:[%s2077 + $0x8] sm:$0xff]
  %v3206 = vld [vmem:[%s2077 + $0x10] sm:$0xff]
  %v3207 = vld [vmem:[%s2077 + $0x18] sm:$0xff]
  %3209 = vset.pattern.permute.xlu0 0
  %3210 = vperm.xlu0 %3209, %v3204
  %v3211 = vpop.permute.xlu0 %3210
  %3214 = vset.pattern.permute.xlu0 0
  %3215 = vperm.xlu0 %3214, %v3205
  %v3216 = vpop.permute.xlu0 %3215
  %3219 = vset.pattern.permute.xlu0 0
  %3220 = vperm.xlu0 %3219, %v3206
  %v3221 = vpop.permute.xlu0 %3220
  %3224 = vset.pattern.permute.xlu0 0
  %3225 = vperm.xlu0 %3224, %v3207
  %v3226 = vpop.permute.xlu0 %3225
  %v3228 = vmul.f32 %v3200, %v3211
  %v3229 = vmul.f32 %v3201, %v3216
  %v3230 = vmul.f32 %v3202, %v3221
  %v3231 = vmul.f32 %v3203, %v3226
  %v3232 = vld [vmem:[%s745] sm:$0xff]
  %v3233 = vld [vmem:[%s745 + $0x8] sm:$0xff]
  %v3234 = vld [vmem:[%s745 + $0x10] sm:$0xff]
  %v3235 = vld [vmem:[%s745 + $0x18] sm:$0xff]
  %v3236 = vld [vmem:[%s2110] sm:$0xff]
  %v3237 = vld [vmem:[%s2110 + $0x8] sm:$0xff]
  %v3238 = vld [vmem:[%s2110 + $0x10] sm:$0xff]
  %v3239 = vld [vmem:[%s2110 + $0x18] sm:$0xff]
  %3241 = vset.pattern.permute.xlu0 0
  %3242 = vperm.xlu0 %3241, %v3236
  %v3243 = vpop.permute.xlu0 %3242
  %3246 = vset.pattern.permute.xlu0 0
  %3247 = vperm.xlu0 %3246, %v3237
  %v3248 = vpop.permute.xlu0 %3247
  %3251 = vset.pattern.permute.xlu0 0
  %3252 = vperm.xlu0 %3251, %v3238
  %v3253 = vpop.permute.xlu0 %3252
  %3256 = vset.pattern.permute.xlu0 0
  %3257 = vperm.xlu0 %3256, %v3239
  %v3258 = vpop.permute.xlu0 %3257
  %v3260 = vmul.f32 %v3232, %v3243
  %v3261 = vmul.f32 %v3233, %v3248
  %v3262 = vmul.f32 %v3234, %v3253
  %v3263 = vmul.f32 %v3235, %v3258
  %v3264 = vadd.f32 %v3196, %v3260
  %v3265 = vadd.f32 %v3197, %v3261
  %v3266 = vadd.f32 %v3198, %v3262
  %v3267 = vadd.f32 %v3199, %v3263
  %v3268 = vld [vmem:[%s1032] sm:$0xff]
  %v3269 = vld [vmem:[%s1032 + $0x8] sm:$0xff]
  %v3270 = vld [vmem:[%s1032 + $0x10] sm:$0xff]
  %v3271 = vld [vmem:[%s1032 + $0x18] sm:$0xff]
  %v3272 = vld [vmem:[%s2147] sm:$0xff]
  %v3273 = vld [vmem:[%s2147 + $0x8] sm:$0xff]
  %v3274 = vld [vmem:[%s2147 + $0x10] sm:$0xff]
  %v3275 = vld [vmem:[%s2147 + $0x18] sm:$0xff]
  %3277 = vset.pattern.permute.xlu0 0
  %3278 = vperm.xlu0 %3277, %v3272
  %v3279 = vpop.permute.xlu0 %3278
  %3282 = vset.pattern.permute.xlu0 0
  %3283 = vperm.xlu0 %3282, %v3273
  %v3284 = vpop.permute.xlu0 %3283
  %3287 = vset.pattern.permute.xlu0 0
  %3288 = vperm.xlu0 %3287, %v3274
  %v3289 = vpop.permute.xlu0 %3288
  %3292 = vset.pattern.permute.xlu0 0
  %3293 = vperm.xlu0 %3292, %v3275
  %v3294 = vpop.permute.xlu0 %3293
  %v3296 = vmul.f32 %v3268, %v3279
  %v3297 = vmul.f32 %v3269, %v3284
  %v3298 = vmul.f32 %v3270, %v3289
  %v3299 = vmul.f32 %v3271, %v3294
  %v3300 = vadd.f32 %v3228, %v3296
  %v3301 = vadd.f32 %v3229, %v3297
  %v3302 = vadd.f32 %v3230, %v3298
  %v3303 = vadd.f32 %v3231, %v3299
  %v3304 = vld [vmem:[%s1319] sm:$0xff]
  %v3305 = vld [vmem:[%s1319 + $0x8] sm:$0xff]
  %v3306 = vld [vmem:[%s1319 + $0x10] sm:$0xff]
  %v3307 = vld [vmem:[%s1319 + $0x18] sm:$0xff]
  %v3308 = vld [vmem:[%s2184] sm:$0xff]
  %v3309 = vld [vmem:[%s2184 + $0x8] sm:$0xff]
  %v3310 = vld [vmem:[%s2184 + $0x10] sm:$0xff]
  %v3311 = vld [vmem:[%s2184 + $0x18] sm:$0xff]
  %3313 = vset.pattern.permute.xlu0 0
  %3314 = vperm.xlu0 %3313, %v3308
  %v3315 = vpop.permute.xlu0 %3314
  %3318 = vset.pattern.permute.xlu0 0
  %3319 = vperm.xlu0 %3318, %v3309
  %v3320 = vpop.permute.xlu0 %3319
  %3323 = vset.pattern.permute.xlu0 0
  %3324 = vperm.xlu0 %3323, %v3310
  %v3325 = vpop.permute.xlu0 %3324
  %3328 = vset.pattern.permute.xlu0 0
  %3329 = vperm.xlu0 %3328, %v3311
  %v3330 = vpop.permute.xlu0 %3329
  %v3332 = vmul.f32 %v3304, %v3315
  %v3333 = vmul.f32 %v3305, %v3320
  %v3334 = vmul.f32 %v3306, %v3325
  %v3335 = vmul.f32 %v3307, %v3330
  %v3336 = vadd.f32 %v3264, %v3332
  %v3337 = vadd.f32 %v3265, %v3333
  %v3338 = vadd.f32 %v3266, %v3334
  %v3339 = vadd.f32 %v3267, %v3335
  %v3340 = vld [vmem:[%s1606] sm:$0xff]
  %v3341 = vld [vmem:[%s1606 + $0x8] sm:$0xff]
  %v3342 = vld [vmem:[%s1606 + $0x10] sm:$0xff]
  %v3343 = vld [vmem:[%s1606 + $0x18] sm:$0xff]
  %v3344 = vld [vmem:[%s2221] sm:$0xff]
  %v3345 = vld [vmem:[%s2221 + $0x8] sm:$0xff]
  %v3346 = vld [vmem:[%s2221 + $0x10] sm:$0xff]
  %v3347 = vld [vmem:[%s2221 + $0x18] sm:$0xff]
  %3349 = vset.pattern.permute.xlu0 0
  %3350 = vperm.xlu0 %3349, %v3344
  %v3351 = vpop.permute.xlu0 %3350
  %3354 = vset.pattern.permute.xlu0 0
  %3355 = vperm.xlu0 %3354, %v3345
  %v3356 = vpop.permute.xlu0 %3355
  %3359 = vset.pattern.permute.xlu0 0
  %3360 = vperm.xlu0 %3359, %v3346
  %v3361 = vpop.permute.xlu0 %3360
  %3364 = vset.pattern.permute.xlu0 0
  %3365 = vperm.xlu0 %3364, %v3347
  %v3366 = vpop.permute.xlu0 %3365
  %v3368 = vmul.f32 %v3340, %v3351
  %v3369 = vmul.f32 %v3341, %v3356
  %v3370 = vmul.f32 %v3342, %v3361
  %v3371 = vmul.f32 %v3343, %v3366
  %v3372 = vadd.f32 %v3300, %v3368
  %v3373 = vadd.f32 %v3301, %v3369
  %v3374 = vadd.f32 %v3302, %v3370
  %v3375 = vadd.f32 %v3303, %v3371
  %v3376 = vld [vmem:[%s1893] sm:$0xff]
  %v3377 = vld [vmem:[%s1893 + $0x8] sm:$0xff]
  %v3378 = vld [vmem:[%s1893 + $0x10] sm:$0xff]
  %v3379 = vld [vmem:[%s1893 + $0x18] sm:$0xff]
  %v3380 = vld [vmem:[%s2258] sm:$0xff]
  %v3381 = vld [vmem:[%s2258 + $0x8] sm:$0xff]
  %v3382 = vld [vmem:[%s2258 + $0x10] sm:$0xff]
  %v3383 = vld [vmem:[%s2258 + $0x18] sm:$0xff]
  %3385 = vset.pattern.permute.xlu0 0
  %3386 = vperm.xlu0 %3385, %v3380
  %v3387 = vpop.permute.xlu0 %3386
  %3390 = vset.pattern.permute.xlu0 0
  %3391 = vperm.xlu0 %3390, %v3381
  %v3392 = vpop.permute.xlu0 %3391
  %3395 = vset.pattern.permute.xlu0 0
  %3396 = vperm.xlu0 %3395, %v3382
  %v3397 = vpop.permute.xlu0 %3396
  %3400 = vset.pattern.permute.xlu0 0
  %3401 = vperm.xlu0 %3400, %v3383
  %v3402 = vpop.permute.xlu0 %3401
  %v3404 = vmul.f32 %v3376, %v3387
  %v3405 = vmul.f32 %v3377, %v3392
  %v3406 = vmul.f32 %v3378, %v3397
  %v3407 = vmul.f32 %v3379, %v3402
  %v3408 = vadd.f32 %v3336, %v3404
  %v3409 = vadd.f32 %v3337, %v3405
  %v3410 = vadd.f32 %v3338, %v3406
  %v3411 = vadd.f32 %v3339, %v3407
  %v3412 = vadd.f32 %v3408, %v3372
  %v3413 = vadd.f32 %v3409, %v3373
  %v3414 = vadd.f32 %v3410, %v3374
  %v3415 = vadd.f32 %v3411, %v3375
  %v3416 = vld [vmem:[%s2295] sm:$0xff]
  %v3417 = vld [vmem:[%s2295 + $0x8] sm:$0xff]
  %v3418 = vld [vmem:[%s2295 + $0x10] sm:$0xff]
  %v3419 = vld [vmem:[%s2295 + $0x18] sm:$0xff]
  %3421 = vset.pattern.permute.xlu0 0
  %3422 = vperm.xlu0 %3421, %v3416
  %v3423 = vpop.permute.xlu0 %3422
  %3426 = vset.pattern.permute.xlu0 0
  %3427 = vperm.xlu0 %3426, %v3417
  %v3428 = vpop.permute.xlu0 %3427
  %3431 = vset.pattern.permute.xlu0 0
  %3432 = vperm.xlu0 %3431, %v3418
  %v3433 = vpop.permute.xlu0 %3432
  %3436 = vset.pattern.permute.xlu0 0
  %3437 = vperm.xlu0 %3436, %v3419
  %v3438 = vpop.permute.xlu0 %3437
  %v3440 = vadd.f32 %v3412, %v3423
  %v3441 = vadd.f32 %v3413, %v3428
  %v3442 = vadd.f32 %v3414, %v3433
  %v3443 = vadd.f32 %v3415, %v3438
  %3444 = vst [vmem:[#allocation2 + $0x58] sm:$0xff] %v3440
  %3445 = vst [vmem:[#allocation2 + $0xc8] sm:$0xff] %v3441
  %3446 = vst [vmem:[#allocation2 + $0x138] sm:$0xff] %v3442
  %3447 = vst [vmem:[#allocation2 + $0x1a8] sm:$0xff] %v3443
  %v3448 = vld [vmem:[%s206] sm:$0xff]
  %v3449 = vld [vmem:[%s206 + $0x8] sm:$0xff]
  %v3450 = vld [vmem:[%s206 + $0x10] sm:$0xff]
  %v3451 = vld [vmem:[%s206 + $0x18] sm:$0xff]
  %v3452 = vld [vmem:[%s2044] sm:$0xff]
  %v3453 = vld [vmem:[%s2044 + $0x8] sm:$0xff]
  %v3454 = vld [vmem:[%s2044 + $0x10] sm:$0xff]
  %v3455 = vld [vmem:[%s2044 + $0x18] sm:$0xff]
  %3457 = vset.pattern.permute.xlu0 0
  %3458 = vperm.xlu0 %3457, %v3452
  %v3459 = vpop.permute.xlu0 %3458
  %3462 = vset.pattern.permute.xlu0 0
  %3463 = vperm.xlu0 %3462, %v3453
  %v3464 = vpop.permute.xlu0 %3463
  %3467 = vset.pattern.permute.xlu0 0
  %3468 = vperm.xlu0 %3467, %v3454
  %v3469 = vpop.permute.xlu0 %3468
  %3472 = vset.pattern.permute.xlu0 0
  %3473 = vperm.xlu0 %3472, %v3455
  %v3474 = vpop.permute.xlu0 %3473
  %v3476 = vmul.f32 %v3448, %v3459
  %v3477 = vmul.f32 %v3449, %v3464
  %v3478 = vmul.f32 %v3450, %v3469
  %v3479 = vmul.f32 %v3451, %v3474
  %v3480 = vld [vmem:[%s495] sm:$0xff]
  %v3481 = vld [vmem:[%s495 + $0x8] sm:$0xff]
  %v3482 = vld [vmem:[%s495 + $0x10] sm:$0xff]
  %v3483 = vld [vmem:[%s495 + $0x18] sm:$0xff]
  %v3484 = vld [vmem:[%s2077] sm:$0xff]
  %v3485 = vld [vmem:[%s2077 + $0x8] sm:$0xff]
  %v3486 = vld [vmem:[%s2077 + $0x10] sm:$0xff]
  %v3487 = vld [vmem:[%s2077 + $0x18] sm:$0xff]
  %3489 = vset.pattern.permute.xlu0 0
  %3490 = vperm.xlu0 %3489, %v3484
  %v3491 = vpop.permute.xlu0 %3490
  %3494 = vset.pattern.permute.xlu0 0
  %3495 = vperm.xlu0 %3494, %v3485
  %v3496 = vpop.permute.xlu0 %3495
  %3499 = vset.pattern.permute.xlu0 0
  %3500 = vperm.xlu0 %3499, %v3486
  %v3501 = vpop.permute.xlu0 %3500
  %3504 = vset.pattern.permute.xlu0 0
  %3505 = vperm.xlu0 %3504, %v3487
  %v3506 = vpop.permute.xlu0 %3505
  %v3508 = vmul.f32 %v3480, %v3491
  %v3509 = vmul.f32 %v3481, %v3496
  %v3510 = vmul.f32 %v3482, %v3501
  %v3511 = vmul.f32 %v3483, %v3506
  %v3512 = vld [vmem:[%s782] sm:$0xff]
  %v3513 = vld [vmem:[%s782 + $0x8] sm:$0xff]
  %v3514 = vld [vmem:[%s782 + $0x10] sm:$0xff]
  %v3515 = vld [vmem:[%s782 + $0x18] sm:$0xff]
  %v3516 = vld [vmem:[%s2110] sm:$0xff]
  %v3517 = vld [vmem:[%s2110 + $0x8] sm:$0xff]
  %v3518 = vld [vmem:[%s2110 + $0x10] sm:$0xff]
  %v3519 = vld [vmem:[%s2110 + $0x18] sm:$0xff]
  %3521 = vset.pattern.permute.xlu0 0
  %3522 = vperm.xlu0 %3521, %v3516
  %v3523 = vpop.permute.xlu0 %3522
  %3526 = vset.pattern.permute.xlu0 0
  %3527 = vperm.xlu0 %3526, %v3517
  %v3528 = vpop.permute.xlu0 %3527
  %3531 = vset.pattern.permute.xlu0 0
  %3532 = vperm.xlu0 %3531, %v3518
  %v3533 = vpop.permute.xlu0 %3532
  %3536 = vset.pattern.permute.xlu0 0
  %3537 = vperm.xlu0 %3536, %v3519
  %v3538 = vpop.permute.xlu0 %3537
  %v3540 = vmul.f32 %v3512, %v3523
  %v3541 = vmul.f32 %v3513, %v3528
  %v3542 = vmul.f32 %v3514, %v3533
  %v3543 = vmul.f32 %v3515, %v3538
  %v3544 = vadd.f32 %v3476, %v3540
  %v3545 = vadd.f32 %v3477, %v3541
  %v3546 = vadd.f32 %v3478, %v3542
  %v3547 = vadd.f32 %v3479, %v3543
  %v3548 = vld [vmem:[%s1069] sm:$0xff]
  %v3549 = vld [vmem:[%s1069 + $0x8] sm:$0xff]
  %v3550 = vld [vmem:[%s1069 + $0x10] sm:$0xff]
  %v3551 = vld [vmem:[%s1069 + $0x18] sm:$0xff]
  %v3552 = vld [vmem:[%s2147] sm:$0xff]
  %v3553 = vld [vmem:[%s2147 + $0x8] sm:$0xff]
  %v3554 = vld [vmem:[%s2147 + $0x10] sm:$0xff]
  %v3555 = vld [vmem:[%s2147 + $0x18] sm:$0xff]
  %3557 = vset.pattern.permute.xlu0 0
  %3558 = vperm.xlu0 %3557, %v3552
  %v3559 = vpop.permute.xlu0 %3558
  %3562 = vset.pattern.permute.xlu0 0
  %3563 = vperm.xlu0 %3562, %v3553
  %v3564 = vpop.permute.xlu0 %3563
  %3567 = vset.pattern.permute.xlu0 0
  %3568 = vperm.xlu0 %3567, %v3554
  %v3569 = vpop.permute.xlu0 %3568
  %3572 = vset.pattern.permute.xlu0 0
  %3573 = vperm.xlu0 %3572, %v3555
  %v3574 = vpop.permute.xlu0 %3573
  %v3576 = vmul.f32 %v3548, %v3559
  %v3577 = vmul.f32 %v3549, %v3564
  %v3578 = vmul.f32 %v3550, %v3569
  %v3579 = vmul.f32 %v3551, %v3574
  %v3580 = vadd.f32 %v3508, %v3576
  %v3581 = vadd.f32 %v3509, %v3577
  %v3582 = vadd.f32 %v3510, %v3578
  %v3583 = vadd.f32 %v3511, %v3579
  %v3584 = vld [vmem:[%s1356] sm:$0xff]
  %v3585 = vld [vmem:[%s1356 + $0x8] sm:$0xff]
  %v3586 = vld [vmem:[%s1356 + $0x10] sm:$0xff]
  %v3587 = vld [vmem:[%s1356 + $0x18] sm:$0xff]
  %v3588 = vld [vmem:[%s2184] sm:$0xff]
  %v3589 = vld [vmem:[%s2184 + $0x8] sm:$0xff]
  %v3590 = vld [vmem:[%s2184 + $0x10] sm:$0xff]
  %v3591 = vld [vmem:[%s2184 + $0x18] sm:$0xff]
  %3593 = vset.pattern.permute.xlu0 0
  %3594 = vperm.xlu0 %3593, %v3588
  %v3595 = vpop.permute.xlu0 %3594
  %3598 = vset.pattern.permute.xlu0 0
  %3599 = vperm.xlu0 %3598, %v3589
  %v3600 = vpop.permute.xlu0 %3599
  %3603 = vset.pattern.permute.xlu0 0
  %3604 = vperm.xlu0 %3603, %v3590
  %v3605 = vpop.permute.xlu0 %3604
  %3608 = vset.pattern.permute.xlu0 0
  %3609 = vperm.xlu0 %3608, %v3591
  %v3610 = vpop.permute.xlu0 %3609
  %v3612 = vmul.f32 %v3584, %v3595
  %v3613 = vmul.f32 %v3585, %v3600
  %v3614 = vmul.f32 %v3586, %v3605
  %v3615 = vmul.f32 %v3587, %v3610
  %v3616 = vadd.f32 %v3544, %v3612
  %v3617 = vadd.f32 %v3545, %v3613
  %v3618 = vadd.f32 %v3546, %v3614
  %v3619 = vadd.f32 %v3547, %v3615
  %v3620 = vld [vmem:[%s1643] sm:$0xff]
  %v3621 = vld [vmem:[%s1643 + $0x8] sm:$0xff]
  %v3622 = vld [vmem:[%s1643 + $0x10] sm:$0xff]
  %v3623 = vld [vmem:[%s1643 + $0x18] sm:$0xff]
  %v3624 = vld [vmem:[%s2221] sm:$0xff]
  %v3625 = vld [vmem:[%s2221 + $0x8] sm:$0xff]
  %v3626 = vld [vmem:[%s2221 + $0x10] sm:$0xff]
  %v3627 = vld [vmem:[%s2221 + $0x18] sm:$0xff]
  %3629 = vset.pattern.permute.xlu0 0
  %3630 = vperm.xlu0 %3629, %v3624
  %v3631 = vpop.permute.xlu0 %3630
  %3634 = vset.pattern.permute.xlu0 0
  %3635 = vperm.xlu0 %3634, %v3625
  %v3636 = vpop.permute.xlu0 %3635
  %3639 = vset.pattern.permute.xlu0 0
  %3640 = vperm.xlu0 %3639, %v3626
  %v3641 = vpop.permute.xlu0 %3640
  %3644 = vset.pattern.permute.xlu0 0
  %3645 = vperm.xlu0 %3644, %v3627
  %v3646 = vpop.permute.xlu0 %3645
  %v3648 = vmul.f32 %v3620, %v3631
  %v3649 = vmul.f32 %v3621, %v3636
  %v3650 = vmul.f32 %v3622, %v3641
  %v3651 = vmul.f32 %v3623, %v3646
  %v3652 = vadd.f32 %v3580, %v3648
  %v3653 = vadd.f32 %v3581, %v3649
  %v3654 = vadd.f32 %v3582, %v3650
  %v3655 = vadd.f32 %v3583, %v3651
  %v3656 = vld [vmem:[%s1930] sm:$0xff]
  %v3657 = vld [vmem:[%s1930 + $0x8] sm:$0xff]
  %v3658 = vld [vmem:[%s1930 + $0x10] sm:$0xff]
  %v3659 = vld [vmem:[%s1930 + $0x18] sm:$0xff]
  %v3660 = vld [vmem:[%s2258] sm:$0xff]
  %v3661 = vld [vmem:[%s2258 + $0x8] sm:$0xff]
  %v3662 = vld [vmem:[%s2258 + $0x10] sm:$0xff]
  %v3663 = vld [vmem:[%s2258 + $0x18] sm:$0xff]
  %3665 = vset.pattern.permute.xlu0 0
  %3666 = vperm.xlu0 %3665, %v3660
  %v3667 = vpop.permute.xlu0 %3666
  %3670 = vset.pattern.permute.xlu0 0
  %3671 = vperm.xlu0 %3670, %v3661
  %v3672 = vpop.permute.xlu0 %3671
  %3675 = vset.pattern.permute.xlu0 0
  %3676 = vperm.xlu0 %3675, %v3662
  %v3677 = vpop.permute.xlu0 %3676
  %3680 = vset.pattern.permute.xlu0 0
  %3681 = vperm.xlu0 %3680, %v3663
  %v3682 = vpop.permute.xlu0 %3681
  %v3684 = vmul.f32 %v3656, %v3667
  %v3685 = vmul.f32 %v3657, %v3672
  %v3686 = vmul.f32 %v3658, %v3677
  %v3687 = vmul.f32 %v3659, %v3682
  %v3688 = vadd.f32 %v3616, %v3684
  %v3689 = vadd.f32 %v3617, %v3685
  %v3690 = vadd.f32 %v3618, %v3686
  %v3691 = vadd.f32 %v3619, %v3687
  %v3692 = vadd.f32 %v3688, %v3652
  %v3693 = vadd.f32 %v3689, %v3653
  %v3694 = vadd.f32 %v3690, %v3654
  %v3695 = vadd.f32 %v3691, %v3655
  %v3696 = vld [vmem:[%s2295] sm:$0xff]
  %v3697 = vld [vmem:[%s2295 + $0x8] sm:$0xff]
  %v3698 = vld [vmem:[%s2295 + $0x10] sm:$0xff]
  %v3699 = vld [vmem:[%s2295 + $0x18] sm:$0xff]
  %3701 = vset.pattern.permute.xlu0 0
  %3702 = vperm.xlu0 %3701, %v3696
  %v3703 = vpop.permute.xlu0 %3702
  %3706 = vset.pattern.permute.xlu0 0
  %3707 = vperm.xlu0 %3706, %v3697
  %v3708 = vpop.permute.xlu0 %3707
  %3711 = vset.pattern.permute.xlu0 0
  %3712 = vperm.xlu0 %3711, %v3698
  %v3713 = vpop.permute.xlu0 %3712
  %3716 = vset.pattern.permute.xlu0 0
  %3717 = vperm.xlu0 %3716, %v3699
  %v3718 = vpop.permute.xlu0 %3717
  %v3720 = vadd.f32 %v3692, %v3703
  %v3721 = vadd.f32 %v3693, %v3708
  %v3722 = vadd.f32 %v3694, %v3713
  %v3723 = vadd.f32 %v3695, %v3718
  %3724 = vst [vmem:[#allocation2 + $0x60] sm:$0xff] %v3720
  %3725 = vst [vmem:[#allocation2 + $0xd0] sm:$0xff] %v3721
  %3726 = vst [vmem:[#allocation2 + $0x140] sm:$0xff] %v3722
  %3727 = vst [vmem:[#allocation2 + $0x1b0] sm:$0xff] %v3723
  %v3728 = vld [vmem:[%s244] sm:$0xff]
  %v3729 = vld [vmem:[%s244 + $0x8] sm:$0xff]
  %v3730 = vld [vmem:[%s244 + $0x10] sm:$0xff]
  %v3731 = vld [vmem:[%s244 + $0x18] sm:$0xff]
  %v3732 = vld [vmem:[%s2044] sm:$0xff]
  %v3733 = vld [vmem:[%s2044 + $0x8] sm:$0xff]
  %v3734 = vld [vmem:[%s2044 + $0x10] sm:$0xff]
  %v3735 = vld [vmem:[%s2044 + $0x18] sm:$0xff]
  %3737 = vset.pattern.permute.xlu0 0
  %3738 = vperm.xlu0 %3737, %v3732
  %v3739 = vpop.permute.xlu0 %3738
  %3742 = vset.pattern.permute.xlu0 0
  %3743 = vperm.xlu0 %3742, %v3733
  %v3744 = vpop.permute.xlu0 %3743
  %3747 = vset.pattern.permute.xlu0 0
  %3748 = vperm.xlu0 %3747, %v3734
  %v3749 = vpop.permute.xlu0 %3748
  %3752 = vset.pattern.permute.xlu0 0
  %3753 = vperm.xlu0 %3752, %v3735
  %v3754 = vpop.permute.xlu0 %3753
  %v3756 = vmul.f32 %v3728, %v3739
  %v3757 = vmul.f32 %v3729, %v3744
  %v3758 = vmul.f32 %v3730, %v3749
  %v3759 = vmul.f32 %v3731, %v3754
  %v3760 = vld [vmem:[%s532] sm:$0xff]
  %v3761 = vld [vmem:[%s532 + $0x8] sm:$0xff]
  %v3762 = vld [vmem:[%s532 + $0x10] sm:$0xff]
  %v3763 = vld [vmem:[%s532 + $0x18] sm:$0xff]
  %v3764 = vld [vmem:[%s2077] sm:$0xff]
  %v3765 = vld [vmem:[%s2077 + $0x8] sm:$0xff]
  %v3766 = vld [vmem:[%s2077 + $0x10] sm:$0xff]
  %v3767 = vld [vmem:[%s2077 + $0x18] sm:$0xff]
  %3769 = vset.pattern.permute.xlu0 0
  %3770 = vperm.xlu0 %3769, %v3764
  %v3771 = vpop.permute.xlu0 %3770
  %3774 = vset.pattern.permute.xlu0 0
  %3775 = vperm.xlu0 %3774, %v3765
  %v3776 = vpop.permute.xlu0 %3775
  %3779 = vset.pattern.permute.xlu0 0
  %3780 = vperm.xlu0 %3779, %v3766
  %v3781 = vpop.permute.xlu0 %3780
  %3784 = vset.pattern.permute.xlu0 0
  %3785 = vperm.xlu0 %3784, %v3767
  %v3786 = vpop.permute.xlu0 %3785
  %v3788 = vmul.f32 %v3760, %v3771
  %v3789 = vmul.f32 %v3761, %v3776
  %v3790 = vmul.f32 %v3762, %v3781
  %v3791 = vmul.f32 %v3763, %v3786
  %v3792 = vld [vmem:[%s819] sm:$0xff]
  %v3793 = vld [vmem:[%s819 + $0x8] sm:$0xff]
  %v3794 = vld [vmem:[%s819 + $0x10] sm:$0xff]
  %v3795 = vld [vmem:[%s819 + $0x18] sm:$0xff]
  %v3796 = vld [vmem:[%s2110] sm:$0xff]
  %v3797 = vld [vmem:[%s2110 + $0x8] sm:$0xff]
  %v3798 = vld [vmem:[%s2110 + $0x10] sm:$0xff]
  %v3799 = vld [vmem:[%s2110 + $0x18] sm:$0xff]
  %3801 = vset.pattern.permute.xlu0 0
  %3802 = vperm.xlu0 %3801, %v3796
  %v3803 = vpop.permute.xlu0 %3802
  %3806 = vset.pattern.permute.xlu0 0
  %3807 = vperm.xlu0 %3806, %v3797
  %v3808 = vpop.permute.xlu0 %3807
  %3811 = vset.pattern.permute.xlu0 0
  %3812 = vperm.xlu0 %3811, %v3798
  %v3813 = vpop.permute.xlu0 %3812
  %3816 = vset.pattern.permute.xlu0 0
  %3817 = vperm.xlu0 %3816, %v3799
  %v3818 = vpop.permute.xlu0 %3817
  %v3820 = vmul.f32 %v3792, %v3803
  %v3821 = vmul.f32 %v3793, %v3808
  %v3822 = vmul.f32 %v3794, %v3813
  %v3823 = vmul.f32 %v3795, %v3818
  %v3824 = vadd.f32 %v3756, %v3820
  %v3825 = vadd.f32 %v3757, %v3821
  %v3826 = vadd.f32 %v3758, %v3822
  %v3827 = vadd.f32 %v3759, %v3823
  %v3828 = vld [vmem:[%s1106] sm:$0xff]
  %v3829 = vld [vmem:[%s1106 + $0x8] sm:$0xff]
  %v3830 = vld [vmem:[%s1106 + $0x10] sm:$0xff]
  %v3831 = vld [vmem:[%s1106 + $0x18] sm:$0xff]
  %v3832 = vld [vmem:[%s2147] sm:$0xff]
  %v3833 = vld [vmem:[%s2147 + $0x8] sm:$0xff]
  %v3834 = vld [vmem:[%s2147 + $0x10] sm:$0xff]
  %v3835 = vld [vmem:[%s2147 + $0x18] sm:$0xff]
  %3837 = vset.pattern.permute.xlu0 0
  %3838 = vperm.xlu0 %3837, %v3832
  %v3839 = vpop.permute.xlu0 %3838
  %3842 = vset.pattern.permute.xlu0 0
  %3843 = vperm.xlu0 %3842, %v3833
  %v3844 = vpop.permute.xlu0 %3843
  %3847 = vset.pattern.permute.xlu0 0
  %3848 = vperm.xlu0 %3847, %v3834
  %v3849 = vpop.permute.xlu0 %3848
  %3852 = vset.pattern.permute.xlu0 0
  %3853 = vperm.xlu0 %3852, %v3835
  %v3854 = vpop.permute.xlu0 %3853
  %v3856 = vmul.f32 %v3828, %v3839
  %v3857 = vmul.f32 %v3829, %v3844
  %v3858 = vmul.f32 %v3830, %v3849
  %v3859 = vmul.f32 %v3831, %v3854
  %v3860 = vadd.f32 %v3788, %v3856
  %v3861 = vadd.f32 %v3789, %v3857
  %v3862 = vadd.f32 %v3790, %v3858
  %v3863 = vadd.f32 %v3791, %v3859
  %v3864 = vld [vmem:[%s1393] sm:$0xff]
  %v3865 = vld [vmem:[%s1393 + $0x8] sm:$0xff]
  %v3866 = vld [vmem:[%s1393 + $0x10] sm:$0xff]
  %v3867 = vld [vmem:[%s1393 + $0x18] sm:$0xff]
  %v3868 = vld [vmem:[%s2184] sm:$0xff]
  %v3869 = vld [vmem:[%s2184 + $0x8] sm:$0xff]
  %v3870 = vld [vmem:[%s2184 + $0x10] sm:$0xff]
  %v3871 = vld [vmem:[%s2184 + $0x18] sm:$0xff]
  %3873 = vset.pattern.permute.xlu0 0
  %3874 = vperm.xlu0 %3873, %v3868
  %v3875 = vpop.permute.xlu0 %3874
  %3878 = vset.pattern.permute.xlu0 0
  %3879 = vperm.xlu0 %3878, %v3869
  %v3880 = vpop.permute.xlu0 %3879
  %3883 = vset.pattern.permute.xlu0 0
  %3884 = vperm.xlu0 %3883, %v3870
  %v3885 = vpop.permute.xlu0 %3884
  %3888 = vset.pattern.permute.xlu0 0
  %3889 = vperm.xlu0 %3888, %v3871
  %v3890 = vpop.permute.xlu0 %3889
  %v3892 = vmul.f32 %v3864, %v3875
  %v3893 = vmul.f32 %v3865, %v3880
  %v3894 = vmul.f32 %v3866, %v3885
  %v3895 = vmul.f32 %v3867, %v3890
  %v3896 = vadd.f32 %v3824, %v3892
  %v3897 = vadd.f32 %v3825, %v3893
  %v3898 = vadd.f32 %v3826, %v3894
  %v3899 = vadd.f32 %v3827, %v3895
  %v3900 = vld [vmem:[%s1680] sm:$0xff]
  %v3901 = vld [vmem:[%s1680 + $0x8] sm:$0xff]
  %v3902 = vld [vmem:[%s1680 + $0x10] sm:$0xff]
  %v3903 = vld [vmem:[%s1680 + $0x18] sm:$0xff]
  %v3904 = vld [vmem:[%s2221] sm:$0xff]
  %v3905 = vld [vmem:[%s2221 + $0x8] sm:$0xff]
  %v3906 = vld [vmem:[%s2221 + $0x10] sm:$0xff]
  %v3907 = vld [vmem:[%s2221 + $0x18] sm:$0xff]
  %3909 = vset.pattern.permute.xlu0 0
  %3910 = vperm.xlu0 %3909, %v3904
  %v3911 = vpop.permute.xlu0 %3910
  %3914 = vset.pattern.permute.xlu0 0
  %3915 = vperm.xlu0 %3914, %v3905
  %v3916 = vpop.permute.xlu0 %3915
  %3919 = vset.pattern.permute.xlu0 0
  %3920 = vperm.xlu0 %3919, %v3906
  %v3921 = vpop.permute.xlu0 %3920
  %3924 = vset.pattern.permute.xlu0 0
  %3925 = vperm.xlu0 %3924, %v3907
  %v3926 = vpop.permute.xlu0 %3925
  %v3928 = vmul.f32 %v3900, %v3911
  %v3929 = vmul.f32 %v3901, %v3916
  %v3930 = vmul.f32 %v3902, %v3921
  %v3931 = vmul.f32 %v3903, %v3926
  %v3932 = vadd.f32 %v3860, %v3928
  %v3933 = vadd.f32 %v3861, %v3929
  %v3934 = vadd.f32 %v3862, %v3930
  %v3935 = vadd.f32 %v3863, %v3931
  %v3936 = vld [vmem:[%s1967] sm:$0xff]
  %v3937 = vld [vmem:[%s1967 + $0x8] sm:$0xff]
  %v3938 = vld [vmem:[%s1967 + $0x10] sm:$0xff]
  %v3939 = vld [vmem:[%s1967 + $0x18] sm:$0xff]
  %v3940 = vld [vmem:[%s2258] sm:$0xff]
  %v3941 = vld [vmem:[%s2258 + $0x8] sm:$0xff]
  %v3942 = vld [vmem:[%s2258 + $0x10] sm:$0xff]
  %v3943 = vld [vmem:[%s2258 + $0x18] sm:$0xff]
  %3945 = vset.pattern.permute.xlu0 0
  %3946 = vperm.xlu0 %3945, %v3940
  %v3947 = vpop.permute.xlu0 %3946
  %3950 = vset.pattern.permute.xlu0 0
  %3951 = vperm.xlu0 %3950, %v3941
  %v3952 = vpop.permute.xlu0 %3951
  %3955 = vset.pattern.permute.xlu0 0
  %3956 = vperm.xlu0 %3955, %v3942
  %v3957 = vpop.permute.xlu0 %3956
  %3960 = vset.pattern.permute.xlu0 0
  %3961 = vperm.xlu0 %3960, %v3943
  %v3962 = vpop.permute.xlu0 %3961
  %v3964 = vmul.f32 %v3936, %v3947
  %v3965 = vmul.f32 %v3937, %v3952
  %v3966 = vmul.f32 %v3938, %v3957
  %v3967 = vmul.f32 %v3939, %v3962
  %v3968 = vadd.f32 %v3896, %v3964
  %v3969 = vadd.f32 %v3897, %v3965
  %v3970 = vadd.f32 %v3898, %v3966
  %v3971 = vadd.f32 %v3899, %v3967
  %v3972 = vadd.f32 %v3968, %v3932
  %v3973 = vadd.f32 %v3969, %v3933
  %v3974 = vadd.f32 %v3970, %v3934
  %v3975 = vadd.f32 %v3971, %v3935
  %v3976 = vld [vmem:[%s2295] sm:$0xff]
  %v3977 = vld [vmem:[%s2295 + $0x8] sm:$0xff]
  %v3978 = vld [vmem:[%s2295 + $0x10] sm:$0xff]
  %v3979 = vld [vmem:[%s2295 + $0x18] sm:$0xff]
  %3981 = vset.pattern.permute.xlu0 0
  %3982 = vperm.xlu0 %3981, %v3976
  %v3983 = vpop.permute.xlu0 %3982
  %3986 = vset.pattern.permute.xlu0 0
  %3987 = vperm.xlu0 %3986, %v3977
  %v3988 = vpop.permute.xlu0 %3987
  %3991 = vset.pattern.permute.xlu0 0
  %3992 = vperm.xlu0 %3991, %v3978
  %v3993 = vpop.permute.xlu0 %3992
  %3996 = vset.pattern.permute.xlu0 0
  %3997 = vperm.xlu0 %3996, %v3979
  %v3998 = vpop.permute.xlu0 %3997
  %v4000 = vadd.f32 %v3972, %v3983
  %v4001 = vadd.f32 %v3973, %v3988
  %v4002 = vadd.f32 %v3974, %v3993
  %v4003 = vadd.f32 %v3975, %v3998
  %4004 = vst [vmem:[#allocation2 + $0x68] sm:$0xff] %v4000
  %4005 = vst [vmem:[#allocation2 + $0xd8] sm:$0xff] %v4001
  %4006 = vst [vmem:[#allocation2 + $0x148] sm:$0xff] %v4002
  %4007 = vst [vmem:[#allocation2 + $0x1b8] sm:$0xff] %v4003
  %v4008 = vld [vmem:[%s3] sm:$0xff]
  %v4009 = vld [vmem:[#allocation2] sm:$0xff]
  %v4010 = vld [vmem:[#allocation2 + $0x8] sm:$0xff]
  %v4011 = vld [vmem:[#allocation2 + $0x10] sm:$0xff]
  %v4012 = vld [vmem:[#allocation2 + $0x18] sm:$0xff]
  %v4013 = vld [vmem:[#allocation2 + $0x20] sm:$0xff]
  %v4014 = vld [vmem:[#allocation2 + $0x28] sm:$0xff]
  %v4015 = vld [vmem:[#allocation2 + $0x30] sm:$0xff]
  %v4016 = vld [vmem:[#allocation2 + $0x38] sm:$0xff]
  %v4017 = vld [vmem:[#allocation2 + $0x40] sm:$0xff]
  %v4018 = vld [vmem:[#allocation2 + $0x48] sm:$0xff]
  %v4019 = vld [vmem:[#allocation2 + $0x50] sm:$0xff]
  %v4020 = vld [vmem:[#allocation2 + $0x58] sm:$0xff]
  %v4021 = vld [vmem:[#allocation2 + $0x60] sm:$0xff]
  %v4022 = vld [vmem:[#allocation2 + $0x68] sm:$0xff]
  %v4023 = vld [vmem:[#allocation2 + $0x70] sm:$0xff]
  %v4024 = vld [vmem:[#allocation2 + $0x78] sm:$0xff]
  %v4025 = vld [vmem:[#allocation2 + $0x80] sm:$0xff]
  %v4026 = vld [vmem:[#allocation2 + $0x88] sm:$0xff]
  %v4027 = vld [vmem:[#allocation2 + $0x90] sm:$0xff]
  %v4028 = vld [vmem:[#allocation2 + $0x98] sm:$0xff]
  %v4029 = vld [vmem:[#allocation2 + $0xa0] sm:$0xff]
  %v4030 = vld [vmem:[#allocation2 + $0xa8] sm:$0xff]
  %v4031 = vld [vmem:[#allocation2 + $0xb0] sm:$0xff]
  %v4032 = vld [vmem:[#allocation2 + $0xb8] sm:$0xff]
  %v4033 = vld [vmem:[#allocation2 + $0xc0] sm:$0xff]
  %v4034 = vld [vmem:[#allocation2 + $0xc8] sm:$0xff]
  %v4035 = vld [vmem:[#allocation2 + $0xd0] sm:$0xff]
  %v4036 = vld [vmem:[#allocation2 + $0xd8] sm:$0xff]
  %v4037 = vld [vmem:[#allocation2 + $0xe0] sm:$0xff]
  %v4038 = vld [vmem:[#allocation2 + $0xe8] sm:$0xff]
  %v4039 = vld [vmem:[#allocation2 + $0xf0] sm:$0xff]
  %v4040 = vld [vmem:[#allocation2 + $0xf8] sm:$0xff]
  %v4041 = vld [vmem:[#allocation2 + $0x100] sm:$0xff]
  %v4042 = vld [vmem:[#allocation2 + $0x108] sm:$0xff]
  %v4043 = vld [vmem:[#allocation2 + $0x110] sm:$0xff]
  %v4044 = vld [vmem:[#allocation2 + $0x118] sm:$0xff]
  %v4045 = vld [vmem:[#allocation2 + $0x120] sm:$0xff]
  %v4046 = vld [vmem:[#allocation2 + $0x128] sm:$0xff]
  %v4047 = vld [vmem:[#allocation2 + $0x130] sm:$0xff]
  %v4048 = vld [vmem:[#allocation2 + $0x138] sm:$0xff]
  %v4049 = vld [vmem:[#allocation2 + $0x140] sm:$0xff]
  %v4050 = vld [vmem:[#allocation2 + $0x148] sm:$0xff]
  %v4051 = vld [vmem:[#allocation2 + $0x150] sm:$0xff]
  %v4052 = vld [vmem:[#allocation2 + $0x158] sm:$0xff]
  %v4053 = vld [vmem:[#allocation2 + $0x160] sm:$0xff]
  %v4054 = vld [vmem:[#allocation2 + $0x168] sm:$0xff]
  %v4055 = vld [vmem:[#allocation2 + $0x170] sm:$0xff]
  %v4056 = vld [vmem:[#allocation2 + $0x178] sm:$0xff]
  %v4057 = vld [vmem:[#allocation2 + $0x180] sm:$0xff]
  %v4058 = vld [vmem:[#allocation2 + $0x188] sm:$0xff]
  %v4059 = vld [vmem:[#allocation2 + $0x190] sm:$0xff]
  %v4060 = vld [vmem:[#allocation2 + $0x198] sm:$0xff]
  %v4061 = vld [vmem:[#allocation2 + $0x1a0] sm:$0xff]
  %v4062 = vld [vmem:[#allocation2 + $0x1a8] sm:$0xff]
  %v4063 = vld [vmem:[#allocation2 + $0x1b0] sm:$0xff]
  %v4064 = vld [vmem:[#allocation2 + $0x1b8] sm:$0xff]
  %v4065 = vld [vmem:[%s4] sm:$0xff]
  %4067 = vset.pattern.permute.xlu0 0
  %4068 = vperm.xlu0 %4067, %v4065
  %v4069 = vpop.permute.xlu0 %4068
  %vm4071 = vcmask 261120
  %v4073 = vsel %vm4071, %v4008, 0
  %4075 = vmatprep.subr.mxu0 %v4010
  %4076 = vmatpush1.msra.mxu0 %v4009
  %4077 = vmatprep.subr.mxu0 %v4024
  %4078 = vmatpush1.msra.mxu0 %v4023
  %4079 = vmatprep.subr.mxu0 %v4038
  %4080 = vmatpush1.msra.mxu0 %v4037
  %4081 = vmatprep.subr.mxu0 %v4052
  %4082 = vmatpush1.msra.mxu0 %v4051
  %4083 = vmatprep.subr.mxu0 0.0
  %4084 = vmatpush1.msra.mxu0 0.0
  %4085 = vmatprep.subr.mxu0 0.0
  %4086 = vmatpush1.msra.mxu0 0.0
  %4087 = vmatprep.subr.mxu0 0.0
  %4088 = vmatpush1.msra.mxu0 0.0
  %4089 = vmatprep.subr.mxu0 0.0
  %4090 = vmatpush1.msra.mxu0 0.0
  %4091 = vmatprep.subr.mxu0 0.0
  %4092 = vmatpush1.msra.mxu0 0.0
  %4093 = vmatprep.subr.mxu0 0.0
  %4094 = vmatpush1.msra.mxu0 0.0
  %4095 = vmatprep.subr.mxu0 0.0
  %4096 = vmatpush1.msra.mxu0 0.0
  %4097 = vmatprep.subr.mxu0 0.0
  %4098 = vmatpush1.msra.mxu0 0.0
  %4099 = vmatprep.subr.mxu0 0.0
  %4100 = vmatpush1.msra.mxu0 0.0
  %4101 = vmatprep.subr.mxu0 0.0
  %4102 = vmatpush1.msra.mxu0 0.0
  %4103 = vmatprep.subr.mxu0 0.0
  %4104 = vmatpush1.msra.mxu0 0.0
  %4105 = vmatprep.subr.mxu0 0.0
  %4106 = vmatpush1.msra.mxu0 0.0
  %4107 = vmatprep.subr.mxu0 0.0
  %4108 = vmatpush1.msra.mxu0 0.0
  %4109 = vmatprep.subr.mxu0 0.0
  %4110 = vmatpush1.msra.mxu0 0.0
  %4111 = vmatprep.subr.mxu0 0.0
  %4112 = vmatpush1.msra.mxu0 0.0
  %4113 = vmatprep.subr.mxu0 0.0
  %4114 = vmatpush1.msra.mxu0 0.0
  %4115 = vmatprep.subr.mxu0 0.0
  %4116 = vmatpush1.msra.mxu0 0.0
  %4117 = vmatprep.subr.mxu0 0.0
  %4118 = vmatpush1.msra.mxu0 0.0
  %4119 = vmatprep.subr.mxu0 0.0
  %4120 = vmatpush1.msra.mxu0 0.0
  %4121 = vmatprep.subr.mxu0 0.0
  %4122 = vmatpush1.msra.mxu0 0.0
  %4123 = vmatprep.subr.mxu0 0.0
  %4124 = vmatpush1.msra.mxu0 0.0
  %4125 = vmatprep.subr.mxu0 0.0
  %4126 = vmatpush1.msra.mxu0 0.0
  %4127 = vmatprep.subr.mxu0 0.0
  %4128 = vmatpush1.msra.mxu0 0.0
  %4129 = vmatprep.subr.mxu0 0.0
  %4130 = vmatpush1.msra.mxu0 0.0
  %4131 = vmatprep.subr.mxu0 0.0
  %4132 = vmatpush1.msra.mxu0 0.0
  %4133 = vmatprep.subr.mxu0 0.0
  %4134 = vmatpush1.msra.mxu0 0.0
  %4135 = vmatprep.subr.mxu0 0.0
  %4136 = vmatpush1.msra.mxu0 0.0
  %4137 = vmatprep.subr.mxu0 0.0
  %4138 = vmatpush1.msra.mxu0 0.0
  %4139 = vmatprep.mubr.f32.mxu0 0.0
  %4140 = vmatmul.mubr.f32.gmra.mrb[0].mxu0 %v4073
  %v4141 = vpop.f32.mrb[0].mxu0
  %v4142 = vadd.f32 %v4069, %v4141
  %v4143 = vpop.f32.mrb[0].mxu0
  %v4144 = vadd.f32 %v4069, %v4143
  %4145 = vdwg.mxu0
  %4146 = vmatprep.subr.mxu0 %v4012
  %4147 = vmatpush1.msra.mxu0 %v4011
  %4148 = vmatprep.subr.mxu0 %v4026
  %4149 = vmatpush1.msra.mxu0 %v4025
  %4150 = vmatprep.subr.mxu0 %v4040
  %4151 = vmatpush1.msra.mxu0 %v4039
  %4152 = vmatprep.subr.mxu0 %v4054
  %4153 = vmatpush1.msra.mxu0 %v4053
  %4154 = vmatprep.subr.mxu0 0.0
  %4155 = vmatpush1.msra.mxu0 0.0
  %4156 = vmatprep.subr.mxu0 0.0
  %4157 = vmatpush1.msra.mxu0 0.0
  %4158 = vmatprep.subr.mxu0 0.0
  %4159 = vmatpush1.msra.mxu0 0.0
  %4160 = vmatprep.subr.mxu0 0.0
  %4161 = vmatpush1.msra.mxu0 0.0
  %4162 = vmatprep.subr.mxu0 0.0
  %4163 = vmatpush1.msra.mxu0 0.0
  %4164 = vmatprep.subr.mxu0 0.0
  %4165 = vmatpush1.msra.mxu0 0.0
  %4166 = vmatprep.subr.mxu0 0.0
  %4167 = vmatpush1.msra.mxu0 0.0
  %4168 = vmatprep.subr.mxu0 0.0
  %4169 = vmatpush1.msra.mxu0 0.0
  %4170 = vmatprep.subr.mxu0 0.0
  %4171 = vmatpush1.msra.mxu0 0.0
  %4172 = vmatprep.subr.mxu0 0.0
  %4173 = vmatpush1.msra.mxu0 0.0
  %4174 = vmatprep.subr.mxu0 0.0
  %4175 = vmatpush1.msra.mxu0 0.0
  %4176 = vmatprep.subr.mxu0 0.0
  %4177 = vmatpush1.msra.mxu0 0.0
  %4178 = vmatprep.subr.mxu0 0.0
  %4179 = vmatpush1.msra.mxu0 0.0
  %4180 = vmatprep.subr.mxu0 0.0
  %4181 = vmatpush1.msra.mxu0 0.0
  %4182 = vmatprep.subr.mxu0 0.0
  %4183 = vmatpush1.msra.mxu0 0.0
  %4184 = vmatprep.subr.mxu0 0.0
  %4185 = vmatpush1.msra.mxu0 0.0
  %4186 = vmatprep.subr.mxu0 0.0
  %4187 = vmatpush1.msra.mxu0 0.0
  %4188 = vmatprep.subr.mxu0 0.0
  %4189 = vmatpush1.msra.mxu0 0.0
  %4190 = vmatprep.subr.mxu0 0.0
  %4191 = vmatpush1.msra.mxu0 0.0
  %4192 = vmatprep.subr.mxu0 0.0
  %4193 = vmatpush1.msra.mxu0 0.0
  %4194 = vmatprep.subr.mxu0 0.0
  %4195 = vmatpush1.msra.mxu0 0.0
  %4196 = vmatprep.subr.mxu0 0.0
  %4197 = vmatpush1.msra.mxu0 0.0
  %4198 = vmatprep.subr.mxu0 0.0
  %4199 = vmatpush1.msra.mxu0 0.0
  %4200 = vmatprep.subr.mxu0 0.0
  %4201 = vmatpush1.msra.mxu0 0.0
  %4202 = vmatprep.subr.mxu0 0.0
  %4203 = vmatpush1.msra.mxu0 0.0
  %4204 = vmatprep.subr.mxu0 0.0
  %4205 = vmatpush1.msra.mxu0 0.0
  %4206 = vmatprep.subr.mxu0 0.0
  %4207 = vmatpush1.msra.mxu0 0.0
  %4208 = vmatprep.subr.mxu0 0.0
  %4209 = vmatpush1.msra.mxu0 0.0
  %4210 = vmatprep.mubr.f32.mxu0 0.0
  %4211 = vmatmul.mubr.f32.gmra.mrb[0].mxu0 %v4073
  %v4212 = vpop.f32.mrb[0].mxu0
  %v4213 = vadd.f32 %v4069, %v4212
  %v4214 = vpop.f32.mrb[0].mxu0
  %v4215 = vadd.f32 %v4069, %v4214
  %4216 = vdwg.mxu0
  %4217 = vmatprep.subr.mxu0 %v4014
  %4218 = vmatpush1.msra.mxu0 %v4013
  %4219 = vmatprep.subr.mxu0 %v4028
  %4220 = vmatpush1.msra.mxu0 %v4027
  %4221 = vmatprep.subr.mxu0 %v4042
  %4222 = vmatpush1.msra.mxu0 %v4041
  %4223 = vmatprep.subr.mxu0 %v4056
  %4224 = vmatpush1.msra.mxu0 %v4055
  %4225 = vmatprep.subr.mxu0 0.0
  %4226 = vmatpush1.msra.mxu0 0.0
  %4227 = vmatprep.subr.mxu0 0.0
  %4228 = vmatpush1.msra.mxu0 0.0
  %4229 = vmatprep.subr.mxu0 0.0
  %4230 = vmatpush1.msra.mxu0 0.0
  %4231 = vmatprep.subr.mxu0 0.0
  %4232 = vmatpush1.msra.mxu0 0.0
  %4233 = vmatprep.subr.mxu0 0.0
  %4234 = vmatpush1.msra.mxu0 0.0
  %4235 = vmatprep.subr.mxu0 0.0
  %4236 = vmatpush1.msra.mxu0 0.0
  %4237 = vmatprep.subr.mxu0 0.0
  %4238 = vmatpush1.msra.mxu0 0.0
  %4239 = vmatprep.subr.mxu0 0.0
  %4240 = vmatpush1.msra.mxu0 0.0
  %4241 = vmatprep.subr.mxu0 0.0
  %4242 = vmatpush1.msra.mxu0 0.0
  %4243 = vmatprep.subr.mxu0 0.0
  %4244 = vmatpush1.msra.mxu0 0.0
  %4245 = vmatprep.subr.mxu0 0.0
  %4246 = vmatpush1.msra.mxu0 0.0
  %4247 = vmatprep.subr.mxu0 0.0
  %4248 = vmatpush1.msra.mxu0 0.0
  %4249 = vmatprep.subr.mxu0 0.0
  %4250 = vmatpush1.msra.mxu0 0.0
  %4251 = vmatprep.subr.mxu0 0.0
  %4252 = vmatpush1.msra.mxu0 0.0
  %4253 = vmatprep.subr.mxu0 0.0
  %4254 = vmatpush1.msra.mxu0 0.0
  %4255 = vmatprep.subr.mxu0 0.0
  %4256 = vmatpush1.msra.mxu0 0.0
  %4257 = vmatprep.subr.mxu0 0.0
  %4258 = vmatpush1.msra.mxu0 0.0
  %4259 = vmatprep.subr.mxu0 0.0
  %4260 = vmatpush1.msra.mxu0 0.0
  %4261 = vmatprep.subr.mxu0 0.0
  %4262 = vmatpush1.msra.mxu0 0.0
  %4263 = vmatprep.subr.mxu0 0.0
  %4264 = vmatpush1.msra.mxu0 0.0
  %4265 = vmatprep.subr.mxu0 0.0
  %4266 = vmatpush1.msra.mxu0 0.0
  %4267 = vmatprep.subr.mxu0 0.0
  %4268 = vmatpush1.msra.mxu0 0.0
  %4269 = vmatprep.subr.mxu0 0.0
  %4270 = vmatpush1.msra.mxu0 0.0
  %4271 = vmatprep.subr.mxu0 0.0
  %4272 = vmatpush1.msra.mxu0 0.0
  %4273 = vmatprep.subr.mxu0 0.0
  %4274 = vmatpush1.msra.mxu0 0.0
  %4275 = vmatprep.subr.mxu0 0.0
  %4276 = vmatpush1.msra.mxu0 0.0
  %4277 = vmatprep.subr.mxu0 0.0
  %4278 = vmatpush1.msra.mxu0 0.0
  %4279 = vmatprep.subr.mxu0 0.0
  %4280 = vmatpush1.msra.mxu0 0.0
  %4281 = vmatprep.mubr.f32.mxu0 0.0
  %4282 = vmatmul.mubr.f32.gmra.mrb[0].mxu0 %v4073
  %v4283 = vpop.f32.mrb[0].mxu0
  %v4284 = vadd.f32 %v4069, %v4283
  %v4285 = vpop.f32.mrb[0].mxu0
  %v4286 = vadd.f32 %v4069, %v4285
  %4287 = vdwg.mxu0
  %4288 = vmatprep.subr.mxu0 %v4016
  %4289 = vmatpush1.msra.mxu0 %v4015
  %4290 = vmatprep.subr.mxu0 %v4030
  %4291 = vmatpush1.msra.mxu0 %v4029
  %4292 = vmatprep.subr.mxu0 %v4044
  %4293 = vmatpush1.msra.mxu0 %v4043
  %4294 = vmatprep.subr.mxu0 %v4058
  %4295 = vmatpush1.msra.mxu0 %v4057
  %4296 = vmatprep.subr.mxu0 0.0
  %4297 = vmatpush1.msra.mxu0 0.0
  %4298 = vmatprep.subr.mxu0 0.0
  %4299 = vmatpush1.msra.mxu0 0.0
  %4300 = vmatprep.subr.mxu0 0.0
  %4301 = vmatpush1.msra.mxu0 0.0
  %4302 = vmatprep.subr.mxu0 0.0
  %4303 = vmatpush1.msra.mxu0 0.0
  %4304 = vmatprep.subr.mxu0 0.0
  %4305 = vmatpush1.msra.mxu0 0.0
  %4306 = vmatprep.subr.mxu0 0.0
  %4307 = vmatpush1.msra.mxu0 0.0
  %4308 = vmatprep.subr.mxu0 0.0
  %4309 = vmatpush1.msra.mxu0 0.0
  %4310 = vmatprep.subr.mxu0 0.0
  %4311 = vmatpush1.msra.mxu0 0.0
  %4312 = vmatprep.subr.mxu0 0.0
  %4313 = vmatpush1.msra.mxu0 0.0
  %4314 = vmatprep.subr.mxu0 0.0
  %4315 = vmatpush1.msra.mxu0 0.0
  %4316 = vmatprep.subr.mxu0 0.0
  %4317 = vmatpush1.msra.mxu0 0.0
  %4318 = vmatprep.subr.mxu0 0.0
  %4319 = vmatpush1.msra.mxu0 0.0
  %4320 = vmatprep.subr.mxu0 0.0
  %4321 = vmatpush1.msra.mxu0 0.0
  %4322 = vmatprep.subr.mxu0 0.0
  %4323 = vmatpush1.msra.mxu0 0.0
  %4324 = vmatprep.subr.mxu0 0.0
  %4325 = vmatpush1.msra.mxu0 0.0
  %4326 = vmatprep.subr.mxu0 0.0
  %4327 = vmatpush1.msra.mxu0 0.0
  %4328 = vmatprep.subr.mxu0 0.0
  %4329 = vmatpush1.msra.mxu0 0.0
  %4330 = vmatprep.subr.mxu0 0.0
  %4331 = vmatpush1.msra.mxu0 0.0
  %4332 = vmatprep.subr.mxu0 0.0
  %4333 = vmatpush1.msra.mxu0 0.0
  %4334 = vmatprep.subr.mxu0 0.0
  %4335 = vmatpush1.msra.mxu0 0.0
  %4336 = vmatprep.subr.mxu0 0.0
  %4337 = vmatpush1.msra.mxu0 0.0
  %4338 = vmatprep.subr.mxu0 0.0
  %4339 = vmatpush1.msra.mxu0 0.0
  %4340 = vmatprep.subr.mxu0 0.0
  %4341 = vmatpush1.msra.mxu0 0.0
  %4342 = vmatprep.subr.mxu0 0.0
  %4343 = vmatpush1.msra.mxu0 0.0
  %4344 = vmatprep.subr.mxu0 0.0
  %4345 = vmatpush1.msra.mxu0 0.0
  %4346 = vmatprep.subr.mxu0 0.0
  %4347 = vmatpush1.msra.mxu0 0.0
  %4348 = vmatprep.subr.mxu0 0.0
  %4349 = vmatpush1.msra.mxu0 0.0
  %4350 = vmatprep.subr.mxu0 0.0
  %4351 = vmatpush1.msra.mxu0 0.0
  %4352 = vmatprep.mubr.f32.mxu0 0.0
  %4353 = vmatmul.mubr.f32.gmra.mrb[0].mxu0 %v4073
  %v4354 = vpop.f32.mrb[0].mxu0
  %v4355 = vadd.f32 %v4069, %v4354
  %v4356 = vpop.f32.mrb[0].mxu0
  %v4357 = vadd.f32 %v4069, %v4356
  %4358 = vdwg.mxu0
  %4359 = vmatprep.subr.mxu0 %v4018
  %4360 = vmatpush1.msra.mxu0 %v4017
  %4361 = vmatprep.subr.mxu0 %v4032
  %4362 = vmatpush1.msra.mxu0 %v4031
  %4363 = vmatprep.subr.mxu0 %v4046
  %4364 = vmatpush1.msra.mxu0 %v4045
  %4365 = vmatprep.subr.mxu0 %v4060
  %4366 = vmatpush1.msra.mxu0 %v4059
  %4367 = vmatprep.subr.mxu0 0.0
  %4368 = vmatpush1.msra.mxu0 0.0
  %4369 = vmatprep.subr.mxu0 0.0
  %4370 = vmatpush1.msra.mxu0 0.0
  %4371 = vmatprep.subr.mxu0 0.0
  %4372 = vmatpush1.msra.mxu0 0.0
  %4373 = vmatprep.subr.mxu0 0.0
  %4374 = vmatpush1.msra.mxu0 0.0
  %4375 = vmatprep.subr.mxu0 0.0
  %4376 = vmatpush1.msra.mxu0 0.0
  %4377 = vmatprep.subr.mxu0 0.0
  %4378 = vmatpush1.msra.mxu0 0.0
  %4379 = vmatprep.subr.mxu0 0.0
  %4380 = vmatpush1.msra.mxu0 0.0
  %4381 = vmatprep.subr.mxu0 0.0
  %4382 = vmatpush1.msra.mxu0 0.0
  %4383 = vmatprep.subr.mxu0 0.0
  %4384 = vmatpush1.msra.mxu0 0.0
  %4385 = vmatprep.subr.mxu0 0.0
  %4386 = vmatpush1.msra.mxu0 0.0
  %4387 = vmatprep.subr.mxu0 0.0
  %4388 = vmatpush1.msra.mxu0 0.0
  %4389 = vmatprep.subr.mxu0 0.0
  %4390 = vmatpush1.msra.mxu0 0.0
  %4391 = vmatprep.subr.mxu0 0.0
  %4392 = vmatpush1.msra.mxu0 0.0
  %4393 = vmatprep.subr.mxu0 0.0
  %4394 = vmatpush1.msra.mxu0 0.0
  %4395 = vmatprep.subr.mxu0 0.0
  %4396 = vmatpush1.msra.mxu0 0.0
  %4397 = vmatprep.subr.mxu0 0.0
  %4398 = vmatpush1.msra.mxu0 0.0
  %4399 = vmatprep.subr.mxu0 0.0
  %4400 = vmatpush1.msra.mxu0 0.0
  %4401 = vmatprep.subr.mxu0 0.0
  %4402 = vmatpush1.msra.mxu0 0.0
  %4403 = vmatprep.subr.mxu0 0.0
  %4404 = vmatpush1.msra.mxu0 0.0
  %4405 = vmatprep.subr.mxu0 0.0
  %4406 = vmatpush1.msra.mxu0 0.0
  %4407 = vmatprep.subr.mxu0 0.0
  %4408 = vmatpush1.msra.mxu0 0.0
  %4409 = vmatprep.subr.mxu0 0.0
  %4410 = vmatpush1.msra.mxu0 0.0
  %4411 = vmatprep.subr.mxu0 0.0
  %4412 = vmatpush1.msra.mxu0 0.0
  %4413 = vmatprep.subr.mxu0 0.0
  %4414 = vmatpush1.msra.mxu0 0.0
  %4415 = vmatprep.subr.mxu0 0.0
  %4416 = vmatpush1.msra.mxu0 0.0
  %4417 = vmatprep.subr.mxu0 0.0
  %4418 = vmatpush1.msra.mxu0 0.0
  %4419 = vmatprep.subr.mxu0 0.0
  %4420 = vmatpush1.msra.mxu0 0.0
  %4421 = vmatprep.subr.mxu0 0.0
  %4422 = vmatpush1.msra.mxu0 0.0
  %4423 = vmatprep.mubr.f32.mxu0 0.0
  %4424 = vmatmul.mubr.f32.gmra.mrb[0].mxu0 %v4073
  %v4425 = vpop.f32.mrb[0].mxu0
  %v4426 = vadd.f32 %v4069, %v4425
  %v4427 = vpop.f32.mrb[0].mxu0
  %v4428 = vadd.f32 %v4069, %v4427
  %4429 = vdwg.mxu0
  %4430 = vmatprep.subr.mxu0 %v4020
  %4431 = vmatpush1.msra.mxu0 %v4019
  %4432 = vmatprep.subr.mxu0 %v4034
  %4433 = vmatpush1.msra.mxu0 %v4033
  %4434 = vmatprep.subr.mxu0 %v4048
  %4435 = vmatpush1.msra.mxu0 %v4047
  %4436 = vmatprep.subr.mxu0 %v4062
  %4437 = vmatpush1.msra.mxu0 %v4061
  %4438 = vmatprep.subr.mxu0 0.0
  %4439 = vmatpush1.msra.mxu0 0.0
  %4440 = vmatprep.subr.mxu0 0.0
  %4441 = vmatpush1.msra.mxu0 0.0
  %4442 = vmatprep.subr.mxu0 0.0
  %4443 = vmatpush1.msra.mxu0 0.0
  %4444 = vmatprep.subr.mxu0 0.0
  %4445 = vmatpush1.msra.mxu0 0.0
  %4446 = vmatprep.subr.mxu0 0.0
  %4447 = vmatpush1.msra.mxu0 0.0
  %4448 = vmatprep.subr.mxu0 0.0
  %4449 = vmatpush1.msra.mxu0 0.0
  %4450 = vmatprep.subr.mxu0 0.0
  %4451 = vmatpush1.msra.mxu0 0.0
  %4452 = vmatprep.subr.mxu0 0.0
  %4453 = vmatpush1.msra.mxu0 0.0
  %4454 = vmatprep.subr.mxu0 0.0
  %4455 = vmatpush1.msra.mxu0 0.0
  %4456 = vmatprep.subr.mxu0 0.0
  %4457 = vmatpush1.msra.mxu0 0.0
  %4458 = vmatprep.subr.mxu0 0.0
  %4459 = vmatpush1.msra.mxu0 0.0
  %4460 = vmatprep.subr.mxu0 0.0
  %4461 = vmatpush1.msra.mxu0 0.0
  %4462 = vmatprep.subr.mxu0 0.0
  %4463 = vmatpush1.msra.mxu0 0.0
  %4464 = vmatprep.subr.mxu0 0.0
  %4465 = vmatpush1.msra.mxu0 0.0
  %4466 = vmatprep.subr.mxu0 0.0
  %4467 = vmatpush1.msra.mxu0 0.0
  %4468 = vmatprep.subr.mxu0 0.0
  %4469 = vmatpush1.msra.mxu0 0.0
  %4470 = vmatprep.subr.mxu0 0.0
  %4471 = vmatpush1.msra.mxu0 0.0
  %4472 = vmatprep.subr.mxu0 0.0
  %4473 = vmatpush1.msra.mxu0 0.0
  %4474 = vmatprep.subr.mxu0 0.0
  %4475 = vmatpush1.msra.mxu0 0.0
  %4476 = vmatprep.subr.mxu0 0.0
  %4477 = vmatpush1.msra.mxu0 0.0
  %4478 = vmatprep.subr.mxu0 0.0
  %4479 = vmatpush1.msra.mxu0 0.0
  %4480 = vmatprep.subr.mxu0 0.0
  %4481 = vmatpush1.msra.mxu0 0.0
  %4482 = vmatprep.subr.mxu0 0.0
  %4483 = vmatpush1.msra.mxu0 0.0
  %4484 = vmatprep.subr.mxu0 0.0
  %4485 = vmatpush1.msra.mxu0 0.0
  %4486 = vmatprep.subr.mxu0 0.0
  %4487 = vmatpush1.msra.mxu0 0.0
  %4488 = vmatprep.subr.mxu0 0.0
  %4489 = vmatpush1.msra.mxu0 0.0
  %4490 = vmatprep.subr.mxu0 0.0
  %4491 = vmatpush1.msra.mxu0 0.0
  %4492 = vmatprep.subr.mxu0 0.0
  %4493 = vmatpush1.msra.mxu0 0.0
  %4494 = vmatprep.mubr.f32.mxu0 0.0
  %4495 = vmatmul.mubr.f32.gmra.mrb[0].mxu0 %v4073
  %v4496 = vpop.f32.mrb[0].mxu0
  %v4497 = vadd.f32 %v4069, %v4496
  %v4498 = vpop.f32.mrb[0].mxu0
  %v4499 = vadd.f32 %v4069, %v4498
  %4500 = vdwg.mxu0
  %4501 = vmatprep.subr.mxu0 %v4022
  %4502 = vmatpush1.msra.mxu0 %v4021
  %4503 = vmatprep.subr.mxu0 %v4036
  %4504 = vmatpush1.msra.mxu0 %v4035
  %4505 = vmatprep.subr.mxu0 %v4050
  %4506 = vmatpush1.msra.mxu0 %v4049
  %4507 = vmatprep.subr.mxu0 %v4064
  %4508 = vmatpush1.msra.mxu0 %v4063
  %4509 = vmatprep.subr.mxu0 0.0
  %4510 = vmatpush1.msra.mxu0 0.0
  %4511 = vmatprep.subr.mxu0 0.0
  %4512 = vmatpush1.msra.mxu0 0.0
  %4513 = vmatprep.subr.mxu0 0.0
  %4514 = vmatpush1.msra.mxu0 0.0
  %4515 = vmatprep.subr.mxu0 0.0
  %4516 = vmatpush1.msra.mxu0 0.0
  %4517 = vmatprep.subr.mxu0 0.0
  %4518 = vmatpush1.msra.mxu0 0.0
  %4519 = vmatprep.subr.mxu0 0.0
  %4520 = vmatpush1.msra.mxu0 0.0
  %4521 = vmatprep.subr.mxu0 0.0
  %4522 = vmatpush1.msra.mxu0 0.0
  %4523 = vmatprep.subr.mxu0 0.0
  %4524 = vmatpush1.msra.mxu0 0.0
  %4525 = vmatprep.subr.mxu0 0.0
  %4526 = vmatpush1.msra.mxu0 0.0
  %4527 = vmatprep.subr.mxu0 0.0
  %4528 = vmatpush1.msra.mxu0 0.0
  %4529 = vmatprep.subr.mxu0 0.0
  %4530 = vmatpush1.msra.mxu0 0.0
  %4531 = vmatprep.subr.mxu0 0.0
  %4532 = vmatpush1.msra.mxu0 0.0
  %4533 = vmatprep.subr.mxu0 0.0
  %4534 = vmatpush1.msra.mxu0 0.0
  %4535 = vmatprep.subr.mxu0 0.0
  %4536 = vmatpush1.msra.mxu0 0.0
  %4537 = vmatprep.subr.mxu0 0.0
  %4538 = vmatpush1.msra.mxu0 0.0
  %4539 = vmatprep.subr.mxu0 0.0
  %4540 = vmatpush1.msra.mxu0 0.0
  %4541 = vmatprep.subr.mxu0 0.0
  %4542 = vmatpush1.msra.mxu0 0.0
  %4543 = vmatprep.subr.mxu0 0.0
  %4544 = vmatpush1.msra.mxu0 0.0
  %4545 = vmatprep.subr.mxu0 0.0
  %4546 = vmatpush1.msra.mxu0 0.0
  %4547 = vmatprep.subr.mxu0 0.0
  %4548 = vmatpush1.msra.mxu0 0.0
  %4549 = vmatprep.subr.mxu0 0.0
  %4550 = vmatpush1.msra.mxu0 0.0
  %4551 = vmatprep.subr.mxu0 0.0
  %4552 = vmatpush1.msra.mxu0 0.0
  %4553 = vmatprep.subr.mxu0 0.0
  %4554 = vmatpush1.msra.mxu0 0.0
  %4555 = vmatprep.subr.mxu0 0.0
  %4556 = vmatpush1.msra.mxu0 0.0
  %4557 = vmatprep.subr.mxu0 0.0
  %4558 = vmatpush1.msra.mxu0 0.0
  %4559 = vmatprep.subr.mxu0 0.0
  %4560 = vmatpush1.msra.mxu0 0.0
  %4561 = vmatprep.subr.mxu0 0.0
  %4562 = vmatpush1.msra.mxu0 0.0
  %4563 = vmatprep.subr.mxu0 0.0
  %4564 = vmatpush1.msra.mxu0 0.0
  %4565 = vmatprep.mubr.f32.mxu0 0.0
  %4566 = vmatmul.mubr.f32.gmra.mrb[0].mxu0 %v4073
  %v4567 = vpop.f32.mrb[0].mxu0
  %v4568 = vadd.f32 %v4069, %v4567
  %v4569 = vpop.f32.mrb[0].mxu0
  %v4570 = vadd.f32 %v4069, %v4569
  %4571 = vdwg.mxu0
  %v4572 = vadd.f32 %v4142, 3.0
  %v4573 = vadd.f32 %v4144, 3.0
  %v4574 = vadd.f32 %v4213, 3.0
  %v4575 = vadd.f32 %v4215, 3.0
  %v4576 = vadd.f32 %v4284, 3.0
  %v4577 = vadd.f32 %v4286, 3.0
  %v4578 = vadd.f32 %v4355, 3.0
  %v4579 = vadd.f32 %v4357, 3.0
  %v4580 = vadd.f32 %v4426, 3.0
  %v4581 = vadd.f32 %v4428, 3.0
  %v4582 = vadd.f32 %v4497, 3.0
  %v4583 = vadd.f32 %v4499, 3.0
  %v4584 = vadd.f32 %v4568, 3.0
  %v4585 = vadd.f32 %v4570, 3.0
  %v4586 = vmax.f32 %v4572, 0.0
  %v4587 = vmax.f32 %v4573, 0.0
  %v4588 = vmax.f32 %v4574, 0.0
  %v4589 = vmax.f32 %v4575, 0.0
  %v4590 = vmax.f32 %v4576, 0.0
  %v4591 = vmax.f32 %v4577, 0.0
  %v4592 = vmax.f32 %v4578, 0.0
  %v4593 = vmax.f32 %v4579, 0.0
  %v4594 = vmax.f32 %v4580, 0.0
  %v4595 = vmax.f32 %v4581, 0.0
  %v4596 = vmax.f32 %v4582, 0.0
  %v4597 = vmax.f32 %v4583, 0.0
  %v4598 = vmax.f32 %v4584, 0.0
  %v4599 = vmax.f32 %v4585, 0.0
  %v4600 = vmin.f32 %v4586, 6.0
  %v4601 = vmin.f32 %v4587, 6.0
  %v4602 = vmin.f32 %v4588, 6.0
  %v4603 = vmin.f32 %v4589, 6.0
  %v4604 = vmin.f32 %v4590, 6.0
  %v4605 = vmin.f32 %v4591, 6.0
  %v4606 = vmin.f32 %v4592, 6.0
  %v4607 = vmin.f32 %v4593, 6.0
  %v4608 = vmin.f32 %v4594, 6.0
  %v4609 = vmin.f32 %v4595, 6.0
  %v4610 = vmin.f32 %v4596, 6.0
  %v4611 = vmin.f32 %v4597, 6.0
  %v4612 = vmin.f32 %v4598, 6.0
  %v4613 = vmin.f32 %v4599, 6.0
  %v4614 = vmul.f32 %v4600, 0.16666667
  %v4615 = vmul.f32 %v4601, 0.16666667
  %v4616 = vmul.f32 %v4602, 0.16666667
  %v4617 = vmul.f32 %v4603, 0.16666667
  %v4618 = vmul.f32 %v4604, 0.16666667
  %v4619 = vmul.f32 %v4605, 0.16666667
  %v4620 = vmul.f32 %v4606, 0.16666667
  %v4621 = vmul.f32 %v4607, 0.16666667
  %v4622 = vmul.f32 %v4608, 0.16666667
  %v4623 = vmul.f32 %v4609, 0.16666667
  %v4624 = vmul.f32 %v4610, 0.16666667
  %v4625 = vmul.f32 %v4611, 0.16666667
  %v4626 = vmul.f32 %v4612, 0.16666667
  %v4627 = vmul.f32 %v4613, 0.16666667
  %v4628 = vmul.f32 %v4142, %v4614
  %v4629 = vmul.f32 %v4144, %v4615
  %v4630 = vmul.f32 %v4213, %v4616
  %v4631 = vmul.f32 %v4215, %v4617
  %v4632 = vmul.f32 %v4284, %v4618
  %v4633 = vmul.f32 %v4286, %v4619
  %v4634 = vmul.f32 %v4355, %v4620
  %v4635 = vmul.f32 %v4357, %v4621
  %v4636 = vmul.f32 %v4426, %v4622
  %v4637 = vmul.f32 %v4428, %v4623
  %v4638 = vmul.f32 %v4497, %v4624
  %v4639 = vmul.f32 %v4499, %v4625
  %v4640 = vmul.f32 %v4568, %v4626
  %v4641 = vmul.f32 %v4570, %v4627
  %v4642 = vld [vmem:[%s5] sm:$0xff]
  %v4643 = vld [vmem:[%s5 + $0x8] sm:$0xff]
  %v4644 = vld [vmem:[%s5 + $0x10] sm:$0xff]
  %v4645 = vld [vmem:[%s5 + $0x18] sm:$0xff]
  %v4646 = vld [vmem:[%s5 + $0x20] sm:$0xff]
  %v4647 = vld [vmem:[%s5 + $0x28] sm:$0xff]
  %v4648 = vld [vmem:[%s5 + $0x30] sm:$0xff]
  %v4649 = vld [vmem:[%s5 + $0x38] sm:$0xff]
  %v4650 = vld [vmem:[%s6] sm:$0xff]
  %v4651 = vld [vmem:[%s6 + $0x8] sm:$0xff]
  %v4652 = vld [vmem:[%s6 + $0x10] sm:$0xff]
  %v4653 = vld [vmem:[%s6 + $0x18] sm:$0xff]
  %v4654 = vld [vmem:[%s6 + $0x20] sm:$0xff]
  %v4655 = vld [vmem:[%s6 + $0x28] sm:$0xff]
  %v4656 = vld [vmem:[%s6 + $0x30] sm:$0xff]
  %v4657 = vld [vmem:[%s6 + $0x38] sm:$0xff]
  %4659 = vset.pattern.permute.xlu0 0
  %4660 = vperm.xlu0 %4659, %v4650
  %v4661 = vpop.permute.xlu0 %4660
  %4664 = vset.pattern.permute.xlu0 0
  %4665 = vperm.xlu0 %4664, %v4651
  %v4666 = vpop.permute.xlu0 %4665
  %4669 = vset.pattern.permute.xlu0 0
  %4670 = vperm.xlu0 %4669, %v4652
  %v4671 = vpop.permute.xlu0 %4670
  %4674 = vset.pattern.permute.xlu0 0
  %4675 = vperm.xlu0 %4674, %v4653
  %v4676 = vpop.permute.xlu0 %4675
  %4679 = vset.pattern.permute.xlu0 0
  %4680 = vperm.xlu0 %4679, %v4654
  %v4681 = vpop.permute.xlu0 %4680
  %4684 = vset.pattern.permute.xlu0 0
  %4685 = vperm.xlu0 %4684, %v4655
  %v4686 = vpop.permute.xlu0 %4685
  %4689 = vset.pattern.permute.xlu0 0
  %4690 = vperm.xlu0 %4689, %v4656
  %v4691 = vpop.permute.xlu0 %4690
  %4694 = vset.pattern.permute.xlu0 0
  %4695 = vperm.xlu0 %4694, %v4657
  %v4696 = vpop.permute.xlu0 %4695
  %vm4698 = vcmask 130048
  %v4700 = vsel %vm4698, %v4642, 0
  %v4703 = vsel %vm4698, %v4643, 0
  %v4706 = vsel %vm4698, %v4644, 0
  %v4709 = vsel %vm4698, %v4645, 0
  %v4712 = vsel %vm4698, %v4646, 0
  %v4715 = vsel %vm4698, %v4647, 0
  %v4718 = vsel %vm4698, %v4648, 0
  %v4721 = vsel %vm4698, %v4649, 0
  %4723 = vmatprep.subr.mxu0 0.0
  %4724 = vmatpush1.msra.mxu0 %v4628
  %4725 = vmatprep.subr.mxu0 0.0
  %4726 = vmatpush1.msra.mxu0 %v4635
  %4727 = vmatprep.subr.mxu0 0.0
  %4728 = vmatpush1.msra.mxu0 0.0
  %4729 = vmatprep.subr.mxu0 0.0
  %4730 = vmatpush1.msra.mxu0 0.0
  %4731 = vmatprep.subr.mxu0 0.0
  %4732 = vmatpush1.msra.mxu0 0.0
  %4733 = vmatprep.subr.mxu0 0.0
  %4734 = vmatpush1.msra.mxu0 0.0
  %4735 = vmatprep.subr.mxu0 0.0
  %4736 = vmatpush1.msra.mxu0 0.0
  %4737 = vmatprep.subr.mxu0 0.0
  %4738 = vmatpush1.msra.mxu0 0.0
  %4739 = vmatprep.subr.mxu0 0.0
  %4740 = vmatpush1.msra.mxu0 0.0
  %4741 = vmatprep.subr.mxu0 0.0
  %4742 = vmatpush1.msra.mxu0 0.0
  %4743 = vmatprep.subr.mxu0 0.0
  %4744 = vmatpush1.msra.mxu0 0.0
  %4745 = vmatprep.subr.mxu0 0.0
  %4746 = vmatpush1.msra.mxu0 0.0
  %4747 = vmatprep.subr.mxu0 0.0
  %4748 = vmatpush1.msra.mxu0 0.0
  %4749 = vmatprep.subr.mxu0 0.0
  %4750 = vmatpush1.msra.mxu0 0.0
  %4751 = vmatprep.subr.mxu0 0.0
  %4752 = vmatpush1.msra.mxu0 0.0
  %4753 = vmatprep.subr.mxu0 0.0
  %4754 = vmatpush1.msra.mxu0 0.0
  %4755 = vmatprep.subr.mxu0 0.0
  %4756 = vmatpush1.msra.mxu0 0.0
  %4757 = vmatprep.subr.mxu0 0.0
  %4758 = vmatpush1.msra.mxu0 0.0
  %4759 = vmatprep.subr.mxu0 0.0
  %4760 = vmatpush1.msra.mxu0 0.0
  %4761 = vmatprep.subr.mxu0 0.0
  %4762 = vmatpush1.msra.mxu0 0.0
  %4763 = vmatprep.subr.mxu0 0.0
  %4764 = vmatpush1.msra.mxu0 0.0
  %4765 = vmatprep.subr.mxu0 0.0
  %4766 = vmatpush1.msra.mxu0 0.0
  %4767 = vmatprep.subr.mxu0 0.0
  %4768 = vmatpush1.msra.mxu0 0.0
  %4769 = vmatprep.subr.mxu0 0.0
  %4770 = vmatpush1.msra.mxu0 0.0
  %4771 = vmatprep.subr.mxu0 0.0
  %4772 = vmatpush1.msra.mxu0 0.0
  %4773 = vmatprep.subr.mxu0 0.0
  %4774 = vmatpush1.msra.mxu0 0.0
  %4775 = vmatprep.subr.mxu0 0.0
  %4776 = vmatpush1.msra.mxu0 0.0
  %4777 = vmatprep.subr.mxu0 0.0
  %4778 = vmatpush1.msra.mxu0 0.0
  %4779 = vmatprep.subr.mxu0 0.0
  %4780 = vmatpush1.msra.mxu0 0.0
  %4781 = vmatprep.subr.mxu0 0.0
  %4782 = vmatpush1.msra.mxu0 0.0
  %4783 = vmatprep.subr.mxu0 0.0
  %4784 = vmatpush1.msra.mxu0 0.0
  %4785 = vmatprep.subr.mxu0 0.0
  %4786 = vmatpush1.msra.mxu0 0.0
  %4787 = vmatprep.mubr.f32.mxu0 0.0
  %4788 = vmatmul.mubr.f32.gmra.mrb[0].mxu0 %v4700
  %v4789 = vpop.f32.mrb[0].mxu0
  %v4790 = vadd.f32 %v4661, %v4789
  %v4791 = vpop.f32.mrb[0].mxu0
  %4792 = vmatprep.mubr.f32.mxu0 0.0
  %4793 = vmatmul.mubr.f32.gmra.mrb[0].mxu0 %v4703
  %v4794 = vpop.f32.mrb[0].mxu0
  %v4795 = vadd.f32 %v4666, %v4794
  %v4796 = vpop.f32.mrb[0].mxu0
  %4797 = vmatprep.mubr.f32.mxu0 0.0
  %4798 = vmatmul.mubr.f32.gmra.mrb[0].mxu0 %v4706
  %v4799 = vpop.f32.mrb[0].mxu0
  %v4800 = vadd.f32 %v4671, %v4799
  %v4801 = vpop.f32.mrb[0].mxu0
  %4802 = vmatprep.mubr.f32.mxu0 0.0
  %4803 = vmatmul.mubr.f32.gmra.mrb[0].mxu0 %v4709
  %v4804 = vpop.f32.mrb[0].mxu0
  %v4805 = vadd.f32 %v4676, %v4804
  %v4806 = vpop.f32.mrb[0].mxu0
  %4807 = vmatprep.mubr.f32.mxu0 0.0
  %4808 = vmatmul.mubr.f32.gmra.mrb[0].mxu0 %v4712
  %v4809 = vpop.f32.mrb[0].mxu0
  %v4810 = vadd.f32 %v4681, %v4809
  %v4811 = vpop.f32.mrb[0].mxu0
  %4812 = vmatprep.mubr.f32.mxu0 0.0
  %4813 = vmatmul.mubr.f32.gmra.mrb[0].mxu0 %v4715
  %v4814 = vpop.f32.mrb[0].mxu0
  %v4815 = vadd.f32 %v4686, %v4814
  %v4816 = vpop.f32.mrb[0].mxu0
  %4817 = vmatprep.mubr.f32.mxu0 0.0
  %4818 = vmatmul.mubr.f32.gmra.mrb[0].mxu0 %v4718
  %v4819 = vpop.f32.mrb[0].mxu0
  %v4820 = vadd.f32 %v4691, %v4819
  %v4821 = vpop.f32.mrb[0].mxu0
  %4822 = vmatprep.mubr.f32.mxu0 0.0
  %4823 = vmatmul.mubr.f32.gmra.mrb[0].mxu0 %v4721
  %v4824 = vpop.f32.mrb[0].mxu0
  %v4825 = vadd.f32 %v4696, %v4824
  %v4826 = vpop.f32.mrb[0].mxu0
  %4827 = vdwg.mxu0
  %v4828 = vxor.u32 %v4790, 2147483648
  %v4829 = vxor.u32 %v4795, 2147483648
  %v4830 = vxor.u32 %v4800, 2147483648
  %v4831 = vxor.u32 %v4805, 2147483648
  %v4832 = vxor.u32 %v4810, 2147483648
  %v4833 = vxor.u32 %v4815, 2147483648
  %v4834 = vxor.u32 %v4820, 2147483648
  %v4835 = vxor.u32 %v4825, 2147483648
  %v4836 = vmul.f32 %v4828, 1.442695
  %v4837 = vpow.pop %v4836
  %v4838 = vmul.f32 %v4829, 1.442695
  %v4839 = vpow.pop %v4838
  %v4840 = vmul.f32 %v4830, 1.442695
  %v4841 = vpow.pop %v4840
  %v4842 = vmul.f32 %v4831, 1.442695
  %v4843 = vpow.pop %v4842
  %v4844 = vmul.f32 %v4832, 1.442695
  %v4845 = vpow.pop %v4844
  %v4846 = vmul.f32 %v4833, 1.442695
  %v4847 = vpow.pop %v4846
  %v4848 = vmul.f32 %v4834, 1.442695
  %v4849 = vpow.pop %v4848
  %v4850 = vmul.f32 %v4835, 1.442695
  %v4851 = vpow.pop %v4850
  %v4852 = vadd.f32 %v4837, 1.0
  %v4853 = vadd.f32 %v4839, 1.0
  %v4854 = vadd.f32 %v4841, 1.0
  %v4855 = vadd.f32 %v4843, 1.0
  %v4856 = vadd.f32 %v4845, 1.0
  %v4857 = vadd.f32 %v4847, 1.0
  %v4858 = vadd.f32 %v4849, 1.0
  %v4859 = vadd.f32 %v4851, 1.0
  %v4860 = vrcp.pop %v4852
  %v4861 = vmul.f32 1.0, %v4860
  %v4862 = vrcp.pop %v4853
  %v4863 = vmul.f32 1.0, %v4862
  %v4864 = vrcp.pop %v4854
  %v4865 = vmul.f32 1.0, %v4864
  %v4866 = vrcp.pop %v4855
  %v4867 = vmul.f32 1.0, %v4866
  %v4868 = vrcp.pop %v4856
  %v4869 = vmul.f32 1.0, %v4868
  %v4870 = vrcp.pop %v4857
  %v4871 = vmul.f32 1.0, %v4870
  %v4872 = vrcp.pop %v4858
  %v4873 = vmul.f32 1.0, %v4872
  %v4874 = vrcp.pop %v4859
  %v4875 = vmul.f32 1.0, %v4874
  %4876 = vst [vmem:[#allocation3] sm:$0xff] %v4861
  %4877 = vst [vmem:[#allocation3 + $0x38] sm:$0xff] %v4863
  %4878 = vst [vmem:[#allocation3 + $0x70] sm:$0xff] %v4865
  %4879 = vst [vmem:[#allocation3 + $0xa8] sm:$0xff] %v4867
  %s4880 = scalar_lea.vmem [#allocation3], 224
  %4881 = vst [vmem:[%s4880] sm:$0xff] %v4869
  %4882 = vst [vmem:[%s4880 + $0x38] sm:$0xff] %v4871
  %4883 = vst [vmem:[%s4880 + $0x70] sm:$0xff] %v4873
  %4884 = vst [vmem:[%s4880 + $0xa8] sm:$0xff] %v4875
  %v4885 = vld [vmem:[%s5] sm:$0xff]
  %v4886 = vld [vmem:[%s5 + $0x8] sm:$0xff]
  %v4887 = vld [vmem:[%s5 + $0x10] sm:$0xff]
  %v4888 = vld [vmem:[%s5 + $0x18] sm:$0xff]
  %v4889 = vld [vmem:[%s5 + $0x20] sm:$0xff]
  %v4890 = vld [vmem:[%s5 + $0x28] sm:$0xff]
  %v4891 = vld [vmem:[%s5 + $0x30] sm:$0xff]
  %v4892 = vld [vmem:[%s5 + $0x38] sm:$0xff]
  %v4893 = vld [vmem:[%s6] sm:$0xff]
  %v4894 = vld [vmem:[%s6 + $0x8] sm:$0xff]
  %v4895 = vld [vmem:[%s6 + $0x10] sm:$0xff]
  %v4896 = vld [vmem:[%s6 + $0x18] sm:$0xff]
  %v4897 = vld [vmem:[%s6 + $0x20] sm:$0xff]
  %v4898 = vld [vmem:[%s6 + $0x28] sm:$0xff]
  %v4899 = vld [vmem:[%s6 + $0x30] sm:$0xff]
  %v4900 = vld [vmem:[%s6 + $0x38] sm:$0xff]
  %4902 = vset.pattern.permute.xlu0 0
  %4903 = vperm.xlu0 %4902, %v4893
  %v4904 = vpop.permute.xlu0 %4903
  %4907 = vset.pattern.permute.xlu0 0
  %4908 = vperm.xlu0 %4907, %v4894
  %v4909 = vpop.permute.xlu0 %4908
  %4912 = vset.pattern.permute.xlu0 0
  %4913 = vperm.xlu0 %4912, %v4895
  %v4914 = vpop.permute.xlu0 %4913
  %4917 = vset.pattern.permute.xlu0 0
  %4918 = vperm.xlu0 %4917, %v4896
  %v4919 = vpop.permute.xlu0 %4918
  %4922 = vset.pattern.permute.xlu0 0
  %4923 = vperm.xlu0 %4922, %v4897
  %v4924 = vpop.permute.xlu0 %4923
  %4927 = vset.pattern.permute.xlu0 0
  %4928 = vperm.xlu0 %4927, %v4898
  %v4929 = vpop.permute.xlu0 %4928
  %4932 = vset.pattern.permute.xlu0 0
  %4933 = vperm.xlu0 %4932, %v4899
  %v4934 = vpop.permute.xlu0 %4933
  %4937 = vset.pattern.permute.xlu0 0
  %4938 = vperm.xlu0 %4937, %v4900
  %v4939 = vpop.permute.xlu0 %4938
  %v4942 = vsel %vm4698, %v4885, 0
  %v4945 = vsel %vm4698, %v4886, 0
  %v4948 = vsel %vm4698, %v4887, 0
  %v4951 = vsel %vm4698, %v4888, 0
  %v4954 = vsel %vm4698, %v4889, 0
  %v4957 = vsel %vm4698, %v4890, 0
  %v4960 = vsel %vm4698, %v4891, 0
  %v4963 = vsel %vm4698, %v4892, 0
  %4965 = vmatprep.subr.mxu0 0.0
  %4966 = vmatpush1.msra.mxu0 %v4629
  %4967 = vmatprep.subr.mxu0 0.0
  %4968 = vmatpush1.msra.mxu0 %v4636
  %4969 = vmatprep.subr.mxu0 0.0
  %4970 = vmatpush1.msra.mxu0 0.0
  %4971 = vmatprep.subr.mxu0 0.0
  %4972 = vmatpush1.msra.mxu0 0.0
  %4973 = vmatprep.subr.mxu0 0.0
  %4974 = vmatpush1.msra.mxu0 0.0
  %4975 = vmatprep.subr.mxu0 0.0
  %4976 = vmatpush1.msra.mxu0 0.0
  %4977 = vmatprep.subr.mxu0 0.0
  %4978 = vmatpush1.msra.mxu0 0.0
  %4979 = vmatprep.subr.mxu0 0.0
  %4980 = vmatpush1.msra.mxu0 0.0
  %4981 = vmatprep.subr.mxu0 0.0
  %4982 = vmatpush1.msra.mxu0 0.0
  %4983 = vmatprep.subr.mxu0 0.0
  %4984 = vmatpush1.msra.mxu0 0.0
  %4985 = vmatprep.subr.mxu0 0.0
  %4986 = vmatpush1.msra.mxu0 0.0
  %4987 = vmatprep.subr.mxu0 0.0
  %4988 = vmatpush1.msra.mxu0 0.0
  %4989 = vmatprep.subr.mxu0 0.0
  %4990 = vmatpush1.msra.mxu0 0.0
  %4991 = vmatprep.subr.mxu0 0.0
  %4992 = vmatpush1.msra.mxu0 0.0
  %4993 = vmatprep.subr.mxu0 0.0
  %4994 = vmatpush1.msra.mxu0 0.0
  %4995 = vmatprep.subr.mxu0 0.0
  %4996 = vmatpush1.msra.mxu0 0.0
  %4997 = vmatprep.subr.mxu0 0.0
  %4998 = vmatpush1.msra.mxu0 0.0
  %4999 = vmatprep.subr.mxu0 0.0
  %5000 = vmatpush1.msra.mxu0 0.0
  %5001 = vmatprep.subr.mxu0 0.0
  %5002 = vmatpush1.msra.mxu0 0.0
  %5003 = vmatprep.subr.mxu0 0.0
  %5004 = vmatpush1.msra.mxu0 0.0
  %5005 = vmatprep.subr.mxu0 0.0
  %5006 = vmatpush1.msra.mxu0 0.0
  %5007 = vmatprep.subr.mxu0 0.0
  %5008 = vmatpush1.msra.mxu0 0.0
  %5009 = vmatprep.subr.mxu0 0.0
  %5010 = vmatpush1.msra.mxu0 0.0
  %5011 = vmatprep.subr.mxu0 0.0
  %5012 = vmatpush1.msra.mxu0 0.0
  %5013 = vmatprep.subr.mxu0 0.0
  %5014 = vmatpush1.msra.mxu0 0.0
  %5015 = vmatprep.subr.mxu0 0.0
  %5016 = vmatpush1.msra.mxu0 0.0
  %5017 = vmatprep.subr.mxu0 0.0
  %5018 = vmatpush1.msra.mxu0 0.0
  %5019 = vmatprep.subr.mxu0 0.0
  %5020 = vmatpush1.msra.mxu0 0.0
  %5021 = vmatprep.subr.mxu0 0.0
  %5022 = vmatpush1.msra.mxu0 0.0
  %5023 = vmatprep.subr.mxu0 0.0
  %5024 = vmatpush1.msra.mxu0 0.0
  %5025 = vmatprep.subr.mxu0 0.0
  %5026 = vmatpush1.msra.mxu0 0.0
  %5027 = vmatprep.subr.mxu0 0.0
  %5028 = vmatpush1.msra.mxu0 0.0
  %5029 = vmatprep.mubr.f32.mxu0 0.0
  %5030 = vmatmul.mubr.f32.gmra.mrb[0].mxu0 %v4942
  %v5031 = vpop.f32.mrb[0].mxu0
  %v5032 = vadd.f32 %v4904, %v5031
  %v5033 = vpop.f32.mrb[0].mxu0
  %5034 = vmatprep.mubr.f32.mxu0 0.0
  %5035 = vmatmul.mubr.f32.gmra.mrb[0].mxu0 %v4945
  %v5036 = vpop.f32.mrb[0].mxu0
  %v5037 = vadd.f32 %v4909, %v5036
  %v5038 = vpop.f32.mrb[0].mxu0
  %5039 = vmatprep.mubr.f32.mxu0 0.0
  %5040 = vmatmul.mubr.f32.gmra.mrb[0].mxu0 %v4948
  %v5041 = vpop.f32.mrb[0].mxu0
  %v5042 = vadd.f32 %v4914, %v5041
  %v5043 = vpop.f32.mrb[0].mxu0
  %5044 = vmatprep.mubr.f32.mxu0 0.0
  %5045 = vmatmul.mubr.f32.gmra.mrb[0].mxu0 %v4951
  %v5046 = vpop.f32.mrb[0].mxu0
  %v5047 = vadd.f32 %v4919, %v5046
  %v5048 = vpop.f32.mrb[0].mxu0
  %5049 = vmatprep.mubr.f32.mxu0 0.0
  %5050 = vmatmul.mubr.f32.gmra.mrb[0].mxu0 %v4954
  %v5051 = vpop.f32.mrb[0].mxu0
  %v5052 = vadd.f32 %v4924, %v5051
  %v5053 = vpop.f32.mrb[0].mxu0
  %5054 = vmatprep.mubr.f32.mxu0 0.0
  %5055 = vmatmul.mubr.f32.gmra.mrb[0].mxu0 %v4957
  %v5056 = vpop.f32.mrb[0].mxu0
  %v5057 = vadd.f32 %v4929, %v5056
  %v5058 = vpop.f32.mrb[0].mxu0
  %5059 = vmatprep.mubr.f32.mxu0 0.0
  %5060 = vmatmul.mubr.f32.gmra.mrb[0].mxu0 %v4960
  %v5061 = vpop.f32.mrb[0].mxu0
  %v5062 = vadd.f32 %v4934, %v5061
  %v5063 = vpop.f32.mrb[0].mxu0
  %5064 = vmatprep.mubr.f32.mxu0 0.0
  %5065 = vmatmul.mubr.f32.gmra.mrb[0].mxu0 %v4963
  %v5066 = vpop.f32.mrb[0].mxu0
  %v5067 = vadd.f32 %v4939, %v5066
  %v5068 = vpop.f32.mrb[0].mxu0
  %5069 = vdwg.mxu0
  %v5070 = vxor.u32 %v5032, 2147483648
  %v5071 = vxor.u32 %v5037, 2147483648
  %v5072 = vxor.u32 %v5042, 2147483648
  %v5073 = vxor.u32 %v5047, 2147483648
  %v5074 = vxor.u32 %v5052, 2147483648
  %v5075 = vxor.u32 %v5057, 2147483648
  %v5076 = vxor.u32 %v5062, 2147483648
  %v5077 = vxor.u32 %v5067, 2147483648
  %v5078 = vmul.f32 %v5070, 1.442695
  %v5079 = vpow.pop %v5078
  %v5080 = vmul.f32 %v5071, 1.442695
  %v5081 = vpow.pop %v5080
  %v5082 = vmul.f32 %v5072, 1.442695
  %v5083 = vpow.pop %v5082
  %v5084 = vmul.f32 %v5073, 1.442695
  %v5085 = vpow.pop %v5084
  %v5086 = vmul.f32 %v5074, 1.442695
  %v5087 = vpow.pop %v5086
  %v5088 = vmul.f32 %v5075, 1.442695
  %v5089 = vpow.pop %v5088
  %v5090 = vmul.f32 %v5076, 1.442695
  %v5091 = vpow.pop %v5090
  %v5092 = vmul.f32 %v5077, 1.442695
  %v5093 = vpow.pop %v5092
  %v5094 = vadd.f32 %v5079, 1.0
  %v5095 = vadd.f32 %v5081, 1.0
  %v5096 = vadd.f32 %v5083, 1.0
  %v5097 = vadd.f32 %v5085, 1.0
  %v5098 = vadd.f32 %v5087, 1.0
  %v5099 = vadd.f32 %v5089, 1.0
  %v5100 = vadd.f32 %v5091, 1.0
  %v5101 = vadd.f32 %v5093, 1.0
  %v5102 = vrcp.pop %v5094
  %v5103 = vmul.f32 1.0, %v5102
  %v5104 = vrcp.pop %v5095
  %v5105 = vmul.f32 1.0, %v5104
  %v5106 = vrcp.pop %v5096
  %v5107 = vmul.f32 1.0, %v5106
  %v5108 = vrcp.pop %v5097
  %v5109 = vmul.f32 1.0, %v5108
  %v5110 = vrcp.pop %v5098
  %v5111 = vmul.f32 1.0, %v5110
  %v5112 = vrcp.pop %v5099
  %v5113 = vmul.f32 1.0, %v5112
  %v5114 = vrcp.pop %v5100
  %v5115 = vmul.f32 1.0, %v5114
  %v5116 = vrcp.pop %v5101
  %v5117 = vmul.f32 1.0, %v5116
  %5118 = vst [vmem:[#allocation3 + $0x8] sm:$0xff] %v5103
  %5119 = vst [vmem:[#allocation3 + $0x40] sm:$0xff] %v5105
  %5120 = vst [vmem:[#allocation3 + $0x78] sm:$0xff] %v5107
  %5121 = vst [vmem:[#allocation3 + $0xb0] sm:$0xff] %v5109
  %5122 = vst [vmem:[%s4880 + $0x8] sm:$0xff] %v5111
  %5123 = vst [vmem:[%s4880 + $0x40] sm:$0xff] %v5113
  %5124 = vst [vmem:[%s4880 + $0x78] sm:$0xff] %v5115
  %5125 = vst [vmem:[%s4880 + $0xb0] sm:$0xff] %v5117
  %v5126 = vld [vmem:[%s5] sm:$0xff]
  %v5127 = vld [vmem:[%s5 + $0x8] sm:$0xff]
  %v5128 = vld [vmem:[%s5 + $0x10] sm:$0xff]
  %v5129 = vld [vmem:[%s5 + $0x18] sm:$0xff]
  %v5130 = vld [vmem:[%s5 + $0x20] sm:$0xff]
  %v5131 = vld [vmem:[%s5 + $0x28] sm:$0xff]
  %v5132 = vld [vmem:[%s5 + $0x30] sm:$0xff]
  %v5133 = vld [vmem:[%s5 + $0x38] sm:$0xff]
  %v5134 = vld [vmem:[%s6] sm:$0xff]
  %v5135 = vld [vmem:[%s6 + $0x8] sm:$0xff]
  %v5136 = vld [vmem:[%s6 + $0x10] sm:$0xff]
  %v5137 = vld [vmem:[%s6 + $0x18] sm:$0xff]
  %v5138 = vld [vmem:[%s6 + $0x20] sm:$0xff]
  %v5139 = vld [vmem:[%s6 + $0x28] sm:$0xff]
  %v5140 = vld [vmem:[%s6 + $0x30] sm:$0xff]
  %v5141 = vld [vmem:[%s6 + $0x38] sm:$0xff]
  %5143 = vset.pattern.permute.xlu0 0
  %5144 = vperm.xlu0 %5143, %v5134
  %v5145 = vpop.permute.xlu0 %5144
  %5148 = vset.pattern.permute.xlu0 0
  %5149 = vperm.xlu0 %5148, %v5135
  %v5150 = vpop.permute.xlu0 %5149
  %5153 = vset.pattern.permute.xlu0 0
  %5154 = vperm.xlu0 %5153, %v5136
  %v5155 = vpop.permute.xlu0 %5154
  %5158 = vset.pattern.permute.xlu0 0
  %5159 = vperm.xlu0 %5158, %v5137
  %v5160 = vpop.permute.xlu0 %5159
  %5163 = vset.pattern.permute.xlu0 0
  %5164 = vperm.xlu0 %5163, %v5138
  %v5165 = vpop.permute.xlu0 %5164
  %5168 = vset.pattern.permute.xlu0 0
  %5169 = vperm.xlu0 %5168, %v5139
  %v5170 = vpop.permute.xlu0 %5169
  %5173 = vset.pattern.permute.xlu0 0
  %5174 = vperm.xlu0 %5173, %v5140
  %v5175 = vpop.permute.xlu0 %5174
  %5178 = vset.pattern.permute.xlu0 0
  %5179 = vperm.xlu0 %5178, %v5141
  %v5180 = vpop.permute.xlu0 %5179
  %v5183 = vsel %vm4698, %v5126, 0
  %v5186 = vsel %vm4698, %v5127, 0
  %v5189 = vsel %vm4698, %v5128, 0
  %v5192 = vsel %vm4698, %v5129, 0
  %v5195 = vsel %vm4698, %v5130, 0
  %v5198 = vsel %vm4698, %v5131, 0
  %v5201 = vsel %vm4698, %v5132, 0
  %v5204 = vsel %vm4698, %v5133, 0
  %5206 = vmatprep.subr.mxu0 0.0
  %5207 = vmatpush1.msra.mxu0 %v4630
  %5208 = vmatprep.subr.mxu0 0.0
  %5209 = vmatpush1.msra.mxu0 %v4637
  %5210 = vmatprep.subr.mxu0 0.0
  %5211 = vmatpush1.msra.mxu0 0.0
  %5212 = vmatprep.subr.mxu0 0.0
  %5213 = vmatpush1.msra.mxu0 0.0
  %5214 = vmatprep.subr.mxu0 0.0
  %5215 = vmatpush1.msra.mxu0 0.0
  %5216 = vmatprep.subr.mxu0 0.0
  %5217 = vmatpush1.msra.mxu0 0.0
  %5218 = vmatprep.subr.mxu0 0.0
  %5219 = vmatpush1.msra.mxu0 0.0
  %5220 = vmatprep.subr.mxu0 0.0
  %5221 = vmatpush1.msra.mxu0 0.0
  %5222 = vmatprep.subr.mxu0 0.0
  %5223 = vmatpush1.msra.mxu0 0.0
  %5224 = vmatprep.subr.mxu0 0.0
  %5225 = vmatpush1.msra.mxu0 0.0
  %5226 = vmatprep.subr.mxu0 0.0
  %5227 = vmatpush1.msra.mxu0 0.0
  %5228 = vmatprep.subr.mxu0 0.0
  %5229 = vmatpush1.msra.mxu0 0.0
  %5230 = vmatprep.subr.mxu0 0.0
  %5231 = vmatpush1.msra.mxu0 0.0
  %5232 = vmatprep.subr.mxu0 0.0
  %5233 = vmatpush1.msra.mxu0 0.0
  %5234 = vmatprep.subr.mxu0 0.0
  %5235 = vmatpush1.msra.mxu0 0.0
  %5236 = vmatprep.subr.mxu0 0.0
  %5237 = vmatpush1.msra.mxu0 0.0
  %5238 = vmatprep.subr.mxu0 0.0
  %5239 = vmatpush1.msra.mxu0 0.0
  %5240 = vmatprep.subr.mxu0 0.0
  %5241 = vmatpush1.msra.mxu0 0.0
  %5242 = vmatprep.subr.mxu0 0.0
  %5243 = vmatpush1.msra.mxu0 0.0
  %5244 = vmatprep.subr.mxu0 0.0
  %5245 = vmatpush1.msra.mxu0 0.0
  %5246 = vmatprep.subr.mxu0 0.0
  %5247 = vmatpush1.msra.mxu0 0.0
  %5248 = vmatprep.subr.mxu0 0.0
  %5249 = vmatpush1.msra.mxu0 0.0
  %5250 = vmatprep.subr.mxu0 0.0
  %5251 = vmatpush1.msra.mxu0 0.0
  %5252 = vmatprep.subr.mxu0 0.0
  %5253 = vmatpush1.msra.mxu0 0.0
  %5254 = vmatprep.subr.mxu0 0.0
  %5255 = vmatpush1.msra.mxu0 0.0
  %5256 = vmatprep.subr.mxu0 0.0
  %5257 = vmatpush1.msra.mxu0 0.0
  %5258 = vmatprep.subr.mxu0 0.0
  %5259 = vmatpush1.msra.mxu0 0.0
  %5260 = vmatprep.subr.mxu0 0.0
  %5261 = vmatpush1.msra.mxu0 0.0
  %5262 = vmatprep.subr.mxu0 0.0
  %5263 = vmatpush1.msra.mxu0 0.0
  %5264 = vmatprep.subr.mxu0 0.0
  %5265 = vmatpush1.msra.mxu0 0.0
  %5266 = vmatprep.subr.mxu0 0.0
  %5267 = vmatpush1.msra.mxu0 0.0
  %5268 = vmatprep.subr.mxu0 0.0
  %5269 = vmatpush1.msra.mxu0 0.0
  %5270 = vmatprep.mubr.f32.mxu0 0.0
  %5271 = vmatmul.mubr.f32.gmra.mrb[0].mxu0 %v5183
  %v5272 = vpop.f32.mrb[0].mxu0
  %v5273 = vadd.f32 %v5145, %v5272
  %v5274 = vpop.f32.mrb[0].mxu0
  %5275 = vmatprep.mubr.f32.mxu0 0.0
  %5276 = vmatmul.mubr.f32.gmra.mrb[0].mxu0 %v5186
  %v5277 = vpop.f32.mrb[0].mxu0
  %v5278 = vadd.f32 %v5150, %v5277
  %v5279 = vpop.f32.mrb[0].mxu0
  %5280 = vmatprep.mubr.f32.mxu0 0.0
  %5281 = vmatmul.mubr.f32.gmra.mrb[0].mxu0 %v5189
  %v5282 = vpop.f32.mrb[0].mxu0
  %v5283 = vadd.f32 %v5155, %v5282
  %v5284 = vpop.f32.mrb[0].mxu0
  %5285 = vmatprep.mubr.f32.mxu0 0.0
  %5286 = vmatmul.mubr.f32.gmra.mrb[0].mxu0 %v5192
  %v5287 = vpop.f32.mrb[0].mxu0
  %v5288 = vadd.f32 %v5160, %v5287
  %v5289 = vpop.f32.mrb[0].mxu0
  %5290 = vmatprep.mubr.f32.mxu0 0.0
  %5291 = vmatmul.mubr.f32.gmra.mrb[0].mxu0 %v5195
  %v5292 = vpop.f32.mrb[0].mxu0
  %v5293 = vadd.f32 %v5165, %v5292
  %v5294 = vpop.f32.mrb[0].mxu0
  %5295 = vmatprep.mubr.f32.mxu0 0.0
  %5296 = vmatmul.mubr.f32.gmra.mrb[0].mxu0 %v5198
  %v5297 = vpop.f32.mrb[0].mxu0
  %v5298 = vadd.f32 %v5170, %v5297
  %v5299 = vpop.f32.mrb[0].mxu0
  %5300 = vmatprep.mubr.f32.mxu0 0.0
  %5301 = vmatmul.mubr.f32.gmra.mrb[0].mxu0 %v5201
  %v5302 = vpop.f32.mrb[0].mxu0
  %v5303 = vadd.f32 %v5175, %v5302
  %v5304 = vpop.f32.mrb[0].mxu0
  %5305 = vmatprep.mubr.f32.mxu0 0.0
  %5306 = vmatmul.mubr.f32.gmra.mrb[0].mxu0 %v5204
  %v5307 = vpop.f32.mrb[0].mxu0
  %v5308 = vadd.f32 %v5180, %v5307
  %v5309 = vpop.f32.mrb[0].mxu0
  %5310 = vdwg.mxu0
  %v5311 = vxor.u32 %v5273, 2147483648
  %v5312 = vxor.u32 %v5278, 2147483648
  %v5313 = vxor.u32 %v5283, 2147483648
  %v5314 = vxor.u32 %v5288, 2147483648
  %v5315 = vxor.u32 %v5293, 2147483648
  %v5316 = vxor.u32 %v5298, 2147483648
  %v5317 = vxor.u32 %v5303, 2147483648
  %v5318 = vxor.u32 %v5308, 2147483648
  %v5319 = vmul.f32 %v5311, 1.442695
  %v5320 = vpow.pop %v5319
  %v5321 = vmul.f32 %v5312, 1.442695
  %v5322 = vpow.pop %v5321
  %v5323 = vmul.f32 %v5313, 1.442695
  %v5324 = vpow.pop %v5323
  %v5325 = vmul.f32 %v5314, 1.442695
  %v5326 = vpow.pop %v5325
  %v5327 = vmul.f32 %v5315, 1.442695
  %v5328 = vpow.pop %v5327
  %v5329 = vmul.f32 %v5316, 1.442695
  %v5330 = vpow.pop %v5329
  %v5331 = vmul.f32 %v5317, 1.442695
  %v5332 = vpow.pop %v5331
  %v5333 = vmul.f32 %v5318, 1.442695
  %v5334 = vpow.pop %v5333
  %v5335 = vadd.f32 %v5320, 1.0
  %v5336 = vadd.f32 %v5322, 1.0
  %v5337 = vadd.f32 %v5324, 1.0
  %v5338 = vadd.f32 %v5326, 1.0
  %v5339 = vadd.f32 %v5328, 1.0
  %v5340 = vadd.f32 %v5330, 1.0
  %v5341 = vadd.f32 %v5332, 1.0
  %v5342 = vadd.f32 %v5334, 1.0
  %v5343 = vrcp.pop %v5335
  %v5344 = vmul.f32 1.0, %v5343
  %v5345 = vrcp.pop %v5336
  %v5346 = vmul.f32 1.0, %v5345
  %v5347 = vrcp.pop %v5337
  %v5348 = vmul.f32 1.0, %v5347
  %v5349 = vrcp.pop %v5338
  %v5350 = vmul.f32 1.0, %v5349
  %v5351 = vrcp.pop %v5339
  %v5352 = vmul.f32 1.0, %v5351
  %v5353 = vrcp.pop %v5340
  %v5354 = vmul.f32 1.0, %v5353
  %v5355 = vrcp.pop %v5341
  %v5356 = vmul.f32 1.0, %v5355
  %v5357 = vrcp.pop %v5342
  %v5358 = vmul.f32 1.0, %v5357
  %5359 = vst [vmem:[#allocation3 + $0x10] sm:$0xff] %v5344
  %5360 = vst [vmem:[#allocation3 + $0x48] sm:$0xff] %v5346
  %5361 = vst [vmem:[#allocation3 + $0x80] sm:$0xff] %v5348
  %5362 = vst [vmem:[#allocation3 + $0xb8] sm:$0xff] %v5350
  %5363 = vst [vmem:[%s4880 + $0x10] sm:$0xff] %v5352
  %5364 = vst [vmem:[%s4880 + $0x48] sm:$0xff] %v5354
  %5365 = vst [vmem:[%s4880 + $0x80] sm:$0xff] %v5356
  %5366 = vst [vmem:[%s4880 + $0xb8] sm:$0xff] %v5358
  %v5367 = vld [vmem:[%s5] sm:$0xff]
  %v5368 = vld [vmem:[%s5 + $0x8] sm:$0xff]
  %v5369 = vld [vmem:[%s5 + $0x10] sm:$0xff]
  %v5370 = vld [vmem:[%s5 + $0x18] sm:$0xff]
  %v5371 = vld [vmem:[%s5 + $0x20] sm:$0xff]
  %v5372 = vld [vmem:[%s5 + $0x28] sm:$0xff]
  %v5373 = vld [vmem:[%s5 + $0x30] sm:$0xff]
  %v5374 = vld [vmem:[%s5 + $0x38] sm:$0xff]
  %v5375 = vld [vmem:[%s6] sm:$0xff]
  %v5376 = vld [vmem:[%s6 + $0x8] sm:$0xff]
  %v5377 = vld [vmem:[%s6 + $0x10] sm:$0xff]
  %v5378 = vld [vmem:[%s6 + $0x18] sm:$0xff]
  %v5379 = vld [vmem:[%s6 + $0x20] sm:$0xff]
  %v5380 = vld [vmem:[%s6 + $0x28] sm:$0xff]
  %v5381 = vld [vmem:[%s6 + $0x30] sm:$0xff]
  %v5382 = vld [vmem:[%s6 + $0x38] sm:$0xff]
  %5384 = vset.pattern.permute.xlu0 0
  %5385 = vperm.xlu0 %5384, %v5375
  %v5386 = vpop.permute.xlu0 %5385
  %5389 = vset.pattern.permute.xlu0 0
  %5390 = vperm.xlu0 %5389, %v5376
  %v5391 = vpop.permute.xlu0 %5390
  %5394 = vset.pattern.permute.xlu0 0
  %5395 = vperm.xlu0 %5394, %v5377
  %v5396 = vpop.permute.xlu0 %5395
  %5399 = vset.pattern.permute.xlu0 0
  %5400 = vperm.xlu0 %5399, %v5378
  %v5401 = vpop.permute.xlu0 %5400
  %5404 = vset.pattern.permute.xlu0 0
  %5405 = vperm.xlu0 %5404, %v5379
  %v5406 = vpop.permute.xlu0 %5405
  %5409 = vset.pattern.permute.xlu0 0
  %5410 = vperm.xlu0 %5409, %v5380
  %v5411 = vpop.permute.xlu0 %5410
  %5414 = vset.pattern.permute.xlu0 0
  %5415 = vperm.xlu0 %5414, %v5381
  %v5416 = vpop.permute.xlu0 %5415
  %5419 = vset.pattern.permute.xlu0 0
  %5420 = vperm.xlu0 %5419, %v5382
  %v5421 = vpop.permute.xlu0 %5420
  %v5424 = vsel %vm4698, %v5367, 0
  %v5427 = vsel %vm4698, %v5368, 0
  %v5430 = vsel %vm4698, %v5369, 0
  %v5433 = vsel %vm4698, %v5370, 0
  %v5436 = vsel %vm4698, %v5371, 0
  %v5439 = vsel %vm4698, %v5372, 0
  %v5442 = vsel %vm4698, %v5373, 0
  %v5445 = vsel %vm4698, %v5374, 0
  %5447 = vmatprep.subr.mxu0 0.0
  %5448 = vmatpush1.msra.mxu0 %v4631
  %5449 = vmatprep.subr.mxu0 0.0
  %5450 = vmatpush1.msra.mxu0 %v4638
  %5451 = vmatprep.subr.mxu0 0.0
  %5452 = vmatpush1.msra.mxu0 0.0
  %5453 = vmatprep.subr.mxu0 0.0
  %5454 = vmatpush1.msra.mxu0 0.0
  %5455 = vmatprep.subr.mxu0 0.0
  %5456 = vmatpush1.msra.mxu0 0.0
  %5457 = vmatprep.subr.mxu0 0.0
  %5458 = vmatpush1.msra.mxu0 0.0
  %5459 = vmatprep.subr.mxu0 0.0
  %5460 = vmatpush1.msra.mxu0 0.0
  %5461 = vmatprep.subr.mxu0 0.0
  %5462 = vmatpush1.msra.mxu0 0.0
  %5463 = vmatprep.subr.mxu0 0.0
  %5464 = vmatpush1.msra.mxu0 0.0
  %5465 = vmatprep.subr.mxu0 0.0
  %5466 = vmatpush1.msra.mxu0 0.0
  %5467 = vmatprep.subr.mxu0 0.0
  %5468 = vmatpush1.msra.mxu0 0.0
  %5469 = vmatprep.subr.mxu0 0.0
  %5470 = vmatpush1.msra.mxu0 0.0
  %5471 = vmatprep.subr.mxu0 0.0
  %5472 = vmatpush1.msra.mxu0 0.0
  %5473 = vmatprep.subr.mxu0 0.0
  %5474 = vmatpush1.msra.mxu0 0.0
  %5475 = vmatprep.subr.mxu0 0.0
  %5476 = vmatpush1.msra.mxu0 0.0
  %5477 = vmatprep.subr.mxu0 0.0
  %5478 = vmatpush1.msra.mxu0 0.0
  %5479 = vmatprep.subr.mxu0 0.0
  %5480 = vmatpush1.msra.mxu0 0.0
  %5481 = vmatprep.subr.mxu0 0.0
  %5482 = vmatpush1.msra.mxu0 0.0
  %5483 = vmatprep.subr.mxu0 0.0
  %5484 = vmatpush1.msra.mxu0 0.0
  %5485 = vmatprep.subr.mxu0 0.0
  %5486 = vmatpush1.msra.mxu0 0.0
  %5487 = vmatprep.subr.mxu0 0.0
  %5488 = vmatpush1.msra.mxu0 0.0
  %5489 = vmatprep.subr.mxu0 0.0
  %5490 = vmatpush1.msra.mxu0 0.0
  %5491 = vmatprep.subr.mxu0 0.0
  %5492 = vmatpush1.msra.mxu0 0.0
  %5493 = vmatprep.subr.mxu0 0.0
  %5494 = vmatpush1.msra.mxu0 0.0
  %5495 = vmatprep.subr.mxu0 0.0
  %5496 = vmatpush1.msra.mxu0 0.0
  %5497 = vmatprep.subr.mxu0 0.0
  %5498 = vmatpush1.msra.mxu0 0.0
  %5499 = vmatprep.subr.mxu0 0.0
  %5500 = vmatpush1.msra.mxu0 0.0
  %5501 = vmatprep.subr.mxu0 0.0
  %5502 = vmatpush1.msra.mxu0 0.0
  %5503 = vmatprep.subr.mxu0 0.0
  %5504 = vmatpush1.msra.mxu0 0.0
  %5505 = vmatprep.subr.mxu0 0.0
  %5506 = vmatpush1.msra.mxu0 0.0
  %5507 = vmatprep.subr.mxu0 0.0
  %5508 = vmatpush1.msra.mxu0 0.0
  %5509 = vmatprep.subr.mxu0 0.0
  %5510 = vmatpush1.msra.mxu0 0.0
  %5511 = vmatprep.mubr.f32.mxu0 0.0
  %5512 = vmatmul.mubr.f32.gmra.mrb[0].mxu0 %v5424
  %v5513 = vpop.f32.mrb[0].mxu0
  %v5514 = vadd.f32 %v5386, %v5513
  %v5515 = vpop.f32.mrb[0].mxu0
  %5516 = vmatprep.mubr.f32.mxu0 0.0
  %5517 = vmatmul.mubr.f32.gmra.mrb[0].mxu0 %v5427
  %v5518 = vpop.f32.mrb[0].mxu0
  %v5519 = vadd.f32 %v5391, %v5518
  %v5520 = vpop.f32.mrb[0].mxu0
  %5521 = vmatprep.mubr.f32.mxu0 0.0
  %5522 = vmatmul.mubr.f32.gmra.mrb[0].mxu0 %v5430
  %v5523 = vpop.f32.mrb[0].mxu0
  %v5524 = vadd.f32 %v5396, %v5523
  %v5525 = vpop.f32.mrb[0].mxu0
  %5526 = vmatprep.mubr.f32.mxu0 0.0
  %5527 = vmatmul.mubr.f32.gmra.mrb[0].mxu0 %v5433
  %v5528 = vpop.f32.mrb[0].mxu0
  %v5529 = vadd.f32 %v5401, %v5528
  %v5530 = vpop.f32.mrb[0].mxu0
  %5531 = vmatprep.mubr.f32.mxu0 0.0
  %5532 = vmatmul.mubr.f32.gmra.mrb[0].mxu0 %v5436
  %v5533 = vpop.f32.mrb[0].mxu0
  %v5534 = vadd.f32 %v5406, %v5533
  %v5535 = vpop.f32.mrb[0].mxu0
  %5536 = vmatprep.mubr.f32.mxu0 0.0
  %5537 = vmatmul.mubr.f32.gmra.mrb[0].mxu0 %v5439
  %v5538 = vpop.f32.mrb[0].mxu0
  %v5539 = vadd.f32 %v5411, %v5538
  %v5540 = vpop.f32.mrb[0].mxu0
  %5541 = vmatprep.mubr.f32.mxu0 0.0
  %5542 = vmatmul.mubr.f32.gmra.mrb[0].mxu0 %v5442
  %v5543 = vpop.f32.mrb[0].mxu0
  %v5544 = vadd.f32 %v5416, %v5543
  %v5545 = vpop.f32.mrb[0].mxu0
  %5546 = vmatprep.mubr.f32.mxu0 0.0
  %5547 = vmatmul.mubr.f32.gmra.mrb[0].mxu0 %v5445
  %v5548 = vpop.f32.mrb[0].mxu0
  %v5549 = vadd.f32 %v5421, %v5548
  %v5550 = vpop.f32.mrb[0].mxu0
  %5551 = vdwg.mxu0
  %v5552 = vxor.u32 %v5514, 2147483648
  %v5553 = vxor.u32 %v5519, 2147483648
  %v5554 = vxor.u32 %v5524, 2147483648
  %v5555 = vxor.u32 %v5529, 2147483648
  %v5556 = vxor.u32 %v5534, 2147483648
  %v5557 = vxor.u32 %v5539, 2147483648
  %v5558 = vxor.u32 %v5544, 2147483648
  %v5559 = vxor.u32 %v5549, 2147483648
  %v5560 = vmul.f32 %v5552, 1.442695
  %v5561 = vpow.pop %v5560
  %v5562 = vmul.f32 %v5553, 1.442695
  %v5563 = vpow.pop %v5562
  %v5564 = vmul.f32 %v5554, 1.442695
  %v5565 = vpow.pop %v5564
  %v5566 = vmul.f32 %v5555, 1.442695
  %v5567 = vpow.pop %v5566
  %v5568 = vmul.f32 %v5556, 1.442695
  %v5569 = vpow.pop %v5568
  %v5570 = vmul.f32 %v5557, 1.442695
  %v5571 = vpow.pop %v5570
  %v5572 = vmul.f32 %v5558, 1.442695
  %v5573 = vpow.pop %v5572
  %v5574 = vmul.f32 %v5559, 1.442695
  %v5575 = vpow.pop %v5574
  %v5576 = vadd.f32 %v5561, 1.0
  %v5577 = vadd.f32 %v5563, 1.0
  %v5578 = vadd.f32 %v5565, 1.0
  %v5579 = vadd.f32 %v5567, 1.0
  %v5580 = vadd.f32 %v5569, 1.0
  %v5581 = vadd.f32 %v5571, 1.0
  %v5582 = vadd.f32 %v5573, 1.0
  %v5583 = vadd.f32 %v5575, 1.0
  %v5584 = vrcp.pop %v5576
  %v5585 = vmul.f32 1.0, %v5584
  %v5586 = vrcp.pop %v5577
  %v5587 = vmul.f32 1.0, %v5586
  %v5588 = vrcp.pop %v5578
  %v5589 = vmul.f32 1.0, %v5588
  %v5590 = vrcp.pop %v5579
  %v5591 = vmul.f32 1.0, %v5590
  %v5592 = vrcp.pop %v5580
  %v5593 = vmul.f32 1.0, %v5592
  %v5594 = vrcp.pop %v5581
  %v5595 = vmul.f32 1.0, %v5594
  %v5596 = vrcp.pop %v5582
  %v5597 = vmul.f32 1.0, %v5596
  %v5598 = vrcp.pop %v5583
  %v5599 = vmul.f32 1.0, %v5598
  %5600 = vst [vmem:[#allocation3 + $0x18] sm:$0xff] %v5585
  %5601 = vst [vmem:[#allocation3 + $0x50] sm:$0xff] %v5587
  %5602 = vst [vmem:[#allocation3 + $0x88] sm:$0xff] %v5589
  %5603 = vst [vmem:[#allocation3 + $0xc0] sm:$0xff] %v5591
  %5604 = vst [vmem:[%s4880 + $0x18] sm:$0xff] %v5593
  %5605 = vst [vmem:[%s4880 + $0x50] sm:$0xff] %v5595
  %5606 = vst [vmem:[%s4880 + $0x88] sm:$0xff] %v5597
  %5607 = vst [vmem:[%s4880 + $0xc0] sm:$0xff] %v5599
  %v5608 = vld [vmem:[%s5] sm:$0xff]
  %v5609 = vld [vmem:[%s5 + $0x8] sm:$0xff]
  %v5610 = vld [vmem:[%s5 + $0x10] sm:$0xff]
  %v5611 = vld [vmem:[%s5 + $0x18] sm:$0xff]
  %v5612 = vld [vmem:[%s5 + $0x20] sm:$0xff]
  %v5613 = vld [vmem:[%s5 + $0x28] sm:$0xff]
  %v5614 = vld [vmem:[%s5 + $0x30] sm:$0xff]
  %v5615 = vld [vmem:[%s5 + $0x38] sm:$0xff]
  %v5616 = vld [vmem:[%s6] sm:$0xff]
  %v5617 = vld [vmem:[%s6 + $0x8] sm:$0xff]
  %v5618 = vld [vmem:[%s6 + $0x10] sm:$0xff]
  %v5619 = vld [vmem:[%s6 + $0x18] sm:$0xff]
  %v5620 = vld [vmem:[%s6 + $0x20] sm:$0xff]
  %v5621 = vld [vmem:[%s6 + $0x28] sm:$0xff]
  %v5622 = vld [vmem:[%s6 + $0x30] sm:$0xff]
  %v5623 = vld [vmem:[%s6 + $0x38] sm:$0xff]
  %5625 = vset.pattern.permute.xlu0 0
  %5626 = vperm.xlu0 %5625, %v5616
  %v5627 = vpop.permute.xlu0 %5626
  %5630 = vset.pattern.permute.xlu0 0
  %5631 = vperm.xlu0 %5630, %v5617
  %v5632 = vpop.permute.xlu0 %5631
  %5635 = vset.pattern.permute.xlu0 0
  %5636 = vperm.xlu0 %5635, %v5618
  %v5637 = vpop.permute.xlu0 %5636
  %5640 = vset.pattern.permute.xlu0 0
  %5641 = vperm.xlu0 %5640, %v5619
  %v5642 = vpop.permute.xlu0 %5641
  %5645 = vset.pattern.permute.xlu0 0
  %5646 = vperm.xlu0 %5645, %v5620
  %v5647 = vpop.permute.xlu0 %5646
  %5650 = vset.pattern.permute.xlu0 0
  %5651 = vperm.xlu0 %5650, %v5621
  %v5652 = vpop.permute.xlu0 %5651
  %5655 = vset.pattern.permute.xlu0 0
  %5656 = vperm.xlu0 %5655, %v5622
  %v5657 = vpop.permute.xlu0 %5656
  %5660 = vset.pattern.permute.xlu0 0
  %5661 = vperm.xlu0 %5660, %v5623
  %v5662 = vpop.permute.xlu0 %5661
  %v5665 = vsel %vm4698, %v5608, 0
  %v5668 = vsel %vm4698, %v5609, 0
  %v5671 = vsel %vm4698, %v5610, 0
  %v5674 = vsel %vm4698, %v5611, 0
  %v5677 = vsel %vm4698, %v5612, 0
  %v5680 = vsel %vm4698, %v5613, 0
  %v5683 = vsel %vm4698, %v5614, 0
  %v5686 = vsel %vm4698, %v5615, 0
  %5688 = vmatprep.subr.mxu0 0.0
  %5689 = vmatpush1.msra.mxu0 %v4632
  %5690 = vmatprep.subr.mxu0 0.0
  %5691 = vmatpush1.msra.mxu0 %v4639
  %5692 = vmatprep.subr.mxu0 0.0
  %5693 = vmatpush1.msra.mxu0 0.0
  %5694 = vmatprep.subr.mxu0 0.0
  %5695 = vmatpush1.msra.mxu0 0.0
  %5696 = vmatprep.subr.mxu0 0.0
  %5697 = vmatpush1.msra.mxu0 0.0
  %5698 = vmatprep.subr.mxu0 0.0
  %5699 = vmatpush1.msra.mxu0 0.0
  %5700 = vmatprep.subr.mxu0 0.0
  %5701 = vmatpush1.msra.mxu0 0.0
  %5702 = vmatprep.subr.mxu0 0.0
  %5703 = vmatpush1.msra.mxu0 0.0
  %5704 = vmatprep.subr.mxu0 0.0
  %5705 = vmatpush1.msra.mxu0 0.0
  %5706 = vmatprep.subr.mxu0 0.0
  %5707 = vmatpush1.msra.mxu0 0.0
  %5708 = vmatprep.subr.mxu0 0.0
  %5709 = vmatpush1.msra.mxu0 0.0
  %5710 = vmatprep.subr.mxu0 0.0
  %5711 = vmatpush1.msra.mxu0 0.0
  %5712 = vmatprep.subr.mxu0 0.0
  %5713 = vmatpush1.msra.mxu0 0.0
  %5714 = vmatprep.subr.mxu0 0.0
  %5715 = vmatpush1.msra.mxu0 0.0
  %5716 = vmatprep.subr.mxu0 0.0
  %5717 = vmatpush1.msra.mxu0 0.0
  %5718 = vmatprep.subr.mxu0 0.0
  %5719 = vmatpush1.msra.mxu0 0.0
  %5720 = vmatprep.subr.mxu0 0.0
  %5721 = vmatpush1.msra.mxu0 0.0
  %5722 = vmatprep.subr.mxu0 0.0
  %5723 = vmatpush1.msra.mxu0 0.0
  %5724 = vmatprep.subr.mxu0 0.0
  %5725 = vmatpush1.msra.mxu0 0.0
  %5726 = vmatprep.subr.mxu0 0.0
  %5727 = vmatpush1.msra.mxu0 0.0
  %5728 = vmatprep.subr.mxu0 0.0
  %5729 = vmatpush1.msra.mxu0 0.0
  %5730 = vmatprep.subr.mxu0 0.0
  %5731 = vmatpush1.msra.mxu0 0.0
  %5732 = vmatprep.subr.mxu0 0.0
  %5733 = vmatpush1.msra.mxu0 0.0
  %5734 = vmatprep.subr.mxu0 0.0
  %5735 = vmatpush1.msra.mxu0 0.0
  %5736 = vmatprep.subr.mxu0 0.0
  %5737 = vmatpush1.msra.mxu0 0.0
  %5738 = vmatprep.subr.mxu0 0.0
  %5739 = vmatpush1.msra.mxu0 0.0
  %5740 = vmatprep.subr.mxu0 0.0
  %5741 = vmatpush1.msra.mxu0 0.0
  %5742 = vmatprep.subr.mxu0 0.0
  %5743 = vmatpush1.msra.mxu0 0.0
  %5744 = vmatprep.subr.mxu0 0.0
  %5745 = vmatpush1.msra.mxu0 0.0
  %5746 = vmatprep.subr.mxu0 0.0
  %5747 = vmatpush1.msra.mxu0 0.0
  %5748 = vmatprep.subr.mxu0 0.0
  %5749 = vmatpush1.msra.mxu0 0.0
  %5750 = vmatprep.subr.mxu0 0.0
  %5751 = vmatpush1.msra.mxu0 0.0
  %5752 = vmatprep.mubr.f32.mxu0 0.0
  %5753 = vmatmul.mubr.f32.gmra.mrb[0].mxu0 %v5665
  %v5754 = vpop.f32.mrb[0].mxu0
  %v5755 = vadd.f32 %v5627, %v5754
  %v5756 = vpop.f32.mrb[0].mxu0
  %5757 = vmatprep.mubr.f32.mxu0 0.0
  %5758 = vmatmul.mubr.f32.gmra.mrb[0].mxu0 %v5668
  %v5759 = vpop.f32.mrb[0].mxu0
  %v5760 = vadd.f32 %v5632, %v5759
  %v5761 = vpop.f32.mrb[0].mxu0
  %5762 = vmatprep.mubr.f32.mxu0 0.0
  %5763 = vmatmul.mubr.f32.gmra.mrb[0].mxu0 %v5671
  %v5764 = vpop.f32.mrb[0].mxu0
  %v5765 = vadd.f32 %v5637, %v5764
  %v5766 = vpop.f32.mrb[0].mxu0
  %5767 = vmatprep.mubr.f32.mxu0 0.0
  %5768 = vmatmul.mubr.f32.gmra.mrb[0].mxu0 %v5674
  %v5769 = vpop.f32.mrb[0].mxu0
  %v5770 = vadd.f32 %v5642, %v5769
  %v5771 = vpop.f32.mrb[0].mxu0
  %5772 = vmatprep.mubr.f32.mxu0 0.0
  %5773 = vmatmul.mubr.f32.gmra.mrb[0].mxu0 %v5677
  %v5774 = vpop.f32.mrb[0].mxu0
  %v5775 = vadd.f32 %v5647, %v5774
  %v5776 = vpop.f32.mrb[0].mxu0
  %5777 = vmatprep.mubr.f32.mxu0 0.0
  %5778 = vmatmul.mubr.f32.gmra.mrb[0].mxu0 %v5680
  %v5779 = vpop.f32.mrb[0].mxu0
  %v5780 = vadd.f32 %v5652, %v5779
  %v5781 = vpop.f32.mrb[0].mxu0
  %5782 = vmatprep.mubr.f32.mxu0 0.0
  %5783 = vmatmul.mubr.f32.gmra.mrb[0].mxu0 %v5683
  %v5784 = vpop.f32.mrb[0].mxu0
  %v5785 = vadd.f32 %v5657, %v5784
  %v5786 = vpop.f32.mrb[0].mxu0
  %5787 = vmatprep.mubr.f32.mxu0 0.0
  %5788 = vmatmul.mubr.f32.gmra.mrb[0].mxu0 %v5686
  %v5789 = vpop.f32.mrb[0].mxu0
  %v5790 = vadd.f32 %v5662, %v5789
  %v5791 = vpop.f32.mrb[0].mxu0
  %5792 = vdwg.mxu0
  %v5793 = vxor.u32 %v5755, 2147483648
  %v5794 = vxor.u32 %v5760, 2147483648
  %v5795 = vxor.u32 %v5765, 2147483648
  %v5796 = vxor.u32 %v5770, 2147483648
  %v5797 = vxor.u32 %v5775, 2147483648
  %v5798 = vxor.u32 %v5780, 2147483648
  %v5799 = vxor.u32 %v5785, 2147483648
  %v5800 = vxor.u32 %v5790, 2147483648
  %v5801 = vmul.f32 %v5793, 1.442695
  %v5802 = vpow.pop %v5801
  %v5803 = vmul.f32 %v5794, 1.442695
  %v5804 = vpow.pop %v5803
  %v5805 = vmul.f32 %v5795, 1.442695
  %v5806 = vpow.pop %v5805
  %v5807 = vmul.f32 %v5796, 1.442695
  %v5808 = vpow.pop %v5807
  %v5809 = vmul.f32 %v5797, 1.442695
  %v5810 = vpow.pop %v5809
  %v5811 = vmul.f32 %v5798, 1.442695
  %v5812 = vpow.pop %v5811
  %v5813 = vmul.f32 %v5799, 1.442695
  %v5814 = vpow.pop %v5813
  %v5815 = vmul.f32 %v5800, 1.442695
  %v5816 = vpow.pop %v5815
  %v5817 = vadd.f32 %v5802, 1.0
  %v5818 = vadd.f32 %v5804, 1.0
  %v5819 = vadd.f32 %v5806, 1.0
  %v5820 = vadd.f32 %v5808, 1.0
  %v5821 = vadd.f32 %v5810, 1.0
  %v5822 = vadd.f32 %v5812, 1.0
  %v5823 = vadd.f32 %v5814, 1.0
  %v5824 = vadd.f32 %v5816, 1.0
  %v5825 = vrcp.pop %v5817
  %v5826 = vmul.f32 1.0, %v5825
  %v5827 = vrcp.pop %v5818
  %v5828 = vmul.f32 1.0, %v5827
  %v5829 = vrcp.pop %v5819
  %v5830 = vmul.f32 1.0, %v5829
  %v5831 = vrcp.pop %v5820
  %v5832 = vmul.f32 1.0, %v5831
  %v5833 = vrcp.pop %v5821
  %v5834 = vmul.f32 1.0, %v5833
  %v5835 = vrcp.pop %v5822
  %v5836 = vmul.f32 1.0, %v5835
  %v5837 = vrcp.pop %v5823
  %v5838 = vmul.f32 1.0, %v5837
  %v5839 = vrcp.pop %v5824
  %v5840 = vmul.f32 1.0, %v5839
  %5841 = vst [vmem:[#allocation3 + $0x20] sm:$0xff] %v5826
  %5842 = vst [vmem:[#allocation3 + $0x58] sm:$0xff] %v5828
  %5843 = vst [vmem:[#allocation3 + $0x90] sm:$0xff] %v5830
  %5844 = vst [vmem:[#allocation3 + $0xc8] sm:$0xff] %v5832
  %5845 = vst [vmem:[%s4880 + $0x20] sm:$0xff] %v5834
  %5846 = vst [vmem:[%s4880 + $0x58] sm:$0xff] %v5836
  %5847 = vst [vmem:[%s4880 + $0x90] sm:$0xff] %v5838
  %5848 = vst [vmem:[%s4880 + $0xc8] sm:$0xff] %v5840
  %v5849 = vld [vmem:[%s5] sm:$0xff]
  %v5850 = vld [vmem:[%s5 + $0x8] sm:$0xff]
  %v5851 = vld [vmem:[%s5 + $0x10] sm:$0xff]
  %v5852 = vld [vmem:[%s5 + $0x18] sm:$0xff]
  %v5853 = vld [vmem:[%s5 + $0x20] sm:$0xff]
  %v5854 = vld [vmem:[%s5 + $0x28] sm:$0xff]
  %v5855 = vld [vmem:[%s5 + $0x30] sm:$0xff]
  %v5856 = vld [vmem:[%s5 + $0x38] sm:$0xff]
  %v5857 = vld [vmem:[%s6] sm:$0xff]
  %v5858 = vld [vmem:[%s6 + $0x8] sm:$0xff]
  %v5859 = vld [vmem:[%s6 + $0x10] sm:$0xff]
  %v5860 = vld [vmem:[%s6 + $0x18] sm:$0xff]
  %v5861 = vld [vmem:[%s6 + $0x20] sm:$0xff]
  %v5862 = vld [vmem:[%s6 + $0x28] sm:$0xff]
  %v5863 = vld [vmem:[%s6 + $0x30] sm:$0xff]
  %v5864 = vld [vmem:[%s6 + $0x38] sm:$0xff]
  %5866 = vset.pattern.permute.xlu0 0
  %5867 = vperm.xlu0 %5866, %v5857
  %v5868 = vpop.permute.xlu0 %5867
  %5871 = vset.pattern.permute.xlu0 0
  %5872 = vperm.xlu0 %5871, %v5858
  %v5873 = vpop.permute.xlu0 %5872
  %5876 = vset.pattern.permute.xlu0 0
  %5877 = vperm.xlu0 %5876, %v5859
  %v5878 = vpop.permute.xlu0 %5877
  %5881 = vset.pattern.permute.xlu0 0
  %5882 = vperm.xlu0 %5881, %v5860
  %v5883 = vpop.permute.xlu0 %5882
  %5886 = vset.pattern.permute.xlu0 0
  %5887 = vperm.xlu0 %5886, %v5861
  %v5888 = vpop.permute.xlu0 %5887
  %5891 = vset.pattern.permute.xlu0 0
  %5892 = vperm.xlu0 %5891, %v5862
  %v5893 = vpop.permute.xlu0 %5892
  %5896 = vset.pattern.permute.xlu0 0
  %5897 = vperm.xlu0 %5896, %v5863
  %v5898 = vpop.permute.xlu0 %5897
  %5901 = vset.pattern.permute.xlu0 0
  %5902 = vperm.xlu0 %5901, %v5864
  %v5903 = vpop.permute.xlu0 %5902
  %v5906 = vsel %vm4698, %v5849, 0
  %v5909 = vsel %vm4698, %v5850, 0
  %v5912 = vsel %vm4698, %v5851, 0
  %v5915 = vsel %vm4698, %v5852, 0
  %v5918 = vsel %vm4698, %v5853, 0
  %v5921 = vsel %vm4698, %v5854, 0
  %v5924 = vsel %vm4698, %v5855, 0
  %v5927 = vsel %vm4698, %v5856, 0
  %5929 = vmatprep.subr.mxu0 0.0
  %5930 = vmatpush1.msra.mxu0 %v4633
  %5931 = vmatprep.subr.mxu0 0.0
  %5932 = vmatpush1.msra.mxu0 %v4640
  %5933 = vmatprep.subr.mxu0 0.0
  %5934 = vmatpush1.msra.mxu0 0.0
  %5935 = vmatprep.subr.mxu0 0.0
  %5936 = vmatpush1.msra.mxu0 0.0
  %5937 = vmatprep.subr.mxu0 0.0
  %5938 = vmatpush1.msra.mxu0 0.0
  %5939 = vmatprep.subr.mxu0 0.0
  %5940 = vmatpush1.msra.mxu0 0.0
  %5941 = vmatprep.subr.mxu0 0.0
  %5942 = vmatpush1.msra.mxu0 0.0
  %5943 = vmatprep.subr.mxu0 0.0
  %5944 = vmatpush1.msra.mxu0 0.0
  %5945 = vmatprep.subr.mxu0 0.0
  %5946 = vmatpush1.msra.mxu0 0.0
  %5947 = vmatprep.subr.mxu0 0.0
  %5948 = vmatpush1.msra.mxu0 0.0
  %5949 = vmatprep.subr.mxu0 0.0
  %5950 = vmatpush1.msra.mxu0 0.0
  %5951 = vmatprep.subr.mxu0 0.0
  %5952 = vmatpush1.msra.mxu0 0.0
  %5953 = vmatprep.subr.mxu0 0.0
  %5954 = vmatpush1.msra.mxu0 0.0
  %5955 = vmatprep.subr.mxu0 0.0
  %5956 = vmatpush1.msra.mxu0 0.0
  %5957 = vmatprep.subr.mxu0 0.0
  %5958 = vmatpush1.msra.mxu0 0.0
  %5959 = vmatprep.subr.mxu0 0.0
  %5960 = vmatpush1.msra.mxu0 0.0
  %5961 = vmatprep.subr.mxu0 0.0
  %5962 = vmatpush1.msra.mxu0 0.0
  %5963 = vmatprep.subr.mxu0 0.0
  %5964 = vmatpush1.msra.mxu0 0.0
  %5965 = vmatprep.subr.mxu0 0.0
  %5966 = vmatpush1.msra.mxu0 0.0
  %5967 = vmatprep.subr.mxu0 0.0
  %5968 = vmatpush1.msra.mxu0 0.0
  %5969 = vmatprep.subr.mxu0 0.0
  %5970 = vmatpush1.msra.mxu0 0.0
  %5971 = vmatprep.subr.mxu0 0.0
  %5972 = vmatpush1.msra.mxu0 0.0
  %5973 = vmatprep.subr.mxu0 0.0
  %5974 = vmatpush1.msra.mxu0 0.0
  %5975 = vmatprep.subr.mxu0 0.0
  %5976 = vmatpush1.msra.mxu0 0.0
  %5977 = vmatprep.subr.mxu0 0.0
  %5978 = vmatpush1.msra.mxu0 0.0
  %5979 = vmatprep.subr.mxu0 0.0
  %5980 = vmatpush1.msra.mxu0 0.0
  %5981 = vmatprep.subr.mxu0 0.0
  %5982 = vmatpush1.msra.mxu0 0.0
  %5983 = vmatprep.subr.mxu0 0.0
  %5984 = vmatpush1.msra.mxu0 0.0
  %5985 = vmatprep.subr.mxu0 0.0
  %5986 = vmatpush1.msra.mxu0 0.0
  %5987 = vmatprep.subr.mxu0 0.0
  %5988 = vmatpush1.msra.mxu0 0.0
  %5989 = vmatprep.subr.mxu0 0.0
  %5990 = vmatpush1.msra.mxu0 0.0
  %5991 = vmatprep.subr.mxu0 0.0
  %5992 = vmatpush1.msra.mxu0 0.0
  %5993 = vmatprep.mubr.f32.mxu0 0.0
  %5994 = vmatmul.mubr.f32.gmra.mrb[0].mxu0 %v5906
  %v5995 = vpop.f32.mrb[0].mxu0
  %v5996 = vadd.f32 %v5868, %v5995
  %v5997 = vpop.f32.mrb[0].mxu0
  %5998 = vmatprep.mubr.f32.mxu0 0.0
  %5999 = vmatmul.mubr.f32.gmra.mrb[0].mxu0 %v5909
  %v6000 = vpop.f32.mrb[0].mxu0
  %v6001 = vadd.f32 %v5873, %v6000
  %v6002 = vpop.f32.mrb[0].mxu0
  %6003 = vmatprep.mubr.f32.mxu0 0.0
  %6004 = vmatmul.mubr.f32.gmra.mrb[0].mxu0 %v5912
  %v6005 = vpop.f32.mrb[0].mxu0
  %v6006 = vadd.f32 %v5878, %v6005
  %v6007 = vpop.f32.mrb[0].mxu0
  %6008 = vmatprep.mubr.f32.mxu0 0.0
  %6009 = vmatmul.mubr.f32.gmra.mrb[0].mxu0 %v5915
  %v6010 = vpop.f32.mrb[0].mxu0
  %v6011 = vadd.f32 %v5883, %v6010
  %v6012 = vpop.f32.mrb[0].mxu0
  %6013 = vmatprep.mubr.f32.mxu0 0.0
  %6014 = vmatmul.mubr.f32.gmra.mrb[0].mxu0 %v5918
  %v6015 = vpop.f32.mrb[0].mxu0
  %v6016 = vadd.f32 %v5888, %v6015
  %v6017 = vpop.f32.mrb[0].mxu0
  %6018 = vmatprep.mubr.f32.mxu0 0.0
  %6019 = vmatmul.mubr.f32.gmra.mrb[0].mxu0 %v5921
  %v6020 = vpop.f32.mrb[0].mxu0
  %v6021 = vadd.f32 %v5893, %v6020
  %v6022 = vpop.f32.mrb[0].mxu0
  %6023 = vmatprep.mubr.f32.mxu0 0.0
  %6024 = vmatmul.mubr.f32.gmra.mrb[0].mxu0 %v5924
  %v6025 = vpop.f32.mrb[0].mxu0
  %v6026 = vadd.f32 %v5898, %v6025
  %v6027 = vpop.f32.mrb[0].mxu0
  %6028 = vmatprep.mubr.f32.mxu0 0.0
  %6029 = vmatmul.mubr.f32.gmra.mrb[0].mxu0 %v5927
  %v6030 = vpop.f32.mrb[0].mxu0
  %v6031 = vadd.f32 %v5903, %v6030
  %v6032 = vpop.f32.mrb[0].mxu0
  %6033 = vdwg.mxu0
  %v6034 = vxor.u32 %v5996, 2147483648
  %v6035 = vxor.u32 %v6001, 2147483648
  %v6036 = vxor.u32 %v6006, 2147483648
  %v6037 = vxor.u32 %v6011, 2147483648
  %v6038 = vxor.u32 %v6016, 2147483648
  %v6039 = vxor.u32 %v6021, 2147483648
  %v6040 = vxor.u32 %v6026, 2147483648
  %v6041 = vxor.u32 %v6031, 2147483648
  %v6042 = vmul.f32 %v6034, 1.442695
  %v6043 = vpow.pop %v6042
  %v6044 = vmul.f32 %v6035, 1.442695
  %v6045 = vpow.pop %v6044
  %v6046 = vmul.f32 %v6036, 1.442695
  %v6047 = vpow.pop %v6046
  %v6048 = vmul.f32 %v6037, 1.442695
  %v6049 = vpow.pop %v6048
  %v6050 = vmul.f32 %v6038, 1.442695
  %v6051 = vpow.pop %v6050
  %v6052 = vmul.f32 %v6039, 1.442695
  %v6053 = vpow.pop %v6052
  %v6054 = vmul.f32 %v6040, 1.442695
  %v6055 = vpow.pop %v6054
  %v6056 = vmul.f32 %v6041, 1.442695
  %v6057 = vpow.pop %v6056
  %v6058 = vadd.f32 %v6043, 1.0
  %v6059 = vadd.f32 %v6045, 1.0
  %v6060 = vadd.f32 %v6047, 1.0
  %v6061 = vadd.f32 %v6049, 1.0
  %v6062 = vadd.f32 %v6051, 1.0
  %v6063 = vadd.f32 %v6053, 1.0
  %v6064 = vadd.f32 %v6055, 1.0
  %v6065 = vadd.f32 %v6057, 1.0
  %v6066 = vrcp.pop %v6058
  %v6067 = vmul.f32 1.0, %v6066
  %v6068 = vrcp.pop %v6059
  %v6069 = vmul.f32 1.0, %v6068
  %v6070 = vrcp.pop %v6060
  %v6071 = vmul.f32 1.0, %v6070
  %v6072 = vrcp.pop %v6061
  %v6073 = vmul.f32 1.0, %v6072
  %v6074 = vrcp.pop %v6062
  %v6075 = vmul.f32 1.0, %v6074
  %v6076 = vrcp.pop %v6063
  %v6077 = vmul.f32 1.0, %v6076
  %v6078 = vrcp.pop %v6064
  %v6079 = vmul.f32 1.0, %v6078
  %v6080 = vrcp.pop %v6065
  %v6081 = vmul.f32 1.0, %v6080
  %6082 = vst [vmem:[#allocation3 + $0x28] sm:$0xff] %v6067
  %6083 = vst [vmem:[#allocation3 + $0x60] sm:$0xff] %v6069
  %6084 = vst [vmem:[#allocation3 + $0x98] sm:$0xff] %v6071
  %6085 = vst [vmem:[#allocation3 + $0xd0] sm:$0xff] %v6073
  %6086 = vst [vmem:[%s4880 + $0x28] sm:$0xff] %v6075
  %6087 = vst [vmem:[%s4880 + $0x60] sm:$0xff] %v6077
  %6088 = vst [vmem:[%s4880 + $0x98] sm:$0xff] %v6079
  %6089 = vst [vmem:[%s4880 + $0xd0] sm:$0xff] %v6081
  %v6090 = vld [vmem:[%s5] sm:$0xff]
  %v6091 = vld [vmem:[%s5 + $0x8] sm:$0xff]
  %v6092 = vld [vmem:[%s5 + $0x10] sm:$0xff]
  %v6093 = vld [vmem:[%s5 + $0x18] sm:$0xff]
  %v6094 = vld [vmem:[%s5 + $0x20] sm:$0xff]
  %v6095 = vld [vmem:[%s5 + $0x28] sm:$0xff]
  %v6096 = vld [vmem:[%s5 + $0x30] sm:$0xff]
  %v6097 = vld [vmem:[%s5 + $0x38] sm:$0xff]
  %v6098 = vld [vmem:[%s6] sm:$0xff]
  %v6099 = vld [vmem:[%s6 + $0x8] sm:$0xff]
  %v6100 = vld [vmem:[%s6 + $0x10] sm:$0xff]
  %v6101 = vld [vmem:[%s6 + $0x18] sm:$0xff]
  %v6102 = vld [vmem:[%s6 + $0x20] sm:$0xff]
  %v6103 = vld [vmem:[%s6 + $0x28] sm:$0xff]
  %v6104 = vld [vmem:[%s6 + $0x30] sm:$0xff]
  %v6105 = vld [vmem:[%s6 + $0x38] sm:$0xff]
  %6107 = vset.pattern.permute.xlu0 0
  %6108 = vperm.xlu0 %6107, %v6098
  %v6109 = vpop.permute.xlu0 %6108
  %6112 = vset.pattern.permute.xlu0 0
  %6113 = vperm.xlu0 %6112, %v6099
  %v6114 = vpop.permute.xlu0 %6113
  %6117 = vset.pattern.permute.xlu0 0
  %6118 = vperm.xlu0 %6117, %v6100
  %v6119 = vpop.permute.xlu0 %6118
  %6122 = vset.pattern.permute.xlu0 0
  %6123 = vperm.xlu0 %6122, %v6101
  %v6124 = vpop.permute.xlu0 %6123
  %6127 = vset.pattern.permute.xlu0 0
  %6128 = vperm.xlu0 %6127, %v6102
  %v6129 = vpop.permute.xlu0 %6128
  %6132 = vset.pattern.permute.xlu0 0
  %6133 = vperm.xlu0 %6132, %v6103
  %v6134 = vpop.permute.xlu0 %6133
  %6137 = vset.pattern.permute.xlu0 0
  %6138 = vperm.xlu0 %6137, %v6104
  %v6139 = vpop.permute.xlu0 %6138
  %6142 = vset.pattern.permute.xlu0 0
  %6143 = vperm.xlu0 %6142, %v6105
  %v6144 = vpop.permute.xlu0 %6143
  %v6147 = vsel %vm4698, %v6090, 0
  %v6150 = vsel %vm4698, %v6091, 0
  %v6153 = vsel %vm4698, %v6092, 0
  %v6156 = vsel %vm4698, %v6093, 0
  %v6159 = vsel %vm4698, %v6094, 0
  %v6162 = vsel %vm4698, %v6095, 0
  %v6165 = vsel %vm4698, %v6096, 0
  %v6168 = vsel %vm4698, %v6097, 0
  %6170 = vmatprep.subr.mxu0 0.0
  %6171 = vmatpush1.msra.mxu0 %v4634
  %6172 = vmatprep.subr.mxu0 0.0
  %6173 = vmatpush1.msra.mxu0 %v4641
  %6174 = vmatprep.subr.mxu0 0.0
  %6175 = vmatpush1.msra.mxu0 0.0
  %6176 = vmatprep.subr.mxu0 0.0
  %6177 = vmatpush1.msra.mxu0 0.0
  %6178 = vmatprep.subr.mxu0 0.0
  %6179 = vmatpush1.msra.mxu0 0.0
  %6180 = vmatprep.subr.mxu0 0.0
  %6181 = vmatpush1.msra.mxu0 0.0
  %6182 = vmatprep.subr.mxu0 0.0
  %6183 = vmatpush1.msra.mxu0 0.0
  %6184 = vmatprep.subr.mxu0 0.0
  %6185 = vmatpush1.msra.mxu0 0.0
  %6186 = vmatprep.subr.mxu0 0.0
  %6187 = vmatpush1.msra.mxu0 0.0
  %6188 = vmatprep.subr.mxu0 0.0
  %6189 = vmatpush1.msra.mxu0 0.0
  %6190 = vmatprep.subr.mxu0 0.0
  %6191 = vmatpush1.msra.mxu0 0.0
  %6192 = vmatprep.subr.mxu0 0.0
  %6193 = vmatpush1.msra.mxu0 0.0
  %6194 = vmatprep.subr.mxu0 0.0
  %6195 = vmatpush1.msra.mxu0 0.0
  %6196 = vmatprep.subr.mxu0 0.0
  %6197 = vmatpush1.msra.mxu0 0.0
  %6198 = vmatprep.subr.mxu0 0.0
  %6199 = vmatpush1.msra.mxu0 0.0
  %6200 = vmatprep.subr.mxu0 0.0
  %6201 = vmatpush1.msra.mxu0 0.0
  %6202 = vmatprep.subr.mxu0 0.0
  %6203 = vmatpush1.msra.mxu0 0.0
  %6204 = vmatprep.subr.mxu0 0.0
  %6205 = vmatpush1.msra.mxu0 0.0
  %6206 = vmatprep.subr.mxu0 0.0
  %6207 = vmatpush1.msra.mxu0 0.0
  %6208 = vmatprep.subr.mxu0 0.0
  %6209 = vmatpush1.msra.mxu0 0.0
  %6210 = vmatprep.subr.mxu0 0.0
  %6211 = vmatpush1.msra.mxu0 0.0
  %6212 = vmatprep.subr.mxu0 0.0
  %6213 = vmatpush1.msra.mxu0 0.0
  %6214 = vmatprep.subr.mxu0 0.0
  %6215 = vmatpush1.msra.mxu0 0.0
  %6216 = vmatprep.subr.mxu0 0.0
  %6217 = vmatpush1.msra.mxu0 0.0
  %6218 = vmatprep.subr.mxu0 0.0
  %6219 = vmatpush1.msra.mxu0 0.0
  %6220 = vmatprep.subr.mxu0 0.0
  %6221 = vmatpush1.msra.mxu0 0.0
  %6222 = vmatprep.subr.mxu0 0.0
  %6223 = vmatpush1.msra.mxu0 0.0
  %6224 = vmatprep.subr.mxu0 0.0
  %6225 = vmatpush1.msra.mxu0 0.0
  %6226 = vmatprep.subr.mxu0 0.0
  %6227 = vmatpush1.msra.mxu0 0.0
  %6228 = vmatprep.subr.mxu0 0.0
  %6229 = vmatpush1.msra.mxu0 0.0
  %6230 = vmatprep.subr.mxu0 0.0
  %6231 = vmatpush1.msra.mxu0 0.0
  %6232 = vmatprep.subr.mxu0 0.0
  %6233 = vmatpush1.msra.mxu0 0.0
  %6234 = vmatprep.mubr.f32.mxu0 0.0
  %6235 = vmatmul.mubr.f32.gmra.mrb[0].mxu0 %v6147
  %v6236 = vpop.f32.mrb[0].mxu0
  %v6237 = vadd.f32 %v6109, %v6236
  %v6238 = vpop.f32.mrb[0].mxu0
  %6239 = vmatprep.mubr.f32.mxu0 0.0
  %6240 = vmatmul.mubr.f32.gmra.mrb[0].mxu0 %v6150
  %v6241 = vpop.f32.mrb[0].mxu0
  %v6242 = vadd.f32 %v6114, %v6241
  %v6243 = vpop.f32.mrb[0].mxu0
  %6244 = vmatprep.mubr.f32.mxu0 0.0
  %6245 = vmatmul.mubr.f32.gmra.mrb[0].mxu0 %v6153
  %v6246 = vpop.f32.mrb[0].mxu0
  %v6247 = vadd.f32 %v6119, %v6246
  %v6248 = vpop.f32.mrb[0].mxu0
  %6249 = vmatprep.mubr.f32.mxu0 0.0
  %6250 = vmatmul.mubr.f32.gmra.mrb[0].mxu0 %v6156
  %v6251 = vpop.f32.mrb[0].mxu0
  %v6252 = vadd.f32 %v6124, %v6251
  %v6253 = vpop.f32.mrb[0].mxu0
  %6254 = vmatprep.mubr.f32.mxu0 0.0
  %6255 = vmatmul.mubr.f32.gmra.mrb[0].mxu0 %v6159
  %v6256 = vpop.f32.mrb[0].mxu0
  %v6257 = vadd.f32 %v6129, %v6256
  %v6258 = vpop.f32.mrb[0].mxu0
  %6259 = vmatprep.mubr.f32.mxu0 0.0
  %6260 = vmatmul.mubr.f32.gmra.mrb[0].mxu0 %v6162
  %v6261 = vpop.f32.mrb[0].mxu0
  %v6262 = vadd.f32 %v6134, %v6261
  %v6263 = vpop.f32.mrb[0].mxu0
  %6264 = vmatprep.mubr.f32.mxu0 0.0
  %6265 = vmatmul.mubr.f32.gmra.mrb[0].mxu0 %v6165
  %v6266 = vpop.f32.mrb[0].mxu0
  %v6267 = vadd.f32 %v6139, %v6266
  %v6268 = vpop.f32.mrb[0].mxu0
  %6269 = vmatprep.mubr.f32.mxu0 0.0
  %6270 = vmatmul.mubr.f32.gmra.mrb[0].mxu0 %v6168
  %v6271 = vpop.f32.mrb[0].mxu0
  %v6272 = vadd.f32 %v6144, %v6271
  %v6273 = vpop.f32.mrb[0].mxu0
  %6274 = vdwg.mxu0
  %v6275 = vxor.u32 %v6237, 2147483648
  %v6276 = vxor.u32 %v6242, 2147483648
  %v6277 = vxor.u32 %v6247, 2147483648
  %v6278 = vxor.u32 %v6252, 2147483648
  %v6279 = vxor.u32 %v6257, 2147483648
  %v6280 = vxor.u32 %v6262, 2147483648
  %v6281 = vxor.u32 %v6267, 2147483648
  %v6282 = vxor.u32 %v6272, 2147483648
  %v6283 = vmul.f32 %v6275, 1.442695
  %v6284 = vpow.pop %v6283
  %v6285 = vmul.f32 %v6276, 1.442695
  %v6286 = vpow.pop %v6285
  %v6287 = vmul.f32 %v6277, 1.442695
  %v6288 = vpow.pop %v6287
  %v6289 = vmul.f32 %v6278, 1.442695
  %v6290 = vpow.pop %v6289
  %v6291 = vmul.f32 %v6279, 1.442695
  %v6292 = vpow.pop %v6291
  %v6293 = vmul.f32 %v6280, 1.442695
  %v6294 = vpow.pop %v6293
  %v6295 = vmul.f32 %v6281, 1.442695
  %v6296 = vpow.pop %v6295
  %v6297 = vmul.f32 %v6282, 1.442695
  %v6298 = vpow.pop %v6297
  %v6299 = vadd.f32 %v6284, 1.0
  %v6300 = vadd.f32 %v6286, 1.0
  %v6301 = vadd.f32 %v6288, 1.0
  %v6302 = vadd.f32 %v6290, 1.0
  %v6303 = vadd.f32 %v6292, 1.0
  %v6304 = vadd.f32 %v6294, 1.0
  %v6305 = vadd.f32 %v6296, 1.0
  %v6306 = vadd.f32 %v6298, 1.0
  %v6307 = vrcp.pop %v6299
  %v6308 = vmul.f32 1.0, %v6307
  %v6309 = vrcp.pop %v6300
  %v6310 = vmul.f32 1.0, %v6309
  %v6311 = vrcp.pop %v6301
  %v6312 = vmul.f32 1.0, %v6311
  %v6313 = vrcp.pop %v6302
  %v6314 = vmul.f32 1.0, %v6313
  %v6315 = vrcp.pop %v6303
  %v6316 = vmul.f32 1.0, %v6315
  %v6317 = vrcp.pop %v6304
  %v6318 = vmul.f32 1.0, %v6317
  %v6319 = vrcp.pop %v6305
  %v6320 = vmul.f32 1.0, %v6319
  %v6321 = vrcp.pop %v6306
  %v6322 = vmul.f32 1.0, %v6321
  %6323 = vst [vmem:[#allocation3 + $0x30] sm:$0xff] %v6308
  %6324 = vst [vmem:[#allocation3 + $0x68] sm:$0xff] %v6310
  %6325 = vst [vmem:[#allocation3 + $0xa0] sm:$0xff] %v6312
  %6326 = vst [vmem:[#allocation3 + $0xd8] sm:$0xff] %v6314
  %6327 = vst [vmem:[%s4880 + $0x30] sm:$0xff] %v6316
  %6328 = vst [vmem:[%s4880 + $0x68] sm:$0xff] %v6318
  %6329 = vst [vmem:[%s4880 + $0xa0] sm:$0xff] %v6320
  %6330 = vst [vmem:[%s4880 + $0xd8] sm:$0xff] %v6322
  %v6331 = vld [vmem:[#allocation3] sm:$0xff]
  %v6332 = vld [vmem:[#allocation3 + $0x38] sm:$0xff]
  %v6333 = vld [vmem:[#allocation3 + $0x70] sm:$0xff]
  %v6334 = vld [vmem:[#allocation3 + $0xa8] sm:$0xff]
  %v6335 = vld [vmem:[%s4880] sm:$0xff]
  %v6336 = vld [vmem:[%s4880 + $0x38] sm:$0xff]
  %v6337 = vld [vmem:[%s4880 + $0x70] sm:$0xff]
  %v6338 = vld [vmem:[%s4880 + $0xa8] sm:$0xff]
  %v6339 = vmul.f32 %v6331, %v6335
  %v6340 = vmul.f32 %v6332, %v6336
  %v6341 = vmul.f32 %v6333, %v6337
  %v6342 = vmul.f32 %v6334, %v6338
  %6343 = vst [vmem:[%s7] sm:$0xff] %v6339
  %6344 = vst [vmem:[%s7 + $0x8] sm:$0xff] %v6340
  %6345 = vst [vmem:[%s7 + $0x10] sm:$0xff] %v6341
  %6346 = vst [vmem:[%s7 + $0x18] sm:$0xff] %v6342
  %v6347 = vld [vmem:[%s4880 + $0x8] sm:$0xff]
  %v6348 = vld [vmem:[%s4880 + $0x40] sm:$0xff]
  %v6349 = vld [vmem:[%s4880 + $0x78] sm:$0xff]
  %v6350 = vld [vmem:[%s4880 + $0xb0] sm:$0xff]
  %v6351 = vmul.f32 %v6331, %v6347
  %v6352 = vmul.f32 %v6332, %v6348
  %v6353 = vmul.f32 %v6333, %v6349
  %v6354 = vmul.f32 %v6334, %v6350
  %s6355 = scalar_lea.vmem %s7, 32
  %6356 = vst [vmem:[%s6355] sm:$0xff] %v6351
  %6357 = vst [vmem:[%s6355 + $0x8] sm:$0xff] %v6352
  %6358 = vst [vmem:[%s6355 + $0x10] sm:$0xff] %v6353
  %6359 = vst [vmem:[%s6355 + $0x18] sm:$0xff] %v6354
  %v6360 = vld [vmem:[%s4880 + $0x10] sm:$0xff]
  %v6361 = vld [vmem:[%s4880 + $0x48] sm:$0xff]
  %v6362 = vld [vmem:[%s4880 + $0x80] sm:$0xff]
  %v6363 = vld [vmem:[%s4880 + $0xb8] sm:$0xff]
  %v6364 = vmul.f32 %v6331, %v6360
  %v6365 = vmul.f32 %v6332, %v6361
  %v6366 = vmul.f32 %v6333, %v6362
  %v6367 = vmul.f32 %v6334, %v6363
  %s6368 = scalar_lea.vmem %s7, 64
  %6369 = vst [vmem:[%s6368] sm:$0xff] %v6364
  %6370 = vst [vmem:[%s6368 + $0x8] sm:$0xff] %v6365
  %6371 = vst [vmem:[%s6368 + $0x10] sm:$0xff] %v6366
  %6372 = vst [vmem:[%s6368 + $0x18] sm:$0xff] %v6367
  %v6373 = vld [vmem:[%s4880 + $0x18] sm:$0xff]
  %v6374 = vld [vmem:[%s4880 + $0x50] sm:$0xff]
  %v6375 = vld [vmem:[%s4880 + $0x88] sm:$0xff]
  %v6376 = vld [vmem:[%s4880 + $0xc0] sm:$0xff]
  %v6377 = vmul.f32 %v6331, %v6373
  %v6378 = vmul.f32 %v6332, %v6374
  %v6379 = vmul.f32 %v6333, %v6375
  %v6380 = vmul.f32 %v6334, %v6376
  %s6381 = scalar_lea.vmem %s7, 96
  %6382 = vst [vmem:[%s6381] sm:$0xff] %v6377
  %6383 = vst [vmem:[%s6381 + $0x8] sm:$0xff] %v6378
  %6384 = vst [vmem:[%s6381 + $0x10] sm:$0xff] %v6379
  %6385 = vst [vmem:[%s6381 + $0x18] sm:$0xff] %v6380
  %v6386 = vld [vmem:[%s4880 + $0x20] sm:$0xff]
  %v6387 = vld [vmem:[%s4880 + $0x58] sm:$0xff]
  %v6388 = vld [vmem:[%s4880 + $0x90] sm:$0xff]
  %v6389 = vld [vmem:[%s4880 + $0xc8] sm:$0xff]
  %v6390 = vmul.f32 %v6331, %v6386
  %v6391 = vmul.f32 %v6332, %v6387
  %v6392 = vmul.f32 %v6333, %v6388
  %v6393 = vmul.f32 %v6334, %v6389
  %s6394 = scalar_lea.vmem %s7, 128
  %6395 = vst [vmem:[%s6394] sm:$0xff] %v6390
  %6396 = vst [vmem:[%s6394 + $0x8] sm:$0xff] %v6391
  %6397 = vst [vmem:[%s6394 + $0x10] sm:$0xff] %v6392
  %6398 = vst [vmem:[%s6394 + $0x18] sm:$0xff] %v6393
  %v6399 = vld [vmem:[%s4880 + $0x28] sm:$0xff]
  %v6400 = vld [vmem:[%s4880 + $0x60] sm:$0xff]
  %v6401 = vld [vmem:[%s4880 + $0x98] sm:$0xff]
  %v6402 = vld [vmem:[%s4880 + $0xd0] sm:$0xff]
  %v6403 = vmul.f32 %v6331, %v6399
  %v6404 = vmul.f32 %v6332, %v6400
  %v6405 = vmul.f32 %v6333, %v6401
  %v6406 = vmul.f32 %v6334, %v6402
  %s6407 = scalar_lea.vmem %s7, 160
  %6408 = vst [vmem:[%s6407] sm:$0xff] %v6403
  %6409 = vst [vmem:[%s6407 + $0x8] sm:$0xff] %v6404
  %6410 = vst [vmem:[%s6407 + $0x10] sm:$0xff] %v6405
  %6411 = vst [vmem:[%s6407 + $0x18] sm:$0xff] %v6406
  %v6412 = vld [vmem:[%s4880 + $0x30] sm:$0xff]
  %v6413 = vld [vmem:[%s4880 + $0x68] sm:$0xff]
  %v6414 = vld [vmem:[%s4880 + $0xa0] sm:$0xff]
  %v6415 = vld [vmem:[%s4880 + $0xd8] sm:$0xff]
  %v6416 = vmul.f32 %v6331, %v6412
  %v6417 = vmul.f32 %v6332, %v6413
  %v6418 = vmul.f32 %v6333, %v6414
  %v6419 = vmul.f32 %v6334, %v6415
  %s6420 = scalar_lea.vmem %s7, 192
  %6421 = vst [vmem:[%s6420] sm:$0xff] %v6416
  %6422 = vst [vmem:[%s6420 + $0x8] sm:$0xff] %v6417
  %6423 = vst [vmem:[%s6420 + $0x10] sm:$0xff] %v6418
  %6424 = vst [vmem:[%s6420 + $0x18] sm:$0xff] %v6419
  %v6425 = vld [vmem:[#allocation3 + $0x8] sm:$0xff]
  %v6426 = vld [vmem:[#allocation3 + $0x40] sm:$0xff]
  %v6427 = vld [vmem:[#allocation3 + $0x78] sm:$0xff]
  %v6428 = vld [vmem:[#allocation3 + $0xb0] sm:$0xff]
  %v6429 = vld [vmem:[%s4880] sm:$0xff]
  %v6430 = vld [vmem:[%s4880 + $0x38] sm:$0xff]
  %v6431 = vld [vmem:[%s4880 + $0x70] sm:$0xff]
  %v6432 = vld [vmem:[%s4880 + $0xa8] sm:$0xff]
  %v6433 = vmul.f32 %v6425, %v6429
  %v6434 = vmul.f32 %v6426, %v6430
  %v6435 = vmul.f32 %v6427, %v6431
  %v6436 = vmul.f32 %v6428, %v6432
  %s6437 = scalar_lea.vmem %s7, 224
  %6438 = vst [vmem:[%s6437] sm:$0xff] %v6433
  %6439 = vst [vmem:[%s6437 + $0x8] sm:$0xff] %v6434
  %6440 = vst [vmem:[%s6437 + $0x10] sm:$0xff] %v6435
  %6441 = vst [vmem:[%s6437 + $0x18] sm:$0xff] %v6436
  %v6442 = vld [vmem:[%s4880 + $0x8] sm:$0xff]
  %v6443 = vld [vmem:[%s4880 + $0x40] sm:$0xff]
  %v6444 = vld [vmem:[%s4880 + $0x78] sm:$0xff]
  %v6445 = vld [vmem:[%s4880 + $0xb0] sm:$0xff]
  %v6446 = vmul.f32 %v6425, %v6442
  %v6447 = vmul.f32 %v6426, %v6443
  %v6448 = vmul.f32 %v6427, %v6444
  %v6449 = vmul.f32 %v6428, %v6445
  %s6450 = scalar_lea.vmem %s7, 256
  %6451 = vst [vmem:[%s6450] sm:$0xff] %v6446
  %6452 = vst [vmem:[%s6450 + $0x8] sm:$0xff] %v6447
  %6453 = vst [vmem:[%s6450 + $0x10] sm:$0xff] %v6448
  %6454 = vst [vmem:[%s6450 + $0x18] sm:$0xff] %v6449
  %v6455 = vld [vmem:[%s4880 + $0x10] sm:$0xff]
  %v6456 = vld [vmem:[%s4880 + $0x48] sm:$0xff]
  %v6457 = vld [vmem:[%s4880 + $0x80] sm:$0xff]
  %v6458 = vld [vmem:[%s4880 + $0xb8] sm:$0xff]
  %v6459 = vmul.f32 %v6425, %v6455
  %v6460 = vmul.f32 %v6426, %v6456
  %v6461 = vmul.f32 %v6427, %v6457
  %v6462 = vmul.f32 %v6428, %v6458
  %s6463 = scalar_lea.vmem %s7, 288
  %6464 = vst [vmem:[%s6463] sm:$0xff] %v6459
  %6465 = vst [vmem:[%s6463 + $0x8] sm:$0xff] %v6460
  %6466 = vst [vmem:[%s6463 + $0x10] sm:$0xff] %v6461
  %6467 = vst [vmem:[%s6463 + $0x18] sm:$0xff] %v6462
  %v6468 = vld [vmem:[%s4880 + $0x18] sm:$0xff]
  %v6469 = vld [vmem:[%s4880 + $0x50] sm:$0xff]
  %v6470 = vld [vmem:[%s4880 + $0x88] sm:$0xff]
  %v6471 = vld [vmem:[%s4880 + $0xc0] sm:$0xff]
  %v6472 = vmul.f32 %v6425, %v6468
  %v6473 = vmul.f32 %v6426, %v6469
  %v6474 = vmul.f32 %v6427, %v6470
  %v6475 = vmul.f32 %v6428, %v6471
  %s6476 = scalar_lea.vmem %s7, 320
  %6477 = vst [vmem:[%s6476] sm:$0xff] %v6472
  %6478 = vst [vmem:[%s6476 + $0x8] sm:$0xff] %v6473
  %6479 = vst [vmem:[%s6476 + $0x10] sm:$0xff] %v6474
  %6480 = vst [vmem:[%s6476 + $0x18] sm:$0xff] %v6475
  %v6481 = vld [vmem:[%s4880 + $0x20] sm:$0xff]
  %v6482 = vld [vmem:[%s4880 + $0x58] sm:$0xff]
  %v6483 = vld [vmem:[%s4880 + $0x90] sm:$0xff]
  %v6484 = vld [vmem:[%s4880 + $0xc8] sm:$0xff]
  %v6485 = vmul.f32 %v6425, %v6481
  %v6486 = vmul.f32 %v6426, %v6482
  %v6487 = vmul.f32 %v6427, %v6483
  %v6488 = vmul.f32 %v6428, %v6484
  %s6489 = scalar_lea.vmem %s7, 352
  %6490 = vst [vmem:[%s6489] sm:$0xff] %v6485
  %6491 = vst [vmem:[%s6489 + $0x8] sm:$0xff] %v6486
  %6492 = vst [vmem:[%s6489 + $0x10] sm:$0xff] %v6487
  %6493 = vst [vmem:[%s6489 + $0x18] sm:$0xff] %v6488
  %v6494 = vld [vmem:[%s4880 + $0x28] sm:$0xff]
  %v6495 = vld [vmem:[%s4880 + $0x60] sm:$0xff]
  %v6496 = vld [vmem:[%s4880 + $0x98] sm:$0xff]
  %v6497 = vld [vmem:[%s4880 + $0xd0] sm:$0xff]
  %v6498 = vmul.f32 %v6425, %v6494
  %v6499 = vmul.f32 %v6426, %v6495
  %v6500 = vmul.f32 %v6427, %v6496
  %v6501 = vmul.f32 %v6428, %v6497
  %s6502 = scalar_lea.vmem %s7, 384
  %6503 = vst [vmem:[%s6502] sm:$0xff] %v6498
  %6504 = vst [vmem:[%s6502 + $0x8] sm:$0xff] %v6499
  %6505 = vst [vmem:[%s6502 + $0x10] sm:$0xff] %v6500
  %6506 = vst [vmem:[%s6502 + $0x18] sm:$0xff] %v6501
  %v6507 = vld [vmem:[%s4880 + $0x30] sm:$0xff]
  %v6508 = vld [vmem:[%s4880 + $0x68] sm:$0xff]
  %v6509 = vld [vmem:[%s4880 + $0xa0] sm:$0xff]
  %v6510 = vld [vmem:[%s4880 + $0xd8] sm:$0xff]
  %v6511 = vmul.f32 %v6425, %v6507
  %v6512 = vmul.f32 %v6426, %v6508
  %v6513 = vmul.f32 %v6427, %v6509
  %v6514 = vmul.f32 %v6428, %v6510
  %s6515 = scalar_lea.vmem %s7, 416
  %6516 = vst [vmem:[%s6515] sm:$0xff] %v6511
  %6517 = vst [vmem:[%s6515 + $0x8] sm:$0xff] %v6512
  %6518 = vst [vmem:[%s6515 + $0x10] sm:$0xff] %v6513
  %6519 = vst [vmem:[%s6515 + $0x18] sm:$0xff] %v6514
  %v6520 = vld [vmem:[#allocation3 + $0x10] sm:$0xff]
  %v6521 = vld [vmem:[#allocation3 + $0x48] sm:$0xff]
  %v6522 = vld [vmem:[#allocation3 + $0x80] sm:$0xff]
  %v6523 = vld [vmem:[#allocation3 + $0xb8] sm:$0xff]
  %v6524 = vld [vmem:[%s4880] sm:$0xff]
  %v6525 = vld [vmem:[%s4880 + $0x38] sm:$0xff]
  %v6526 = vld [vmem:[%s4880 + $0x70] sm:$0xff]
  %v6527 = vld [vmem:[%s4880 + $0xa8] sm:$0xff]
  %v6528 = vmul.f32 %v6520, %v6524
  %v6529 = vmul.f32 %v6521, %v6525
  %v6530 = vmul.f32 %v6522, %v6526
  %v6531 = vmul.f32 %v6523, %v6527
  %s6532 = scalar_lea.vmem %s7, 448
  %6533 = vst [vmem:[%s6532] sm:$0xff] %v6528
  %6534 = vst [vmem:[%s6532 + $0x8] sm:$0xff] %v6529
  %6535 = vst [vmem:[%s6532 + $0x10] sm:$0xff] %v6530
  %6536 = vst [vmem:[%s6532 + $0x18] sm:$0xff] %v6531
  %v6537 = vld [vmem:[%s4880 + $0x8] sm:$0xff]
  %v6538 = vld [vmem:[%s4880 + $0x40] sm:$0xff]
  %v6539 = vld [vmem:[%s4880 + $0x78] sm:$0xff]
  %v6540 = vld [vmem:[%s4880 + $0xb0] sm:$0xff]
  %v6541 = vmul.f32 %v6520, %v6537
  %v6542 = vmul.f32 %v6521, %v6538
  %v6543 = vmul.f32 %v6522, %v6539
  %v6544 = vmul.f32 %v6523, %v6540
  %s6545 = scalar_lea.vmem %s7, 480
  %6546 = vst [vmem:[%s6545] sm:$0xff] %v6541
  %6547 = vst [vmem:[%s6545 + $0x8] sm:$0xff] %v6542
  %6548 = vst [vmem:[%s6545 + $0x10] sm:$0xff] %v6543
  %6549 = vst [vmem:[%s6545 + $0x18] sm:$0xff] %v6544
  %v6550 = vld [vmem:[%s4880 + $0x10] sm:$0xff]
  %v6551 = vld [vmem:[%s4880 + $0x48] sm:$0xff]
  %v6552 = vld [vmem:[%s4880 + $0x80] sm:$0xff]
  %v6553 = vld [vmem:[%s4880 + $0xb8] sm:$0xff]
  %v6554 = vmul.f32 %v6520, %v6550
  %v6555 = vmul.f32 %v6521, %v6551
  %v6556 = vmul.f32 %v6522, %v6552
  %v6557 = vmul.f32 %v6523, %v6553
  %s6558 = scalar_lea.vmem %s7, 512
  %6559 = vst [vmem:[%s6558] sm:$0xff] %v6554
  %6560 = vst [vmem:[%s6558 + $0x8] sm:$0xff] %v6555
  %6561 = vst [vmem:[%s6558 + $0x10] sm:$0xff] %v6556
  %6562 = vst [vmem:[%s6558 + $0x18] sm:$0xff] %v6557
  %v6563 = vld [vmem:[%s4880 + $0x18] sm:$0xff]
  %v6564 = vld [vmem:[%s4880 + $0x50] sm:$0xff]
  %v6565 = vld [vmem:[%s4880 + $0x88] sm:$0xff]
  %v6566 = vld [vmem:[%s4880 + $0xc0] sm:$0xff]
  %v6567 = vmul.f32 %v6520, %v6563
  %v6568 = vmul.f32 %v6521, %v6564
  %v6569 = vmul.f32 %v6522, %v6565
  %v6570 = vmul.f32 %v6523, %v6566
  %s6571 = scalar_lea.vmem %s7, 544
  %6572 = vst [vmem:[%s6571] sm:$0xff] %v6567
  %6573 = vst [vmem:[%s6571 + $0x8] sm:$0xff] %v6568
  %6574 = vst [vmem:[%s6571 + $0x10] sm:$0xff] %v6569
  %6575 = vst [vmem:[%s6571 + $0x18] sm:$0xff] %v6570
  %v6576 = vld [vmem:[%s4880 + $0x20] sm:$0xff]
  %v6577 = vld [vmem:[%s4880 + $0x58] sm:$0xff]
  %v6578 = vld [vmem:[%s4880 + $0x90] sm:$0xff]
  %v6579 = vld [vmem:[%s4880 + $0xc8] sm:$0xff]
  %v6580 = vmul.f32 %v6520, %v6576
  %v6581 = vmul.f32 %v6521, %v6577
  %v6582 = vmul.f32 %v6522, %v6578
  %v6583 = vmul.f32 %v6523, %v6579
  %s6584 = scalar_lea.vmem %s7, 576
  %6585 = vst [vmem:[%s6584] sm:$0xff] %v6580
  %6586 = vst [vmem:[%s6584 + $0x8] sm:$0xff] %v6581
  %6587 = vst [vmem:[%s6584 + $0x10] sm:$0xff] %v6582
  %6588 = vst [vmem:[%s6584 + $0x18] sm:$0xff] %v6583
  %v6589 = vld [vmem:[%s4880 + $0x28] sm:$0xff]
  %v6590 = vld [vmem:[%s4880 + $0x60] sm:$0xff]
  %v6591 = vld [vmem:[%s4880 + $0x98] sm:$0xff]
  %v6592 = vld [vmem:[%s4880 + $0xd0] sm:$0xff]
  %v6593 = vmul.f32 %v6520, %v6589
  %v6594 = vmul.f32 %v6521, %v6590
  %v6595 = vmul.f32 %v6522, %v6591
  %v6596 = vmul.f32 %v6523, %v6592
  %s6597 = scalar_lea.vmem %s7, 608
  %6598 = vst [vmem:[%s6597] sm:$0xff] %v6593
  %6599 = vst [vmem:[%s6597 + $0x8] sm:$0xff] %v6594
  %6600 = vst [vmem:[%s6597 + $0x10] sm:$0xff] %v6595
  %6601 = vst [vmem:[%s6597 + $0x18] sm:$0xff] %v6596
  %v6602 = vld [vmem:[%s4880 + $0x30] sm:$0xff]
  %v6603 = vld [vmem:[%s4880 + $0x68] sm:$0xff]
  %v6604 = vld [vmem:[%s4880 + $0xa0] sm:$0xff]
  %v6605 = vld [vmem:[%s4880 + $0xd8] sm:$0xff]
  %v6606 = vmul.f32 %v6520, %v6602
  %v6607 = vmul.f32 %v6521, %v6603
  %v6608 = vmul.f32 %v6522, %v6604
  %v6609 = vmul.f32 %v6523, %v6605
  %s6610 = scalar_lea.vmem %s7, 640
  %6611 = vst [vmem:[%s6610] sm:$0xff] %v6606
  %6612 = vst [vmem:[%s6610 + $0x8] sm:$0xff] %v6607
  %6613 = vst [vmem:[%s6610 + $0x10] sm:$0xff] %v6608
  %6614 = vst [vmem:[%s6610 + $0x18] sm:$0xff] %v6609
  %v6615 = vld [vmem:[#allocation3 + $0x18] sm:$0xff]
  %v6616 = vld [vmem:[#allocation3 + $0x50] sm:$0xff]
  %v6617 = vld [vmem:[#allocation3 + $0x88] sm:$0xff]
  %v6618 = vld [vmem:[#allocation3 + $0xc0] sm:$0xff]
  %v6619 = vld [vmem:[%s4880] sm:$0xff]
  %v6620 = vld [vmem:[%s4880 + $0x38] sm:$0xff]
  %v6621 = vld [vmem:[%s4880 + $0x70] sm:$0xff]
  %v6622 = vld [vmem:[%s4880 + $0xa8] sm:$0xff]
  %v6623 = vmul.f32 %v6615, %v6619
  %v6624 = vmul.f32 %v6616, %v6620
  %v6625 = vmul.f32 %v6617, %v6621
  %v6626 = vmul.f32 %v6618, %v6622
  %s6627 = scalar_lea.vmem %s7, 672
  %6628 = vst [vmem:[%s6627] sm:$0xff] %v6623
  %6629 = vst [vmem:[%s6627 + $0x8] sm:$0xff] %v6624
  %6630 = vst [vmem:[%s6627 + $0x10] sm:$0xff] %v6625
  %6631 = vst [vmem:[%s6627 + $0x18] sm:$0xff] %v6626
  %v6632 = vld [vmem:[%s4880 + $0x8] sm:$0xff]
  %v6633 = vld [vmem:[%s4880 + $0x40] sm:$0xff]
  %v6634 = vld [vmem:[%s4880 + $0x78] sm:$0xff]
  %v6635 = vld [vmem:[%s4880 + $0xb0] sm:$0xff]
  %v6636 = vmul.f32 %v6615, %v6632
  %v6637 = vmul.f32 %v6616, %v6633
  %v6638 = vmul.f32 %v6617, %v6634
  %v6639 = vmul.f32 %v6618, %v6635
  %s6640 = scalar_lea.vmem %s7, 704
  %6641 = vst [vmem:[%s6640] sm:$0xff] %v6636
  %6642 = vst [vmem:[%s6640 + $0x8] sm:$0xff] %v6637
  %6643 = vst [vmem:[%s6640 + $0x10] sm:$0xff] %v6638
  %6644 = vst [vmem:[%s6640 + $0x18] sm:$0xff] %v6639
  %v6645 = vld [vmem:[%s4880 + $0x10] sm:$0xff]
  %v6646 = vld [vmem:[%s4880 + $0x48] sm:$0xff]
  %v6647 = vld [vmem:[%s4880 + $0x80] sm:$0xff]
  %v6648 = vld [vmem:[%s4880 + $0xb8] sm:$0xff]
  %v6649 = vmul.f32 %v6615, %v6645
  %v6650 = vmul.f32 %v6616, %v6646
  %v6651 = vmul.f32 %v6617, %v6647
  %v6652 = vmul.f32 %v6618, %v6648
  %s6653 = scalar_lea.vmem %s7, 736
  %6654 = vst [vmem:[%s6653] sm:$0xff] %v6649
  %6655 = vst [vmem:[%s6653 + $0x8] sm:$0xff] %v6650
  %6656 = vst [vmem:[%s6653 + $0x10] sm:$0xff] %v6651
  %6657 = vst [vmem:[%s6653 + $0x18] sm:$0xff] %v6652
  %v6658 = vld [vmem:[%s4880 + $0x18] sm:$0xff]
  %v6659 = vld [vmem:[%s4880 + $0x50] sm:$0xff]
  %v6660 = vld [vmem:[%s4880 + $0x88] sm:$0xff]
  %v6661 = vld [vmem:[%s4880 + $0xc0] sm:$0xff]
  %v6662 = vmul.f32 %v6615, %v6658
  %v6663 = vmul.f32 %v6616, %v6659
  %v6664 = vmul.f32 %v6617, %v6660
  %v6665 = vmul.f32 %v6618, %v6661
  %s6666 = scalar_lea.vmem %s7, 768
  %6667 = vst [vmem:[%s6666] sm:$0xff] %v6662
  %6668 = vst [vmem:[%s6666 + $0x8] sm:$0xff] %v6663
  %6669 = vst [vmem:[%s6666 + $0x10] sm:$0xff] %v6664
  %6670 = vst [vmem:[%s6666 + $0x18] sm:$0xff] %v6665
  %v6671 = vld [vmem:[%s4880 + $0x20] sm:$0xff]
  %v6672 = vld [vmem:[%s4880 + $0x58] sm:$0xff]
  %v6673 = vld [vmem:[%s4880 + $0x90] sm:$0xff]
  %v6674 = vld [vmem:[%s4880 + $0xc8] sm:$0xff]
  %v6675 = vmul.f32 %v6615, %v6671
  %v6676 = vmul.f32 %v6616, %v6672
  %v6677 = vmul.f32 %v6617, %v6673
  %v6678 = vmul.f32 %v6618, %v6674
  %s6679 = scalar_lea.vmem %s7, 800
  %6680 = vst [vmem:[%s6679] sm:$0xff] %v6675
  %6681 = vst [vmem:[%s6679 + $0x8] sm:$0xff] %v6676
  %6682 = vst [vmem:[%s6679 + $0x10] sm:$0xff] %v6677
  %6683 = vst [vmem:[%s6679 + $0x18] sm:$0xff] %v6678
  %v6684 = vld [vmem:[%s4880 + $0x28] sm:$0xff]
  %v6685 = vld [vmem:[%s4880 + $0x60] sm:$0xff]
  %v6686 = vld [vmem:[%s4880 + $0x98] sm:$0xff]
  %v6687 = vld [vmem:[%s4880 + $0xd0] sm:$0xff]
  %v6688 = vmul.f32 %v6615, %v6684
  %v6689 = vmul.f32 %v6616, %v6685
  %v6690 = vmul.f32 %v6617, %v6686
  %v6691 = vmul.f32 %v6618, %v6687
  %s6692 = scalar_lea.vmem %s7, 832
  %6693 = vst [vmem:[%s6692] sm:$0xff] %v6688
  %6694 = vst [vmem:[%s6692 + $0x8] sm:$0xff] %v6689
  %6695 = vst [vmem:[%s6692 + $0x10] sm:$0xff] %v6690
  %6696 = vst [vmem:[%s6692 + $0x18] sm:$0xff] %v6691
  %v6697 = vld [vmem:[%s4880 + $0x30] sm:$0xff]
  %v6698 = vld [vmem:[%s4880 + $0x68] sm:$0xff]
  %v6699 = vld [vmem:[%s4880 + $0xa0] sm:$0xff]
  %v6700 = vld [vmem:[%s4880 + $0xd8] sm:$0xff]
  %v6701 = vmul.f32 %v6615, %v6697
  %v6702 = vmul.f32 %v6616, %v6698
  %v6703 = vmul.f32 %v6617, %v6699
  %v6704 = vmul.f32 %v6618, %v6700
  %s6705 = scalar_lea.vmem %s7, 864
  %6706 = vst [vmem:[%s6705] sm:$0xff] %v6701
  %6707 = vst [vmem:[%s6705 + $0x8] sm:$0xff] %v6702
  %6708 = vst [vmem:[%s6705 + $0x10] sm:$0xff] %v6703
  %6709 = vst [vmem:[%s6705 + $0x18] sm:$0xff] %v6704
  %v6710 = vld [vmem:[#allocation3 + $0x20] sm:$0xff]
  %v6711 = vld [vmem:[#allocation3 + $0x58] sm:$0xff]
  %v6712 = vld [vmem:[#allocation3 + $0x90] sm:$0xff]
  %v6713 = vld [vmem:[#allocation3 + $0xc8] sm:$0xff]
  %v6714 = vld [vmem:[%s4880] sm:$0xff]
  %v6715 = vld [vmem:[%s4880 + $0x38] sm:$0xff]
  %v6716 = vld [vmem:[%s4880 + $0x70] sm:$0xff]
  %v6717 = vld [vmem:[%s4880 + $0xa8] sm:$0xff]
  %v6718 = vmul.f32 %v6710, %v6714
  %v6719 = vmul.f32 %v6711, %v6715
  %v6720 = vmul.f32 %v6712, %v6716
  %v6721 = vmul.f32 %v6713, %v6717
  %s6722 = scalar_lea.vmem %s7, 896
  %6723 = vst [vmem:[%s6722] sm:$0xff] %v6718
  %6724 = vst [vmem:[%s6722 + $0x8] sm:$0xff] %v6719
  %6725 = vst [vmem:[%s6722 + $0x10] sm:$0xff] %v6720
  %6726 = vst [vmem:[%s6722 + $0x18] sm:$0xff] %v6721
  %v6727 = vld [vmem:[%s4880 + $0x8] sm:$0xff]
  %v6728 = vld [vmem:[%s4880 + $0x40] sm:$0xff]
  %v6729 = vld [vmem:[%s4880 + $0x78] sm:$0xff]
  %v6730 = vld [vmem:[%s4880 + $0xb0] sm:$0xff]
  %v6731 = vmul.f32 %v6710, %v6727
  %v6732 = vmul.f32 %v6711, %v6728
  %v6733 = vmul.f32 %v6712, %v6729
  %v6734 = vmul.f32 %v6713, %v6730
  %s6735 = scalar_lea.vmem %s7, 928
  %6736 = vst [vmem:[%s6735] sm:$0xff] %v6731
  %6737 = vst [vmem:[%s6735 + $0x8] sm:$0xff] %v6732
  %6738 = vst [vmem:[%s6735 + $0x10] sm:$0xff] %v6733
  %6739 = vst [vmem:[%s6735 + $0x18] sm:$0xff] %v6734
  %v6740 = vld [vmem:[%s4880 + $0x10] sm:$0xff]
  %v6741 = vld [vmem:[%s4880 + $0x48] sm:$0xff]
  %v6742 = vld [vmem:[%s4880 + $0x80] sm:$0xff]
  %v6743 = vld [vmem:[%s4880 + $0xb8] sm:$0xff]
  %v6744 = vmul.f32 %v6710, %v6740
  %v6745 = vmul.f32 %v6711, %v6741
  %v6746 = vmul.f32 %v6712, %v6742
  %v6747 = vmul.f32 %v6713, %v6743
  %s6748 = scalar_lea.vmem %s7, 960
  %6749 = vst [vmem:[%s6748] sm:$0xff] %v6744
  %6750 = vst [vmem:[%s6748 + $0x8] sm:$0xff] %v6745
  %6751 = vst [vmem:[%s6748 + $0x10] sm:$0xff] %v6746
  %6752 = vst [vmem:[%s6748 + $0x18] sm:$0xff] %v6747
  %v6753 = vld [vmem:[%s4880 + $0x18] sm:$0xff]
  %v6754 = vld [vmem:[%s4880 + $0x50] sm:$0xff]
  %v6755 = vld [vmem:[%s4880 + $0x88] sm:$0xff]
  %v6756 = vld [vmem:[%s4880 + $0xc0] sm:$0xff]
  %v6757 = vmul.f32 %v6710, %v6753
  %v6758 = vmul.f32 %v6711, %v6754
  %v6759 = vmul.f32 %v6712, %v6755
  %v6760 = vmul.f32 %v6713, %v6756
  %s6761 = scalar_lea.vmem %s7, 992
  %6762 = vst [vmem:[%s6761] sm:$0xff] %v6757
  %6763 = vst [vmem:[%s6761 + $0x8] sm:$0xff] %v6758
  %6764 = vst [vmem:[%s6761 + $0x10] sm:$0xff] %v6759
  %6765 = vst [vmem:[%s6761 + $0x18] sm:$0xff] %v6760
  %v6766 = vld [vmem:[%s4880 + $0x20] sm:$0xff]
  %v6767 = vld [vmem:[%s4880 + $0x58] sm:$0xff]
  %v6768 = vld [vmem:[%s4880 + $0x90] sm:$0xff]
  %v6769 = vld [vmem:[%s4880 + $0xc8] sm:$0xff]
  %v6770 = vmul.f32 %v6710, %v6766
  %v6771 = vmul.f32 %v6711, %v6767
  %v6772 = vmul.f32 %v6712, %v6768
  %v6773 = vmul.f32 %v6713, %v6769
  %s6774 = scalar_lea.vmem %s7, 1024
  %6775 = vst [vmem:[%s6774] sm:$0xff] %v6770
  %6776 = vst [vmem:[%s6774 + $0x8] sm:$0xff] %v6771
  %6777 = vst [vmem:[%s6774 + $0x10] sm:$0xff] %v6772
  %6778 = vst [vmem:[%s6774 + $0x18] sm:$0xff] %v6773
  %v6779 = vld [vmem:[%s4880 + $0x28] sm:$0xff]
  %v6780 = vld [vmem:[%s4880 + $0x60] sm:$0xff]
  %v6781 = vld [vmem:[%s4880 + $0x98] sm:$0xff]
  %v6782 = vld [vmem:[%s4880 + $0xd0] sm:$0xff]
  %v6783 = vmul.f32 %v6710, %v6779
  %v6784 = vmul.f32 %v6711, %v6780
  %v6785 = vmul.f32 %v6712, %v6781
  %v6786 = vmul.f32 %v6713, %v6782
  %s6787 = scalar_lea.vmem %s7, 1056
  %6788 = vst [vmem:[%s6787] sm:$0xff] %v6783
  %6789 = vst [vmem:[%s6787 + $0x8] sm:$0xff] %v6784
  %6790 = vst [vmem:[%s6787 + $0x10] sm:$0xff] %v6785
  %6791 = vst [vmem:[%s6787 + $0x18] sm:$0xff] %v6786
  %v6792 = vld [vmem:[%s4880 + $0x30] sm:$0xff]
  %v6793 = vld [vmem:[%s4880 + $0x68] sm:$0xff]
  %v6794 = vld [vmem:[%s4880 + $0xa0] sm:$0xff]
  %v6795 = vld [vmem:[%s4880 + $0xd8] sm:$0xff]
  %v6796 = vmul.f32 %v6710, %v6792
  %v6797 = vmul.f32 %v6711, %v6793
  %v6798 = vmul.f32 %v6712, %v6794
  %v6799 = vmul.f32 %v6713, %v6795
  %s6800 = scalar_lea.vmem %s7, 1088
  %6801 = vst [vmem:[%s6800] sm:$0xff] %v6796
  %6802 = vst [vmem:[%s6800 + $0x8] sm:$0xff] %v6797
  %6803 = vst [vmem:[%s6800 + $0x10] sm:$0xff] %v6798
  %6804 = vst [vmem:[%s6800 + $0x18] sm:$0xff] %v6799
  %v6805 = vld [vmem:[#allocation3 + $0x28] sm:$0xff]
  %v6806 = vld [vmem:[#allocation3 + $0x60] sm:$0xff]
  %v6807 = vld [vmem:[#allocation3 + $0x98] sm:$0xff]
  %v6808 = vld [vmem:[#allocation3 + $0xd0] sm:$0xff]
  %v6809 = vld [vmem:[%s4880] sm:$0xff]
  %v6810 = vld [vmem:[%s4880 + $0x38] sm:$0xff]
  %v6811 = vld [vmem:[%s4880 + $0x70] sm:$0xff]
  %v6812 = vld [vmem:[%s4880 + $0xa8] sm:$0xff]
  %v6813 = vmul.f32 %v6805, %v6809
  %v6814 = vmul.f32 %v6806, %v6810
  %v6815 = vmul.f32 %v6807, %v6811
  %v6816 = vmul.f32 %v6808, %v6812
  %s6817 = scalar_lea.vmem %s7, 1120
  %6818 = vst [vmem:[%s6817] sm:$0xff] %v6813
  %6819 = vst [vmem:[%s6817 + $0x8] sm:$0xff] %v6814
  %6820 = vst [vmem:[%s6817 + $0x10] sm:$0xff] %v6815
  %6821 = vst [vmem:[%s6817 + $0x18] sm:$0xff] %v6816
  %v6822 = vld [vmem:[%s4880 + $0x8] sm:$0xff]
  %v6823 = vld [vmem:[%s4880 + $0x40] sm:$0xff]
  %v6824 = vld [vmem:[%s4880 + $0x78] sm:$0xff]
  %v6825 = vld [vmem:[%s4880 + $0xb0] sm:$0xff]
  %v6826 = vmul.f32 %v6805, %v6822
  %v6827 = vmul.f32 %v6806, %v6823
  %v6828 = vmul.f32 %v6807, %v6824
  %v6829 = vmul.f32 %v6808, %v6825
  %s6830 = scalar_lea.vmem %s7, 1152
  %6831 = vst [vmem:[%s6830] sm:$0xff] %v6826
  %6832 = vst [vmem:[%s6830 + $0x8] sm:$0xff] %v6827
  %6833 = vst [vmem:[%s6830 + $0x10] sm:$0xff] %v6828
  %6834 = vst [vmem:[%s6830 + $0x18] sm:$0xff] %v6829
  %v6835 = vld [vmem:[%s4880 + $0x10] sm:$0xff]
  %v6836 = vld [vmem:[%s4880 + $0x48] sm:$0xff]
  %v6837 = vld [vmem:[%s4880 + $0x80] sm:$0xff]
  %v6838 = vld [vmem:[%s4880 + $0xb8] sm:$0xff]
  %v6839 = vmul.f32 %v6805, %v6835
  %v6840 = vmul.f32 %v6806, %v6836
  %v6841 = vmul.f32 %v6807, %v6837
  %v6842 = vmul.f32 %v6808, %v6838
  %s6843 = scalar_lea.vmem %s7, 1184
  %6844 = vst [vmem:[%s6843] sm:$0xff] %v6839
  %6845 = vst [vmem:[%s6843 + $0x8] sm:$0xff] %v6840
  %6846 = vst [vmem:[%s6843 + $0x10] sm:$0xff] %v6841
  %6847 = vst [vmem:[%s6843 + $0x18] sm:$0xff] %v6842
  %v6848 = vld [vmem:[%s4880 + $0x18] sm:$0xff]
  %v6849 = vld [vmem:[%s4880 + $0x50] sm:$0xff]
  %v6850 = vld [vmem:[%s4880 + $0x88] sm:$0xff]
  %v6851 = vld [vmem:[%s4880 + $0xc0] sm:$0xff]
  %v6852 = vmul.f32 %v6805, %v6848
  %v6853 = vmul.f32 %v6806, %v6849
  %v6854 = vmul.f32 %v6807, %v6850
  %v6855 = vmul.f32 %v6808, %v6851
  %s6856 = scalar_lea.vmem %s7, 1216
  %6857 = vst [vmem:[%s6856] sm:$0xff] %v6852
  %6858 = vst [vmem:[%s6856 + $0x8] sm:$0xff] %v6853
  %6859 = vst [vmem:[%s6856 + $0x10] sm:$0xff] %v6854
  %6860 = vst [vmem:[%s6856 + $0x18] sm:$0xff] %v6855
  %v6861 = vld [vmem:[%s4880 + $0x20] sm:$0xff]
  %v6862 = vld [vmem:[%s4880 + $0x58] sm:$0xff]
  %v6863 = vld [vmem:[%s4880 + $0x90] sm:$0xff]
  %v6864 = vld [vmem:[%s4880 + $0xc8] sm:$0xff]
  %v6865 = vmul.f32 %v6805, %v6861
  %v6866 = vmul.f32 %v6806, %v6862
  %v6867 = vmul.f32 %v6807, %v6863
  %v6868 = vmul.f32 %v6808, %v6864
  %s6869 = scalar_lea.vmem %s7, 1248
  %6870 = vst [vmem:[%s6869] sm:$0xff] %v6865
  %6871 = vst [vmem:[%s6869 + $0x8] sm:$0xff] %v6866
  %6872 = vst [vmem:[%s6869 + $0x10] sm:$0xff] %v6867
  %6873 = vst [vmem:[%s6869 + $0x18] sm:$0xff] %v6868
  %v6874 = vld [vmem:[%s4880 + $0x28] sm:$0xff]
  %v6875 = vld [vmem:[%s4880 + $0x60] sm:$0xff]
  %v6876 = vld [vmem:[%s4880 + $0x98] sm:$0xff]
  %v6877 = vld [vmem:[%s4880 + $0xd0] sm:$0xff]
  %v6878 = vmul.f32 %v6805, %v6874
  %v6879 = vmul.f32 %v6806, %v6875
  %v6880 = vmul.f32 %v6807, %v6876
  %v6881 = vmul.f32 %v6808, %v6877
  %s6882 = scalar_lea.vmem %s7, 1280
  %6883 = vst [vmem:[%s6882] sm:$0xff] %v6878
  %6884 = vst [vmem:[%s6882 + $0x8] sm:$0xff] %v6879
  %6885 = vst [vmem:[%s6882 + $0x10] sm:$0xff] %v6880
  %6886 = vst [vmem:[%s6882 + $0x18] sm:$0xff] %v6881
  %v6887 = vld [vmem:[%s4880 + $0x30] sm:$0xff]
  %v6888 = vld [vmem:[%s4880 + $0x68] sm:$0xff]
  %v6889 = vld [vmem:[%s4880 + $0xa0] sm:$0xff]
  %v6890 = vld [vmem:[%s4880 + $0xd8] sm:$0xff]
  %v6891 = vmul.f32 %v6805, %v6887
  %v6892 = vmul.f32 %v6806, %v6888
  %v6893 = vmul.f32 %v6807, %v6889
  %v6894 = vmul.f32 %v6808, %v6890
  %s6895 = scalar_lea.vmem %s7, 1312
  %6896 = vst [vmem:[%s6895] sm:$0xff] %v6891
  %6897 = vst [vmem:[%s6895 + $0x8] sm:$0xff] %v6892
  %6898 = vst [vmem:[%s6895 + $0x10] sm:$0xff] %v6893
  %6899 = vst [vmem:[%s6895 + $0x18] sm:$0xff] %v6894
  %v6900 = vld [vmem:[#allocation3 + $0x30] sm:$0xff]
  %v6901 = vld [vmem:[#allocation3 + $0x68] sm:$0xff]
  %v6902 = vld [vmem:[#allocation3 + $0xa0] sm:$0xff]
  %v6903 = vld [vmem:[#allocation3 + $0xd8] sm:$0xff]
  %v6904 = vld [vmem:[%s4880] sm:$0xff]
  %v6905 = vld [vmem:[%s4880 + $0x38] sm:$0xff]
  %v6906 = vld [vmem:[%s4880 + $0x70] sm:$0xff]
  %v6907 = vld [vmem:[%s4880 + $0xa8] sm:$0xff]
  %v6908 = vmul.f32 %v6900, %v6904
  %v6909 = vmul.f32 %v6901, %v6905
  %v6910 = vmul.f32 %v6902, %v6906
  %v6911 = vmul.f32 %v6903, %v6907
  %s6912 = scalar_lea.vmem %s7, 1344
  %6913 = vst [vmem:[%s6912] sm:$0xff] %v6908
  %6914 = vst [vmem:[%s6912 + $0x8] sm:$0xff] %v6909
  %6915 = vst [vmem:[%s6912 + $0x10] sm:$0xff] %v6910
  %6916 = vst [vmem:[%s6912 + $0x18] sm:$0xff] %v6911
  %v6917 = vld [vmem:[%s4880 + $0x8] sm:$0xff]
  %v6918 = vld [vmem:[%s4880 + $0x40] sm:$0xff]
  %v6919 = vld [vmem:[%s4880 + $0x78] sm:$0xff]
  %v6920 = vld [vmem:[%s4880 + $0xb0] sm:$0xff]
  %v6921 = vmul.f32 %v6900, %v6917
  %v6922 = vmul.f32 %v6901, %v6918
  %v6923 = vmul.f32 %v6902, %v6919
  %v6924 = vmul.f32 %v6903, %v6920
  %s6925 = scalar_lea.vmem %s7, 1376
  %6926 = vst [vmem:[%s6925] sm:$0xff] %v6921
  %6927 = vst [vmem:[%s6925 + $0x8] sm:$0xff] %v6922
  %6928 = vst [vmem:[%s6925 + $0x10] sm:$0xff] %v6923
  %6929 = vst [vmem:[%s6925 + $0x18] sm:$0xff] %v6924
  %v6930 = vld [vmem:[%s4880 + $0x10] sm:$0xff]
  %v6931 = vld [vmem:[%s4880 + $0x48] sm:$0xff]
  %v6932 = vld [vmem:[%s4880 + $0x80] sm:$0xff]
  %v6933 = vld [vmem:[%s4880 + $0xb8] sm:$0xff]
  %v6934 = vmul.f32 %v6900, %v6930
  %v6935 = vmul.f32 %v6901, %v6931
  %v6936 = vmul.f32 %v6902, %v6932
  %v6937 = vmul.f32 %v6903, %v6933
  %s6938 = scalar_lea.vmem %s7, 1408
  %6939 = vst [vmem:[%s6938] sm:$0xff] %v6934
  %6940 = vst [vmem:[%s6938 + $0x8] sm:$0xff] %v6935
  %6941 = vst [vmem:[%s6938 + $0x10] sm:$0xff] %v6936
  %6942 = vst [vmem:[%s6938 + $0x18] sm:$0xff] %v6937
  %v6943 = vld [vmem:[%s4880 + $0x18] sm:$0xff]
  %v6944 = vld [vmem:[%s4880 + $0x50] sm:$0xff]
  %v6945 = vld [vmem:[%s4880 + $0x88] sm:$0xff]
  %v6946 = vld [vmem:[%s4880 + $0xc0] sm:$0xff]
  %v6947 = vmul.f32 %v6900, %v6943
  %v6948 = vmul.f32 %v6901, %v6944
  %v6949 = vmul.f32 %v6902, %v6945
  %v6950 = vmul.f32 %v6903, %v6946
  %s6951 = scalar_lea.vmem %s7, 1440
  %6952 = vst [vmem:[%s6951] sm:$0xff] %v6947
  %6953 = vst [vmem:[%s6951 + $0x8] sm:$0xff] %v6948
  %6954 = vst [vmem:[%s6951 + $0x10] sm:$0xff] %v6949
  %6955 = vst [vmem:[%s6951 + $0x18] sm:$0xff] %v6950
  %v6956 = vld [vmem:[%s4880 + $0x20] sm:$0xff]
  %v6957 = vld [vmem:[%s4880 + $0x58] sm:$0xff]
  %v6958 = vld [vmem:[%s4880 + $0x90] sm:$0xff]
  %v6959 = vld [vmem:[%s4880 + $0xc8] sm:$0xff]
  %v6960 = vmul.f32 %v6900, %v6956
  %v6961 = vmul.f32 %v6901, %v6957
  %v6962 = vmul.f32 %v6902, %v6958
  %v6963 = vmul.f32 %v6903, %v6959
  %s6964 = scalar_lea.vmem %s7, 1472
  %6965 = vst [vmem:[%s6964] sm:$0xff] %v6960
  %6966 = vst [vmem:[%s6964 + $0x8] sm:$0xff] %v6961
  %6967 = vst [vmem:[%s6964 + $0x10] sm:$0xff] %v6962
  %6968 = vst [vmem:[%s6964 + $0x18] sm:$0xff] %v6963
  %v6969 = vld [vmem:[%s4880 + $0x28] sm:$0xff]
  %v6970 = vld [vmem:[%s4880 + $0x60] sm:$0xff]
  %v6971 = vld [vmem:[%s4880 + $0x98] sm:$0xff]
  %v6972 = vld [vmem:[%s4880 + $0xd0] sm:$0xff]
  %v6973 = vmul.f32 %v6900, %v6969
  %v6974 = vmul.f32 %v6901, %v6970
  %v6975 = vmul.f32 %v6902, %v6971
  %v6976 = vmul.f32 %v6903, %v6972
  %s6977 = scalar_lea.vmem %s7, 1504
  %6978 = vst [vmem:[%s6977] sm:$0xff] %v6973
  %6979 = vst [vmem:[%s6977 + $0x8] sm:$0xff] %v6974
  %6980 = vst [vmem:[%s6977 + $0x10] sm:$0xff] %v6975
  %6981 = vst [vmem:[%s6977 + $0x18] sm:$0xff] %v6976
  %v6982 = vld [vmem:[%s4880 + $0x30] sm:$0xff]
  %v6983 = vld [vmem:[%s4880 + $0x68] sm:$0xff]
  %v6984 = vld [vmem:[%s4880 + $0xa0] sm:$0xff]
  %v6985 = vld [vmem:[%s4880 + $0xd8] sm:$0xff]
  %v6986 = vmul.f32 %v6900, %v6982
  %v6987 = vmul.f32 %v6901, %v6983
  %v6988 = vmul.f32 %v6902, %v6984
  %v6989 = vmul.f32 %v6903, %v6985
  %s6990 = scalar_lea.vmem %s7, 1536
  %6991 = vst [vmem:[%s6990] sm:$0xff] %v6986
  %6992 = vst [vmem:[%s6990 + $0x8] sm:$0xff] %v6987
  %6993 = vst [vmem:[%s6990 + $0x10] sm:$0xff] %v6988
  %6994 = vst [vmem:[%s6990 + $0x18] sm:$0xff] %v6989
  // Predicated region
  $region30: #{coordinate_attention.1} parent=0 // pred_check
    _
  $region31: #{coordinate_attention.1} parent=0 // pred_check_branch
    %6996 = sbr.rel (0) target = $region33
  $region32: #{coordinate_attention.1} parent=0 // pred_region
    _
  $region33: #{coordinate_attention.1} parent=0 // pred_fallthru
    _
  // Predicated region
  $region34: #{coordinate_attention.1} parent=0 // pred_check
    _
  $region35: #{coordinate_attention.1} parent=0 // pred_check_branch
    %6998 = sbr.rel (0) target = $region37
  $region36: #{coordinate_attention.1} parent=0 // pred_region
    _
  $region37: #{coordinate_attention.1} parent=0 // pred_fallthru
    _

</llo_original>
